<compile_context>
chip_gen: v7x
topology: tpu7x:2x2x1
jax: 0.10.0
libtpu: 0.0.40
codegen_flags: <defaults>
</compile_context>

<pallas_src>
import functools

import jax
import jax.numpy as jnp
from jax import lax
from jax.experimental import pallas as pl
from jax.experimental.pallas import tpu as pltpu

BN_EPS = 1e-5
OUT_LANES = 128   # lane-dense packed (policy | value | unused) output row
CIN_PAD = 8       # minimum K padding for the initial conv taps
HEAD_CH = 8       # padded head channels: 0,1 = policy conv, 2 = value conv


# ----------------------------------------------------------------------------
# Fused whole-network kernel: one grid step == one tile of B batch samples.
# ----------------------------------------------------------------------------
def _net_kernel(x_ref, mask_ref, sel_ref,
                w0_ref, s0_ref, b0_ref,
                w1_ref, s1_ref, b1_ref,
                w2_ref, s2_ref, b2_ref,
                whT_ref, sh_ref, bh_ref,
                wp0_ref, wp1_ref, bp_ref,
                wv1_ref, bv1_ref, wv2_ref, bv2_ref,
                out_ref, pad_ref,
                *, guard, wpad, rows, res_blocks, legal_moves):
    g, M = guard, rows
    deltas = [dh * wpad + dw for dh in (-1, 0, 1) for dw in (-1, 0, 1)]
    row_mask = mask_ref[...]                     # (M, 1) f32: 1 on board rows

    # Outer guard rows of the bf16 activation scratch must be zero.  Interior
    # guard / separator rows are kept zero by the masked writes below.
    zero_g = jnp.zeros((g, pad_ref.shape[-1]), pad_ref.dtype)
    pad_ref[0:g, :] = zero_g
    pad_ref[g + M:g + M + g, :] = zero_g

    def conv3x3(read, w_ref, scale, shift, residual=None):
        """3x3 'same' conv as 9 shifted-window bf16 MXU dots, f32 accumulation."""
        acc = jnp.zeros((M, w_ref.shape[-1]), jnp.float32)
        for t, d in enumerate(deltas):
            acc = acc + jnp.dot(read(g + d), w_ref[t],
                                preferred_element_type=jnp.float32)
        y = acc * scale + shift                  # folded conv-bias + BN
        if residual is not None:
            y = y + residual
        return jnp.maximum(y, 0.0) * row_mask    # zero separator / guard rows

    # ---- initial: conv3x3 + BN + ReLU (input arrives pre-guarded, bf16) -----
    xg = x_ref[0]                                # (M + 2*guard, cin_pad) bf16
    act = conv3x3(lambda r: xg[r:r + M, :], w0_ref,
                  s0_ref[...], b0_ref[...])      # (M, C) f32

    # ---- residual tower: SAME shared block weights every iteration ----------
    def swin(r):
        return pad_ref[r:r + M, :]

    # TODO(synk): switch to lax.fori_loop carrying `act` if res_blocks gets large.
    for _ in range(res_blocks):
        pad_ref[g:g + M, :] = act.astype(jnp.bfloat16)
        h1 = conv3x3(swin, w1_ref, s1_ref[...], b1_ref[...])
        pad_ref[g:g + M, :] = h1.astype(jnp.bfloat16)
        act = conv3x3(swin, w2_ref, s2_ref[...], b2_ref[...], residual=act)

    # ---- heads: transposed fused 1x1 convs + MXU FC layers with B rows -------
    # hdT[c, m] = head channel c at stacked position m (positions along lanes).
    hdT = lax.dot_general(whT_ref[...], act.astype(jnp.bfloat16),
                          dimension_numbers=(((1,), (1,)), ((), ())),
                          preferred_element_type=jnp.float32)       # (HEAD_CH, M)
    hdT = jnp.maximum(hdT * sh_ref[...] + bh_ref[...], 0.0)

    sel = sel_ref[...]                           # (B, M): 1 on sample b's board rows
    a0 = (hdT[0:1, :] * sel).astype(jnp.bfloat16)
    a1 = (hdT[1:2, :] * sel).astype(jnp.bfloat16)
    a2 = (hdT[2:3, :] * sel).astype(jnp.bfloat16)

    pol = (jnp.dot(a0, wp0_ref[...], preferred_element_type=jnp.float32)
           + jnp.dot(a1, wp1_ref[...], preferred_element_type=jnp.float32)
           + bp_ref[...])                                           # (B, legal)
    v1 = jnp.maximum(jnp.dot(a2, wv1_ref[...],
                             preferred_element_type=jnp.float32)
                     + bv1_ref[...], 0.0)                           # (B, 256)
    val = jnp.tanh(jnp.sum(v1 * wv2_ref[...], axis=1, keepdims=True)
                   + bv2_ref[...])                                  # (B, 1)

    # Direct slice writes into a pre-zeroed lane-dense (B, 128) output block.
    out_ref[...] = jnp.zeros(out_ref.shape, out_ref.dtype)
    out_ref[:, 0:legal_moves] = pol
    out_ref[:, legal_moves:legal_moves + 1] = val


# ----------------------------------------------------------------------------
# Parameter folding / layout plumbing (wrapper side, weights only)
# ----------------------------------------------------------------------------
def _fold_bn(conv_b, bn):
    inv = bn["g"] / jnp.sqrt(bn["v"] + BN_EPS)
    return inv, (conv_b - bn["m"]) * inv + bn["b"]


def _conv3x3_taps(w, k_pad):
    """PyTorch (Cout, Cin, 3, 3) -> (9, k_pad, Cout) tap-major matrices."""
    cout, cin = w.shape[0], w.shape[1]
    wt = jnp.transpose(w, (2, 3, 1, 0)).reshape(9, cin, cout)
    if k_pad > cin:
        wt = jnp.pad(wt, ((0, 0), (0, k_pad - cin), (0, 0)))
    return wt


def forward(params, x_nchw, *, res_blocks, batch_tile=8):
    N, Cin, H, W = x_nchw.shape
    Wp = W + 1                      # board row + zero separator column
    Pp = H * Wp                     # padded positions per sample
    g = Wp + 1                      # guard rows (max tap shift magnitude)
    stride = Pp + g                 # rows per sample in the stacked layout
    B = batch_tile
    n_pad = -(-N // B) * B
    T = n_pad // B                  # grid steps (>= 2 lets v7x use both cores)
    M = B * stride                  # stacked matmul M dimension per grid step
    R = M + 2 * g

    C = params["initial"]["conv_w"].shape[0]
    legal = params["policy"]["fc_w"].shape[0]
    vhid = params["value"]["fc1_w"].shape[0]
    cin_p = max(CIN_PAD, -(-Cin // 8) * 8)
    assert legal + 1 <= OUT_LANES

    # -- input: NCHW -> stacked (T, R, cin_p) bf16 with separator/guard zeros --
    x = jnp.transpose(x_nchw, (0, 2, 3, 1))                         # (N, H, W, Cin)
    x = jnp.pad(x, ((0, n_pad - N), (0, 0), (0, 1), (0, cin_p - Cin)))
    x = x.reshape(n_pad, Pp, cin_p)
    x = jnp.pad(x, ((0, 0), (0, g), (0, 0)))                        # trailing guard
    x = x.reshape(T, M, cin_p)
    x = jnp.pad(x, ((0, 0), (g, g), (0, 0))).astype(jnp.bfloat16)   # (T, R, cin_p)

    # -- board-row mask (M, 1) and per-sample selection mask (B, M) ------------
    m_idx = jnp.arange(M)
    within = m_idx % stride
    is_board = (within < Pp) & (within % Wp < W)
    row_mask = is_board.astype(jnp.float32).reshape(M, 1)
    sel = ((m_idx[None, :] // stride) == jnp.arange(B)[:, None]) & is_board[None, :]
    sel = sel.astype(jnp.float32)

    # -- trunk weights (bf16 MXU operands) + folded BN scale/shift (f32) -------
    p0, pb = params["initial"], params["block"]
    w0 = _conv3x3_taps(p0["conv_w"], cin_p).astype(jnp.bfloat16)
    s0, b0 = _fold_bn(p0["conv_b"], p0["bn"])
    w1 = _conv3x3_taps(pb["conv1_w"], C).astype(jnp.bfloat16)
    s1, b1 = _fold_bn(pb["conv1_b"], pb["bn1"])
    w2 = _conv3x3_taps(pb["conv2_w"], C).astype(jnp.bfloat16)
    s2, b2 = _fold_bn(pb["conv2_b"], pb["bn2"])

    # -- heads: transposed 1x1-conv weights + per-sample-tiled FC weights ------
    pol_p, val_p = params["policy"], params["value"]
    whT = jnp.concatenate(
        [pol_p["conv_w"].reshape(2, C), val_p["conv_w"].reshape(1, C),
         jnp.zeros((HEAD_CH - 3, C), jnp.float32)], axis=0).astype(jnp.bfloat16)
    sp, shp = _fold_bn(pol_p["conv_b"], pol_p["bn"])
    sv, shv = _fold_bn(val_p["conv_b"], val_p["bn"])
    zpad = jnp.zeros((HEAD_CH - 3,), jnp.float32)
    sh = jnp.concatenate([sp, sv, zpad]).reshape(HEAD_CH, 1)
    bh = jnp.concatenate([shp, shv, zpad]).reshape(HEAD_CH, 1)

    def _fold_fc(w_hwo):
        """(H, W, out) -> (stride, out) with zero separator/guard rows."""
        w = jnp.pad(w_hwo, ((0, 0), (0, 1), (0, 0))).reshape(Pp, w_hwo.shape[-1])
        return jnp.pad(w, ((0, g), (0, 0)))

    # PyTorch Flatten order (C, H, W) is folded into the FC weight layout.
    fcw = jnp.transpose(pol_p["fc_w"].reshape(legal, 2, H, W), (1, 2, 3, 0))
    wp0 = jnp.tile(_fold_fc(fcw[0]), (B, 1)).astype(jnp.bfloat16)    # (M, legal)
    wp1 = jnp.tile(_fold_fc(fcw[1]), (B, 1)).astype(jnp.bfloat16)
    bp = pol_p["fc_b"].reshape(1, legal)
    v1w = jnp.transpose(val_p["fc1_w"].reshape(vhid, H, W), (1, 2, 0))
    wv1 = jnp.tile(_fold_fc(v1w), (B, 1)).astype(jnp.bfloat16)       # (M, vhid)
    bv1 = val_p["fc1_b"].reshape(1, vhid)
    wv2 = val_p["fc2_w"].reshape(1, vhid)
    bv2 = val_p["fc2_b"].reshape(1, 1)

    consts = [row_mask, sel,
              w0, s0.reshape(1, C), b0.reshape(1, C),
              w1, s1.reshape(1, C), b1.reshape(1, C),
              w2, s2.reshape(1, C), b2.reshape(1, C),
              whT, sh, bh, wp0, wp1, bp, wv1, bv1, wv2, bv2]

    def _resident(a):
        nd = a.ndim
        return pl.BlockSpec(a.shape, lambda t: (0,) * nd)   # DMA'd once, stays in VMEM

    kernel = functools.partial(_net_kernel, guard=g, wpad=Wp, rows=M,
                               res_blocks=res_blocks, legal_moves=legal)

    out = pl.pallas_call(
        kernel,
        out_shape=jax.ShapeDtypeStruct((n_pad, OUT_LANES), jnp.float32),
        grid=(T,),
        in_specs=[pl.BlockSpec((1, R, cin_p), lambda t: (t, 0, 0))]
                 + [_resident(a) for a in consts],
        out_specs=pl.BlockSpec((B, OUT_LANES), lambda t: (t, 0)),
        scratch_shapes=[pltpu.VMEM((R, C), jnp.bfloat16)],
        compiler_params=pltpu.CompilerParams(
            dimension_semantics=("parallel",)),
    )(x, *consts)

    policy = out[:N, :legal]
    value = out[:N, legal:legal + 1]
    return policy, value


# ----------------------------------------------------------------------------
# Deterministic parameter construction (PyTorch shapes)
# ----------------------------------------------------------------------------
def init_params(key, hidden, cin, game_size, legal_moves):
    keys = iter(jax.random.split(key, 40))

    def conv(cout, cin_, k):
        fan_in = cin_ * k * k
        w = jax.random.normal(next(keys), (cout, cin_, k, k), jnp.float32) * (fan_in ** -0.5)
        b = jax.random.normal(next(keys), (cout,), jnp.float32) * 0.1
        return w, b

    def linear(out, inp):
        w = jax.random.normal(next(keys), (out, inp), jnp.float32) * (inp ** -0.5)
        b = jax.random.normal(next(keys), (out,), jnp.float32) * 0.1
        return w, b

    def bn(c):
        return dict(g=jnp.ones((c,), jnp.float32), b=jnp.zeros((c,), jnp.float32),
                    m=jnp.zeros((c,), jnp.float32), v=jnp.ones((c,), jnp.float32))

    params = {}
    w, b = conv(hidden, cin, 3)
    params["initial"] = dict(conv_w=w, conv_b=b, bn=bn(hidden))

    w1, b1 = conv(hidden, hidden, 3)
    w2, b2 = conv(hidden, hidden, 3)
    params["block"] = dict(conv1_w=w1, conv1_b=b1, bn1=bn(hidden),
                           conv2_w=w2, conv2_b=b2, bn2=bn(hidden))

    pw, pb = conv(2, hidden, 1)
    pfw, pfb = linear(legal_moves, 2 * game_size)
    params["policy"] = dict(conv_w=pw, conv_b=pb, bn=bn(2), fc_w=pfw, fc_b=pfb)

    vw, vb = conv(1, hidden, 1)
    vf1w, vf1b = linear(256, game_size)
    vf2w, vf2b = linear(1, 256)
    params["value"] = dict(conv_w=vw, conv_b=vb, bn=bn(1),
                           fc1_w=vf1w, fc1_b=vf1b, fc2_w=vf2w, fc2_b=vf2b)
    return params


if __name__ == "__main__":
    # Small shapes consistent with the module: 3x3 board (game_size=9),
    # 3 input planes, hidden=32, 2 residual blocks, 9 legal moves.
    # batch=16 with batch_tile=8 -> grid=(2,) so both v7x TensorCores are used.
    hidden, cin, res_blocks, side = 32, 3, 2, 3
    game_size = side * side
    legal_moves = 9
    batch = 16

    x = jax.random.normal(jax.random.PRNGKey(0), (batch, cin, side, side), jnp.float32)
    params = init_params(jax.random.PRNGKey(42), hidden, cin, game_size, legal_moves)

    fwd = jax.jit(functools.partial(forward, res_blocks=res_blocks, batch_tile=8))
    policy, value = fwd(params, x)
    jax.block_until_ready((policy, value))

    assert policy.shape == (batch, legal_moves), policy.shape
    assert value.shape == (batch, 1), value.shape
    assert policy.dtype == jnp.float32 and value.dtype == jnp.float32
    assert bool(jnp.all(jnp.isfinite(policy))) and bool(jnp.all(jnp.isfinite(value)))
    assert bool(jnp.all(jnp.abs(value) <= 1.0))   # tanh range
    print("KERNEL_OK")
</pallas_src>

<mosaic_0001>
module attributes {stable_mosaic.version = 11 : i64} {
  func.func @_net_kernel(%arg0: i32, %arg1: memref<1x146x8xbf16, #tpu.memory_space<vmem>>, %arg2: memref<136x1xf32, #tpu.memory_space<vmem>>, %arg3: memref<8x136xf32, #tpu.memory_space<vmem>>, %arg4: memref<9x8x32xbf16, #tpu.memory_space<vmem>>, %arg5: memref<1x32xf32, #tpu.memory_space<vmem>>, %arg6: memref<1x32xf32, #tpu.memory_space<vmem>>, %arg7: memref<9x32x32xbf16, #tpu.memory_space<vmem>>, %arg8: memref<1x32xf32, #tpu.memory_space<vmem>>, %arg9: memref<1x32xf32, #tpu.memory_space<vmem>>, %arg10: memref<9x32x32xbf16, #tpu.memory_space<vmem>>, %arg11: memref<1x32xf32, #tpu.memory_space<vmem>>, %arg12: memref<1x32xf32, #tpu.memory_space<vmem>>, %arg13: memref<8x32xbf16, #tpu.memory_space<vmem>>, %arg14: memref<8x1xf32, #tpu.memory_space<vmem>>, %arg15: memref<8x1xf32, #tpu.memory_space<vmem>>, %arg16: memref<136x9xbf16, #tpu.memory_space<vmem>>, %arg17: memref<136x9xbf16, #tpu.memory_space<vmem>>, %arg18: memref<1x9xf32, #tpu.memory_space<vmem>>, %arg19: memref<136x256xbf16, #tpu.memory_space<vmem>>, %arg20: memref<1x256xf32, #tpu.memory_space<vmem>>, %arg21: memref<1x256xf32, #tpu.memory_space<vmem>>, %arg22: memref<1x1xf32, #tpu.memory_space<vmem>>, %arg23: memref<8x128xf32, #tpu.memory_space<vmem>>, %arg24: memref<146x32xbf16, #tpu.memory_space<vmem>>) attributes {dimension_semantics = [#tpu.dimension_semantics<parallel>], iteration_bounds = array<i64: 2>, scalar_prefetch = 0 : i64, scratch_operands = 1 : i64, tpu.core_type = #tpu.core_type<tc>, window_params = [{transform_indices = @transform_0, window_bounds = array<i64: 1, 146, 8>}, {pipeline_mode = #tpu.pipeline_mode<synchronous>, transform_indices = @transform_1, window_bounds = array<i64: 136, 1>}, {pipeline_mode = #tpu.pipeline_mode<synchronous>, transform_indices = @transform_2, window_bounds = array<i64: 8, 136>}, {pipeline_mode = #tpu.pipeline_mode<synchronous>, transform_indices = @transform_3, window_bounds = array<i64: 9, 8, 32>}, {pipeline_mode = #tpu.pipeline_mode<synchronous>, transform_indices = @transform_4, window_bounds = array<i64: 1, 32>}, {pipeline_mode = #tpu.pipeline_mode<synchronous>, transform_indices = @transform_5, window_bounds = array<i64: 1, 32>}, {pipeline_mode = #tpu.pipeline_mode<synchronous>, transform_indices = @transform_6, window_bounds = array<i64: 9, 32, 32>}, {pipeline_mode = #tpu.pipeline_mode<synchronous>, transform_indices = @transform_7, window_bounds = array<i64: 1, 32>}, {pipeline_mode = #tpu.pipeline_mode<synchronous>, transform_indices = @transform_8, window_bounds = array<i64: 1, 32>}, {pipeline_mode = #tpu.pipeline_mode<synchronous>, transform_indices = @transform_9, window_bounds = array<i64: 9, 32, 32>}, {pipeline_mode = #tpu.pipeline_mode<synchronous>, transform_indices = @transform_10, window_bounds = array<i64: 1, 32>}, {pipeline_mode = #tpu.pipeline_mode<synchronous>, transform_indices = @transform_11, window_bounds = array<i64: 1, 32>}, {pipeline_mode = #tpu.pipeline_mode<synchronous>, transform_indices = @transform_12, window_bounds = array<i64: 8, 32>}, {pipeline_mode = #tpu.pipeline_mode<synchronous>, transform_indices = @transform_13, window_bounds = array<i64: 8, 1>}, {pipeline_mode = #tpu.pipeline_mode<synchronous>, transform_indices = @transform_14, window_bounds = array<i64: 8, 1>}, {pipeline_mode = #tpu.pipeline_mode<synchronous>, transform_indices = @transform_15, window_bounds = array<i64: 136, 9>}, {pipeline_mode = #tpu.pipeline_mode<synchronous>, transform_indices = @transform_16, window_bounds = array<i64: 136, 9>}, {pipeline_mode = #tpu.pipeline_mode<synchronous>, transform_indices = @transform_17, window_bounds = array<i64: 1, 9>}, {pipeline_mode = #tpu.pipeline_mode<synchronous>, transform_indices = @transform_18, window_bounds = array<i64: 136, 256>}, {pipeline_mode = #tpu.pipeline_mode<synchronous>, transform_indices = @transform_19, window_bounds = array<i64: 1, 256>}, {pipeline_mode = #tpu.pipeline_mode<synchronous>, transform_indices = @transform_20, window_bounds = array<i64: 1, 256>}, {pipeline_mode = #tpu.pipeline_mode<synchronous>, transform_indices = @transform_21, window_bounds = array<i64: 1, 1>}, {transform_indices = @transform_22, window_bounds = array<i64: 8, 128>}]} {
    %c0 = arith.constant 0 : index
    %c0_0 = arith.constant 0 : index
    %0 = vector.load %arg2[%c0, %c0_0] : memref<136x1xf32, #tpu.memory_space<vmem>>, vector<136x1xf32>
    %cst = arith.constant 0.000000e+00 : bf16
    %1 = vector.broadcast %cst : bf16 to vector<5x32xbf16>
    %c0_1 = arith.constant 0 : index
    %c0_2 = arith.constant 0 : index
    %2 = vector.load %arg24[%c0_1, %c0_2] : memref<146x32xbf16, #tpu.memory_space<vmem>>, vector<5x32xbf16>
    tpu.vector_store %arg24[%c0_1, %c0_2], %1 {strides = array<i32>} : memref<146x32xbf16, #tpu.memory_space<vmem>>, vector<5x32xbf16>,
    %c141 = arith.constant 141 : index
    %c0_3 = arith.constant 0 : index
    %3 = vector.load %arg24[%c141, %c0_3] : memref<146x32xbf16, #tpu.memory_space<vmem>>, vector<5x32xbf16>
    tpu.vector_store %arg24[%c141, %c0_3], %1 {strides = array<i32>} : memref<146x32xbf16, #tpu.memory_space<vmem>>, vector<5x32xbf16>,
    %c0_4 = arith.constant 0 : index
    %c0_5 = arith.constant 0 : index
    %c0_6 = arith.constant 0 : index
    %4 = vector.load %arg1[%c0_4, %c0_5, %c0_6] : memref<1x146x8xbf16, #tpu.memory_space<vmem>>, vector<1x146x8xbf16>
    %5 = vector.shape_cast %4 : vector<1x146x8xbf16> to vector<146x8xbf16>
    %c0_7 = arith.constant 0 : index
    %c0_8 = arith.constant 0 : index
    %6 = vector.load %arg5[%c0_7, %c0_8] : memref<1x32xf32, #tpu.memory_space<vmem>>, vector<1x32xf32>
    %c0_9 = arith.constant 0 : index
    %c0_10 = arith.constant 0 : index
    %7 = vector.load %arg6[%c0_9, %c0_10] : memref<1x32xf32, #tpu.memory_space<vmem>>, vector<1x32xf32>
    %cst_11 = arith.constant 0.000000e+00 : f32
    %8 = vector.broadcast %cst_11 : f32 to vector<136x32xf32>
    %9 = vector.extract_strided_slice %5 {offsets = [0, 0], sizes = [136, 8], strides = [1, 1]} : vector<146x8xbf16> to vector<136x8xbf16>
    %c0_12 = arith.constant 0 : index
    %c0_13 = arith.constant 0 : index
    %c0_14 = arith.constant 0 : index
    %10 = vector.load %arg4[%c0_12, %c0_13, %c0_14] : memref<9x8x32xbf16, #tpu.memory_space<vmem>>, vector<1x8x32xbf16>
    %11 = vector.shape_cast %10 : vector<1x8x32xbf16> to vector<8x32xbf16>
    %cst_15 = arith.constant dense<0.000000e+00> : vector<136x32xf32>
    %12 = tpu.matmul %9, %11, %cst_15 {dimension_numbers = #tpu.dot_dimension_numbers<[1], [0], [0], [1], [0, 0, 1, 1], [], []>} : vector<136x8xbf16>, vector<8x32xbf16>, vector<136x32xf32> -> vector<136x32xf32>
    %13 = arith.addf %8, %12 : vector<136x32xf32>
    %14 = vector.extract_strided_slice %5 {offsets = [1, 0], sizes = [136, 8], strides = [1, 1]} : vector<146x8xbf16> to vector<136x8xbf16>
    %c1 = arith.constant 1 : index
    %c0_16 = arith.constant 0 : index
    %c0_17 = arith.constant 0 : index
    %15 = vector.load %arg4[%c1, %c0_16, %c0_17] : memref<9x8x32xbf16, #tpu.memory_space<vmem>>, vector<1x8x32xbf16>
    %16 = vector.shape_cast %15 : vector<1x8x32xbf16> to vector<8x32xbf16>
    %cst_18 = arith.constant dense<0.000000e+00> : vector<136x32xf32>
    %17 = tpu.matmul %14, %16, %cst_18 {dimension_numbers = #tpu.dot_dimension_numbers<[1], [0], [0], [1], [0, 0, 1, 1], [], []>} : vector<136x8xbf16>, vector<8x32xbf16>, vector<136x32xf32> -> vector<136x32xf32>
    %18 = arith.addf %13, %17 : vector<136x32xf32>
    %19 = vector.extract_strided_slice %5 {offsets = [2, 0], sizes = [136, 8], strides = [1, 1]} : vector<146x8xbf16> to vector<136x8xbf16>
    %c2 = arith.constant 2 : index
    %c0_19 = arith.constant 0 : index
    %c0_20 = arith.constant 0 : index
    %20 = vector.load %arg4[%c2, %c0_19, %c0_20] : memref<9x8x32xbf16, #tpu.memory_space<vmem>>, vector<1x8x32xbf16>
    %21 = vector.shape_cast %20 : vector<1x8x32xbf16> to vector<8x32xbf16>
    %cst_21 = arith.constant dense<0.000000e+00> : vector<136x32xf32>
    %22 = tpu.matmul %19, %21, %cst_21 {dimension_numbers = #tpu.dot_dimension_numbers<[1], [0], [0], [1], [0, 0, 1, 1], [], []>} : vector<136x8xbf16>, vector<8x32xbf16>, vector<136x32xf32> -> vector<136x32xf32>
    %23 = arith.addf %18, %22 : vector<136x32xf32>
    %24 = vector.extract_strided_slice %5 {offsets = [4, 0], sizes = [136, 8], strides = [1, 1]} : vector<146x8xbf16> to vector<136x8xbf16>
    %c3 = arith.constant 3 : index
    %c0_22 = arith.constant 0 : index
    %c0_23 = arith.constant 0 : index
    %25 = vector.load %arg4[%c3, %c0_22, %c0_23] : memref<9x8x32xbf16, #tpu.memory_space<vmem>>, vector<1x8x32xbf16>
    %26 = vector.shape_cast %25 : vector<1x8x32xbf16> to vector<8x32xbf16>
    %cst_24 = arith.constant dense<0.000000e+00> : vector<136x32xf32>
    %27 = tpu.matmul %24, %26, %cst_24 {dimension_numbers = #tpu.dot_dimension_numbers<[1], [0], [0], [1], [0, 0, 1, 1], [], []>} : vector<136x8xbf16>, vector<8x32xbf16>, vector<136x32xf32> -> vector<136x32xf32>
    %28 = arith.addf %23, %27 : vector<136x32xf32>
    %29 = vector.extract_strided_slice %5 {offsets = [5, 0], sizes = [136, 8], strides = [1, 1]} : vector<146x8xbf16> to vector<136x8xbf16>
    %c4 = arith.constant 4 : index
    %c0_25 = arith.constant 0 : index
    %c0_26 = arith.constant 0 : index
    %30 = vector.load %arg4[%c4, %c0_25, %c0_26] : memref<9x8x32xbf16, #tpu.memory_space<vmem>>, vector<1x8x32xbf16>
    %31 = vector.shape_cast %30 : vector<1x8x32xbf16> to vector<8x32xbf16>
    %cst_27 = arith.constant dense<0.000000e+00> : vector<136x32xf32>
    %32 = tpu.matmul %29, %31, %cst_27 {dimension_numbers = #tpu.dot_dimension_numbers<[1], [0], [0], [1], [0, 0, 1, 1], [], []>} : vector<136x8xbf16>, vector<8x32xbf16>, vector<136x32xf32> -> vector<136x32xf32>
    %33 = arith.addf %28, %32 : vector<136x32xf32>
    %34 = vector.extract_strided_slice %5 {offsets = [6, 0], sizes = [136, 8], strides = [1, 1]} : vector<146x8xbf16> to vector<136x8xbf16>
    %c5 = arith.constant 5 : index
    %c0_28 = arith.constant 0 : index
    %c0_29 = arith.constant 0 : index
    %35 = vector.load %arg4[%c5, %c0_28, %c0_29] : memref<9x8x32xbf16, #tpu.memory_space<vmem>>, vector<1x8x32xbf16>
    %36 = vector.shape_cast %35 : vector<1x8x32xbf16> to vector<8x32xbf16>
    %cst_30 = arith.constant dense<0.000000e+00> : vector<136x32xf32>
    %37 = tpu.matmul %34, %36, %cst_30 {dimension_numbers = #tpu.dot_dimension_numbers<[1], [0], [0], [1], [0, 0, 1, 1], [], []>} : vector<136x8xbf16>, vector<8x32xbf16>, vector<136x32xf32> -> vector<136x32xf32>
    %38 = arith.addf %33, %37 : vector<136x32xf32>
    %39 = vector.extract_strided_slice %5 {offsets = [8, 0], sizes = [136, 8], strides = [1, 1]} : vector<146x8xbf16> to vector<136x8xbf16>
    %c6 = arith.constant 6 : index
    %c0_31 = arith.constant 0 : index
    %c0_32 = arith.constant 0 : index
    %40 = vector.load %arg4[%c6, %c0_31, %c0_32] : memref<9x8x32xbf16, #tpu.memory_space<vmem>>, vector<1x8x32xbf16>
    %41 = vector.shape_cast %40 : vector<1x8x32xbf16> to vector<8x32xbf16>
    %cst_33 = arith.constant dense<0.000000e+00> : vector<136x32xf32>
    %42 = tpu.matmul %39, %41, %cst_33 {dimension_numbers = #tpu.dot_dimension_numbers<[1], [0], [0], [1], [0, 0, 1, 1], [], []>} : vector<136x8xbf16>, vector<8x32xbf16>, vector<136x32xf32> -> vector<136x32xf32>
    %43 = arith.addf %38, %42 : vector<136x32xf32>
    %44 = vector.extract_strided_slice %5 {offsets = [9, 0], sizes = [136, 8], strides = [1, 1]} : vector<146x8xbf16> to vector<136x8xbf16>
    %c7 = arith.constant 7 : index
    %c0_34 = arith.constant 0 : index
    %c0_35 = arith.constant 0 : index
    %45 = vector.load %arg4[%c7, %c0_34, %c0_35] : memref<9x8x32xbf16, #tpu.memory_space<vmem>>, vector<1x8x32xbf16>
    %46 = vector.shape_cast %45 : vector<1x8x32xbf16> to vector<8x32xbf16>
    %cst_36 = arith.constant dense<0.000000e+00> : vector<136x32xf32>
    %47 = tpu.matmul %44, %46, %cst_36 {dimension_numbers = #tpu.dot_dimension_numbers<[1], [0], [0], [1], [0, 0, 1, 1], [], []>} : vector<136x8xbf16>, vector<8x32xbf16>, vector<136x32xf32> -> vector<136x32xf32>
    %48 = arith.addf %43, %47 : vector<136x32xf32>
    %49 = vector.extract_strided_slice %5 {offsets = [10, 0], sizes = [136, 8], strides = [1, 1]} : vector<146x8xbf16> to vector<136x8xbf16>
    %c8 = arith.constant 8 : index
    %c0_37 = arith.constant 0 : index
    %c0_38 = arith.constant 0 : index
    %50 = vector.load %arg4[%c8, %c0_37, %c0_38] : memref<9x8x32xbf16, #tpu.memory_space<vmem>>, vector<1x8x32xbf16>
    %51 = vector.shape_cast %50 : vector<1x8x32xbf16> to vector<8x32xbf16>
    %cst_39 = arith.constant dense<0.000000e+00> : vector<136x32xf32>
    %52 = tpu.matmul %49, %51, %cst_39 {dimension_numbers = #tpu.dot_dimension_numbers<[1], [0], [0], [1], [0, 0, 1, 1], [], []>} : vector<136x8xbf16>, vector<8x32xbf16>, vector<136x32xf32> -> vector<136x32xf32>
    %53 = arith.addf %48, %52 : vector<136x32xf32>
    %54 = vector.broadcast %6 : vector<1x32xf32> to vector<136x32xf32>
    %55 = arith.mulf %53, %54 : vector<136x32xf32>
    %56 = vector.broadcast %7 : vector<1x32xf32> to vector<136x32xf32>
    %57 = arith.addf %55, %56 : vector<136x32xf32>
    %cst_40 = arith.constant 0.000000e+00 : f32
    %58 = vector.broadcast %cst_40 : f32 to vector<136x32xf32>
    %59 = arith.maximumf %57, %58 : vector<136x32xf32>
    %60 = vector.broadcast %0 : vector<136x1xf32> to vector<136x32xf32>
    %61 = arith.mulf %59, %60 : vector<136x32xf32>
    %62 = arith.truncf %61 : vector<136x32xf32> to vector<136x32xbf16>
    %c5_41 = arith.constant 5 : index
    %c0_42 = arith.constant 0 : index
    %63 = vector.load %arg24[%c5_41, %c0_42] : memref<146x32xbf16, #tpu.memory_space<vmem>>, vector<136x32xbf16>
    tpu.vector_store %arg24[%c5_41, %c0_42], %62 {strides = array<i32>} : memref<146x32xbf16, #tpu.memory_space<vmem>>, vector<136x32xbf16>,
    %c0_43 = arith.constant 0 : index
    %c0_44 = arith.constant 0 : index
    %64 = vector.load %arg8[%c0_43, %c0_44] : memref<1x32xf32, #tpu.memory_space<vmem>>, vector<1x32xf32>
    %c0_45 = arith.constant 0 : index
    %c0_46 = arith.constant 0 : index
    %65 = vector.load %arg9[%c0_45, %c0_46] : memref<1x32xf32, #tpu.memory_space<vmem>>, vector<1x32xf32>
    %cst_47 = arith.constant 0.000000e+00 : f32
    %66 = vector.broadcast %cst_47 : f32 to vector<136x32xf32>
    %c0_48 = arith.constant 0 : index
    %c0_49 = arith.constant 0 : index
    %67 = vector.load %arg24[%c0_48, %c0_49] : memref<146x32xbf16, #tpu.memory_space<vmem>>, vector<136x32xbf16>
    %c0_50 = arith.constant 0 : index
    %c0_51 = arith.constant 0 : index
    %c0_52 = arith.constant 0 : index
    %68 = vector.load %arg7[%c0_50, %c0_51, %c0_52] : memref<9x32x32xbf16, #tpu.memory_space<vmem>>, vector<1x32x32xbf16>
    %69 = vector.shape_cast %68 : vector<1x32x32xbf16> to vector<32x32xbf16>
    %cst_53 = arith.constant dense<0.000000e+00> : vector<136x32xf32>
    %70 = tpu.matmul %67, %69, %cst_53 {dimension_numbers = #tpu.dot_dimension_numbers<[1], [0], [0], [1], [0, 0, 1, 1], [], []>} : vector<136x32xbf16>, vector<32x32xbf16>, vector<136x32xf32> -> vector<136x32xf32>
    %71 = arith.addf %66, %70 : vector<136x32xf32>
    %c1_54 = arith.constant 1 : index
    %c0_55 = arith.constant 0 : index
    %72 = vector.load %arg24[%c1_54, %c0_55] : memref<146x32xbf16, #tpu.memory_space<vmem>>, vector<136x32xbf16>
    %c1_56 = arith.constant 1 : index
    %c0_57 = arith.constant 0 : index
    %c0_58 = arith.constant 0 : index
    %73 = vector.load %arg7[%c1_56, %c0_57, %c0_58] : memref<9x32x32xbf16, #tpu.memory_space<vmem>>, vector<1x32x32xbf16>
    %74 = vector.shape_cast %73 : vector<1x32x32xbf16> to vector<32x32xbf16>
    %cst_59 = arith.constant dense<0.000000e+00> : vector<136x32xf32>
    %75 = tpu.matmul %72, %74, %cst_59 {dimension_numbers = #tpu.dot_dimension_numbers<[1], [0], [0], [1], [0, 0, 1, 1], [], []>} : vector<136x32xbf16>, vector<32x32xbf16>, vector<136x32xf32> -> vector<136x32xf32>
    %76 = arith.addf %71, %75 : vector<136x32xf32>
    %c2_60 = arith.constant 2 : index
    %c0_61 = arith.constant 0 : index
    %77 = vector.load %arg24[%c2_60, %c0_61] : memref<146x32xbf16, #tpu.memory_space<vmem>>, vector<136x32xbf16>
    %c2_62 = arith.constant 2 : index
    %c0_63 = arith.constant 0 : index
    %c0_64 = arith.constant 0 : index
    %78 = vector.load %arg7[%c2_62, %c0_63, %c0_64] : memref<9x32x32xbf16, #tpu.memory_space<vmem>>, vector<1x32x32xbf16>
    %79 = vector.shape_cast %78 : vector<1x32x32xbf16> to vector<32x32xbf16>
    %cst_65 = arith.constant dense<0.000000e+00> : vector<136x32xf32>
    %80 = tpu.matmul %77, %79, %cst_65 {dimension_numbers = #tpu.dot_dimension_numbers<[1], [0], [0], [1], [0, 0, 1, 1], [], []>} : vector<136x32xbf16>, vector<32x32xbf16>, vector<136x32xf32> -> vector<136x32xf32>
    %81 = arith.addf %76, %80 : vector<136x32xf32>
    %c4_66 = arith.constant 4 : index
    %c0_67 = arith.constant 0 : index
    %82 = vector.load %arg24[%c4_66, %c0_67] : memref<146x32xbf16, #tpu.memory_space<vmem>>, vector<136x32xbf16>
    %c3_68 = arith.constant 3 : index
    %c0_69 = arith.constant 0 : index
    %c0_70 = arith.constant 0 : index
    %83 = vector.load %arg7[%c3_68, %c0_69, %c0_70] : memref<9x32x32xbf16, #tpu.memory_space<vmem>>, vector<1x32x32xbf16>
    %84 = vector.shape_cast %83 : vector<1x32x32xbf16> to vector<32x32xbf16>
    %cst_71 = arith.constant dense<0.000000e+00> : vector<136x32xf32>
    %85 = tpu.matmul %82, %84, %cst_71 {dimension_numbers = #tpu.dot_dimension_numbers<[1], [0], [0], [1], [0, 0, 1, 1], [], []>} : vector<136x32xbf16>, vector<32x32xbf16>, vector<136x32xf32> -> vector<136x32xf32>
    %86 = arith.addf %81, %85 : vector<136x32xf32>
    %c5_72 = arith.constant 5 : index
    %c0_73 = arith.constant 0 : index
    %87 = vector.load %arg24[%c5_72, %c0_73] : memref<146x32xbf16, #tpu.memory_space<vmem>>, vector<136x32xbf16>
    %c4_74 = arith.constant 4 : index
    %c0_75 = arith.constant 0 : index
    %c0_76 = arith.constant 0 : index
    %88 = vector.load %arg7[%c4_74, %c0_75, %c0_76] : memref<9x32x32xbf16, #tpu.memory_space<vmem>>, vector<1x32x32xbf16>
    %89 = vector.shape_cast %88 : vector<1x32x32xbf16> to vector<32x32xbf16>
    %cst_77 = arith.constant dense<0.000000e+00> : vector<136x32xf32>
    %90 = tpu.matmul %87, %89, %cst_77 {dimension_numbers = #tpu.dot_dimension_numbers<[1], [0], [0], [1], [0, 0, 1, 1], [], []>} : vector<136x32xbf16>, vector<32x32xbf16>, vector<136x32xf32> -> vector<136x32xf32>
    %91 = arith.addf %86, %90 : vector<136x32xf32>
    %c6_78 = arith.constant 6 : index
    %c0_79 = arith.constant 0 : index
    %92 = vector.load %arg24[%c6_78, %c0_79] : memref<146x32xbf16, #tpu.memory_space<vmem>>, vector<136x32xbf16>
    %c5_80 = arith.constant 5 : index
    %c0_81 = arith.constant 0 : index
    %c0_82 = arith.constant 0 : index
    %93 = vector.load %arg7[%c5_80, %c0_81, %c0_82] : memref<9x32x32xbf16, #tpu.memory_space<vmem>>, vector<1x32x32xbf16>
    %94 = vector.shape_cast %93 : vector<1x32x32xbf16> to vector<32x32xbf16>
    %cst_83 = arith.constant dense<0.000000e+00> : vector<136x32xf32>
    %95 = tpu.matmul %92, %94, %cst_83 {dimension_numbers = #tpu.dot_dimension_numbers<[1], [0], [0], [1], [0, 0, 1, 1], [], []>} : vector<136x32xbf16>, vector<32x32xbf16>, vector<136x32xf32> -> vector<136x32xf32>
    %96 = arith.addf %91, %95 : vector<136x32xf32>
    %c8_84 = arith.constant 8 : index
    %c0_85 = arith.constant 0 : index
    %97 = vector.load %arg24[%c8_84, %c0_85] : memref<146x32xbf16, #tpu.memory_space<vmem>>, vector<136x32xbf16>
    %c6_86 = arith.constant 6 : index
    %c0_87 = arith.constant 0 : index
    %c0_88 = arith.constant 0 : index
    %98 = vector.load %arg7[%c6_86, %c0_87, %c0_88] : memref<9x32x32xbf16, #tpu.memory_space<vmem>>, vector<1x32x32xbf16>
    %99 = vector.shape_cast %98 : vector<1x32x32xbf16> to vector<32x32xbf16>
    %cst_89 = arith.constant dense<0.000000e+00> : vector<136x32xf32>
    %100 = tpu.matmul %97, %99, %cst_89 {dimension_numbers = #tpu.dot_dimension_numbers<[1], [0], [0], [1], [0, 0, 1, 1], [], []>} : vector<136x32xbf16>, vector<32x32xbf16>, vector<136x32xf32> -> vector<136x32xf32>
    %101 = arith.addf %96, %100 : vector<136x32xf32>
    %c9 = arith.constant 9 : index
    %c0_90 = arith.constant 0 : index
    %102 = vector.load %arg24[%c9, %c0_90] : memref<146x32xbf16, #tpu.memory_space<vmem>>, vector<136x32xbf16>
    %c7_91 = arith.constant 7 : index
    %c0_92 = arith.constant 0 : index
    %c0_93 = arith.constant 0 : index
    %103 = vector.load %arg7[%c7_91, %c0_92, %c0_93] : memref<9x32x32xbf16, #tpu.memory_space<vmem>>, vector<1x32x32xbf16>
    %104 = vector.shape_cast %103 : vector<1x32x32xbf16> to vector<32x32xbf16>
    %cst_94 = arith.constant dense<0.000000e+00> : vector<136x32xf32>
    %105 = tpu.matmul %102, %104, %cst_94 {dimension_numbers = #tpu.dot_dimension_numbers<[1], [0], [0], [1], [0, 0, 1, 1], [], []>} : vector<136x32xbf16>, vector<32x32xbf16>, vector<136x32xf32> -> vector<136x32xf32>
    %106 = arith.addf %101, %105 : vector<136x32xf32>
    %c10 = arith.constant 10 : index
    %c0_95 = arith.constant 0 : index
    %107 = vector.load %arg24[%c10, %c0_95] : memref<146x32xbf16, #tpu.memory_space<vmem>>, vector<136x32xbf16>
    %c8_96 = arith.constant 8 : index
    %c0_97 = arith.constant 0 : index
    %c0_98 = arith.constant 0 : index
    %108 = vector.load %arg7[%c8_96, %c0_97, %c0_98] : memref<9x32x32xbf16, #tpu.memory_space<vmem>>, vector<1x32x32xbf16>
    %109 = vector.shape_cast %108 : vector<1x32x32xbf16> to vector<32x32xbf16>
    %cst_99 = arith.constant dense<0.000000e+00> : vector<136x32xf32>
    %110 = tpu.matmul %107, %109, %cst_99 {dimension_numbers = #tpu.dot_dimension_numbers<[1], [0], [0], [1], [0, 0, 1, 1], [], []>} : vector<136x32xbf16>, vector<32x32xbf16>, vector<136x32xf32> -> vector<136x32xf32>
    %111 = arith.addf %106, %110 : vector<136x32xf32>
    %112 = vector.broadcast %64 : vector<1x32xf32> to vector<136x32xf32>
    %113 = arith.mulf %111, %112 : vector<136x32xf32>
    %114 = vector.broadcast %65 : vector<1x32xf32> to vector<136x32xf32>
    %115 = arith.addf %113, %114 : vector<136x32xf32>
    %cst_100 = arith.constant 0.000000e+00 : f32
    %116 = vector.broadcast %cst_100 : f32 to vector<136x32xf32>
    %117 = arith.maximumf %115, %116 : vector<136x32xf32>
    %118 = vector.broadcast %0 : vector<136x1xf32> to vector<136x32xf32>
    %119 = arith.mulf %117, %118 : vector<136x32xf32>
    %120 = arith.truncf %119 : vector<136x32xf32> to vector<136x32xbf16>
    %c5_101 = arith.constant 5 : index
    %c0_102 = arith.constant 0 : index
    %121 = vector.load %arg24[%c5_101, %c0_102] : memref<146x32xbf16, #tpu.memory_space<vmem>>, vector<136x32xbf16>
    tpu.vector_store %arg24[%c5_101, %c0_102], %120 {strides = array<i32>} : memref<146x32xbf16, #tpu.memory_space<vmem>>, vector<136x32xbf16>,
    %c0_103 = arith.constant 0 : index
    %c0_104 = arith.constant 0 : index
    %122 = vector.load %arg11[%c0_103, %c0_104] : memref<1x32xf32, #tpu.memory_space<vmem>>, vector<1x32xf32>
    %c0_105 = arith.constant 0 : index
    %c0_106 = arith.constant 0 : index
    %123 = vector.load %arg12[%c0_105, %c0_106] : memref<1x32xf32, #tpu.memory_space<vmem>>, vector<1x32xf32>
    %cst_107 = arith.constant 0.000000e+00 : f32
    %124 = vector.broadcast %cst_107 : f32 to vector<136x32xf32>
    %c0_108 = arith.constant 0 : index
    %c0_109 = arith.constant 0 : index
    %125 = vector.load %arg24[%c0_108, %c0_109] : memref<146x32xbf16, #tpu.memory_space<vmem>>, vector<136x32xbf16>
    %c0_110 = arith.constant 0 : index
    %c0_111 = arith.constant 0 : index
    %c0_112 = arith.constant 0 : index
    %126 = vector.load %arg10[%c0_110, %c0_111, %c0_112] : memref<9x32x32xbf16, #tpu.memory_space<vmem>>, vector<1x32x32xbf16>
    %127 = vector.shape_cast %126 : vector<1x32x32xbf16> to vector<32x32xbf16>
    %cst_113 = arith.constant dense<0.000000e+00> : vector<136x32xf32>
    %128 = tpu.matmul %125, %127, %cst_113 {dimension_numbers = #tpu.dot_dimension_numbers<[1], [0], [0], [1], [0, 0, 1, 1], [], []>} : vector<136x32xbf16>, vector<32x32xbf16>, vector<136x32xf32> -> vector<136x32xf32>
    %129 = arith.addf %124, %128 : vector<136x32xf32>
    %c1_114 = arith.constant 1 : index
    %c0_115 = arith.constant 0 : index
    %130 = vector.load %arg24[%c1_114, %c0_115] : memref<146x32xbf16, #tpu.memory_space<vmem>>, vector<136x32xbf16>
    %c1_116 = arith.constant 1 : index
    %c0_117 = arith.constant 0 : index
    %c0_118 = arith.constant 0 : index
    %131 = vector.load %arg10[%c1_116, %c0_117, %c0_118] : memref<9x32x32xbf16, #tpu.memory_space<vmem>>, vector<1x32x32xbf16>
    %132 = vector.shape_cast %131 : vector<1x32x32xbf16> to vector<32x32xbf16>
    %cst_119 = arith.constant dense<0.000000e+00> : vector<136x32xf32>
    %133 = tpu.matmul %130, %132, %cst_119 {dimension_numbers = #tpu.dot_dimension_numbers<[1], [0], [0], [1], [0, 0, 1, 1], [], []>} : vector<136x32xbf16>, vector<32x32xbf16>, vector<136x32xf32> -> vector<136x32xf32>
    %134 = arith.addf %129, %133 : vector<136x32xf32>
    %c2_120 = arith.constant 2 : index
    %c0_121 = arith.constant 0 : index
    %135 = vector.load %arg24[%c2_120, %c0_121] : memref<146x32xbf16, #tpu.memory_space<vmem>>, vector<136x32xbf16>
    %c2_122 = arith.constant 2 : index
    %c0_123 = arith.constant 0 : index
    %c0_124 = arith.constant 0 : index
    %136 = vector.load %arg10[%c2_122, %c0_123, %c0_124] : memref<9x32x32xbf16, #tpu.memory_space<vmem>>, vector<1x32x32xbf16>
    %137 = vector.shape_cast %136 : vector<1x32x32xbf16> to vector<32x32xbf16>
    %cst_125 = arith.constant dense<0.000000e+00> : vector<136x32xf32>
    %138 = tpu.matmul %135, %137, %cst_125 {dimension_numbers = #tpu.dot_dimension_numbers<[1], [0], [0], [1], [0, 0, 1, 1], [], []>} : vector<136x32xbf16>, vector<32x32xbf16>, vector<136x32xf32> -> vector<136x32xf32>
    %139 = arith.addf %134, %138 : vector<136x32xf32>
    %c4_126 = arith.constant 4 : index
    %c0_127 = arith.constant 0 : index
    %140 = vector.load %arg24[%c4_126, %c0_127] : memref<146x32xbf16, #tpu.memory_space<vmem>>, vector<136x32xbf16>
    %c3_128 = arith.constant 3 : index
    %c0_129 = arith.constant 0 : index
    %c0_130 = arith.constant 0 : index
    %141 = vector.load %arg10[%c3_128, %c0_129, %c0_130] : memref<9x32x32xbf16, #tpu.memory_space<vmem>>, vector<1x32x32xbf16>
    %142 = vector.shape_cast %141 : vector<1x32x32xbf16> to vector<32x32xbf16>
    %cst_131 = arith.constant dense<0.000000e+00> : vector<136x32xf32>
    %143 = tpu.matmul %140, %142, %cst_131 {dimension_numbers = #tpu.dot_dimension_numbers<[1], [0], [0], [1], [0, 0, 1, 1], [], []>} : vector<136x32xbf16>, vector<32x32xbf16>, vector<136x32xf32> -> vector<136x32xf32>
    %144 = arith.addf %139, %143 : vector<136x32xf32>
    %c5_132 = arith.constant 5 : index
    %c0_133 = arith.constant 0 : index
    %145 = vector.load %arg24[%c5_132, %c0_133] : memref<146x32xbf16, #tpu.memory_space<vmem>>, vector<136x32xbf16>
    %c4_134 = arith.constant 4 : index
    %c0_135 = arith.constant 0 : index
    %c0_136 = arith.constant 0 : index
    %146 = vector.load %arg10[%c4_134, %c0_135, %c0_136] : memref<9x32x32xbf16, #tpu.memory_space<vmem>>, vector<1x32x32xbf16>
    %147 = vector.shape_cast %146 : vector<1x32x32xbf16> to vector<32x32xbf16>
    %cst_137 = arith.constant dense<0.000000e+00> : vector<136x32xf32>
    %148 = tpu.matmul %145, %147, %cst_137 {dimension_numbers = #tpu.dot_dimension_numbers<[1], [0], [0], [1], [0, 0, 1, 1], [], []>} : vector<136x32xbf16>, vector<32x32xbf16>, vector<136x32xf32> -> vector<136x32xf32>
    %149 = arith.addf %144, %148 : vector<136x32xf32>
    %c6_138 = arith.constant 6 : index
    %c0_139 = arith.constant 0 : index
    %150 = vector.load %arg24[%c6_138, %c0_139] : memref<146x32xbf16, #tpu.memory_space<vmem>>, vector<136x32xbf16>
    %c5_140 = arith.constant 5 : index
    %c0_141 = arith.constant 0 : index
    %c0_142 = arith.constant 0 : index
    %151 = vector.load %arg10[%c5_140, %c0_141, %c0_142] : memref<9x32x32xbf16, #tpu.memory_space<vmem>>, vector<1x32x32xbf16>
    %152 = vector.shape_cast %151 : vector<1x32x32xbf16> to vector<32x32xbf16>
    %cst_143 = arith.constant dense<0.000000e+00> : vector<136x32xf32>
    %153 = tpu.matmul %150, %152, %cst_143 {dimension_numbers = #tpu.dot_dimension_numbers<[1], [0], [0], [1], [0, 0, 1, 1], [], []>} : vector<136x32xbf16>, vector<32x32xbf16>, vector<136x32xf32> -> vector<136x32xf32>
    %154 = arith.addf %149, %153 : vector<136x32xf32>
    %c8_144 = arith.constant 8 : index
    %c0_145 = arith.constant 0 : index
    %155 = vector.load %arg24[%c8_144, %c0_145] : memref<146x32xbf16, #tpu.memory_space<vmem>>, vector<136x32xbf16>
    %c6_146 = arith.constant 6 : index
    %c0_147 = arith.constant 0 : index
    %c0_148 = arith.constant 0 : index
    %156 = vector.load %arg10[%c6_146, %c0_147, %c0_148] : memref<9x32x32xbf16, #tpu.memory_space<vmem>>, vector<1x32x32xbf16>
    %157 = vector.shape_cast %156 : vector<1x32x32xbf16> to vector<32x32xbf16>
    %cst_149 = arith.constant dense<0.000000e+00> : vector<136x32xf32>
    %158 = tpu.matmul %155, %157, %cst_149 {dimension_numbers = #tpu.dot_dimension_numbers<[1], [0], [0], [1], [0, 0, 1, 1], [], []>} : vector<136x32xbf16>, vector<32x32xbf16>, vector<136x32xf32> -> vector<136x32xf32>
    %159 = arith.addf %154, %158 : vector<136x32xf32>
    %c9_150 = arith.constant 9 : index
    %c0_151 = arith.constant 0 : index
    %160 = vector.load %arg24[%c9_150, %c0_151] : memref<146x32xbf16, #tpu.memory_space<vmem>>, vector<136x32xbf16>
    %c7_152 = arith.constant 7 : index
    %c0_153 = arith.constant 0 : index
    %c0_154 = arith.constant 0 : index
    %161 = vector.load %arg10[%c7_152, %c0_153, %c0_154] : memref<9x32x32xbf16, #tpu.memory_space<vmem>>, vector<1x32x32xbf16>
    %162 = vector.shape_cast %161 : vector<1x32x32xbf16> to vector<32x32xbf16>
    %cst_155 = arith.constant dense<0.000000e+00> : vector<136x32xf32>
    %163 = tpu.matmul %160, %162, %cst_155 {dimension_numbers = #tpu.dot_dimension_numbers<[1], [0], [0], [1], [0, 0, 1, 1], [], []>} : vector<136x32xbf16>, vector<32x32xbf16>, vector<136x32xf32> -> vector<136x32xf32>
    %164 = arith.addf %159, %163 : vector<136x32xf32>
    %c10_156 = arith.constant 10 : index
    %c0_157 = arith.constant 0 : index
    %165 = vector.load %arg24[%c10_156, %c0_157] : memref<146x32xbf16, #tpu.memory_space<vmem>>, vector<136x32xbf16>
    %c8_158 = arith.constant 8 : index
    %c0_159 = arith.constant 0 : index
    %c0_160 = arith.constant 0 : index
    %166 = vector.load %arg10[%c8_158, %c0_159, %c0_160] : memref<9x32x32xbf16, #tpu.memory_space<vmem>>, vector<1x32x32xbf16>
    %167 = vector.shape_cast %166 : vector<1x32x32xbf16> to vector<32x32xbf16>
    %cst_161 = arith.constant dense<0.000000e+00> : vector<136x32xf32>
    %168 = tpu.matmul %165, %167, %cst_161 {dimension_numbers = #tpu.dot_dimension_numbers<[1], [0], [0], [1], [0, 0, 1, 1], [], []>} : vector<136x32xbf16>, vector<32x32xbf16>, vector<136x32xf32> -> vector<136x32xf32>
    %169 = arith.addf %164, %168 : vector<136x32xf32>
    %170 = vector.broadcast %122 : vector<1x32xf32> to vector<136x32xf32>
    %171 = arith.mulf %169, %170 : vector<136x32xf32>
    %172 = vector.broadcast %123 : vector<1x32xf32> to vector<136x32xf32>
    %173 = arith.addf %171, %172 : vector<136x32xf32>
    %174 = arith.addf %173, %61 : vector<136x32xf32>
    %cst_162 = arith.constant 0.000000e+00 : f32
    %175 = vector.broadcast %cst_162 : f32 to vector<136x32xf32>
    %176 = arith.maximumf %174, %175 : vector<136x32xf32>
    %177 = vector.broadcast %0 : vector<136x1xf32> to vector<136x32xf32>
    %178 = arith.mulf %176, %177 : vector<136x32xf32>
    %179 = arith.truncf %178 : vector<136x32xf32> to vector<136x32xbf16>
    %c5_163 = arith.constant 5 : index
    %c0_164 = arith.constant 0 : index
    %180 = vector.load %arg24[%c5_163, %c0_164] : memref<146x32xbf16, #tpu.memory_space<vmem>>, vector<136x32xbf16>
    tpu.vector_store %arg24[%c5_163, %c0_164], %179 {strides = array<i32>} : memref<146x32xbf16, #tpu.memory_space<vmem>>, vector<136x32xbf16>,
    %c0_165 = arith.constant 0 : index
    %c0_166 = arith.constant 0 : index
    %181 = vector.load %arg8[%c0_165, %c0_166] : memref<1x32xf32, #tpu.memory_space<vmem>>, vector<1x32xf32>
    %c0_167 = arith.constant 0 : index
    %c0_168 = arith.constant 0 : index
    %182 = vector.load %arg9[%c0_167, %c0_168] : memref<1x32xf32, #tpu.memory_space<vmem>>, vector<1x32xf32>
    %cst_169 = arith.constant 0.000000e+00 : f32
    %183 = vector.broadcast %cst_169 : f32 to vector<136x32xf32>
    %c0_170 = arith.constant 0 : index
    %c0_171 = arith.constant 0 : index
    %184 = vector.load %arg24[%c0_170, %c0_171] : memref<146x32xbf16, #tpu.memory_space<vmem>>, vector<136x32xbf16>
    %c0_172 = arith.constant 0 : index
    %c0_173 = arith.constant 0 : index
    %c0_174 = arith.constant 0 : index
    %185 = vector.load %arg7[%c0_172, %c0_173, %c0_174] : memref<9x32x32xbf16, #tpu.memory_space<vmem>>, vector<1x32x32xbf16>
    %186 = vector.shape_cast %185 : vector<1x32x32xbf16> to vector<32x32xbf16>
    %cst_175 = arith.constant dense<0.000000e+00> : vector<136x32xf32>
    %187 = tpu.matmul %184, %186, %cst_175 {dimension_numbers = #tpu.dot_dimension_numbers<[1], [0], [0], [1], [0, 0, 1, 1], [], []>} : vector<136x32xbf16>, vector<32x32xbf16>, vector<136x32xf32> -> vector<136x32xf32>
    %188 = arith.addf %183, %187 : vector<136x32xf32>
    %c1_176 = arith.constant 1 : index
    %c0_177 = arith.constant 0 : index
    %189 = vector.load %arg24[%c1_176, %c0_177] : memref<146x32xbf16, #tpu.memory_space<vmem>>, vector<136x32xbf16>
    %c1_178 = arith.constant 1 : index
    %c0_179 = arith.constant 0 : index
    %c0_180 = arith.constant 0 : index
    %190 = vector.load %arg7[%c1_178, %c0_179, %c0_180] : memref<9x32x32xbf16, #tpu.memory_space<vmem>>, vector<1x32x32xbf16>
    %191 = vector.shape_cast %190 : vector<1x32x32xbf16> to vector<32x32xbf16>
    %cst_181 = arith.constant dense<0.000000e+00> : vector<136x32xf32>
    %192 = tpu.matmul %189, %191, %cst_181 {dimension_numbers = #tpu.dot_dimension_numbers<[1], [0], [0], [1], [0, 0, 1, 1], [], []>} : vector<136x32xbf16>, vector<32x32xbf16>, vector<136x32xf32> -> vector<136x32xf32>
    %193 = arith.addf %188, %192 : vector<136x32xf32>
    %c2_182 = arith.constant 2 : index
    %c0_183 = arith.constant 0 : index
    %194 = vector.load %arg24[%c2_182, %c0_183] : memref<146x32xbf16, #tpu.memory_space<vmem>>, vector<136x32xbf16>
    %c2_184 = arith.constant 2 : index
    %c0_185 = arith.constant 0 : index
    %c0_186 = arith.constant 0 : index
    %195 = vector.load %arg7[%c2_184, %c0_185, %c0_186] : memref<9x32x32xbf16, #tpu.memory_space<vmem>>, vector<1x32x32xbf16>
    %196 = vector.shape_cast %195 : vector<1x32x32xbf16> to vector<32x32xbf16>
    %cst_187 = arith.constant dense<0.000000e+00> : vector<136x32xf32>
    %197 = tpu.matmul %194, %196, %cst_187 {dimension_numbers = #tpu.dot_dimension_numbers<[1], [0], [0], [1], [0, 0, 1, 1], [], []>} : vector<136x32xbf16>, vector<32x32xbf16>, vector<136x32xf32> -> vector<136x32xf32>
    %198 = arith.addf %193, %197 : vector<136x32xf32>
    %c4_188 = arith.constant 4 : index
    %c0_189 = arith.constant 0 : index
    %199 = vector.load %arg24[%c4_188, %c0_189] : memref<146x32xbf16, #tpu.memory_space<vmem>>, vector<136x32xbf16>
    %c3_190 = arith.constant 3 : index
    %c0_191 = arith.constant 0 : index
    %c0_192 = arith.constant 0 : index
    %200 = vector.load %arg7[%c3_190, %c0_191, %c0_192] : memref<9x32x32xbf16, #tpu.memory_space<vmem>>, vector<1x32x32xbf16>
    %201 = vector.shape_cast %200 : vector<1x32x32xbf16> to vector<32x32xbf16>
    %cst_193 = arith.constant dense<0.000000e+00> : vector<136x32xf32>
    %202 = tpu.matmul %199, %201, %cst_193 {dimension_numbers = #tpu.dot_dimension_numbers<[1], [0], [0], [1], [0, 0, 1, 1], [], []>} : vector<136x32xbf16>, vector<32x32xbf16>, vector<136x32xf32> -> vector<136x32xf32>
    %203 = arith.addf %198, %202 : vector<136x32xf32>
    %c5_194 = arith.constant 5 : index
    %c0_195 = arith.constant 0 : index
    %204 = vector.load %arg24[%c5_194, %c0_195] : memref<146x32xbf16, #tpu.memory_space<vmem>>, vector<136x32xbf16>
    %c4_196 = arith.constant 4 : index
    %c0_197 = arith.constant 0 : index
    %c0_198 = arith.constant 0 : index
    %205 = vector.load %arg7[%c4_196, %c0_197, %c0_198] : memref<9x32x32xbf16, #tpu.memory_space<vmem>>, vector<1x32x32xbf16>
    %206 = vector.shape_cast %205 : vector<1x32x32xbf16> to vector<32x32xbf16>
    %cst_199 = arith.constant dense<0.000000e+00> : vector<136x32xf32>
    %207 = tpu.matmul %204, %206, %cst_199 {dimension_numbers = #tpu.dot_dimension_numbers<[1], [0], [0], [1], [0, 0, 1, 1], [], []>} : vector<136x32xbf16>, vector<32x32xbf16>, vector<136x32xf32> -> vector<136x32xf32>
    %208 = arith.addf %203, %207 : vector<136x32xf32>
    %c6_200 = arith.constant 6 : index
    %c0_201 = arith.constant 0 : index
    %209 = vector.load %arg24[%c6_200, %c0_201] : memref<146x32xbf16, #tpu.memory_space<vmem>>, vector<136x32xbf16>
    %c5_202 = arith.constant 5 : index
    %c0_203 = arith.constant 0 : index
    %c0_204 = arith.constant 0 : index
    %210 = vector.load %arg7[%c5_202, %c0_203, %c0_204] : memref<9x32x32xbf16, #tpu.memory_space<vmem>>, vector<1x32x32xbf16>
    %211 = vector.shape_cast %210 : vector<1x32x32xbf16> to vector<32x32xbf16>
    %cst_205 = arith.constant dense<0.000000e+00> : vector<136x32xf32>
    %212 = tpu.matmul %209, %211, %cst_205 {dimension_numbers = #tpu.dot_dimension_numbers<[1], [0], [0], [1], [0, 0, 1, 1], [], []>} : vector<136x32xbf16>, vector<32x32xbf16>, vector<136x32xf32> -> vector<136x32xf32>
    %213 = arith.addf %208, %212 : vector<136x32xf32>
    %c8_206 = arith.constant 8 : index
    %c0_207 = arith.constant 0 : index
    %214 = vector.load %arg24[%c8_206, %c0_207] : memref<146x32xbf16, #tpu.memory_space<vmem>>, vector<136x32xbf16>
    %c6_208 = arith.constant 6 : index
    %c0_209 = arith.constant 0 : index
    %c0_210 = arith.constant 0 : index
    %215 = vector.load %arg7[%c6_208, %c0_209, %c0_210] : memref<9x32x32xbf16, #tpu.memory_space<vmem>>, vector<1x32x32xbf16>
    %216 = vector.shape_cast %215 : vector<1x32x32xbf16> to vector<32x32xbf16>
    %cst_211 = arith.constant dense<0.000000e+00> : vector<136x32xf32>
    %217 = tpu.matmul %214, %216, %cst_211 {dimension_numbers = #tpu.dot_dimension_numbers<[1], [0], [0], [1], [0, 0, 1, 1], [], []>} : vector<136x32xbf16>, vector<32x32xbf16>, vector<136x32xf32> -> vector<136x32xf32>
    %218 = arith.addf %213, %217 : vector<136x32xf32>
    %c9_212 = arith.constant 9 : index
    %c0_213 = arith.constant 0 : index
    %219 = vector.load %arg24[%c9_212, %c0_213] : memref<146x32xbf16, #tpu.memory_space<vmem>>, vector<136x32xbf16>
    %c7_214 = arith.constant 7 : index
    %c0_215 = arith.constant 0 : index
    %c0_216 = arith.constant 0 : index
    %220 = vector.load %arg7[%c7_214, %c0_215, %c0_216] : memref<9x32x32xbf16, #tpu.memory_space<vmem>>, vector<1x32x32xbf16>
    %221 = vector.shape_cast %220 : vector<1x32x32xbf16> to vector<32x32xbf16>
    %cst_217 = arith.constant dense<0.000000e+00> : vector<136x32xf32>
    %222 = tpu.matmul %219, %221, %cst_217 {dimension_numbers = #tpu.dot_dimension_numbers<[1], [0], [0], [1], [0, 0, 1, 1], [], []>} : vector<136x32xbf16>, vector<32x32xbf16>, vector<136x32xf32> -> vector<136x32xf32>
    %223 = arith.addf %218, %222 : vector<136x32xf32>
    %c10_218 = arith.constant 10 : index
    %c0_219 = arith.constant 0 : index
    %224 = vector.load %arg24[%c10_218, %c0_219] : memref<146x32xbf16, #tpu.memory_space<vmem>>, vector<136x32xbf16>
    %c8_220 = arith.constant 8 : index
    %c0_221 = arith.constant 0 : index
    %c0_222 = arith.constant 0 : index
    %225 = vector.load %arg7[%c8_220, %c0_221, %c0_222] : memref<9x32x32xbf16, #tpu.memory_space<vmem>>, vector<1x32x32xbf16>
    %226 = vector.shape_cast %225 : vector<1x32x32xbf16> to vector<32x32xbf16>
    %cst_223 = arith.constant dense<0.000000e+00> : vector<136x32xf32>
    %227 = tpu.matmul %224, %226, %cst_223 {dimension_numbers = #tpu.dot_dimension_numbers<[1], [0], [0], [1], [0, 0, 1, 1], [], []>} : vector<136x32xbf16>, vector<32x32xbf16>, vector<136x32xf32> -> vector<136x32xf32>
    %228 = arith.addf %223, %227 : vector<136x32xf32>
    %229 = vector.broadcast %181 : vector<1x32xf32> to vector<136x32xf32>
    %230 = arith.mulf %228, %229 : vector<136x32xf32>
    %231 = vector.broadcast %182 : vector<1x32xf32> to vector<136x32xf32>
    %232 = arith.addf %230, %231 : vector<136x32xf32>
    %cst_224 = arith.constant 0.000000e+00 : f32
    %233 = vector.broadcast %cst_224 : f32 to vector<136x32xf32>
    %234 = arith.maximumf %232, %233 : vector<136x32xf32>
    %235 = vector.broadcast %0 : vector<136x1xf32> to vector<136x32xf32>
    %236 = arith.mulf %234, %235 : vector<136x32xf32>
    %237 = arith.truncf %236 : vector<136x32xf32> to vector<136x32xbf16>
    %c5_225 = arith.constant 5 : index
    %c0_226 = arith.constant 0 : index
    %238 = vector.load %arg24[%c5_225, %c0_226] : memref<146x32xbf16, #tpu.memory_space<vmem>>, vector<136x32xbf16>
    tpu.vector_store %arg24[%c5_225, %c0_226], %237 {strides = array<i32>} : memref<146x32xbf16, #tpu.memory_space<vmem>>, vector<136x32xbf16>,
    %c0_227 = arith.constant 0 : index
    %c0_228 = arith.constant 0 : index
    %239 = vector.load %arg11[%c0_227, %c0_228] : memref<1x32xf32, #tpu.memory_space<vmem>>, vector<1x32xf32>
    %c0_229 = arith.constant 0 : index
    %c0_230 = arith.constant 0 : index
    %240 = vector.load %arg12[%c0_229, %c0_230] : memref<1x32xf32, #tpu.memory_space<vmem>>, vector<1x32xf32>
    %cst_231 = arith.constant 0.000000e+00 : f32
    %241 = vector.broadcast %cst_231 : f32 to vector<136x32xf32>
    %c0_232 = arith.constant 0 : index
    %c0_233 = arith.constant 0 : index
    %242 = vector.load %arg24[%c0_232, %c0_233] : memref<146x32xbf16, #tpu.memory_space<vmem>>, vector<136x32xbf16>
    %c0_234 = arith.constant 0 : index
    %c0_235 = arith.constant 0 : index
    %c0_236 = arith.constant 0 : index
    %243 = vector.load %arg10[%c0_234, %c0_235, %c0_236] : memref<9x32x32xbf16, #tpu.memory_space<vmem>>, vector<1x32x32xbf16>
    %244 = vector.shape_cast %243 : vector<1x32x32xbf16> to vector<32x32xbf16>
    %cst_237 = arith.constant dense<0.000000e+00> : vector<136x32xf32>
    %245 = tpu.matmul %242, %244, %cst_237 {dimension_numbers = #tpu.dot_dimension_numbers<[1], [0], [0], [1], [0, 0, 1, 1], [], []>} : vector<136x32xbf16>, vector<32x32xbf16>, vector<136x32xf32> -> vector<136x32xf32>
    %246 = arith.addf %241, %245 : vector<136x32xf32>
    %c1_238 = arith.constant 1 : index
    %c0_239 = arith.constant 0 : index
    %247 = vector.load %arg24[%c1_238, %c0_239] : memref<146x32xbf16, #tpu.memory_space<vmem>>, vector<136x32xbf16>
    %c1_240 = arith.constant 1 : index
    %c0_241 = arith.constant 0 : index
    %c0_242 = arith.constant 0 : index
    %248 = vector.load %arg10[%c1_240, %c0_241, %c0_242] : memref<9x32x32xbf16, #tpu.memory_space<vmem>>, vector<1x32x32xbf16>
    %249 = vector.shape_cast %248 : vector<1x32x32xbf16> to vector<32x32xbf16>
    %cst_243 = arith.constant dense<0.000000e+00> : vector<136x32xf32>
    %250 = tpu.matmul %247, %249, %cst_243 {dimension_numbers = #tpu.dot_dimension_numbers<[1], [0], [0], [1], [0, 0, 1, 1], [], []>} : vector<136x32xbf16>, vector<32x32xbf16>, vector<136x32xf32> -> vector<136x32xf32>
    %251 = arith.addf %246, %250 : vector<136x32xf32>
    %c2_244 = arith.constant 2 : index
    %c0_245 = arith.constant 0 : index
    %252 = vector.load %arg24[%c2_244, %c0_245] : memref<146x32xbf16, #tpu.memory_space<vmem>>, vector<136x32xbf16>
    %c2_246 = arith.constant 2 : index
    %c0_247 = arith.constant 0 : index
    %c0_248 = arith.constant 0 : index
    %253 = vector.load %arg10[%c2_246, %c0_247, %c0_248] : memref<9x32x32xbf16, #tpu.memory_space<vmem>>, vector<1x32x32xbf16>
    %254 = vector.shape_cast %253 : vector<1x32x32xbf16> to vector<32x32xbf16>
    %cst_249 = arith.constant dense<0.000000e+00> : vector<136x32xf32>
    %255 = tpu.matmul %252, %254, %cst_249 {dimension_numbers = #tpu.dot_dimension_numbers<[1], [0], [0], [1], [0, 0, 1, 1], [], []>} : vector<136x32xbf16>, vector<32x32xbf16>, vector<136x32xf32> -> vector<136x32xf32>
    %256 = arith.addf %251, %255 : vector<136x32xf32>
    %c4_250 = arith.constant 4 : index
    %c0_251 = arith.constant 0 : index
    %257 = vector.load %arg24[%c4_250, %c0_251] : memref<146x32xbf16, #tpu.memory_space<vmem>>, vector<136x32xbf16>
    %c3_252 = arith.constant 3 : index
    %c0_253 = arith.constant 0 : index
    %c0_254 = arith.constant 0 : index
    %258 = vector.load %arg10[%c3_252, %c0_253, %c0_254] : memref<9x32x32xbf16, #tpu.memory_space<vmem>>, vector<1x32x32xbf16>
    %259 = vector.shape_cast %258 : vector<1x32x32xbf16> to vector<32x32xbf16>
    %cst_255 = arith.constant dense<0.000000e+00> : vector<136x32xf32>
    %260 = tpu.matmul %257, %259, %cst_255 {dimension_numbers = #tpu.dot_dimension_numbers<[1], [0], [0], [1], [0, 0, 1, 1], [], []>} : vector<136x32xbf16>, vector<32x32xbf16>, vector<136x32xf32> -> vector<136x32xf32>
    %261 = arith.addf %256, %260 : vector<136x32xf32>
    %c5_256 = arith.constant 5 : index
    %c0_257 = arith.constant 0 : index
    %262 = vector.load %arg24[%c5_256, %c0_257] : memref<146x32xbf16, #tpu.memory_space<vmem>>, vector<136x32xbf16>
    %c4_258 = arith.constant 4 : index
    %c0_259 = arith.constant 0 : index
    %c0_260 = arith.constant 0 : index
    %263 = vector.load %arg10[%c4_258, %c0_259, %c0_260] : memref<9x32x32xbf16, #tpu.memory_space<vmem>>, vector<1x32x32xbf16>
    %264 = vector.shape_cast %263 : vector<1x32x32xbf16> to vector<32x32xbf16>
    %cst_261 = arith.constant dense<0.000000e+00> : vector<136x32xf32>
    %265 = tpu.matmul %262, %264, %cst_261 {dimension_numbers = #tpu.dot_dimension_numbers<[1], [0], [0], [1], [0, 0, 1, 1], [], []>} : vector<136x32xbf16>, vector<32x32xbf16>, vector<136x32xf32> -> vector<136x32xf32>
    %266 = arith.addf %261, %265 : vector<136x32xf32>
    %c6_262 = arith.constant 6 : index
    %c0_263 = arith.constant 0 : index
    %267 = vector.load %arg24[%c6_262, %c0_263] : memref<146x32xbf16, #tpu.memory_space<vmem>>, vector<136x32xbf16>
    %c5_264 = arith.constant 5 : index
    %c0_265 = arith.constant 0 : index
    %c0_266 = arith.constant 0 : index
    %268 = vector.load %arg10[%c5_264, %c0_265, %c0_266] : memref<9x32x32xbf16, #tpu.memory_space<vmem>>, vector<1x32x32xbf16>
    %269 = vector.shape_cast %268 : vector<1x32x32xbf16> to vector<32x32xbf16>
    %cst_267 = arith.constant dense<0.000000e+00> : vector<136x32xf32>
    %270 = tpu.matmul %267, %269, %cst_267 {dimension_numbers = #tpu.dot_dimension_numbers<[1], [0], [0], [1], [0, 0, 1, 1], [], []>} : vector<136x32xbf16>, vector<32x32xbf16>, vector<136x32xf32> -> vector<136x32xf32>
    %271 = arith.addf %266, %270 : vector<136x32xf32>
    %c8_268 = arith.constant 8 : index
    %c0_269 = arith.constant 0 : index
    %272 = vector.load %arg24[%c8_268, %c0_269] : memref<146x32xbf16, #tpu.memory_space<vmem>>, vector<136x32xbf16>
    %c6_270 = arith.constant 6 : index
    %c0_271 = arith.constant 0 : index
    %c0_272 = arith.constant 0 : index
    %273 = vector.load %arg10[%c6_270, %c0_271, %c0_272] : memref<9x32x32xbf16, #tpu.memory_space<vmem>>, vector<1x32x32xbf16>
    %274 = vector.shape_cast %273 : vector<1x32x32xbf16> to vector<32x32xbf16>
    %cst_273 = arith.constant dense<0.000000e+00> : vector<136x32xf32>
    %275 = tpu.matmul %272, %274, %cst_273 {dimension_numbers = #tpu.dot_dimension_numbers<[1], [0], [0], [1], [0, 0, 1, 1], [], []>} : vector<136x32xbf16>, vector<32x32xbf16>, vector<136x32xf32> -> vector<136x32xf32>
    %276 = arith.addf %271, %275 : vector<136x32xf32>
    %c9_274 = arith.constant 9 : index
    %c0_275 = arith.constant 0 : index
    %277 = vector.load %arg24[%c9_274, %c0_275] : memref<146x32xbf16, #tpu.memory_space<vmem>>, vector<136x32xbf16>
    %c7_276 = arith.constant 7 : index
    %c0_277 = arith.constant 0 : index
    %c0_278 = arith.constant 0 : index
    %278 = vector.load %arg10[%c7_276, %c0_277, %c0_278] : memref<9x32x32xbf16, #tpu.memory_space<vmem>>, vector<1x32x32xbf16>
    %279 = vector.shape_cast %278 : vector<1x32x32xbf16> to vector<32x32xbf16>
    %cst_279 = arith.constant dense<0.000000e+00> : vector<136x32xf32>
    %280 = tpu.matmul %277, %279, %cst_279 {dimension_numbers = #tpu.dot_dimension_numbers<[1], [0], [0], [1], [0, 0, 1, 1], [], []>} : vector<136x32xbf16>, vector<32x32xbf16>, vector<136x32xf32> -> vector<136x32xf32>
    %281 = arith.addf %276, %280 : vector<136x32xf32>
    %c10_280 = arith.constant 10 : index
    %c0_281 = arith.constant 0 : index
    %282 = vector.load %arg24[%c10_280, %c0_281] : memref<146x32xbf16, #tpu.memory_space<vmem>>, vector<136x32xbf16>
    %c8_282 = arith.constant 8 : index
    %c0_283 = arith.constant 0 : index
    %c0_284 = arith.constant 0 : index
    %283 = vector.load %arg10[%c8_282, %c0_283, %c0_284] : memref<9x32x32xbf16, #tpu.memory_space<vmem>>, vector<1x32x32xbf16>
    %284 = vector.shape_cast %283 : vector<1x32x32xbf16> to vector<32x32xbf16>
    %cst_285 = arith.constant dense<0.000000e+00> : vector<136x32xf32>
    %285 = tpu.matmul %282, %284, %cst_285 {dimension_numbers = #tpu.dot_dimension_numbers<[1], [0], [0], [1], [0, 0, 1, 1], [], []>} : vector<136x32xbf16>, vector<32x32xbf16>, vector<136x32xf32> -> vector<136x32xf32>
    %286 = arith.addf %281, %285 : vector<136x32xf32>
    %287 = vector.broadcast %239 : vector<1x32xf32> to vector<136x32xf32>
    %288 = arith.mulf %286, %287 : vector<136x32xf32>
    %289 = vector.broadcast %240 : vector<1x32xf32> to vector<136x32xf32>
    %290 = arith.addf %288, %289 : vector<136x32xf32>
    %291 = arith.addf %290, %178 : vector<136x32xf32>
    %cst_286 = arith.constant 0.000000e+00 : f32
    %292 = vector.broadcast %cst_286 : f32 to vector<136x32xf32>
    %293 = arith.maximumf %291, %292 : vector<136x32xf32>
    %294 = vector.broadcast %0 : vector<136x1xf32> to vector<136x32xf32>
    %295 = arith.mulf %293, %294 : vector<136x32xf32>
    %c0_287 = arith.constant 0 : index
    %c0_288 = arith.constant 0 : index
    %296 = vector.load %arg13[%c0_287, %c0_288] : memref<8x32xbf16, #tpu.memory_space<vmem>>, vector<8x32xbf16>
    %297 = arith.truncf %295 : vector<136x32xf32> to vector<136x32xbf16>
    %cst_289 = arith.constant dense<0.000000e+00> : vector<8x136xf32>
    %298 = tpu.matmul %296, %297, %cst_289 {dimension_numbers = #tpu.dot_dimension_numbers<[1], [1], [0], [0], [0, 0, 1, 0], [], []>} : vector<8x32xbf16>, vector<136x32xbf16>, vector<8x136xf32> -> vector<8x136xf32>
    %c0_290 = arith.constant 0 : index
    %c0_291 = arith.constant 0 : index
    %299 = vector.load %arg14[%c0_290, %c0_291] : memref<8x1xf32, #tpu.memory_space<vmem>>, vector<8x1xf32>
    %300 = vector.broadcast %299 : vector<8x1xf32> to vector<8x136xf32>
    %301 = arith.mulf %298, %300 : vector<8x136xf32>
    %c0_292 = arith.constant 0 : index
    %c0_293 = arith.constant 0 : index
    %302 = vector.load %arg15[%c0_292, %c0_293] : memref<8x1xf32, #tpu.memory_space<vmem>>, vector<8x1xf32>
    %303 = vector.broadcast %302 : vector<8x1xf32> to vector<8x136xf32>
    %304 = arith.addf %301, %303 : vector<8x136xf32>
    %cst_294 = arith.constant 0.000000e+00 : f32
    %305 = vector.broadcast %cst_294 : f32 to vector<8x136xf32>
    %306 = arith.maximumf %304, %305 : vector<8x136xf32>
    %c0_295 = arith.constant 0 : index
    %c0_296 = arith.constant 0 : index
    %307 = vector.load %arg3[%c0_295, %c0_296] : memref<8x136xf32, #tpu.memory_space<vmem>>, vector<8x136xf32>
    %308 = vector.extract_strided_slice %306 {offsets = [0, 0], sizes = [1, 136], strides = [1, 1]} : vector<8x136xf32> to vector<1x136xf32>
    %309 = vector.broadcast %308 : vector<1x136xf32> to vector<8x136xf32>
    %310 = arith.mulf %309, %307 : vector<8x136xf32>
    %311 = arith.truncf %310 : vector<8x136xf32> to vector<8x136xbf16>
    %312 = vector.extract_strided_slice %306 {offsets = [1, 0], sizes = [1, 136], strides = [1, 1]} : vector<8x136xf32> to vector<1x136xf32>
    %313 = vector.broadcast %312 : vector<1x136xf32> to vector<8x136xf32>
    %314 = arith.mulf %313, %307 : vector<8x136xf32>
    %315 = arith.truncf %314 : vector<8x136xf32> to vector<8x136xbf16>
    %316 = vector.extract_strided_slice %306 {offsets = [2, 0], sizes = [1, 136], strides = [1, 1]} : vector<8x136xf32> to vector<1x136xf32>
    %317 = vector.broadcast %316 : vector<1x136xf32> to vector<8x136xf32>
    %318 = arith.mulf %317, %307 : vector<8x136xf32>
    %319 = arith.truncf %318 : vector<8x136xf32> to vector<8x136xbf16>
    %c0_297 = arith.constant 0 : index
    %c0_298 = arith.constant 0 : index
    %320 = vector.load %arg16[%c0_297, %c0_298] : memref<136x9xbf16, #tpu.memory_space<vmem>>, vector<136x9xbf16>
    %cst_299 = arith.constant dense<0.000000e+00> : vector<8x9xf32>
    %321 = tpu.matmul %311, %320, %cst_299 {dimension_numbers = #tpu.dot_dimension_numbers<[1], [0], [0], [1], [0, 0, 1, 1], [], []>} : vector<8x136xbf16>, vector<136x9xbf16>, vector<8x9xf32> -> vector<8x9xf32>
    %c0_300 = arith.constant 0 : index
    %c0_301 = arith.constant 0 : index
    %322 = vector.load %arg17[%c0_300, %c0_301] : memref<136x9xbf16, #tpu.memory_space<vmem>>, vector<136x9xbf16>
    %cst_302 = arith.constant dense<0.000000e+00> : vector<8x9xf32>
    %323 = tpu.matmul %315, %322, %cst_302 {dimension_numbers = #tpu.dot_dimension_numbers<[1], [0], [0], [1], [0, 0, 1, 1], [], []>} : vector<8x136xbf16>, vector<136x9xbf16>, vector<8x9xf32> -> vector<8x9xf32>
    %324 = arith.addf %321, %323 : vector<8x9xf32>
    %c0_303 = arith.constant 0 : index
    %c0_304 = arith.constant 0 : index
    %325 = vector.load %arg18[%c0_303, %c0_304] : memref<1x9xf32, #tpu.memory_space<vmem>>, vector<1x9xf32>
    %326 = vector.broadcast %325 : vector<1x9xf32> to vector<8x9xf32>
    %327 = arith.addf %324, %326 : vector<8x9xf32>
    %c0_305 = arith.constant 0 : index
    %c0_306 = arith.constant 0 : index
    %328 = vector.load %arg19[%c0_305, %c0_306] : memref<136x256xbf16, #tpu.memory_space<vmem>>, vector<136x256xbf16>
    %cst_307 = arith.constant dense<0.000000e+00> : vector<8x256xf32>
    %329 = tpu.matmul %319, %328, %cst_307 {dimension_numbers = #tpu.dot_dimension_numbers<[1], [0], [0], [1], [0, 0, 1, 1], [], []>} : vector<8x136xbf16>, vector<136x256xbf16>, vector<8x256xf32> -> vector<8x256xf32>
    %c0_308 = arith.constant 0 : index
    %c0_309 = arith.constant 0 : index
    %330 = vector.load %arg20[%c0_308, %c0_309] : memref<1x256xf32, #tpu.memory_space<vmem>>, vector<1x256xf32>
    %331 = vector.broadcast %330 : vector<1x256xf32> to vector<8x256xf32>
    %332 = arith.addf %329, %331 : vector<8x256xf32>
    %cst_310 = arith.constant 0.000000e+00 : f32
    %333 = vector.broadcast %cst_310 : f32 to vector<8x256xf32>
    %334 = arith.maximumf %332, %333 : vector<8x256xf32>
    %c0_311 = arith.constant 0 : index
    %c0_312 = arith.constant 0 : index
    %335 = vector.load %arg21[%c0_311, %c0_312] : memref<1x256xf32, #tpu.memory_space<vmem>>, vector<1x256xf32>
    %336 = vector.broadcast %335 : vector<1x256xf32> to vector<8x256xf32>
    %337 = arith.mulf %334, %336 : vector<8x256xf32>
    %cst_313 = arith.constant dense<0.000000e+00> : vector<8xf32>
    %338 = vector.multi_reduction <add>, %337, %cst_313 [1] : vector<8x256xf32> to vector<8xf32>
    %339 = vector.shape_cast %338 : vector<8xf32> to vector<8x1xf32>
    %c0_314 = arith.constant 0 : index
    %c0_315 = arith.constant 0 : index
    %340 = vector.load %arg22[%c0_314, %c0_315] : memref<1x1xf32, #tpu.memory_space<vmem>>, vector<1x1xf32>
    %341 = vector.broadcast %340 : vector<1x1xf32> to vector<8x1xf32>
    %342 = arith.addf %339, %341 : vector<8x1xf32>
    %343 = math.tanh %342 : vector<8x1xf32>
    %cst_316 = arith.constant 0.000000e+00 : f32
    %344 = vector.broadcast %cst_316 : f32 to vector<8x128xf32>
    %c0_317 = arith.constant 0 : index
    %c0_318 = arith.constant 0 : index
    %345 = vector.load %arg23[%c0_317, %c0_318] : memref<8x128xf32, #tpu.memory_space<vmem>>, vector<8x128xf32>
    tpu.vector_store %arg23[%c0_317, %c0_318], %344 {strides = array<i32>} : memref<8x128xf32, #tpu.memory_space<vmem>>, vector<8x128xf32>,
    %c0_319 = arith.constant 0 : index
    %c0_320 = arith.constant 0 : index
    %346 = vector.load %arg23[%c0_319, %c0_320] : memref<8x128xf32, #tpu.memory_space<vmem>>, vector<8x9xf32>
    tpu.vector_store %arg23[%c0_319, %c0_320], %327 {strides = array<i32>} : memref<8x128xf32, #tpu.memory_space<vmem>>, vector<8x9xf32>,
    %c0_321 = arith.constant 0 : index
    %c9_322 = arith.constant 9 : index
    %347 = vector.load %arg23[%c0_321, %c9_322] : memref<8x128xf32, #tpu.memory_space<vmem>>, vector<8x1xf32>
    tpu.vector_store %arg23[%c0_321, %c9_322], %343 {strides = array<i32>} : memref<8x128xf32, #tpu.memory_space<vmem>>, vector<8x1xf32>,
    return
  }
  func.func @transform_0(%arg0: i32) -> (i32, i32, i32) {
    %c0_i32 = arith.constant 0 : i32
    %c0_i32_0 = arith.constant 0 : i32
    %c0_i32_1 = arith.constant 0 : i32
    return %arg0, %c0_i32, %c0_i32_0 : i32, i32, i32
  }
  func.func @transform_1(%arg0: i32) -> (i32, i32) {
    %c0_i32 = arith.constant 0 : i32
    %c0_i32_0 = arith.constant 0 : i32
    %c0_i32_1 = arith.constant 0 : i32
    return %c0_i32, %c0_i32_0 : i32, i32
  }
  func.func @transform_2(%arg0: i32) -> (i32, i32) {
    %c0_i32 = arith.constant 0 : i32
    %c0_i32_0 = arith.constant 0 : i32
    %c0_i32_1 = arith.constant 0 : i32
    return %c0_i32, %c0_i32_0 : i32, i32
  }
  func.func @transform_3(%arg0: i32) -> (i32, i32, i32) {
    %c0_i32 = arith.constant 0 : i32
    %c0_i32_0 = arith.constant 0 : i32
    %c0_i32_1 = arith.constant 0 : i32
    %c0_i32_2 = arith.constant 0 : i32
    return %c0_i32, %c0_i32_0, %c0_i32_1 : i32, i32, i32
  }
  func.func @transform_4(%arg0: i32) -> (i32, i32) {
    %c0_i32 = arith.constant 0 : i32
    %c0_i32_0 = arith.constant 0 : i32
    %c0_i32_1 = arith.constant 0 : i32
    return %c0_i32, %c0_i32_0 : i32, i32
  }
  func.func @transform_5(%arg0: i32) -> (i32, i32) {
    %c0_i32 = arith.constant 0 : i32
    %c0_i32_0 = arith.constant 0 : i32
    %c0_i32_1 = arith.constant 0 : i32
    return %c0_i32, %c0_i32_0 : i32, i32
  }
  func.func @transform_6(%arg0: i32) -> (i32, i32, i32) {
    %c0_i32 = arith.constant 0 : i32
    %c0_i32_0 = arith.constant 0 : i32
    %c0_i32_1 = arith.constant 0 : i32
    %c0_i32_2 = arith.constant 0 : i32
    return %c0_i32, %c0_i32_0, %c0_i32_1 : i32, i32, i32
  }
  func.func @transform_7(%arg0: i32) -> (i32, i32) {
    %c0_i32 = arith.constant 0 : i32
    %c0_i32_0 = arith.constant 0 : i32
    %c0_i32_1 = arith.constant 0 : i32
    return %c0_i32, %c0_i32_0 : i32, i32
  }
  func.func @transform_8(%arg0: i32) -> (i32, i32) {
    %c0_i32 = arith.constant 0 : i32
    %c0_i32_0 = arith.constant 0 : i32
    %c0_i32_1 = arith.constant 0 : i32
    return %c0_i32, %c0_i32_0 : i32, i32
  }
  func.func @transform_9(%arg0: i32) -> (i32, i32, i32) {
    %c0_i32 = arith.constant 0 : i32
    %c0_i32_0 = arith.constant 0 : i32
    %c0_i32_1 = arith.constant 0 : i32
    %c0_i32_2 = arith.constant 0 : i32
    return %c0_i32, %c0_i32_0, %c0_i32_1 : i32, i32, i32
  }
  func.func @transform_10(%arg0: i32) -> (i32, i32) {
    %c0_i32 = arith.constant 0 : i32
    %c0_i32_0 = arith.constant 0 : i32
    %c0_i32_1 = arith.constant 0 : i32
    return %c0_i32, %c0_i32_0 : i32, i32
  }
  func.func @transform_11(%arg0: i32) -> (i32, i32) {
    %c0_i32 = arith.constant 0 : i32
    %c0_i32_0 = arith.constant 0 : i32
    %c0_i32_1 = arith.constant 0 : i32
    return %c0_i32, %c0_i32_0 : i32, i32
  }
  func.func @transform_12(%arg0: i32) -> (i32, i32) {
    %c0_i32 = arith.constant 0 : i32
    %c0_i32_0 = arith.constant 0 : i32
    %c0_i32_1 = arith.constant 0 : i32
    return %c0_i32, %c0_i32_0 : i32, i32
  }
  func.func @transform_13(%arg0: i32) -> (i32, i32) {
    %c0_i32 = arith.constant 0 : i32
    %c0_i32_0 = arith.constant 0 : i32
    %c0_i32_1 = arith.constant 0 : i32
    return %c0_i32, %c0_i32_0 : i32, i32
  }
  func.func @transform_14(%arg0: i32) -> (i32, i32) {
    %c0_i32 = arith.constant 0 : i32
    %c0_i32_0 = arith.constant 0 : i32
    %c0_i32_1 = arith.constant 0 : i32
    return %c0_i32, %c0_i32_0 : i32, i32
  }
  func.func @transform_15(%arg0: i32) -> (i32, i32) {
    %c0_i32 = arith.constant 0 : i32
    %c0_i32_0 = arith.constant 0 : i32
    %c0_i32_1 = arith.constant 0 : i32
    return %c0_i32, %c0_i32_0 : i32, i32
  }
  func.func @transform_16(%arg0: i32) -> (i32, i32) {
    %c0_i32 = arith.constant 0 : i32
    %c0_i32_0 = arith.constant 0 : i32
    %c0_i32_1 = arith.constant 0 : i32
    return %c0_i32, %c0_i32_0 : i32, i32
  }
  func.func @transform_17(%arg0: i32) -> (i32, i32) {
    %c0_i32 = arith.constant 0 : i32
    %c0_i32_0 = arith.constant 0 : i32
    %c0_i32_1 = arith.constant 0 : i32
    return %c0_i32, %c0_i32_0 : i32, i32
  }
  func.func @transform_18(%arg0: i32) -> (i32, i32) {
    %c0_i32 = arith.constant 0 : i32
    %c0_i32_0 = arith.constant 0 : i32
    %c0_i32_1 = arith.constant 0 : i32
    return %c0_i32, %c0_i32_0 : i32, i32
  }
  func.func @transform_19(%arg0: i32) -> (i32, i32) {
    %c0_i32 = arith.constant 0 : i32
    %c0_i32_0 = arith.constant 0 : i32
    %c0_i32_1 = arith.constant 0 : i32
    return %c0_i32, %c0_i32_0 : i32, i32
  }
  func.func @transform_20(%arg0: i32) -> (i32, i32) {
    %c0_i32 = arith.constant 0 : i32
    %c0_i32_0 = arith.constant 0 : i32
    %c0_i32_1 = arith.constant 0 : i32
    return %c0_i32, %c0_i32_0 : i32, i32
  }
  func.func @transform_21(%arg0: i32) -> (i32, i32) {
    %c0_i32 = arith.constant 0 : i32
    %c0_i32_0 = arith.constant 0 : i32
    %c0_i32_1 = arith.constant 0 : i32
    return %c0_i32, %c0_i32_0 : i32, i32
  }
  func.func @transform_22(%arg0: i32) -> (i32, i32) {
    %c0_i32 = arith.constant 0 : i32
    %c0_i32_0 = arith.constant 0 : i32
    return %arg0, %c0_i32 : i32, i32
  }
}

</mosaic_0001>

<llo_original>
// kernel: forward.1
$region0: #{forward.1}
  #allocation0 [shape = 'u32[]', space=smem, size = 0x4, offset = 0x4, fixed_abs, tag = 'smem constant byte address 0x4 - core index']
  #allocation1 [shape = 'u32[144,128]{1,0:T(1,128)}', space=vmem, size = 0x12000, scoped, tag = 'internal scratch']
  #allocation2 [shape = 'bf16[146,32]{1,0:T(8,128)(2,1)}', space=vmem, size = 0x9800, scoped, tag = 'scratch operand']
  #allocation3 [shape = 'f32[1,1]{1,0:T(1,128)S(1)}', space=vmem, size = 0x200, scoped, tag = 'scoped memory for forward.1']
  %s0 = inlined_call_operand.vmem [shape: bf16[2,146,8], index: 0, kind: input, shape index: {}]
  %s1 = inlined_call_operand.vmem [shape: f32[136,1], index: 1, kind: input, shape index: {}]
  %s2 = inlined_call_operand.vmem [shape: f32[8,136], index: 2, kind: input, shape index: {}]
  %s3 = inlined_call_operand.vmem [shape: bf16[9,8,32], index: 3, kind: input, shape index: {}]
  %s4 = inlined_call_operand.vmem [shape: f32[1,32], index: 4, kind: input, shape index: {}]
  %s5 = inlined_call_operand.vmem [shape: f32[1,32], index: 5, kind: input, shape index: {}]
  %s6 = inlined_call_operand.vmem [shape: bf16[9,32,32], index: 6, kind: input, shape index: {}]
  %s7 = inlined_call_operand.vmem [shape: f32[1,32], index: 7, kind: input, shape index: {}]
  %s8 = inlined_call_operand.vmem [shape: f32[1,32], index: 8, kind: input, shape index: {}]
  %s9 = inlined_call_operand.vmem [shape: bf16[9,32,32], index: 9, kind: input, shape index: {}]
  %s10 = inlined_call_operand.vmem [shape: f32[1,32], index: 10, kind: input, shape index: {}]
  %s11 = inlined_call_operand.vmem [shape: f32[1,32], index: 11, kind: input, shape index: {}]
  %s12 = inlined_call_operand.vmem [shape: bf16[8,32], index: 12, kind: input, shape index: {}]
  %s13 = inlined_call_operand.vmem [shape: f32[8,1], index: 13, kind: input, shape index: {}]
  %s14 = inlined_call_operand.vmem [shape: f32[8,1], index: 14, kind: input, shape index: {}]
  %s15 = inlined_call_operand.vmem [shape: bf16[136,9], index: 15, kind: input, shape index: {}]
  %s16 = inlined_call_operand.vmem [shape: bf16[136,9], index: 16, kind: input, shape index: {}]
  %s17 = inlined_call_operand.vmem [shape: f32[1,9], index: 17, kind: input, shape index: {}]
  %s18 = inlined_call_operand.vmem [shape: bf16[136,256], index: 18, kind: input, shape index: {}]
  %s19 = inlined_call_operand.vmem [shape: f32[1,256], index: 19, kind: input, shape index: {}]
  %s20 = inlined_call_operand.vmem [shape: f32[1,256], index: 20, kind: input, shape index: {}]
  %s21 = inlined_call_operand.<no memory space> [shape: f32[1,1], index: 21, kind: input, shape index: {}]
  %s22 = inlined_call_operand.vmem [shape: f32[16,128], index: 22, kind: output, shape index: {}]
  %s23 = sld [smem:[#allocation0]]
  $region121: #{forward.1} parent=0
    _
  %s25 = ssub.s32 1, %s23
  %s26 = scalar_select 0, %s25, %s23
  %v27 = vstv %s21
  %28 = vst [vmem:[#allocation3] sm:$0x1] %v27
  loop: start=0, step=1, limit=4
  $region2: #{forward.1} parent=0 // loop_pre_header
    _
  $region3: #{forward.1} parent=0 // loop_header
    %s30 = sphi 0, %s34
    %p31 = scmp.ge.s32.totalorder %s30, 4
    %s40 = sphi 0, %s42
    %s43 = sphi 0, %s40
    %s44 = sphi 0, %s43
    %s60 = sphi 0, %s44
    %s64 = sphi 0, %s64
    %s66 = sphi 0, %s64
    %s67 = sphi 0, %s66
    %s81 = sphi 0, %s67
    %s85 = sphi 0, %s85
    %s87 = sphi 0, %s85
    %s88 = sphi 0, %s87
    %s102 = sphi 0, %s88
    %s106 = sphi 0, %s106
    %s108 = sphi 0, %s106
    %s109 = sphi 0, %s108
    %s123 = sphi 0, %s109
    %s127 = sphi 0, %s127
    %s129 = sphi 0, %s127
    %s130 = sphi 0, %s129
    %s144 = sphi 0, %s130
    %s148 = sphi 0, %s148
    %s150 = sphi 0, %s148
    %s151 = sphi 0, %s150
    %s165 = sphi 0, %s151
    %s169 = sphi 0, %s169
    %s171 = sphi 0, %s169
    %s172 = sphi 0, %s171
    %s186 = sphi 0, %s172
    %s190 = sphi 0, %s190
    %s192 = sphi 0, %s190
    %s193 = sphi 0, %s192
    %s207 = sphi 0, %s193
    %s211 = sphi 0, %s211
    %s213 = sphi 0, %s211
    %s214 = sphi 0, %s213
    %s228 = sphi 0, %s214
    %s232 = sphi 0, %s232
    %s234 = sphi 0, %s232
    %s235 = sphi 0, %s234
    %s249 = sphi 0, %s235
    %s253 = sphi 0, %s253
    %s255 = sphi 0, %s253
    %s256 = sphi 0, %s255
    %s270 = sphi 0, %s256
    %s274 = sphi 0, %s274
    %s276 = sphi 0, %s274
    %s277 = sphi 0, %s276
    %s291 = sphi 0, %s277
    %s295 = sphi 0, %s295
    %s297 = sphi 0, %s295
    %s298 = sphi 0, %s297
    %s312 = sphi 0, %s298
    %s316 = sphi 0, %s316
    %s318 = sphi 0, %s316
    %s319 = sphi 0, %s318
    %s333 = sphi 0, %s319
    %s337 = sphi 0, %s337
    %s339 = sphi 0, %s337
    %s340 = sphi 0, %s339
    %s354 = sphi 0, %s340
    %s358 = sphi 0, %s358
    %s360 = sphi 0, %s358
    %s361 = sphi 0, %s360
    %s375 = sphi 0, %s361
    %s379 = sphi 0, %s379
    %s381 = sphi 0, %s379
    %s382 = sphi 0, %s381
    %s396 = sphi 0, %s382
    %s400 = sphi 0, %s400
    %s402 = sphi 0, %s400
    %s403 = sphi 0, %s402
    %s417 = sphi 0, %s403
    %s421 = sphi 0, %s421
    %s423 = sphi 0, %s421
    %s424 = sphi 0, %s423
    %s438 = sphi 0, %s424
    %s442 = sphi 0, %s442
    %s444 = sphi 0, %s442
    %s445 = sphi 0, %s444
    %s459 = sphi 0, %s445
    %s463 = sphi 0, %s463
    %s465 = sphi 0, %s463
    %s466 = sphi 0, %s465
    %s480 = sphi 0, %s466
    %s484 = sphi 0, %s484
    %s486 = sphi 0, %s484
    %s487 = sphi 0, %s486
    %s501 = sphi 0, %s487
    %s507 = sphi 0, %s509
    %s510 = sphi 0, %s507
    %s511 = sphi 0, %s510
    %s527 = sphi 0, %s511
  $region4: #{forward.1} parent=0 // loop_header_branch
    %33 = sbr.rel (%p31) target = $region8
  $region5: #{forward.1} parent=0 // loop_body
    %s35 = ssub.s32 %s30, 1
    %s36 = ssub.s32 %s30, 2
    %s37 = sadd.s32 %s30, 1
    %s38 = ssub.s32 %s30, %s37
    %p39 = scmp.eq.s32.totalorder %s38, 0
    %s41 = sadd.s32 %s40, 1
    %s42 = scalar_select %p39, %s40, %s41
    %p45 = pneg %p39
    %p46 = scmp.eq.s32.totalorder %s30, 1
    %p47 = por %p45, %p46
    %p48 = scmp.ne.s32.totalorder %s40, %s43
    %p49 = scmp.eq.s32.totalorder %s30, 0
    %p50 = por %p48, %p49
    %p51 = scmp.ne.s32.totalorder %s40, %s43
    %p52 = scmp.eq.s32.totalorder %s35, 1
    %p53 = por %p51, %p52
    %p54 = scmp.ne.s32.totalorder %s43, %s44
    %p55 = scmp.eq.s32.totalorder %s35, 0
    %p56 = por %p54, %p55
    %p57 = scmp.ne.s32.totalorder %s43, %s44
    %p58 = scmp.eq.s32.totalorder %s36, 1
    %p59 = por %p57, %p58
    %p61 = scmp.ne.s32.totalorder %s44, %s60
    %p62 = scmp.eq.s32.totalorder %s36, 0
    %p63 = por %p61, %p62
    %s65 = sadd.s32 %s64, 1
    %p68 = scmp.eq.s32.totalorder %s30, 1
    %p69 = scmp.ne.s32.totalorder %s64, %s66
    %p70 = scmp.eq.s32.totalorder %s30, 0
    %p71 = por %p69, %p70
    %p72 = scmp.ne.s32.totalorder %s64, %s66
    %p73 = scmp.eq.s32.totalorder %s35, 1
    %p74 = por %p72, %p73
    %p75 = scmp.ne.s32.totalorder %s66, %s67
    %p76 = scmp.eq.s32.totalorder %s35, 0
    %p77 = por %p75, %p76
    %p78 = scmp.ne.s32.totalorder %s66, %s67
    %p79 = scmp.eq.s32.totalorder %s36, 1
    %p80 = por %p78, %p79
    %p82 = scmp.ne.s32.totalorder %s67, %s81
    %p83 = scmp.eq.s32.totalorder %s36, 0
    %p84 = por %p82, %p83
    %s86 = sadd.s32 %s85, 1
    %p89 = scmp.eq.s32.totalorder %s30, 1
    %p90 = scmp.ne.s32.totalorder %s85, %s87
    %p91 = scmp.eq.s32.totalorder %s30, 0
    %p92 = por %p90, %p91
    %p93 = scmp.ne.s32.totalorder %s85, %s87
    %p94 = scmp.eq.s32.totalorder %s35, 1
    %p95 = por %p93, %p94
    %p96 = scmp.ne.s32.totalorder %s87, %s88
    %p97 = scmp.eq.s32.totalorder %s35, 0
    %p98 = por %p96, %p97
    %p99 = scmp.ne.s32.totalorder %s87, %s88
    %p100 = scmp.eq.s32.totalorder %s36, 1
    %p101 = por %p99, %p100
    %p103 = scmp.ne.s32.totalorder %s88, %s102
    %p104 = scmp.eq.s32.totalorder %s36, 0
    %p105 = por %p103, %p104
    %s107 = sadd.s32 %s106, 1
    %p110 = scmp.eq.s32.totalorder %s30, 1
    %p111 = scmp.ne.s32.totalorder %s106, %s108
    %p112 = scmp.eq.s32.totalorder %s30, 0
    %p113 = por %p111, %p112
    %p114 = scmp.ne.s32.totalorder %s106, %s108
    %p115 = scmp.eq.s32.totalorder %s35, 1
    %p116 = por %p114, %p115
    %p117 = scmp.ne.s32.totalorder %s108, %s109
    %p118 = scmp.eq.s32.totalorder %s35, 0
    %p119 = por %p117, %p118
    %p120 = scmp.ne.s32.totalorder %s108, %s109
    %p121 = scmp.eq.s32.totalorder %s36, 1
    %p122 = por %p120, %p121
    %p124 = scmp.ne.s32.totalorder %s109, %s123
    %p125 = scmp.eq.s32.totalorder %s36, 0
    %p126 = por %p124, %p125
    %s128 = sadd.s32 %s127, 1
    %p131 = scmp.eq.s32.totalorder %s30, 1
    %p132 = scmp.ne.s32.totalorder %s127, %s129
    %p133 = scmp.eq.s32.totalorder %s30, 0
    %p134 = por %p132, %p133
    %p135 = scmp.ne.s32.totalorder %s127, %s129
    %p136 = scmp.eq.s32.totalorder %s35, 1
    %p137 = por %p135, %p136
    %p138 = scmp.ne.s32.totalorder %s129, %s130
    %p139 = scmp.eq.s32.totalorder %s35, 0
    %p140 = por %p138, %p139
    %p141 = scmp.ne.s32.totalorder %s129, %s130
    %p142 = scmp.eq.s32.totalorder %s36, 1
    %p143 = por %p141, %p142
    %p145 = scmp.ne.s32.totalorder %s130, %s144
    %p146 = scmp.eq.s32.totalorder %s36, 0
    %p147 = por %p145, %p146
    %s149 = sadd.s32 %s148, 1
    %p152 = scmp.eq.s32.totalorder %s30, 1
    %p153 = scmp.ne.s32.totalorder %s148, %s150
    %p154 = scmp.eq.s32.totalorder %s30, 0
    %p155 = por %p153, %p154
    %p156 = scmp.ne.s32.totalorder %s148, %s150
    %p157 = scmp.eq.s32.totalorder %s35, 1
    %p158 = por %p156, %p157
    %p159 = scmp.ne.s32.totalorder %s150, %s151
    %p160 = scmp.eq.s32.totalorder %s35, 0
    %p161 = por %p159, %p160
    %p162 = scmp.ne.s32.totalorder %s150, %s151
    %p163 = scmp.eq.s32.totalorder %s36, 1
    %p164 = por %p162, %p163
    %p166 = scmp.ne.s32.totalorder %s151, %s165
    %p167 = scmp.eq.s32.totalorder %s36, 0
    %p168 = por %p166, %p167
    %s170 = sadd.s32 %s169, 1
    %p173 = scmp.eq.s32.totalorder %s30, 1
    %p174 = scmp.ne.s32.totalorder %s169, %s171
    %p175 = scmp.eq.s32.totalorder %s30, 0
    %p176 = por %p174, %p175
    %p177 = scmp.ne.s32.totalorder %s169, %s171
    %p178 = scmp.eq.s32.totalorder %s35, 1
    %p179 = por %p177, %p178
    %p180 = scmp.ne.s32.totalorder %s171, %s172
    %p181 = scmp.eq.s32.totalorder %s35, 0
    %p182 = por %p180, %p181
    %p183 = scmp.ne.s32.totalorder %s171, %s172
    %p184 = scmp.eq.s32.totalorder %s36, 1
    %p185 = por %p183, %p184
    %p187 = scmp.ne.s32.totalorder %s172, %s186
    %p188 = scmp.eq.s32.totalorder %s36, 0
    %p189 = por %p187, %p188
    %s191 = sadd.s32 %s190, 1
    %p194 = scmp.eq.s32.totalorder %s30, 1
    %p195 = scmp.ne.s32.totalorder %s190, %s192
    %p196 = scmp.eq.s32.totalorder %s30, 0
    %p197 = por %p195, %p196
    %p198 = scmp.ne.s32.totalorder %s190, %s192
    %p199 = scmp.eq.s32.totalorder %s35, 1
    %p200 = por %p198, %p199
    %p201 = scmp.ne.s32.totalorder %s192, %s193
    %p202 = scmp.eq.s32.totalorder %s35, 0
    %p203 = por %p201, %p202
    %p204 = scmp.ne.s32.totalorder %s192, %s193
    %p205 = scmp.eq.s32.totalorder %s36, 1
    %p206 = por %p204, %p205
    %p208 = scmp.ne.s32.totalorder %s193, %s207
    %p209 = scmp.eq.s32.totalorder %s36, 0
    %p210 = por %p208, %p209
    %s212 = sadd.s32 %s211, 1
    %p215 = scmp.eq.s32.totalorder %s30, 1
    %p216 = scmp.ne.s32.totalorder %s211, %s213
    %p217 = scmp.eq.s32.totalorder %s30, 0
    %p218 = por %p216, %p217
    %p219 = scmp.ne.s32.totalorder %s211, %s213
    %p220 = scmp.eq.s32.totalorder %s35, 1
    %p221 = por %p219, %p220
    %p222 = scmp.ne.s32.totalorder %s213, %s214
    %p223 = scmp.eq.s32.totalorder %s35, 0
    %p224 = por %p222, %p223
    %p225 = scmp.ne.s32.totalorder %s213, %s214
    %p226 = scmp.eq.s32.totalorder %s36, 1
    %p227 = por %p225, %p226
    %p229 = scmp.ne.s32.totalorder %s214, %s228
    %p230 = scmp.eq.s32.totalorder %s36, 0
    %p231 = por %p229, %p230
    %s233 = sadd.s32 %s232, 1
    %p236 = scmp.eq.s32.totalorder %s30, 1
    %p237 = scmp.ne.s32.totalorder %s232, %s234
    %p238 = scmp.eq.s32.totalorder %s30, 0
    %p239 = por %p237, %p238
    %p240 = scmp.ne.s32.totalorder %s232, %s234
    %p241 = scmp.eq.s32.totalorder %s35, 1
    %p242 = por %p240, %p241
    %p243 = scmp.ne.s32.totalorder %s234, %s235
    %p244 = scmp.eq.s32.totalorder %s35, 0
    %p245 = por %p243, %p244
    %p246 = scmp.ne.s32.totalorder %s234, %s235
    %p247 = scmp.eq.s32.totalorder %s36, 1
    %p248 = por %p246, %p247
    %p250 = scmp.ne.s32.totalorder %s235, %s249
    %p251 = scmp.eq.s32.totalorder %s36, 0
    %p252 = por %p250, %p251
    %s254 = sadd.s32 %s253, 1
    %p257 = scmp.eq.s32.totalorder %s30, 1
    %p258 = scmp.ne.s32.totalorder %s253, %s255
    %p259 = scmp.eq.s32.totalorder %s30, 0
    %p260 = por %p258, %p259
    %p261 = scmp.ne.s32.totalorder %s253, %s255
    %p262 = scmp.eq.s32.totalorder %s35, 1
    %p263 = por %p261, %p262
    %p264 = scmp.ne.s32.totalorder %s255, %s256
    %p265 = scmp.eq.s32.totalorder %s35, 0
    %p266 = por %p264, %p265
    %p267 = scmp.ne.s32.totalorder %s255, %s256
    %p268 = scmp.eq.s32.totalorder %s36, 1
    %p269 = por %p267, %p268
    %p271 = scmp.ne.s32.totalorder %s256, %s270
    %p272 = scmp.eq.s32.totalorder %s36, 0
    %p273 = por %p271, %p272
    %s275 = sadd.s32 %s274, 1
    %p278 = scmp.eq.s32.totalorder %s30, 1
    %p279 = scmp.ne.s32.totalorder %s274, %s276
    %p280 = scmp.eq.s32.totalorder %s30, 0
    %p281 = por %p279, %p280
    %p282 = scmp.ne.s32.totalorder %s274, %s276
    %p283 = scmp.eq.s32.totalorder %s35, 1
    %p284 = por %p282, %p283
    %p285 = scmp.ne.s32.totalorder %s276, %s277
    %p286 = scmp.eq.s32.totalorder %s35, 0
    %p287 = por %p285, %p286
    %p288 = scmp.ne.s32.totalorder %s276, %s277
    %p289 = scmp.eq.s32.totalorder %s36, 1
    %p290 = por %p288, %p289
    %p292 = scmp.ne.s32.totalorder %s277, %s291
    %p293 = scmp.eq.s32.totalorder %s36, 0
    %p294 = por %p292, %p293
    %s296 = sadd.s32 %s295, 1
    %p299 = scmp.eq.s32.totalorder %s30, 1
    %p300 = scmp.ne.s32.totalorder %s295, %s297
    %p301 = scmp.eq.s32.totalorder %s30, 0
    %p302 = por %p300, %p301
    %p303 = scmp.ne.s32.totalorder %s295, %s297
    %p304 = scmp.eq.s32.totalorder %s35, 1
    %p305 = por %p303, %p304
    %p306 = scmp.ne.s32.totalorder %s297, %s298
    %p307 = scmp.eq.s32.totalorder %s35, 0
    %p308 = por %p306, %p307
    %p309 = scmp.ne.s32.totalorder %s297, %s298
    %p310 = scmp.eq.s32.totalorder %s36, 1
    %p311 = por %p309, %p310
    %p313 = scmp.ne.s32.totalorder %s298, %s312
    %p314 = scmp.eq.s32.totalorder %s36, 0
    %p315 = por %p313, %p314
    %s317 = sadd.s32 %s316, 1
    %p320 = scmp.eq.s32.totalorder %s30, 1
    %p321 = scmp.ne.s32.totalorder %s316, %s318
    %p322 = scmp.eq.s32.totalorder %s30, 0
    %p323 = por %p321, %p322
    %p324 = scmp.ne.s32.totalorder %s316, %s318
    %p325 = scmp.eq.s32.totalorder %s35, 1
    %p326 = por %p324, %p325
    %p327 = scmp.ne.s32.totalorder %s318, %s319
    %p328 = scmp.eq.s32.totalorder %s35, 0
    %p329 = por %p327, %p328
    %p330 = scmp.ne.s32.totalorder %s318, %s319
    %p331 = scmp.eq.s32.totalorder %s36, 1
    %p332 = por %p330, %p331
    %p334 = scmp.ne.s32.totalorder %s319, %s333
    %p335 = scmp.eq.s32.totalorder %s36, 0
    %p336 = por %p334, %p335
    %s338 = sadd.s32 %s337, 1
    %p341 = scmp.eq.s32.totalorder %s30, 1
    %p342 = scmp.ne.s32.totalorder %s337, %s339
    %p343 = scmp.eq.s32.totalorder %s30, 0
    %p344 = por %p342, %p343
    %p345 = scmp.ne.s32.totalorder %s337, %s339
    %p346 = scmp.eq.s32.totalorder %s35, 1
    %p347 = por %p345, %p346
    %p348 = scmp.ne.s32.totalorder %s339, %s340
    %p349 = scmp.eq.s32.totalorder %s35, 0
    %p350 = por %p348, %p349
    %p351 = scmp.ne.s32.totalorder %s339, %s340
    %p352 = scmp.eq.s32.totalorder %s36, 1
    %p353 = por %p351, %p352
    %p355 = scmp.ne.s32.totalorder %s340, %s354
    %p356 = scmp.eq.s32.totalorder %s36, 0
    %p357 = por %p355, %p356
    %s359 = sadd.s32 %s358, 1
    %p362 = scmp.eq.s32.totalorder %s30, 1
    %p363 = scmp.ne.s32.totalorder %s358, %s360
    %p364 = scmp.eq.s32.totalorder %s30, 0
    %p365 = por %p363, %p364
    %p366 = scmp.ne.s32.totalorder %s358, %s360
    %p367 = scmp.eq.s32.totalorder %s35, 1
    %p368 = por %p366, %p367
    %p369 = scmp.ne.s32.totalorder %s360, %s361
    %p370 = scmp.eq.s32.totalorder %s35, 0
    %p371 = por %p369, %p370
    %p372 = scmp.ne.s32.totalorder %s360, %s361
    %p373 = scmp.eq.s32.totalorder %s36, 1
    %p374 = por %p372, %p373
    %p376 = scmp.ne.s32.totalorder %s361, %s375
    %p377 = scmp.eq.s32.totalorder %s36, 0
    %p378 = por %p376, %p377
    %s380 = sadd.s32 %s379, 1
    %p383 = scmp.eq.s32.totalorder %s30, 1
    %p384 = scmp.ne.s32.totalorder %s379, %s381
    %p385 = scmp.eq.s32.totalorder %s30, 0
    %p386 = por %p384, %p385
    %p387 = scmp.ne.s32.totalorder %s379, %s381
    %p388 = scmp.eq.s32.totalorder %s35, 1
    %p389 = por %p387, %p388
    %p390 = scmp.ne.s32.totalorder %s381, %s382
    %p391 = scmp.eq.s32.totalorder %s35, 0
    %p392 = por %p390, %p391
    %p393 = scmp.ne.s32.totalorder %s381, %s382
    %p394 = scmp.eq.s32.totalorder %s36, 1
    %p395 = por %p393, %p394
    %p397 = scmp.ne.s32.totalorder %s382, %s396
    %p398 = scmp.eq.s32.totalorder %s36, 0
    %p399 = por %p397, %p398
    %s401 = sadd.s32 %s400, 1
    %p404 = scmp.eq.s32.totalorder %s30, 1
    %p405 = scmp.ne.s32.totalorder %s400, %s402
    %p406 = scmp.eq.s32.totalorder %s30, 0
    %p407 = por %p405, %p406
    %p408 = scmp.ne.s32.totalorder %s400, %s402
    %p409 = scmp.eq.s32.totalorder %s35, 1
    %p410 = por %p408, %p409
    %p411 = scmp.ne.s32.totalorder %s402, %s403
    %p412 = scmp.eq.s32.totalorder %s35, 0
    %p413 = por %p411, %p412
    %p414 = scmp.ne.s32.totalorder %s402, %s403
    %p415 = scmp.eq.s32.totalorder %s36, 1
    %p416 = por %p414, %p415
    %p418 = scmp.ne.s32.totalorder %s403, %s417
    %p419 = scmp.eq.s32.totalorder %s36, 0
    %p420 = por %p418, %p419
    %s422 = sadd.s32 %s421, 1
    %p425 = scmp.eq.s32.totalorder %s30, 1
    %p426 = scmp.ne.s32.totalorder %s421, %s423
    %p427 = scmp.eq.s32.totalorder %s30, 0
    %p428 = por %p426, %p427
    %p429 = scmp.ne.s32.totalorder %s421, %s423
    %p430 = scmp.eq.s32.totalorder %s35, 1
    %p431 = por %p429, %p430
    %p432 = scmp.ne.s32.totalorder %s423, %s424
    %p433 = scmp.eq.s32.totalorder %s35, 0
    %p434 = por %p432, %p433
    %p435 = scmp.ne.s32.totalorder %s423, %s424
    %p436 = scmp.eq.s32.totalorder %s36, 1
    %p437 = por %p435, %p436
    %p439 = scmp.ne.s32.totalorder %s424, %s438
    %p440 = scmp.eq.s32.totalorder %s36, 0
    %p441 = por %p439, %p440
    %s443 = sadd.s32 %s442, 1
    %p446 = scmp.eq.s32.totalorder %s30, 1
    %p447 = scmp.ne.s32.totalorder %s442, %s444
    %p448 = scmp.eq.s32.totalorder %s30, 0
    %p449 = por %p447, %p448
    %p450 = scmp.ne.s32.totalorder %s442, %s444
    %p451 = scmp.eq.s32.totalorder %s35, 1
    %p452 = por %p450, %p451
    %p453 = scmp.ne.s32.totalorder %s444, %s445
    %p454 = scmp.eq.s32.totalorder %s35, 0
    %p455 = por %p453, %p454
    %p456 = scmp.ne.s32.totalorder %s444, %s445
    %p457 = scmp.eq.s32.totalorder %s36, 1
    %p458 = por %p456, %p457
    %p460 = scmp.ne.s32.totalorder %s445, %s459
    %p461 = scmp.eq.s32.totalorder %s36, 0
    %p462 = por %p460, %p461
    %s464 = sadd.s32 %s463, 1
    %p467 = scmp.eq.s32.totalorder %s30, 1
    %p468 = scmp.ne.s32.totalorder %s463, %s465
    %p469 = scmp.eq.s32.totalorder %s30, 0
    %p470 = por %p468, %p469
    %p471 = scmp.ne.s32.totalorder %s463, %s465
    %p472 = scmp.eq.s32.totalorder %s35, 1
    %p473 = por %p471, %p472
    %p474 = scmp.ne.s32.totalorder %s465, %s466
    %p475 = scmp.eq.s32.totalorder %s35, 0
    %p476 = por %p474, %p475
    %p477 = scmp.ne.s32.totalorder %s465, %s466
    %p478 = scmp.eq.s32.totalorder %s36, 1
    %p479 = por %p477, %p478
    %p481 = scmp.ne.s32.totalorder %s466, %s480
    %p482 = scmp.eq.s32.totalorder %s36, 0
    %p483 = por %p481, %p482
    %s485 = sadd.s32 %s484, 1
    %p488 = scmp.eq.s32.totalorder %s30, 1
    %p489 = scmp.ne.s32.totalorder %s484, %s486
    %p490 = scmp.eq.s32.totalorder %s30, 0
    %p491 = por %p489, %p490
    %p492 = scmp.ne.s32.totalorder %s484, %s486
    %p493 = scmp.eq.s32.totalorder %s35, 1
    %p494 = por %p492, %p493
    %p495 = scmp.ne.s32.totalorder %s486, %s487
    %p496 = scmp.eq.s32.totalorder %s35, 0
    %p497 = por %p495, %p496
    %p498 = scmp.ne.s32.totalorder %s486, %s487
    %p499 = scmp.eq.s32.totalorder %s36, 1
    %p500 = por %p498, %p499
    %p502 = scmp.ne.s32.totalorder %s487, %s501
    %p503 = scmp.eq.s32.totalorder %s36, 0
    %p504 = por %p502, %p503
    %s505 = ssub.s32 %s30, %s37
    %p506 = scmp.eq.s32.totalorder %s505, 0
    %s508 = sadd.s32 %s507, 1
    %s509 = scalar_select %p506, %s507, %s508
    %p512 = pneg %p506
    %p513 = scmp.eq.s32.totalorder %s30, 1
    %p514 = por %p512, %p513
    %p515 = scmp.ne.s32.totalorder %s507, %s510
    %p516 = scmp.eq.s32.totalorder %s30, 0
    %p517 = por %p515, %p516
    %p518 = scmp.ne.s32.totalorder %s507, %s510
    %p519 = scmp.eq.s32.totalorder %s35, 1
    %p520 = por %p518, %p519
    %p521 = scmp.ne.s32.totalorder %s510, %s511
    %p522 = scmp.eq.s32.totalorder %s35, 0
    %p523 = por %p521, %p522
    %p524 = scmp.ne.s32.totalorder %s510, %s511
    %p525 = scmp.eq.s32.totalorder %s36, 1
    %p526 = por %p524, %p525
    %p528 = scmp.ne.s32.totalorder %s511, %s527
    %p529 = scmp.eq.s32.totalorder %s36, 0
    %p530 = por %p528, %p529
    %p531 = scmp.le.s32.totalorder 1, %s30
    %p532 = scmp.lt.s32.totalorder %s30, 3
    %p533 = pnand %p531, %p532
    %p534 = pneg %p533
    // Predicated region
    $region9: #{forward.1} parent=5 // pred_check
      _
    $region10: #{forward.1} parent=5 // pred_check_branch
      %536 = sbr.rel (%p533) target = $region12
    $region11: #{forward.1} parent=5 // pred_region
      %s537 = ssub.s32 %s30, 1
      // Predicated region
      $region13: #{forward.1} parent=11 // pred_check
        %p538 = pneg %p77
      $region14: #{forward.1} parent=11 // pred_check_branch
        %540 = sbr.rel (%p538) target = $region16
      $region15: #{forward.1} parent=11 // pred_region
        _
      $region16: #{forward.1} parent=11 // pred_fallthru
        _
      // Predicated region
      $region17: #{forward.1} parent=11 // pred_check
        %p541 = pneg %p98
      $region18: #{forward.1} parent=11 // pred_check_branch
        %543 = sbr.rel (%p541) target = $region20
      $region19: #{forward.1} parent=11 // pred_region
        _
      $region20: #{forward.1} parent=11 // pred_fallthru
        _
      // Predicated region
      $region21: #{forward.1} parent=11 // pred_check
        %p544 = pneg %p119
      $region22: #{forward.1} parent=11 // pred_check_branch
        %546 = sbr.rel (%p544) target = $region24
      $region23: #{forward.1} parent=11 // pred_region
        _
      $region24: #{forward.1} parent=11 // pred_fallthru
        _
      // Predicated region
      $region25: #{forward.1} parent=11 // pred_check
        %p547 = pneg %p140
      $region26: #{forward.1} parent=11 // pred_check_branch
        %549 = sbr.rel (%p547) target = $region28
      $region27: #{forward.1} parent=11 // pred_region
        _
      $region28: #{forward.1} parent=11 // pred_fallthru
        _
      // Predicated region
      $region29: #{forward.1} parent=11 // pred_check
        %p550 = pneg %p161
      $region30: #{forward.1} parent=11 // pred_check_branch
        %552 = sbr.rel (%p550) target = $region32
      $region31: #{forward.1} parent=11 // pred_region
        _
      $region32: #{forward.1} parent=11 // pred_fallthru
        _
      // Predicated region
      $region33: #{forward.1} parent=11 // pred_check
        %p553 = pneg %p182
      $region34: #{forward.1} parent=11 // pred_check_branch
        %555 = sbr.rel (%p553) target = $region36
      $region35: #{forward.1} parent=11 // pred_region
        _
      $region36: #{forward.1} parent=11 // pred_fallthru
        _
      // Predicated region
      $region37: #{forward.1} parent=11 // pred_check
        %p556 = pneg %p203
      $region38: #{forward.1} parent=11 // pred_check_branch
        %558 = sbr.rel (%p556) target = $region40
      $region39: #{forward.1} parent=11 // pred_region
        _
      $region40: #{forward.1} parent=11 // pred_fallthru
        _
      // Predicated region
      $region41: #{forward.1} parent=11 // pred_check
        %p559 = pneg %p224
      $region42: #{forward.1} parent=11 // pred_check_branch
        %561 = sbr.rel (%p559) target = $region44
      $region43: #{forward.1} parent=11 // pred_region
        _
      $region44: #{forward.1} parent=11 // pred_fallthru
        _
      // Predicated region
      $region45: #{forward.1} parent=11 // pred_check
        %p562 = pneg %p245
      $region46: #{forward.1} parent=11 // pred_check_branch
        %564 = sbr.rel (%p562) target = $region48
      $region47: #{forward.1} parent=11 // pred_region
        _
      $region48: #{forward.1} parent=11 // pred_fallthru
        _
      // Predicated region
      $region49: #{forward.1} parent=11 // pred_check
        %p565 = pneg %p266
      $region50: #{forward.1} parent=11 // pred_check_branch
        %567 = sbr.rel (%p565) target = $region52
      $region51: #{forward.1} parent=11 // pred_region
        _
      $region52: #{forward.1} parent=11 // pred_fallthru
        _
      // Predicated region
      $region53: #{forward.1} parent=11 // pred_check
        %p568 = pneg %p287
      $region54: #{forward.1} parent=11 // pred_check_branch
        %570 = sbr.rel (%p568) target = $region56
      $region55: #{forward.1} parent=11 // pred_region
        _
      $region56: #{forward.1} parent=11 // pred_fallthru
        _
      // Predicated region
      $region57: #{forward.1} parent=11 // pred_check
        %p571 = pneg %p308
      $region58: #{forward.1} parent=11 // pred_check_branch
        %573 = sbr.rel (%p571) target = $region60
      $region59: #{forward.1} parent=11 // pred_region
        _
      $region60: #{forward.1} parent=11 // pred_fallthru
        _
      // Predicated region
      $region61: #{forward.1} parent=11 // pred_check
        %p574 = pneg %p329
      $region62: #{forward.1} parent=11 // pred_check_branch
        %576 = sbr.rel (%p574) target = $region64
      $region63: #{forward.1} parent=11 // pred_region
        _
      $region64: #{forward.1} parent=11 // pred_fallthru
        _
      // Predicated region
      $region65: #{forward.1} parent=11 // pred_check
        %p577 = pneg %p350
      $region66: #{forward.1} parent=11 // pred_check_branch
        %579 = sbr.rel (%p577) target = $region68
      $region67: #{forward.1} parent=11 // pred_region
        _
      $region68: #{forward.1} parent=11 // pred_fallthru
        _
      // Predicated region
      $region69: #{forward.1} parent=11 // pred_check
        %p580 = pneg %p371
      $region70: #{forward.1} parent=11 // pred_check_branch
        %582 = sbr.rel (%p580) target = $region72
      $region71: #{forward.1} parent=11 // pred_region
        _
      $region72: #{forward.1} parent=11 // pred_fallthru
        _
      // Predicated region
      $region73: #{forward.1} parent=11 // pred_check
        %p583 = pneg %p392
      $region74: #{forward.1} parent=11 // pred_check_branch
        %585 = sbr.rel (%p583) target = $region76
      $region75: #{forward.1} parent=11 // pred_region
        _
      $region76: #{forward.1} parent=11 // pred_fallthru
        _
      // Predicated region
      $region77: #{forward.1} parent=11 // pred_check
        %p586 = pneg %p413
      $region78: #{forward.1} parent=11 // pred_check_branch
        %588 = sbr.rel (%p586) target = $region80
      $region79: #{forward.1} parent=11 // pred_region
        _
      $region80: #{forward.1} parent=11 // pred_fallthru
        _
      // Predicated region
      $region81: #{forward.1} parent=11 // pred_check
        %p589 = pneg %p434
      $region82: #{forward.1} parent=11 // pred_check_branch
        %591 = sbr.rel (%p589) target = $region84
      $region83: #{forward.1} parent=11 // pred_region
        _
      $region84: #{forward.1} parent=11 // pred_fallthru
        _
      // Predicated region
      $region85: #{forward.1} parent=11 // pred_check
        %p592 = pneg %p455
      $region86: #{forward.1} parent=11 // pred_check_branch
        %594 = sbr.rel (%p592) target = $region88
      $region87: #{forward.1} parent=11 // pred_region
        _
      $region88: #{forward.1} parent=11 // pred_fallthru
        _
      // Predicated region
      $region89: #{forward.1} parent=11 // pred_check
        %p595 = pneg %p476
      $region90: #{forward.1} parent=11 // pred_check_branch
        %597 = sbr.rel (%p595) target = $region92
      $region91: #{forward.1} parent=11 // pred_region
        _
      $region92: #{forward.1} parent=11 // pred_fallthru
        _
      // Predicated region
      $region93: #{forward.1} parent=11 // pred_check
        %p598 = pneg %p497
      $region94: #{forward.1} parent=11 // pred_check_branch
        %600 = sbr.rel (%p598) target = $region96
      $region95: #{forward.1} parent=11 // pred_region
        _
      $region96: #{forward.1} parent=11 // pred_fallthru
        _
    $region12: #{forward.1} parent=5 // pred_fallthru
      _
    %p601 = scmp.lt.s32.totalorder %s30, 2
    // Predicated region
    $region97: #{forward.1} parent=5 // pred_check
      %p602 = pneg %p601
    $region98: #{forward.1} parent=5 // pred_check_branch
      %604 = sbr.rel (%p602) target = $region100
    $region99: #{forward.1} parent=5 // pred_region
      // Predicated region
      $region101: #{forward.1} parent=99 // pred_check
        %p605 = pneg %p50
      $region102: #{forward.1} parent=99 // pred_check_branch
        %607 = sbr.rel (%p605) target = $region104
      $region103: #{forward.1} parent=99 // pred_region
        %p608 = scmp.lt.s32.totalorder %s30, 1
        %s609 = scalar_select %p608, %s30, 1
        %s610 = smul.addr %s609, 19
        %s611 = smul.addr %s610, 4
        %s612 = scalar_lea.vmem %s0, %s611
      $region104: #{forward.1} parent=99 // pred_fallthru
        _
    $region100: #{forward.1} parent=5 // pred_fallthru
      _
    %p613 = scmp.le.s32.totalorder 1, %s30
    %p614 = scmp.lt.s32.totalorder %s30, 3
    %p615 = pnand %p613, %p614
    %p616 = pneg %p615
    // Predicated region
    $region105: #{forward.1} parent=5 // pred_check
      _
    $region106: #{forward.1} parent=5 // pred_check_branch
      %618 = sbr.rel (%p615) target = $region108
    $region107: #{forward.1} parent=5 // pred_region
      %s619 = ssub.s32 %s30, 1
      %p620 = scmp.lt.s32.totalorder %s35, 1
      %s621 = scalar_select %p620, %s35, 1
      %s622 = smul.addr %s621, 19
      %s623 = smul.addr %s622, 4
      %s624 = scalar_lea.vmem %s0, %s623
      %p625 = pneg %p56
      %p626 = pneg %p53
      %p627 = pneg %p77
      %p628 = pneg %p74
      %p629 = pneg %p98
      %p630 = pneg %p95
      %p631 = pneg %p119
      %p632 = pneg %p116
      %p633 = pneg %p140
      %p634 = pneg %p137
      %p635 = pneg %p161
      %p636 = pneg %p158
      %p637 = pneg %p182
      %p638 = pneg %p179
      %p639 = pneg %p203
      %p640 = pneg %p200
      %p641 = pneg %p224
      %p642 = pneg %p221
      %p643 = pneg %p245
      %p644 = pneg %p242
      %p645 = pneg %p266
      %p646 = pneg %p263
      %p647 = pneg %p287
      %p648 = pneg %p284
      %p649 = pneg %p308
      %p650 = pneg %p305
      %p651 = pneg %p329
      %p652 = pneg %p326
      %p653 = pneg %p350
      %p654 = pneg %p347
      %p655 = pneg %p371
      %p656 = pneg %p368
      %p657 = pneg %p392
      %p658 = pneg %p389
      %p659 = pneg %p413
      %p660 = pneg %p410
      %p661 = pneg %p434
      %p662 = pneg %p431
      %p663 = pneg %p455
      %p664 = pneg %p452
      %p665 = pneg %p476
      %p666 = pneg %p473
      %p667 = pneg %p497
      %p668 = pneg %p494
      %p669 = pneg %p523
      %p670 = pneg %p520
      %p671 = scmp.lt.s32.totalorder %s35, 1
      %s672 = scalar_select %p671, %s35, 1
      %s673 = smul.addr %s672, 8
      %s674 = scalar_lea.vmem %s22, %s673
      %p675 = scmp.lt.s32.totalorder %s35, 1
      %s676 = scalar_select %p675, %s35, 1
      %s677 = smul.addr %s676, 19
      %s678 = smul.addr %s677, 4
      %s679 = scalar_lea.vmem %s0, %s678
      %p680 = scmp.lt.s32.totalorder %s35, 1
      %s681 = scalar_select %p680, %s35, 1
      %s682 = smul.addr %s681, 8
      %s683 = scalar_lea.vmem %s22, %s682
      %v685 = vld [vmem:[%s1] sm:$0xff]
      %v686 = vld [vmem:[%s1 + $0x8] sm:$0xff]
      %v687 = vld [vmem:[%s1 + $0x10] sm:$0xff]
      %v688 = vld [vmem:[%s1 + $0x18] sm:$0xff]
      %v689 = vld [vmem:[%s1 + $0x20] sm:$0xff]
      %v690 = vld [vmem:[%s1 + $0x28] sm:$0xff]
      %v691 = vld [vmem:[%s1 + $0x30] sm:$0xff]
      %v692 = vld [vmem:[%s1 + $0x38] sm:$0xff]
      %v693 = vld [vmem:[%s1 + $0x40] sm:$0xff]
      %v694 = vld [vmem:[%s1 + $0x48] sm:$0xff]
      %v695 = vld [vmem:[%s1 + $0x50] sm:$0xff]
      %v696 = vld [vmem:[%s1 + $0x58] sm:$0xff]
      %v697 = vld [vmem:[%s1 + $0x60] sm:$0xff]
      %v698 = vld [vmem:[%s1 + $0x68] sm:$0xff]
      %v699 = vld [vmem:[%s1 + $0x70] sm:$0xff]
      %v700 = vld [vmem:[%s1 + $0x78] sm:$0xff]
      %v701 = vld [vmem:[%s1 + $0x80] sm:$0xff]
      %vm702 = vcmask 256000
      %vm703 = vsmask.f32 2304
      %vm704 = vmand %vm702, %vm703
      %v705 = vld [vmem:[#allocation2] sm:$0x7]
      %v706 = vsel %vm704, 0, %v705
      %707 = vst [vmem:[#allocation2] sm:$0x7] %v706
      %vm708 = vcmask 257026
      %vm709 = vsmask.f32 7946
      %vm710 = vmand %vm708, %vm709
      %v711 = vld [vmem:[#allocation2 + $0x44] sm:$0xc]
      %v712 = vsel %vm710, 0, %v711
      %713 = vst [vmem:[#allocation2 + $0x44] sm:$0xc] %v712
      %vm714 = vcmask 253952
      %715 = vst.msk [vmem:[#allocation2 + $0x48] sm:$0x1] %vm714, 0
      %v716 = vld [vmem:[%s679] sm:$0xf]
      %v717 = vld [vmem:[%s679 + $0x4] sm:$0xf]
      %v718 = vld [vmem:[%s679 + $0x8] sm:$0xf]
      %v719 = vld [vmem:[%s679 + $0xc] sm:$0xf]
      %v720 = vld [vmem:[%s679 + $0x10] sm:$0xf]
      %v721 = vld [vmem:[%s679 + $0x14] sm:$0xf]
      %v722 = vld [vmem:[%s679 + $0x18] sm:$0xf]
      %v723 = vld [vmem:[%s679 + $0x1c] sm:$0xf]
      %v724 = vld [vmem:[%s679 + $0x20] sm:$0xf]
      %v725 = vld [vmem:[%s679 + $0x24] sm:$0xf]
      %v726 = vld [vmem:[%s679 + $0x28] sm:$0xf]
      %v727 = vld [vmem:[%s679 + $0x2c] sm:$0xf]
      %v728 = vld [vmem:[%s679 + $0x30] sm:$0xf]
      %v729 = vld [vmem:[%s679 + $0x34] sm:$0xf]
      %v730 = vld [vmem:[%s679 + $0x38] sm:$0xf]
      %v731 = vld [vmem:[%s679 + $0x3c] sm:$0xf]
      %v732 = vld [vmem:[%s679 + $0x40] sm:$0xf]
      %v733 = vld [vmem:[%s679 + $0x44] sm:$0xf]
      %v734 = vld [vmem:[%s679 + $0x48] sm:$0x1]
      %v735 = vld [vmem:[%s4] sm:$0x1]
      %v736 = vld [vmem:[%s5] sm:$0x1]
      %v737 = vld [vmem:[%s3] sm:$0xf]
      %s738 = scalar_lea.vmem %s3, 4
      %v739 = vld [vmem:[%s738] sm:$0xf]
      %v758 = vunpack.c.l.b16 %v716
      %v759 = vunpack.c.l.b16 %v717
      %v760 = vunpack.c.l.b16 %v718
      %v761 = vunpack.c.l.b16 %v719
      %v762 = vunpack.c.l.b16 %v720
      %v763 = vunpack.c.l.b16 %v721
      %v764 = vunpack.c.l.b16 %v722
      %v765 = vunpack.c.l.b16 %v723
      %v766 = vunpack.c.l.b16 %v724
      %v767 = vunpack.c.l.b16 %v725
      %v768 = vunpack.c.l.b16 %v726
      %v769 = vunpack.c.l.b16 %v727
      %v770 = vunpack.c.l.b16 %v728
      %v771 = vunpack.c.l.b16 %v729
      %v772 = vunpack.c.l.b16 %v730
      %v773 = vunpack.c.l.b16 %v731
      %v774 = vunpack.c.l.b16 %v732
      %v775 = vunpack.c.l.b16 %v733
      %v776 = vpack.c.b16 %v759, %v758
      %v777 = vpack.c.b16 %v761, %v760
      %v778 = vpack.c.b16 %v763, %v762
      %v779 = vpack.c.b16 %v765, %v764
      %v780 = vpack.c.b16 %v767, %v766
      %v781 = vpack.c.b16 %v769, %v768
      %v782 = vpack.c.b16 %v771, %v770
      %v783 = vpack.c.b16 %v773, %v772
      %v784 = vpack.c.b16 %v775, %v774
      %vm785 = vsmask.f32 7424
      %v787 = vshrl.u32 %v776, 16
      %v789 = vshll.u32 %v776, 16
      %v791 = vrot.slane %v789, 1
      %v792 = vor.u32 %v787, %v791
      %v794 = vshll.u32 %v777, 16
      %v796 = vrot.slane %v794, 1
      %v797 = vsel %vm785, %v792, %v796
      %v798 = vshrl.u32 %v777, 16
      %v800 = vor.u32 %v798, %v796
      %v802 = vshll.u32 %v778, 16
      %v804 = vrot.slane %v802, 1
      %v805 = vsel %vm785, %v800, %v804
      %v806 = vshrl.u32 %v778, 16
      %v808 = vor.u32 %v806, %v804
      %v810 = vshll.u32 %v779, 16
      %v812 = vrot.slane %v810, 1
      %v813 = vsel %vm785, %v808, %v812
      %v814 = vshrl.u32 %v779, 16
      %v816 = vor.u32 %v814, %v812
      %v818 = vshll.u32 %v780, 16
      %v820 = vrot.slane %v818, 1
      %v821 = vsel %vm785, %v816, %v820
      %v822 = vshrl.u32 %v780, 16
      %v824 = vor.u32 %v822, %v820
      %v826 = vshll.u32 %v781, 16
      %v828 = vrot.slane %v826, 1
      %v829 = vsel %vm785, %v824, %v828
      %v830 = vshrl.u32 %v781, 16
      %v832 = vor.u32 %v830, %v828
      %v834 = vshll.u32 %v782, 16
      %v836 = vrot.slane %v834, 1
      %v837 = vsel %vm785, %v832, %v836
      %v838 = vshrl.u32 %v782, 16
      %v840 = vor.u32 %v838, %v836
      %v842 = vshll.u32 %v783, 16
      %v844 = vrot.slane %v842, 1
      %v845 = vsel %vm785, %v840, %v844
      %v846 = vshrl.u32 %v783, 16
      %v848 = vor.u32 %v846, %v844
      %v850 = vshll.u32 %v784, 16
      %v852 = vrot.slane %v850, 1
      %v853 = vsel %vm785, %v848, %v852
      %v854 = vshrl.u32 %v784, 16
      %v856 = vor.u32 %v854, %v852
      %vm857 = vcmask 64512
      %v859 = vsel %vm857, %v797, 0
      %v862 = vsel %vm857, %v805, 0
      %v865 = vsel %vm857, %v813, 0
      %v868 = vsel %vm857, %v821, 0
      %v871 = vsel %vm857, %v829, 0
      %v874 = vsel %vm857, %v837, 0
      %v877 = vsel %vm857, %v845, 0
      %v880 = vsel %vm857, %v853, 0
      %v883 = vsel %vm857, %v856, 0
      %vm885 = vcmask 1043456
      %v887 = vsel %vm885, %v739, 0
      %889 = vmatprep.subr.bf16.mxu0 0
      %890 = vmatpush1.bf16.msra.mxu0 %v887
      %891 = vmatprep.subr.bf16.mxu0 0
      %892 = vmatpush1.bf16.msra.mxu0 0
      %893 = vmatprep.subr.bf16.mxu0 0
      %894 = vmatpush1.bf16.msra.mxu0 0
      %895 = vmatprep.subr.bf16.mxu0 0
      %896 = vmatpush1.bf16.msra.mxu0 0
      %897 = vmatprep.subr.bf16.mxu0 0
      %898 = vmatpush1.bf16.msra.mxu0 0
      %899 = vmatprep.subr.bf16.mxu0 0
      %900 = vmatpush1.bf16.msra.mxu0 0
      %901 = vmatprep.subr.bf16.mxu0 0
      %902 = vmatpush1.bf16.msra.mxu0 0
      %903 = vmatprep.subr.bf16.mxu0 0
      %904 = vmatpush1.bf16.msra.mxu0 0
      %905 = vmatprep.subr.bf16.mxu0 0
      %906 = vmatpush1.bf16.msra.mxu0 0
      %907 = vmatprep.subr.bf16.mxu0 0
      %908 = vmatpush1.bf16.msra.mxu0 0
      %909 = vmatprep.subr.bf16.mxu0 0
      %910 = vmatpush1.bf16.msra.mxu0 0
      %911 = vmatprep.subr.bf16.mxu0 0
      %912 = vmatpush1.bf16.msra.mxu0 0
      %913 = vmatprep.subr.bf16.mxu0 0
      %914 = vmatpush1.bf16.msra.mxu0 0
      %915 = vmatprep.subr.bf16.mxu0 0
      %916 = vmatpush1.bf16.msra.mxu0 0
      %917 = vmatprep.subr.bf16.mxu0 0
      %918 = vmatpush1.bf16.msra.mxu0 0
      %919 = vmatprep.subr.bf16.mxu0 0
      %920 = vmatpush1.bf16.msra.mxu0 0
      %921 = vmatprep.mubr.bf16.mxu0 0
      %922 = vmatmul.mubr.bf16.gmra.mrb[0].mxu0 %v859
      %v923 = vpop.f32.mrb[0].mxu0
      %v924 = vadd.f32 0.0, %v923
      %v925 = vpop.f32.mrb[0].mxu0
      %v926 = vpop.f32.mrb[0].mxu0
      %v927 = vadd.f32 0.0, %v926
      %v928 = vpop.f32.mrb[0].mxu0
      %929 = vmatprep.mubr.bf16.mxu0 0
      %930 = vmatmul.mubr.bf16.gmra.mrb[0].mxu0 %v862
      %v931 = vpop.f32.mrb[0].mxu0
      %v932 = vadd.f32 0.0, %v931
      %v933 = vpop.f32.mrb[0].mxu0
      %v934 = vpop.f32.mrb[0].mxu0
      %v935 = vadd.f32 0.0, %v934
      %v936 = vpop.f32.mrb[0].mxu0
      %937 = vmatprep.mubr.bf16.mxu0 0
      %938 = vmatmul.mubr.bf16.gmra.mrb[0].mxu0 %v865
      %v939 = vpop.f32.mrb[0].mxu0
      %v940 = vadd.f32 0.0, %v939
      %v941 = vpop.f32.mrb[0].mxu0
      %v942 = vpop.f32.mrb[0].mxu0
      %v943 = vadd.f32 0.0, %v942
      %v944 = vpop.f32.mrb[0].mxu0
      %945 = vmatprep.mubr.bf16.mxu0 0
      %946 = vmatmul.mubr.bf16.gmra.mrb[0].mxu0 %v868
      %v947 = vpop.f32.mrb[0].mxu0
      %v948 = vadd.f32 0.0, %v947
      %v949 = vpop.f32.mrb[0].mxu0
      %v950 = vpop.f32.mrb[0].mxu0
      %v951 = vadd.f32 0.0, %v950
      %v952 = vpop.f32.mrb[0].mxu0
      %953 = vmatprep.mubr.bf16.mxu0 0
      %954 = vmatmul.mubr.bf16.gmra.mrb[0].mxu0 %v871
      %v955 = vpop.f32.mrb[0].mxu0
      %v956 = vadd.f32 0.0, %v955
      %v957 = vpop.f32.mrb[0].mxu0
      %v958 = vpop.f32.mrb[0].mxu0
      %v959 = vadd.f32 0.0, %v958
      %v960 = vpop.f32.mrb[0].mxu0
      %961 = vmatprep.mubr.bf16.mxu0 0
      %962 = vmatmul.mubr.bf16.gmra.mrb[0].mxu0 %v874
      %v963 = vpop.f32.mrb[0].mxu0
      %v964 = vadd.f32 0.0, %v963
      %v965 = vpop.f32.mrb[0].mxu0
      %v966 = vpop.f32.mrb[0].mxu0
      %v967 = vadd.f32 0.0, %v966
      %v968 = vpop.f32.mrb[0].mxu0
      %969 = vmatprep.mubr.bf16.mxu0 0
      %970 = vmatmul.mubr.bf16.gmra.mrb[0].mxu0 %v877
      %v971 = vpop.f32.mrb[0].mxu0
      %v972 = vadd.f32 0.0, %v971
      %v973 = vpop.f32.mrb[0].mxu0
      %v974 = vpop.f32.mrb[0].mxu0
      %v975 = vadd.f32 0.0, %v974
      %v976 = vpop.f32.mrb[0].mxu0
      %977 = vmatprep.mubr.bf16.mxu0 0
      %978 = vmatmul.mubr.bf16.gmra.mrb[0].mxu0 %v880
      %v979 = vpop.f32.mrb[0].mxu0
      %v980 = vadd.f32 0.0, %v979
      %v981 = vpop.f32.mrb[0].mxu0
      %v982 = vpop.f32.mrb[0].mxu0
      %v983 = vadd.f32 0.0, %v982
      %v984 = vpop.f32.mrb[0].mxu0
      %985 = vmatprep.mubr.bf16.mxu0 0
      %986 = vmatmul.mubr.bf16.gmra.mrb[0].mxu0 %v883
      %v987 = vpop.f32.mrb[0].mxu0
      %v988 = vadd.f32 0.0, %v987
      %v989 = vpop.f32.mrb[0].mxu0
      %v990 = vpop.f32.mrb[0].mxu0
      %v991 = vpop.f32.mrb[0].mxu0
      %992 = vdwg.mxu0
      %v993 = vpack.c.b16 %v774, %v774
      %v994 = vsel %vm857, %v776, 0
      %v996 = vsel %vm857, %v777, 0
      %v998 = vsel %vm857, %v778, 0
      %v1000 = vsel %vm857, %v779, 0
      %v1002 = vsel %vm857, %v780, 0
      %v1004 = vsel %vm857, %v781, 0
      %v1006 = vsel %vm857, %v782, 0
      %v1008 = vsel %vm857, %v783, 0
      %v1011 = vsel %vm857, %v993, 0
      %v1014 = vsel %vm885, %v737, 0
      %1016 = vmatprep.subr.bf16.mxu0 0
      %1017 = vmatpush1.bf16.msra.mxu0 %v1014
      %1018 = vmatprep.subr.bf16.mxu0 0
      %1019 = vmatpush1.bf16.msra.mxu0 0
      %1020 = vmatprep.subr.bf16.mxu0 0
      %1021 = vmatpush1.bf16.msra.mxu0 0
      %1022 = vmatprep.subr.bf16.mxu0 0
      %1023 = vmatpush1.bf16.msra.mxu0 0
      %1024 = vmatprep.subr.bf16.mxu0 0
      %1025 = vmatpush1.bf16.msra.mxu0 0
      %1026 = vmatprep.subr.bf16.mxu0 0
      %1027 = vmatpush1.bf16.msra.mxu0 0
      %1028 = vmatprep.subr.bf16.mxu0 0
      %1029 = vmatpush1.bf16.msra.mxu0 0
      %1030 = vmatprep.subr.bf16.mxu0 0
      %1031 = vmatpush1.bf16.msra.mxu0 0
      %1032 = vmatprep.subr.bf16.mxu0 0
      %1033 = vmatpush1.bf16.msra.mxu0 0
      %1034 = vmatprep.subr.bf16.mxu0 0
      %1035 = vmatpush1.bf16.msra.mxu0 0
      %1036 = vmatprep.subr.bf16.mxu0 0
      %1037 = vmatpush1.bf16.msra.mxu0 0
      %1038 = vmatprep.subr.bf16.mxu0 0
      %1039 = vmatpush1.bf16.msra.mxu0 0
      %1040 = vmatprep.subr.bf16.mxu0 0
      %1041 = vmatpush1.bf16.msra.mxu0 0
      %1042 = vmatprep.subr.bf16.mxu0 0
      %1043 = vmatpush1.bf16.msra.mxu0 0
      %1044 = vmatprep.subr.bf16.mxu0 0
      %1045 = vmatpush1.bf16.msra.mxu0 0
      %1046 = vmatprep.subr.bf16.mxu0 0
      %1047 = vmatpush1.bf16.msra.mxu0 0
      %1048 = vmatprep.mubr.bf16.mxu0 0
      %1049 = vmatmul.mubr.bf16.gmra.mrb[0].mxu0 %v994
      %v1050 = vpop.f32.mrb[0].mxu0
      %v1051 = vadd.f32 %v924, %v1050
      %v1052 = vpop.f32.mrb[0].mxu0
      %v1053 = vpop.f32.mrb[0].mxu0
      %v1054 = vadd.f32 %v927, %v1053
      %v1055 = vpop.f32.mrb[0].mxu0
      %1056 = vmatprep.mubr.bf16.mxu0 0
      %1057 = vmatmul.mubr.bf16.gmra.mrb[0].mxu0 %v996
      %v1058 = vpop.f32.mrb[0].mxu0
      %v1059 = vadd.f32 %v932, %v1058
      %v1060 = vpop.f32.mrb[0].mxu0
      %v1061 = vpop.f32.mrb[0].mxu0
      %v1062 = vadd.f32 %v935, %v1061
      %v1063 = vpop.f32.mrb[0].mxu0
      %1064 = vmatprep.mubr.bf16.mxu0 0
      %1065 = vmatmul.mubr.bf16.gmra.mrb[0].mxu0 %v998
      %v1066 = vpop.f32.mrb[0].mxu0
      %v1067 = vadd.f32 %v940, %v1066
      %v1068 = vpop.f32.mrb[0].mxu0
      %v1069 = vpop.f32.mrb[0].mxu0
      %v1070 = vadd.f32 %v943, %v1069
      %v1071 = vpop.f32.mrb[0].mxu0
      %1072 = vmatprep.mubr.bf16.mxu0 0
      %1073 = vmatmul.mubr.bf16.gmra.mrb[0].mxu0 %v1000
      %v1074 = vpop.f32.mrb[0].mxu0
      %v1075 = vadd.f32 %v948, %v1074
      %v1076 = vpop.f32.mrb[0].mxu0
      %v1077 = vpop.f32.mrb[0].mxu0
      %v1078 = vadd.f32 %v951, %v1077
      %v1079 = vpop.f32.mrb[0].mxu0
      %1080 = vmatprep.mubr.bf16.mxu0 0
      %1081 = vmatmul.mubr.bf16.gmra.mrb[0].mxu0 %v1002
      %v1082 = vpop.f32.mrb[0].mxu0
      %v1083 = vadd.f32 %v956, %v1082
      %v1084 = vpop.f32.mrb[0].mxu0
      %v1085 = vpop.f32.mrb[0].mxu0
      %v1086 = vadd.f32 %v959, %v1085
      %v1087 = vpop.f32.mrb[0].mxu0
      %1088 = vmatprep.mubr.bf16.mxu0 0
      %1089 = vmatmul.mubr.bf16.gmra.mrb[0].mxu0 %v1004
      %v1090 = vpop.f32.mrb[0].mxu0
      %v1091 = vadd.f32 %v964, %v1090
      %v1092 = vpop.f32.mrb[0].mxu0
      %v1093 = vpop.f32.mrb[0].mxu0
      %v1094 = vadd.f32 %v967, %v1093
      %v1095 = vpop.f32.mrb[0].mxu0
      %1096 = vmatprep.mubr.bf16.mxu0 0
      %1097 = vmatmul.mubr.bf16.gmra.mrb[0].mxu0 %v1006
      %v1098 = vpop.f32.mrb[0].mxu0
      %v1099 = vadd.f32 %v972, %v1098
      %v1100 = vpop.f32.mrb[0].mxu0
      %v1101 = vpop.f32.mrb[0].mxu0
      %v1102 = vadd.f32 %v975, %v1101
      %v1103 = vpop.f32.mrb[0].mxu0
      %1104 = vmatprep.mubr.bf16.mxu0 0
      %1105 = vmatmul.mubr.bf16.gmra.mrb[0].mxu0 %v1008
      %v1106 = vpop.f32.mrb[0].mxu0
      %v1107 = vadd.f32 %v980, %v1106
      %v1108 = vpop.f32.mrb[0].mxu0
      %v1109 = vpop.f32.mrb[0].mxu0
      %v1110 = vadd.f32 %v983, %v1109
      %v1111 = vpop.f32.mrb[0].mxu0
      %1112 = vmatprep.mubr.bf16.mxu0 0
      %1113 = vmatmul.mubr.bf16.gmra.mrb[0].mxu0 %v1011
      %v1114 = vpop.f32.mrb[0].mxu0
      %v1115 = vadd.f32 %v988, %v1114
      %v1116 = vpop.f32.mrb[0].mxu0
      %v1117 = vpop.f32.mrb[0].mxu0
      %v1118 = vpop.f32.mrb[0].mxu0
      %1119 = vdwg.mxu0
      %s1120 = scalar_lea.vmem %s3, 8
      %v1121 = vld [vmem:[%s1120] sm:$0xf]
      %vm1122 = vcmask 1046528
      %v1123 = vrot.slane %v776, 1
      %v1124 = vrot.slane %v777, 1
      %v1125 = vsel %vm1122, %v1123, %v1124
      %v1126 = vrot.slane %v778, 1
      %v1127 = vsel %vm1122, %v1124, %v1126
      %v1128 = vrot.slane %v779, 1
      %v1129 = vsel %vm1122, %v1126, %v1128
      %v1130 = vrot.slane %v780, 1
      %v1131 = vsel %vm1122, %v1128, %v1130
      %v1132 = vrot.slane %v781, 1
      %v1133 = vsel %vm1122, %v1130, %v1132
      %v1134 = vrot.slane %v782, 1
      %v1135 = vsel %vm1122, %v1132, %v1134
      %v1136 = vrot.slane %v783, 1
      %v1137 = vsel %vm1122, %v1134, %v1136
      %v1138 = vrot.slane %v784, 1
      %v1139 = vsel %vm1122, %v1136, %v1138
      %v1141 = vsel %vm857, %v1125, 0
      %v1144 = vsel %vm857, %v1127, 0
      %v1147 = vsel %vm857, %v1129, 0
      %v1150 = vsel %vm857, %v1131, 0
      %v1153 = vsel %vm857, %v1133, 0
      %v1156 = vsel %vm857, %v1135, 0
      %v1159 = vsel %vm857, %v1137, 0
      %v1162 = vsel %vm857, %v1139, 0
      %v1165 = vsel %vm857, %v1138, 0
      %v1168 = vsel %vm885, %v1121, 0
      %1170 = vmatprep.subr.bf16.mxu0 0
      %1171 = vmatpush1.bf16.msra.mxu0 %v1168
      %1172 = vmatprep.subr.bf16.mxu0 0
      %1173 = vmatpush1.bf16.msra.mxu0 0
      %1174 = vmatprep.subr.bf16.mxu0 0
      %1175 = vmatpush1.bf16.msra.mxu0 0
      %1176 = vmatprep.subr.bf16.mxu0 0
      %1177 = vmatpush1.bf16.msra.mxu0 0
      %1178 = vmatprep.subr.bf16.mxu0 0
      %1179 = vmatpush1.bf16.msra.mxu0 0
      %1180 = vmatprep.subr.bf16.mxu0 0
      %1181 = vmatpush1.bf16.msra.mxu0 0
      %1182 = vmatprep.subr.bf16.mxu0 0
      %1183 = vmatpush1.bf16.msra.mxu0 0
      %1184 = vmatprep.subr.bf16.mxu0 0
      %1185 = vmatpush1.bf16.msra.mxu0 0
      %1186 = vmatprep.subr.bf16.mxu0 0
      %1187 = vmatpush1.bf16.msra.mxu0 0
      %1188 = vmatprep.subr.bf16.mxu0 0
      %1189 = vmatpush1.bf16.msra.mxu0 0
      %1190 = vmatprep.subr.bf16.mxu0 0
      %1191 = vmatpush1.bf16.msra.mxu0 0
      %1192 = vmatprep.subr.bf16.mxu0 0
      %1193 = vmatpush1.bf16.msra.mxu0 0
      %1194 = vmatprep.subr.bf16.mxu0 0
      %1195 = vmatpush1.bf16.msra.mxu0 0
      %1196 = vmatprep.subr.bf16.mxu0 0
      %1197 = vmatpush1.bf16.msra.mxu0 0
      %1198 = vmatprep.subr.bf16.mxu0 0
      %1199 = vmatpush1.bf16.msra.mxu0 0
      %1200 = vmatprep.subr.bf16.mxu0 0
      %1201 = vmatpush1.bf16.msra.mxu0 0
      %1202 = vmatprep.mubr.bf16.mxu0 0
      %1203 = vmatmul.mubr.bf16.gmra.mrb[0].mxu0 %v1141
      %v1204 = vpop.f32.mrb[0].mxu0
      %v1205 = vadd.f32 0.0, %v1204
      %v1206 = vpop.f32.mrb[0].mxu0
      %v1207 = vpop.f32.mrb[0].mxu0
      %v1208 = vadd.f32 0.0, %v1207
      %v1209 = vpop.f32.mrb[0].mxu0
      %1210 = vmatprep.mubr.bf16.mxu0 0
      %1211 = vmatmul.mubr.bf16.gmra.mrb[0].mxu0 %v1144
      %v1212 = vpop.f32.mrb[0].mxu0
      %v1213 = vadd.f32 0.0, %v1212
      %v1214 = vpop.f32.mrb[0].mxu0
      %v1215 = vpop.f32.mrb[0].mxu0
      %v1216 = vadd.f32 0.0, %v1215
      %v1217 = vpop.f32.mrb[0].mxu0
      %1218 = vmatprep.mubr.bf16.mxu0 0
      %1219 = vmatmul.mubr.bf16.gmra.mrb[0].mxu0 %v1147
      %v1220 = vpop.f32.mrb[0].mxu0
      %v1221 = vadd.f32 0.0, %v1220
      %v1222 = vpop.f32.mrb[0].mxu0
      %v1223 = vpop.f32.mrb[0].mxu0
      %v1224 = vadd.f32 0.0, %v1223
      %v1225 = vpop.f32.mrb[0].mxu0
      %1226 = vmatprep.mubr.bf16.mxu0 0
      %1227 = vmatmul.mubr.bf16.gmra.mrb[0].mxu0 %v1150
      %v1228 = vpop.f32.mrb[0].mxu0
      %v1229 = vadd.f32 0.0, %v1228
      %v1230 = vpop.f32.mrb[0].mxu0
      %v1231 = vpop.f32.mrb[0].mxu0
      %v1232 = vadd.f32 0.0, %v1231
      %v1233 = vpop.f32.mrb[0].mxu0
      %1234 = vmatprep.mubr.bf16.mxu0 0
      %1235 = vmatmul.mubr.bf16.gmra.mrb[0].mxu0 %v1153
      %v1236 = vpop.f32.mrb[0].mxu0
      %v1237 = vadd.f32 0.0, %v1236
      %v1238 = vpop.f32.mrb[0].mxu0
      %v1239 = vpop.f32.mrb[0].mxu0
      %v1240 = vadd.f32 0.0, %v1239
      %v1241 = vpop.f32.mrb[0].mxu0
      %1242 = vmatprep.mubr.bf16.mxu0 0
      %1243 = vmatmul.mubr.bf16.gmra.mrb[0].mxu0 %v1156
      %v1244 = vpop.f32.mrb[0].mxu0
      %v1245 = vadd.f32 0.0, %v1244
      %v1246 = vpop.f32.mrb[0].mxu0
      %v1247 = vpop.f32.mrb[0].mxu0
      %v1248 = vadd.f32 0.0, %v1247
      %v1249 = vpop.f32.mrb[0].mxu0
      %1250 = vmatprep.mubr.bf16.mxu0 0
      %1251 = vmatmul.mubr.bf16.gmra.mrb[0].mxu0 %v1159
      %v1252 = vpop.f32.mrb[0].mxu0
      %v1253 = vadd.f32 0.0, %v1252
      %v1254 = vpop.f32.mrb[0].mxu0
      %v1255 = vpop.f32.mrb[0].mxu0
      %v1256 = vadd.f32 0.0, %v1255
      %v1257 = vpop.f32.mrb[0].mxu0
      %1258 = vmatprep.mubr.bf16.mxu0 0
      %1259 = vmatmul.mubr.bf16.gmra.mrb[0].mxu0 %v1162
      %v1260 = vpop.f32.mrb[0].mxu0
      %v1261 = vadd.f32 0.0, %v1260
      %v1262 = vpop.f32.mrb[0].mxu0
      %v1263 = vpop.f32.mrb[0].mxu0
      %v1264 = vadd.f32 0.0, %v1263
      %v1265 = vpop.f32.mrb[0].mxu0
      %1266 = vmatprep.mubr.bf16.mxu0 0
      %1267 = vmatmul.mubr.bf16.gmra.mrb[0].mxu0 %v1165
      %v1268 = vpop.f32.mrb[0].mxu0
      %v1269 = vadd.f32 0.0, %v1268
      %v1270 = vpop.f32.mrb[0].mxu0
      %v1271 = vpop.f32.mrb[0].mxu0
      %v1272 = vpop.f32.mrb[0].mxu0
      %1273 = vdwg.mxu0
      %v1274 = vadd.f32 %v1051, %v1205
      %v1275 = vadd.f32 %v1054, %v1208
      %v1276 = vadd.f32 %v1059, %v1213
      %v1277 = vadd.f32 %v1062, %v1216
      %v1278 = vadd.f32 %v1067, %v1221
      %v1279 = vadd.f32 %v1070, %v1224
      %v1280 = vadd.f32 %v1075, %v1229
      %v1281 = vadd.f32 %v1078, %v1232
      %v1282 = vadd.f32 %v1083, %v1237
      %v1283 = vadd.f32 %v1086, %v1240
      %v1284 = vadd.f32 %v1091, %v1245
      %v1285 = vadd.f32 %v1094, %v1248
      %v1286 = vadd.f32 %v1099, %v1253
      %v1287 = vadd.f32 %v1102, %v1256
      %v1288 = vadd.f32 %v1107, %v1261
      %v1289 = vadd.f32 %v1110, %v1264
      %v1290 = vadd.f32 %v1115, %v1269
      %s1291 = scalar_lea.vmem %s3, 12
      %v1292 = vld [vmem:[%s1291] sm:$0xf]
      %vm1293 = vcmask 1045504
      %v1294 = vrot.slane %v776, 2
      %v1295 = vrot.slane %v777, 2
      %v1296 = vsel %vm1293, %v1294, %v1295
      %v1297 = vrot.slane %v778, 2
      %v1298 = vsel %vm1293, %v1295, %v1297
      %v1299 = vrot.slane %v779, 2
      %v1300 = vsel %vm1293, %v1297, %v1299
      %v1301 = vrot.slane %v780, 2
      %v1302 = vsel %vm1293, %v1299, %v1301
      %v1303 = vrot.slane %v781, 2
      %v1304 = vsel %vm1293, %v1301, %v1303
      %v1305 = vrot.slane %v782, 2
      %v1306 = vsel %vm1293, %v1303, %v1305
      %v1307 = vrot.slane %v783, 2
      %v1308 = vsel %vm1293, %v1305, %v1307
      %v1309 = vrot.slane %v784, 2
      %v1310 = vsel %vm1293, %v1307, %v1309
      %v1312 = vsel %vm857, %v1296, 0
      %v1315 = vsel %vm857, %v1298, 0
      %v1318 = vsel %vm857, %v1300, 0
      %v1321 = vsel %vm857, %v1302, 0
      %v1324 = vsel %vm857, %v1304, 0
      %v1327 = vsel %vm857, %v1306, 0
      %v1330 = vsel %vm857, %v1308, 0
      %v1333 = vsel %vm857, %v1310, 0
      %v1336 = vsel %vm857, %v1309, 0
      %v1339 = vsel %vm885, %v1292, 0
      %1341 = vmatprep.subr.bf16.mxu0 0
      %1342 = vmatpush1.bf16.msra.mxu0 %v1339
      %1343 = vmatprep.subr.bf16.mxu0 0
      %1344 = vmatpush1.bf16.msra.mxu0 0
      %1345 = vmatprep.subr.bf16.mxu0 0
      %1346 = vmatpush1.bf16.msra.mxu0 0
      %1347 = vmatprep.subr.bf16.mxu0 0
      %1348 = vmatpush1.bf16.msra.mxu0 0
      %1349 = vmatprep.subr.bf16.mxu0 0
      %1350 = vmatpush1.bf16.msra.mxu0 0
      %1351 = vmatprep.subr.bf16.mxu0 0
      %1352 = vmatpush1.bf16.msra.mxu0 0
      %1353 = vmatprep.subr.bf16.mxu0 0
      %1354 = vmatpush1.bf16.msra.mxu0 0
      %1355 = vmatprep.subr.bf16.mxu0 0
      %1356 = vmatpush1.bf16.msra.mxu0 0
      %1357 = vmatprep.subr.bf16.mxu0 0
      %1358 = vmatpush1.bf16.msra.mxu0 0
      %1359 = vmatprep.subr.bf16.mxu0 0
      %1360 = vmatpush1.bf16.msra.mxu0 0
      %1361 = vmatprep.subr.bf16.mxu0 0
      %1362 = vmatpush1.bf16.msra.mxu0 0
      %1363 = vmatprep.subr.bf16.mxu0 0
      %1364 = vmatpush1.bf16.msra.mxu0 0
      %1365 = vmatprep.subr.bf16.mxu0 0
      %1366 = vmatpush1.bf16.msra.mxu0 0
      %1367 = vmatprep.subr.bf16.mxu0 0
      %1368 = vmatpush1.bf16.msra.mxu0 0
      %1369 = vmatprep.subr.bf16.mxu0 0
      %1370 = vmatpush1.bf16.msra.mxu0 0
      %1371 = vmatprep.subr.bf16.mxu0 0
      %1372 = vmatpush1.bf16.msra.mxu0 0
      %1373 = vmatprep.mubr.bf16.mxu0 0
      %1374 = vmatmul.mubr.bf16.gmra.mrb[0].mxu0 %v1312
      %v1375 = vpop.f32.mrb[0].mxu0
      %v1376 = vadd.f32 0.0, %v1375
      %v1377 = vpop.f32.mrb[0].mxu0
      %v1378 = vpop.f32.mrb[0].mxu0
      %v1379 = vadd.f32 0.0, %v1378
      %v1380 = vpop.f32.mrb[0].mxu0
      %1381 = vmatprep.mubr.bf16.mxu0 0
      %1382 = vmatmul.mubr.bf16.gmra.mrb[0].mxu0 %v1315
      %v1383 = vpop.f32.mrb[0].mxu0
      %v1384 = vadd.f32 0.0, %v1383
      %v1385 = vpop.f32.mrb[0].mxu0
      %v1386 = vpop.f32.mrb[0].mxu0
      %v1387 = vadd.f32 0.0, %v1386
      %v1388 = vpop.f32.mrb[0].mxu0
      %1389 = vmatprep.mubr.bf16.mxu0 0
      %1390 = vmatmul.mubr.bf16.gmra.mrb[0].mxu0 %v1318
      %v1391 = vpop.f32.mrb[0].mxu0
      %v1392 = vadd.f32 0.0, %v1391
      %v1393 = vpop.f32.mrb[0].mxu0
      %v1394 = vpop.f32.mrb[0].mxu0
      %v1395 = vadd.f32 0.0, %v1394
      %v1396 = vpop.f32.mrb[0].mxu0
      %1397 = vmatprep.mubr.bf16.mxu0 0
      %1398 = vmatmul.mubr.bf16.gmra.mrb[0].mxu0 %v1321
      %v1399 = vpop.f32.mrb[0].mxu0
      %v1400 = vadd.f32 0.0, %v1399
      %v1401 = vpop.f32.mrb[0].mxu0
      %v1402 = vpop.f32.mrb[0].mxu0
      %v1403 = vadd.f32 0.0, %v1402
      %v1404 = vpop.f32.mrb[0].mxu0
      %1405 = vmatprep.mubr.bf16.mxu0 0
      %1406 = vmatmul.mubr.bf16.gmra.mrb[0].mxu0 %v1324
      %v1407 = vpop.f32.mrb[0].mxu0
      %v1408 = vadd.f32 0.0, %v1407
      %v1409 = vpop.f32.mrb[0].mxu0
      %v1410 = vpop.f32.mrb[0].mxu0
      %v1411 = vadd.f32 0.0, %v1410
      %v1412 = vpop.f32.mrb[0].mxu0
      %1413 = vmatprep.mubr.bf16.mxu0 0
      %1414 = vmatmul.mubr.bf16.gmra.mrb[0].mxu0 %v1327
      %v1415 = vpop.f32.mrb[0].mxu0
      %v1416 = vadd.f32 0.0, %v1415
      %v1417 = vpop.f32.mrb[0].mxu0
      %v1418 = vpop.f32.mrb[0].mxu0
      %v1419 = vadd.f32 0.0, %v1418
      %v1420 = vpop.f32.mrb[0].mxu0
      %1421 = vmatprep.mubr.bf16.mxu0 0
      %1422 = vmatmul.mubr.bf16.gmra.mrb[0].mxu0 %v1330
      %v1423 = vpop.f32.mrb[0].mxu0
      %v1424 = vadd.f32 0.0, %v1423
      %v1425 = vpop.f32.mrb[0].mxu0
      %v1426 = vpop.f32.mrb[0].mxu0
      %v1427 = vadd.f32 0.0, %v1426
      %v1428 = vpop.f32.mrb[0].mxu0
      %1429 = vmatprep.mubr.bf16.mxu0 0
      %1430 = vmatmul.mubr.bf16.gmra.mrb[0].mxu0 %v1333
      %v1431 = vpop.f32.mrb[0].mxu0
      %v1432 = vadd.f32 0.0, %v1431
      %v1433 = vpop.f32.mrb[0].mxu0
      %v1434 = vpop.f32.mrb[0].mxu0
      %v1435 = vadd.f32 0.0, %v1434
      %v1436 = vpop.f32.mrb[0].mxu0
      %1437 = vmatprep.mubr.bf16.mxu0 0
      %1438 = vmatmul.mubr.bf16.gmra.mrb[0].mxu0 %v1336
      %v1439 = vpop.f32.mrb[0].mxu0
      %v1440 = vadd.f32 0.0, %v1439
      %v1441 = vpop.f32.mrb[0].mxu0
      %v1442 = vpop.f32.mrb[0].mxu0
      %v1443 = vpop.f32.mrb[0].mxu0
      %1444 = vdwg.mxu0
      %v1445 = vadd.f32 %v1274, %v1376
      %v1446 = vadd.f32 %v1275, %v1379
      %v1447 = vadd.f32 %v1276, %v1384
      %v1448 = vadd.f32 %v1277, %v1387
      %v1449 = vadd.f32 %v1278, %v1392
      %v1450 = vadd.f32 %v1279, %v1395
      %v1451 = vadd.f32 %v1280, %v1400
      %v1452 = vadd.f32 %v1281, %v1403
      %v1453 = vadd.f32 %v1282, %v1408
      %v1454 = vadd.f32 %v1283, %v1411
      %v1455 = vadd.f32 %v1284, %v1416
      %v1456 = vadd.f32 %v1285, %v1419
      %v1457 = vadd.f32 %v1286, %v1424
      %v1458 = vadd.f32 %v1287, %v1427
      %v1459 = vadd.f32 %v1288, %v1432
      %v1460 = vadd.f32 %v1289, %v1435
      %v1461 = vadd.f32 %v1290, %v1440
      %s1462 = scalar_lea.vmem %s3, 16
      %v1463 = vld [vmem:[%s1462] sm:$0xf]
      %vm1464 = vsmask.f32 5376
      %v1465 = vrot.slane %v787, 2
      %v1466 = vrot.slane %v789, 3
      %v1467 = vor.u32 %v1465, %v1466
      %v1468 = vrot.slane %v798, 2
      %v1469 = vrot.slane %v794, 3
      %v1470 = vor.u32 %v1468, %v1469
      %v1471 = vsel %vm1464, %v1467, %v1470
      %v1472 = vrot.slane %v806, 2
      %v1473 = vrot.slane %v802, 3
      %v1474 = vor.u32 %v1472, %v1473
      %v1475 = vsel %vm1464, %v1470, %v1474
      %v1476 = vrot.slane %v814, 2
      %v1477 = vrot.slane %v810, 3
      %v1478 = vor.u32 %v1476, %v1477
      %v1479 = vsel %vm1464, %v1474, %v1478
      %v1480 = vrot.slane %v822, 2
      %v1481 = vrot.slane %v818, 3
      %v1482 = vor.u32 %v1480, %v1481
      %v1483 = vsel %vm1464, %v1478, %v1482
      %v1484 = vrot.slane %v830, 2
      %v1485 = vrot.slane %v826, 3
      %v1486 = vor.u32 %v1484, %v1485
      %v1487 = vsel %vm1464, %v1482, %v1486
      %v1488 = vrot.slane %v838, 2
      %v1489 = vrot.slane %v834, 3
      %v1490 = vor.u32 %v1488, %v1489
      %v1491 = vsel %vm1464, %v1486, %v1490
      %v1492 = vrot.slane %v846, 2
      %v1493 = vrot.slane %v842, 3
      %v1494 = vor.u32 %v1492, %v1493
      %v1495 = vsel %vm1464, %v1490, %v1494
      %v1496 = vrot.slane %v854, 2
      %v1497 = vrot.slane %v850, 3
      %v1498 = vor.u32 %v1496, %v1497
      %v1499 = vsel %vm1464, %v1494, %v1498
      %v1501 = vsel %vm857, %v1471, 0
      %v1504 = vsel %vm857, %v1475, 0
      %v1507 = vsel %vm857, %v1479, 0
      %v1510 = vsel %vm857, %v1483, 0
      %v1513 = vsel %vm857, %v1487, 0
      %v1516 = vsel %vm857, %v1491, 0
      %v1519 = vsel %vm857, %v1495, 0
      %v1522 = vsel %vm857, %v1499, 0
      %v1525 = vsel %vm857, %v1498, 0
      %v1528 = vsel %vm885, %v1463, 0
      %1530 = vmatprep.subr.bf16.mxu0 0
      %1531 = vmatpush1.bf16.msra.mxu0 %v1528
      %1532 = vmatprep.subr.bf16.mxu0 0
      %1533 = vmatpush1.bf16.msra.mxu0 0
      %1534 = vmatprep.subr.bf16.mxu0 0
      %1535 = vmatpush1.bf16.msra.mxu0 0
      %1536 = vmatprep.subr.bf16.mxu0 0
      %1537 = vmatpush1.bf16.msra.mxu0 0
      %1538 = vmatprep.subr.bf16.mxu0 0
      %1539 = vmatpush1.bf16.msra.mxu0 0
      %1540 = vmatprep.subr.bf16.mxu0 0
      %1541 = vmatpush1.bf16.msra.mxu0 0
      %1542 = vmatprep.subr.bf16.mxu0 0
      %1543 = vmatpush1.bf16.msra.mxu0 0
      %1544 = vmatprep.subr.bf16.mxu0 0
      %1545 = vmatpush1.bf16.msra.mxu0 0
      %1546 = vmatprep.subr.bf16.mxu0 0
      %1547 = vmatpush1.bf16.msra.mxu0 0
      %1548 = vmatprep.subr.bf16.mxu0 0
      %1549 = vmatpush1.bf16.msra.mxu0 0
      %1550 = vmatprep.subr.bf16.mxu0 0
      %1551 = vmatpush1.bf16.msra.mxu0 0
      %1552 = vmatprep.subr.bf16.mxu0 0
      %1553 = vmatpush1.bf16.msra.mxu0 0
      %1554 = vmatprep.subr.bf16.mxu0 0
      %1555 = vmatpush1.bf16.msra.mxu0 0
      %1556 = vmatprep.subr.bf16.mxu0 0
      %1557 = vmatpush1.bf16.msra.mxu0 0
      %1558 = vmatprep.subr.bf16.mxu0 0
      %1559 = vmatpush1.bf16.msra.mxu0 0
      %1560 = vmatprep.subr.bf16.mxu0 0
      %1561 = vmatpush1.bf16.msra.mxu0 0
      %1562 = vmatprep.mubr.bf16.mxu0 0
      %1563 = vmatmul.mubr.bf16.gmra.mrb[0].mxu0 %v1501
      %v1564 = vpop.f32.mrb[0].mxu0
      %v1565 = vadd.f32 0.0, %v1564
      %v1566 = vpop.f32.mrb[0].mxu0
      %v1567 = vpop.f32.mrb[0].mxu0
      %v1568 = vadd.f32 0.0, %v1567
      %v1569 = vpop.f32.mrb[0].mxu0
      %1570 = vmatprep.mubr.bf16.mxu0 0
      %1571 = vmatmul.mubr.bf16.gmra.mrb[0].mxu0 %v1504
      %v1572 = vpop.f32.mrb[0].mxu0
      %v1573 = vadd.f32 0.0, %v1572
      %v1574 = vpop.f32.mrb[0].mxu0
      %v1575 = vpop.f32.mrb[0].mxu0
      %v1576 = vadd.f32 0.0, %v1575
      %v1577 = vpop.f32.mrb[0].mxu0
      %1578 = vmatprep.mubr.bf16.mxu0 0
      %1579 = vmatmul.mubr.bf16.gmra.mrb[0].mxu0 %v1507
      %v1580 = vpop.f32.mrb[0].mxu0
      %v1581 = vadd.f32 0.0, %v1580
      %v1582 = vpop.f32.mrb[0].mxu0
      %v1583 = vpop.f32.mrb[0].mxu0
      %v1584 = vadd.f32 0.0, %v1583
      %v1585 = vpop.f32.mrb[0].mxu0
      %1586 = vmatprep.mubr.bf16.mxu0 0
      %1587 = vmatmul.mubr.bf16.gmra.mrb[0].mxu0 %v1510
      %v1588 = vpop.f32.mrb[0].mxu0
      %v1589 = vadd.f32 0.0, %v1588
      %v1590 = vpop.f32.mrb[0].mxu0
      %v1591 = vpop.f32.mrb[0].mxu0
      %v1592 = vadd.f32 0.0, %v1591
      %v1593 = vpop.f32.mrb[0].mxu0
      %1594 = vmatprep.mubr.bf16.mxu0 0
      %1595 = vmatmul.mubr.bf16.gmra.mrb[0].mxu0 %v1513
      %v1596 = vpop.f32.mrb[0].mxu0
      %v1597 = vadd.f32 0.0, %v1596
      %v1598 = vpop.f32.mrb[0].mxu0
      %v1599 = vpop.f32.mrb[0].mxu0
      %v1600 = vadd.f32 0.0, %v1599
      %v1601 = vpop.f32.mrb[0].mxu0
      %1602 = vmatprep.mubr.bf16.mxu0 0
      %1603 = vmatmul.mubr.bf16.gmra.mrb[0].mxu0 %v1516
      %v1604 = vpop.f32.mrb[0].mxu0
      %v1605 = vadd.f32 0.0, %v1604
      %v1606 = vpop.f32.mrb[0].mxu0
      %v1607 = vpop.f32.mrb[0].mxu0
      %v1608 = vadd.f32 0.0, %v1607
      %v1609 = vpop.f32.mrb[0].mxu0
      %1610 = vmatprep.mubr.bf16.mxu0 0
      %1611 = vmatmul.mubr.bf16.gmra.mrb[0].mxu0 %v1519
      %v1612 = vpop.f32.mrb[0].mxu0
      %v1613 = vadd.f32 0.0, %v1612
      %v1614 = vpop.f32.mrb[0].mxu0
      %v1615 = vpop.f32.mrb[0].mxu0
      %v1616 = vadd.f32 0.0, %v1615
      %v1617 = vpop.f32.mrb[0].mxu0
      %1618 = vmatprep.mubr.bf16.mxu0 0
      %1619 = vmatmul.mubr.bf16.gmra.mrb[0].mxu0 %v1522
      %v1620 = vpop.f32.mrb[0].mxu0
      %v1621 = vadd.f32 0.0, %v1620
      %v1622 = vpop.f32.mrb[0].mxu0
      %v1623 = vpop.f32.mrb[0].mxu0
      %v1624 = vadd.f32 0.0, %v1623
      %v1625 = vpop.f32.mrb[0].mxu0
      %1626 = vmatprep.mubr.bf16.mxu0 0
      %1627 = vmatmul.mubr.bf16.gmra.mrb[0].mxu0 %v1525
      %v1628 = vpop.f32.mrb[0].mxu0
      %v1629 = vadd.f32 0.0, %v1628
      %v1630 = vpop.f32.mrb[0].mxu0
      %v1631 = vpop.f32.mrb[0].mxu0
      %v1632 = vpop.f32.mrb[0].mxu0
      %1633 = vdwg.mxu0
      %v1634 = vadd.f32 %v1445, %v1565
      %v1635 = vadd.f32 %v1446, %v1568
      %v1636 = vadd.f32 %v1447, %v1573
      %v1637 = vadd.f32 %v1448, %v1576
      %v1638 = vadd.f32 %v1449, %v1581
      %v1639 = vadd.f32 %v1450, %v1584
      %v1640 = vadd.f32 %v1451, %v1589
      %v1641 = vadd.f32 %v1452, %v1592
      %v1642 = vadd.f32 %v1453, %v1597
      %v1643 = vadd.f32 %v1454, %v1600
      %v1644 = vadd.f32 %v1455, %v1605
      %v1645 = vadd.f32 %v1456, %v1608
      %v1646 = vadd.f32 %v1457, %v1613
      %v1647 = vadd.f32 %v1458, %v1616
      %v1648 = vadd.f32 %v1459, %v1621
      %v1649 = vadd.f32 %v1460, %v1624
      %v1650 = vadd.f32 %v1461, %v1629
      %s1651 = scalar_lea.vmem %s3, 20
      %v1652 = vld [vmem:[%s1651] sm:$0xf]
      %vm1653 = vcmask 1044480
      %v1654 = vrot.slane %v776, 3
      %v1655 = vrot.slane %v777, 3
      %v1656 = vsel %vm1653, %v1654, %v1655
      %v1657 = vrot.slane %v778, 3
      %v1658 = vsel %vm1653, %v1655, %v1657
      %v1659 = vrot.slane %v779, 3
      %v1660 = vsel %vm1653, %v1657, %v1659
      %v1661 = vrot.slane %v780, 3
      %v1662 = vsel %vm1653, %v1659, %v1661
      %v1663 = vrot.slane %v781, 3
      %v1664 = vsel %vm1653, %v1661, %v1663
      %v1665 = vrot.slane %v782, 3
      %v1666 = vsel %vm1653, %v1663, %v1665
      %v1667 = vrot.slane %v783, 3
      %v1668 = vsel %vm1653, %v1665, %v1667
      %v1669 = vrot.slane %v784, 3
      %v1670 = vsel %vm1653, %v1667, %v1669
      %v1672 = vsel %vm857, %v1656, 0
      %v1675 = vsel %vm857, %v1658, 0
      %v1678 = vsel %vm857, %v1660, 0
      %v1681 = vsel %vm857, %v1662, 0
      %v1684 = vsel %vm857, %v1664, 0
      %v1687 = vsel %vm857, %v1666, 0
      %v1690 = vsel %vm857, %v1668, 0
      %v1693 = vsel %vm857, %v1670, 0
      %v1696 = vsel %vm857, %v1669, 0
      %v1699 = vsel %vm885, %v1652, 0
      %1701 = vmatprep.subr.bf16.mxu0 0
      %1702 = vmatpush1.bf16.msra.mxu0 %v1699
      %1703 = vmatprep.subr.bf16.mxu0 0
      %1704 = vmatpush1.bf16.msra.mxu0 0
      %1705 = vmatprep.subr.bf16.mxu0 0
      %1706 = vmatpush1.bf16.msra.mxu0 0
      %1707 = vmatprep.subr.bf16.mxu0 0
      %1708 = vmatpush1.bf16.msra.mxu0 0
      %1709 = vmatprep.subr.bf16.mxu0 0
      %1710 = vmatpush1.bf16.msra.mxu0 0
      %1711 = vmatprep.subr.bf16.mxu0 0
      %1712 = vmatpush1.bf16.msra.mxu0 0
      %1713 = vmatprep.subr.bf16.mxu0 0
      %1714 = vmatpush1.bf16.msra.mxu0 0
      %1715 = vmatprep.subr.bf16.mxu0 0
      %1716 = vmatpush1.bf16.msra.mxu0 0
      %1717 = vmatprep.subr.bf16.mxu0 0
      %1718 = vmatpush1.bf16.msra.mxu0 0
      %1719 = vmatprep.subr.bf16.mxu0 0
      %1720 = vmatpush1.bf16.msra.mxu0 0
      %1721 = vmatprep.subr.bf16.mxu0 0
      %1722 = vmatpush1.bf16.msra.mxu0 0
      %1723 = vmatprep.subr.bf16.mxu0 0
      %1724 = vmatpush1.bf16.msra.mxu0 0
      %1725 = vmatprep.subr.bf16.mxu0 0
      %1726 = vmatpush1.bf16.msra.mxu0 0
      %1727 = vmatprep.subr.bf16.mxu0 0
      %1728 = vmatpush1.bf16.msra.mxu0 0
      %1729 = vmatprep.subr.bf16.mxu0 0
      %1730 = vmatpush1.bf16.msra.mxu0 0
      %1731 = vmatprep.subr.bf16.mxu0 0
      %1732 = vmatpush1.bf16.msra.mxu0 0
      %1733 = vmatprep.mubr.bf16.mxu0 0
      %1734 = vmatmul.mubr.bf16.gmra.mrb[0].mxu0 %v1672
      %v1735 = vpop.f32.mrb[0].mxu0
      %v1736 = vadd.f32 0.0, %v1735
      %v1737 = vpop.f32.mrb[0].mxu0
      %v1738 = vpop.f32.mrb[0].mxu0
      %v1739 = vadd.f32 0.0, %v1738
      %v1740 = vpop.f32.mrb[0].mxu0
      %1741 = vmatprep.mubr.bf16.mxu0 0
      %1742 = vmatmul.mubr.bf16.gmra.mrb[0].mxu0 %v1675
      %v1743 = vpop.f32.mrb[0].mxu0
      %v1744 = vadd.f32 0.0, %v1743
      %v1745 = vpop.f32.mrb[0].mxu0
      %v1746 = vpop.f32.mrb[0].mxu0
      %v1747 = vadd.f32 0.0, %v1746
      %v1748 = vpop.f32.mrb[0].mxu0
      %1749 = vmatprep.mubr.bf16.mxu0 0
      %1750 = vmatmul.mubr.bf16.gmra.mrb[0].mxu0 %v1678
      %v1751 = vpop.f32.mrb[0].mxu0
      %v1752 = vadd.f32 0.0, %v1751
      %v1753 = vpop.f32.mrb[0].mxu0
      %v1754 = vpop.f32.mrb[0].mxu0
      %v1755 = vadd.f32 0.0, %v1754
      %v1756 = vpop.f32.mrb[0].mxu0
      %1757 = vmatprep.mubr.bf16.mxu0 0
      %1758 = vmatmul.mubr.bf16.gmra.mrb[0].mxu0 %v1681
      %v1759 = vpop.f32.mrb[0].mxu0
      %v1760 = vadd.f32 0.0, %v1759
      %v1761 = vpop.f32.mrb[0].mxu0
      %v1762 = vpop.f32.mrb[0].mxu0
      %v1763 = vadd.f32 0.0, %v1762
      %v1764 = vpop.f32.mrb[0].mxu0
      %1765 = vmatprep.mubr.bf16.mxu0 0
      %1766 = vmatmul.mubr.bf16.gmra.mrb[0].mxu0 %v1684
      %v1767 = vpop.f32.mrb[0].mxu0
      %v1768 = vadd.f32 0.0, %v1767
      %v1769 = vpop.f32.mrb[0].mxu0
      %v1770 = vpop.f32.mrb[0].mxu0
      %v1771 = vadd.f32 0.0, %v1770
      %v1772 = vpop.f32.mrb[0].mxu0
      %1773 = vmatprep.mubr.bf16.mxu0 0
      %1774 = vmatmul.mubr.bf16.gmra.mrb[0].mxu0 %v1687
      %v1775 = vpop.f32.mrb[0].mxu0
      %v1776 = vadd.f32 0.0, %v1775
      %v1777 = vpop.f32.mrb[0].mxu0
      %v1778 = vpop.f32.mrb[0].mxu0
      %v1779 = vadd.f32 0.0, %v1778
      %v1780 = vpop.f32.mrb[0].mxu0
      %1781 = vmatprep.mubr.bf16.mxu0 0
      %1782 = vmatmul.mubr.bf16.gmra.mrb[0].mxu0 %v1690
      %v1783 = vpop.f32.mrb[0].mxu0
      %v1784 = vadd.f32 0.0, %v1783
      %v1785 = vpop.f32.mrb[0].mxu0
      %v1786 = vpop.f32.mrb[0].mxu0
      %v1787 = vadd.f32 0.0, %v1786
      %v1788 = vpop.f32.mrb[0].mxu0
      %1789 = vmatprep.mubr.bf16.mxu0 0
      %1790 = vmatmul.mubr.bf16.gmra.mrb[0].mxu0 %v1693
      %v1791 = vpop.f32.mrb[0].mxu0
      %v1792 = vadd.f32 0.0, %v1791
      %v1793 = vpop.f32.mrb[0].mxu0
      %v1794 = vpop.f32.mrb[0].mxu0
      %v1795 = vadd.f32 0.0, %v1794
      %v1796 = vpop.f32.mrb[0].mxu0
      %1797 = vmatprep.mubr.bf16.mxu0 0
      %1798 = vmatmul.mubr.bf16.gmra.mrb[0].mxu0 %v1696
      %v1799 = vpop.f32.mrb[0].mxu0
      %v1800 = vadd.f32 0.0, %v1799
      %v1801 = vpop.f32.mrb[0].mxu0
      %v1802 = vpop.f32.mrb[0].mxu0
      %v1803 = vpop.f32.mrb[0].mxu0
      %1804 = vdwg.mxu0
      %v1805 = vadd.f32 %v1634, %v1736
      %v1806 = vadd.f32 %v1635, %v1739
      %v1807 = vadd.f32 %v1636, %v1744
      %v1808 = vadd.f32 %v1637, %v1747
      %v1809 = vadd.f32 %v1638, %v1752
      %v1810 = vadd.f32 %v1639, %v1755
      %v1811 = vadd.f32 %v1640, %v1760
      %v1812 = vadd.f32 %v1641, %v1763
      %v1813 = vadd.f32 %v1642, %v1768
      %v1814 = vadd.f32 %v1643, %v1771
      %v1815 = vadd.f32 %v1644, %v1776
      %v1816 = vadd.f32 %v1645, %v1779
      %v1817 = vadd.f32 %v1646, %v1784
      %v1818 = vadd.f32 %v1647, %v1787
      %v1819 = vadd.f32 %v1648, %v1792
      %v1820 = vadd.f32 %v1649, %v1795
      %v1821 = vadd.f32 %v1650, %v1800
      %s1822 = scalar_lea.vmem %s3, 24
      %v1823 = vld [vmem:[%s1822] sm:$0xf]
      %v1824 = vpack.c.b16 %v760, %v759
      %v1825 = vpack.c.b16 %v762, %v761
      %v1826 = vpack.c.b16 %v764, %v763
      %v1827 = vpack.c.b16 %v766, %v765
      %v1828 = vpack.c.b16 %v768, %v767
      %v1829 = vpack.c.b16 %v770, %v769
      %v1830 = vpack.c.b16 %v772, %v771
      %v1831 = vpack.c.b16 %v774, %v773
      %v1832 = vpack.c.b16 %v775, %v775
      %v1834 = vsel %vm857, %v1824, 0
      %v1837 = vsel %vm857, %v1825, 0
      %v1840 = vsel %vm857, %v1826, 0
      %v1843 = vsel %vm857, %v1827, 0
      %v1846 = vsel %vm857, %v1828, 0
      %v1849 = vsel %vm857, %v1829, 0
      %v1852 = vsel %vm857, %v1830, 0
      %v1855 = vsel %vm857, %v1831, 0
      %v1858 = vsel %vm857, %v1832, 0
      %v1861 = vsel %vm885, %v1823, 0
      %1863 = vmatprep.subr.bf16.mxu0 0
      %1864 = vmatpush1.bf16.msra.mxu0 %v1861
      %1865 = vmatprep.subr.bf16.mxu0 0
      %1866 = vmatpush1.bf16.msra.mxu0 0
      %1867 = vmatprep.subr.bf16.mxu0 0
      %1868 = vmatpush1.bf16.msra.mxu0 0
      %1869 = vmatprep.subr.bf16.mxu0 0
      %1870 = vmatpush1.bf16.msra.mxu0 0
      %1871 = vmatprep.subr.bf16.mxu0 0
      %1872 = vmatpush1.bf16.msra.mxu0 0
      %1873 = vmatprep.subr.bf16.mxu0 0
      %1874 = vmatpush1.bf16.msra.mxu0 0
      %1875 = vmatprep.subr.bf16.mxu0 0
      %1876 = vmatpush1.bf16.msra.mxu0 0
      %1877 = vmatprep.subr.bf16.mxu0 0
      %1878 = vmatpush1.bf16.msra.mxu0 0
      %1879 = vmatprep.subr.bf16.mxu0 0
      %1880 = vmatpush1.bf16.msra.mxu0 0
      %1881 = vmatprep.subr.bf16.mxu0 0
      %1882 = vmatpush1.bf16.msra.mxu0 0
      %1883 = vmatprep.subr.bf16.mxu0 0
      %1884 = vmatpush1.bf16.msra.mxu0 0
      %1885 = vmatprep.subr.bf16.mxu0 0
      %1886 = vmatpush1.bf16.msra.mxu0 0
      %1887 = vmatprep.subr.bf16.mxu0 0
      %1888 = vmatpush1.bf16.msra.mxu0 0
      %1889 = vmatprep.subr.bf16.mxu0 0
      %1890 = vmatpush1.bf16.msra.mxu0 0
      %1891 = vmatprep.subr.bf16.mxu0 0
      %1892 = vmatpush1.bf16.msra.mxu0 0
      %1893 = vmatprep.subr.bf16.mxu0 0
      %1894 = vmatpush1.bf16.msra.mxu0 0
      %1895 = vmatprep.mubr.bf16.mxu0 0
      %1896 = vmatmul.mubr.bf16.gmra.mrb[0].mxu0 %v1834
      %v1897 = vpop.f32.mrb[0].mxu0
      %v1898 = vadd.f32 0.0, %v1897
      %v1899 = vpop.f32.mrb[0].mxu0
      %v1900 = vpop.f32.mrb[0].mxu0
      %v1901 = vadd.f32 0.0, %v1900
      %v1902 = vpop.f32.mrb[0].mxu0
      %1903 = vmatprep.mubr.bf16.mxu0 0
      %1904 = vmatmul.mubr.bf16.gmra.mrb[0].mxu0 %v1837
      %v1905 = vpop.f32.mrb[0].mxu0
      %v1906 = vadd.f32 0.0, %v1905
      %v1907 = vpop.f32.mrb[0].mxu0
      %v1908 = vpop.f32.mrb[0].mxu0
      %v1909 = vadd.f32 0.0, %v1908
      %v1910 = vpop.f32.mrb[0].mxu0
      %1911 = vmatprep.mubr.bf16.mxu0 0
      %1912 = vmatmul.mubr.bf16.gmra.mrb[0].mxu0 %v1840
      %v1913 = vpop.f32.mrb[0].mxu0
      %v1914 = vadd.f32 0.0, %v1913
      %v1915 = vpop.f32.mrb[0].mxu0
      %v1916 = vpop.f32.mrb[0].mxu0
      %v1917 = vadd.f32 0.0, %v1916
      %v1918 = vpop.f32.mrb[0].mxu0
      %1919 = vmatprep.mubr.bf16.mxu0 0
      %1920 = vmatmul.mubr.bf16.gmra.mrb[0].mxu0 %v1843
      %v1921 = vpop.f32.mrb[0].mxu0
      %v1922 = vadd.f32 0.0, %v1921
      %v1923 = vpop.f32.mrb[0].mxu0
      %v1924 = vpop.f32.mrb[0].mxu0
      %v1925 = vadd.f32 0.0, %v1924
      %v1926 = vpop.f32.mrb[0].mxu0
      %1927 = vmatprep.mubr.bf16.mxu0 0
      %1928 = vmatmul.mubr.bf16.gmra.mrb[0].mxu0 %v1846
      %v1929 = vpop.f32.mrb[0].mxu0
      %v1930 = vadd.f32 0.0, %v1929
      %v1931 = vpop.f32.mrb[0].mxu0
      %v1932 = vpop.f32.mrb[0].mxu0
      %v1933 = vadd.f32 0.0, %v1932
      %v1934 = vpop.f32.mrb[0].mxu0
      %1935 = vmatprep.mubr.bf16.mxu0 0
      %1936 = vmatmul.mubr.bf16.gmra.mrb[0].mxu0 %v1849
      %v1937 = vpop.f32.mrb[0].mxu0
      %v1938 = vadd.f32 0.0, %v1937
      %v1939 = vpop.f32.mrb[0].mxu0
      %v1940 = vpop.f32.mrb[0].mxu0
      %v1941 = vadd.f32 0.0, %v1940
      %v1942 = vpop.f32.mrb[0].mxu0
      %1943 = vmatprep.mubr.bf16.mxu0 0
      %1944 = vmatmul.mubr.bf16.gmra.mrb[0].mxu0 %v1852
      %v1945 = vpop.f32.mrb[0].mxu0
      %v1946 = vadd.f32 0.0, %v1945
      %v1947 = vpop.f32.mrb[0].mxu0
      %v1948 = vpop.f32.mrb[0].mxu0
      %v1949 = vadd.f32 0.0, %v1948
      %v1950 = vpop.f32.mrb[0].mxu0
      %1951 = vmatprep.mubr.bf16.mxu0 0
      %1952 = vmatmul.mubr.bf16.gmra.mrb[0].mxu0 %v1855
      %v1953 = vpop.f32.mrb[0].mxu0
      %v1954 = vadd.f32 0.0, %v1953
      %v1955 = vpop.f32.mrb[0].mxu0
      %v1956 = vpop.f32.mrb[0].mxu0
      %v1957 = vadd.f32 0.0, %v1956
      %v1958 = vpop.f32.mrb[0].mxu0
      %1959 = vmatprep.mubr.bf16.mxu0 0
      %1960 = vmatmul.mubr.bf16.gmra.mrb[0].mxu0 %v1858
      %v1961 = vpop.f32.mrb[0].mxu0
      %v1962 = vadd.f32 0.0, %v1961
      %v1963 = vpop.f32.mrb[0].mxu0
      %v1964 = vpop.f32.mrb[0].mxu0
      %v1965 = vpop.f32.mrb[0].mxu0
      %1966 = vdwg.mxu0
      %v1967 = vadd.f32 %v1805, %v1898
      %v1968 = vadd.f32 %v1806, %v1901
      %v1969 = vadd.f32 %v1807, %v1906
      %v1970 = vadd.f32 %v1808, %v1909
      %v1971 = vadd.f32 %v1809, %v1914
      %v1972 = vadd.f32 %v1810, %v1917
      %v1973 = vadd.f32 %v1811, %v1922
      %v1974 = vadd.f32 %v1812, %v1925
      %v1975 = vadd.f32 %v1813, %v1930
      %v1976 = vadd.f32 %v1814, %v1933
      %v1977 = vadd.f32 %v1815, %v1938
      %v1978 = vadd.f32 %v1816, %v1941
      %v1979 = vadd.f32 %v1817, %v1946
      %v1980 = vadd.f32 %v1818, %v1949
      %v1981 = vadd.f32 %v1819, %v1954
      %v1982 = vadd.f32 %v1820, %v1957
      %v1983 = vadd.f32 %v1821, %v1962
      %s1984 = scalar_lea.vmem %s3, 28
      %v1985 = vld [vmem:[%s1984] sm:$0xf]
      %v1987 = vunpack.c.l.b16 %v734
      %v1988 = vpack.c.b16 %v1987, %v775
      %v1989 = vshrl.u32 %v1824, 16
      %v1991 = vshll.u32 %v1824, 16
      %v1993 = vrot.slane %v1991, 1
      %v1994 = vor.u32 %v1989, %v1993
      %v1995 = vshll.u32 %v1825, 16
      %v1997 = vrot.slane %v1995, 1
      %v1998 = vsel %vm785, %v1994, %v1997
      %v1999 = vshrl.u32 %v1825, 16
      %v2001 = vor.u32 %v1999, %v1997
      %v2002 = vshll.u32 %v1826, 16
      %v2004 = vrot.slane %v2002, 1
      %v2005 = vsel %vm785, %v2001, %v2004
      %v2006 = vshrl.u32 %v1826, 16
      %v2008 = vor.u32 %v2006, %v2004
      %v2009 = vshll.u32 %v1827, 16
      %v2011 = vrot.slane %v2009, 1
      %v2012 = vsel %vm785, %v2008, %v2011
      %v2013 = vshrl.u32 %v1827, 16
      %v2015 = vor.u32 %v2013, %v2011
      %v2016 = vshll.u32 %v1828, 16
      %v2018 = vrot.slane %v2016, 1
      %v2019 = vsel %vm785, %v2015, %v2018
      %v2020 = vshrl.u32 %v1828, 16
      %v2022 = vor.u32 %v2020, %v2018
      %v2023 = vshll.u32 %v1829, 16
      %v2025 = vrot.slane %v2023, 1
      %v2026 = vsel %vm785, %v2022, %v2025
      %v2027 = vshrl.u32 %v1829, 16
      %v2029 = vor.u32 %v2027, %v2025
      %v2030 = vshll.u32 %v1830, 16
      %v2032 = vrot.slane %v2030, 1
      %v2033 = vsel %vm785, %v2029, %v2032
      %v2034 = vshrl.u32 %v1830, 16
      %v2036 = vor.u32 %v2034, %v2032
      %v2037 = vshll.u32 %v1831, 16
      %v2039 = vrot.slane %v2037, 1
      %v2040 = vsel %vm785, %v2036, %v2039
      %v2041 = vshrl.u32 %v1831, 16
      %v2043 = vor.u32 %v2041, %v2039
      %v2045 = vshll.u32 %v1988, 16
      %v2047 = vrot.slane %v2045, 1
      %v2048 = vsel %vm785, %v2043, %v2047
      %v2049 = vshrl.u32 %v1988, 16
      %v2051 = vor.u32 %v2049, %v2047
      %v2053 = vsel %vm857, %v1998, 0
      %v2056 = vsel %vm857, %v2005, 0
      %v2059 = vsel %vm857, %v2012, 0
      %v2062 = vsel %vm857, %v2019, 0
      %v2065 = vsel %vm857, %v2026, 0
      %v2068 = vsel %vm857, %v2033, 0
      %v2071 = vsel %vm857, %v2040, 0
      %v2074 = vsel %vm857, %v2048, 0
      %v2077 = vsel %vm857, %v2051, 0
      %v2080 = vsel %vm885, %v1985, 0
      %2082 = vmatprep.subr.bf16.mxu0 0
      %2083 = vmatpush1.bf16.msra.mxu0 %v2080
      %2084 = vmatprep.subr.bf16.mxu0 0
      %2085 = vmatpush1.bf16.msra.mxu0 0
      %2086 = vmatprep.subr.bf16.mxu0 0
      %2087 = vmatpush1.bf16.msra.mxu0 0
      %2088 = vmatprep.subr.bf16.mxu0 0
      %2089 = vmatpush1.bf16.msra.mxu0 0
      %2090 = vmatprep.subr.bf16.mxu0 0
      %2091 = vmatpush1.bf16.msra.mxu0 0
      %2092 = vmatprep.subr.bf16.mxu0 0
      %2093 = vmatpush1.bf16.msra.mxu0 0
      %2094 = vmatprep.subr.bf16.mxu0 0
      %2095 = vmatpush1.bf16.msra.mxu0 0
      %2096 = vmatprep.subr.bf16.mxu0 0
      %2097 = vmatpush1.bf16.msra.mxu0 0
      %2098 = vmatprep.subr.bf16.mxu0 0
      %2099 = vmatpush1.bf16.msra.mxu0 0
      %2100 = vmatprep.subr.bf16.mxu0 0
      %2101 = vmatpush1.bf16.msra.mxu0 0
      %2102 = vmatprep.subr.bf16.mxu0 0
      %2103 = vmatpush1.bf16.msra.mxu0 0
      %2104 = vmatprep.subr.bf16.mxu0 0
      %2105 = vmatpush1.bf16.msra.mxu0 0
      %2106 = vmatprep.subr.bf16.mxu0 0
      %2107 = vmatpush1.bf16.msra.mxu0 0
      %2108 = vmatprep.subr.bf16.mxu0 0
      %2109 = vmatpush1.bf16.msra.mxu0 0
      %2110 = vmatprep.subr.bf16.mxu0 0
      %2111 = vmatpush1.bf16.msra.mxu0 0
      %2112 = vmatprep.subr.bf16.mxu0 0
      %2113 = vmatpush1.bf16.msra.mxu0 0
      %2114 = vmatprep.mubr.bf16.mxu0 0
      %2115 = vmatmul.mubr.bf16.gmra.mrb[0].mxu0 %v2053
      %v2116 = vpop.f32.mrb[0].mxu0
      %v2117 = vadd.f32 0.0, %v2116
      %v2118 = vpop.f32.mrb[0].mxu0
      %v2119 = vpop.f32.mrb[0].mxu0
      %v2120 = vadd.f32 0.0, %v2119
      %v2121 = vpop.f32.mrb[0].mxu0
      %2122 = vmatprep.mubr.bf16.mxu0 0
      %2123 = vmatmul.mubr.bf16.gmra.mrb[0].mxu0 %v2056
      %v2124 = vpop.f32.mrb[0].mxu0
      %v2125 = vadd.f32 0.0, %v2124
      %v2126 = vpop.f32.mrb[0].mxu0
      %v2127 = vpop.f32.mrb[0].mxu0
      %v2128 = vadd.f32 0.0, %v2127
      %v2129 = vpop.f32.mrb[0].mxu0
      %2130 = vmatprep.mubr.bf16.mxu0 0
      %2131 = vmatmul.mubr.bf16.gmra.mrb[0].mxu0 %v2059
      %v2132 = vpop.f32.mrb[0].mxu0
      %v2133 = vadd.f32 0.0, %v2132
      %v2134 = vpop.f32.mrb[0].mxu0
      %v2135 = vpop.f32.mrb[0].mxu0
      %v2136 = vadd.f32 0.0, %v2135
      %v2137 = vpop.f32.mrb[0].mxu0
      %2138 = vmatprep.mubr.bf16.mxu0 0
      %2139 = vmatmul.mubr.bf16.gmra.mrb[0].mxu0 %v2062
      %v2140 = vpop.f32.mrb[0].mxu0
      %v2141 = vadd.f32 0.0, %v2140
      %v2142 = vpop.f32.mrb[0].mxu0
      %v2143 = vpop.f32.mrb[0].mxu0
      %v2144 = vadd.f32 0.0, %v2143
      %v2145 = vpop.f32.mrb[0].mxu0
      %2146 = vmatprep.mubr.bf16.mxu0 0
      %2147 = vmatmul.mubr.bf16.gmra.mrb[0].mxu0 %v2065
      %v2148 = vpop.f32.mrb[0].mxu0
      %v2149 = vadd.f32 0.0, %v2148
      %v2150 = vpop.f32.mrb[0].mxu0
      %v2151 = vpop.f32.mrb[0].mxu0
      %v2152 = vadd.f32 0.0, %v2151
      %v2153 = vpop.f32.mrb[0].mxu0
      %2154 = vmatprep.mubr.bf16.mxu0 0
      %2155 = vmatmul.mubr.bf16.gmra.mrb[0].mxu0 %v2068
      %v2156 = vpop.f32.mrb[0].mxu0
      %v2157 = vadd.f32 0.0, %v2156
      %v2158 = vpop.f32.mrb[0].mxu0
      %v2159 = vpop.f32.mrb[0].mxu0
      %v2160 = vadd.f32 0.0, %v2159
      %v2161 = vpop.f32.mrb[0].mxu0
      %2162 = vmatprep.mubr.bf16.mxu0 0
      %2163 = vmatmul.mubr.bf16.gmra.mrb[0].mxu0 %v2071
      %v2164 = vpop.f32.mrb[0].mxu0
      %v2165 = vadd.f32 0.0, %v2164
      %v2166 = vpop.f32.mrb[0].mxu0
      %v2167 = vpop.f32.mrb[0].mxu0
      %v2168 = vadd.f32 0.0, %v2167
      %v2169 = vpop.f32.mrb[0].mxu0
      %2170 = vmatprep.mubr.bf16.mxu0 0
      %2171 = vmatmul.mubr.bf16.gmra.mrb[0].mxu0 %v2074
      %v2172 = vpop.f32.mrb[0].mxu0
      %v2173 = vadd.f32 0.0, %v2172
      %v2174 = vpop.f32.mrb[0].mxu0
      %v2175 = vpop.f32.mrb[0].mxu0
      %v2176 = vadd.f32 0.0, %v2175
      %v2177 = vpop.f32.mrb[0].mxu0
      %2178 = vmatprep.mubr.bf16.mxu0 0
      %2179 = vmatmul.mubr.bf16.gmra.mrb[0].mxu0 %v2077
      %v2180 = vpop.f32.mrb[0].mxu0
      %v2181 = vadd.f32 0.0, %v2180
      %v2182 = vpop.f32.mrb[0].mxu0
      %v2183 = vpop.f32.mrb[0].mxu0
      %v2184 = vpop.f32.mrb[0].mxu0
      %2185 = vdwg.mxu0
      %v2186 = vadd.f32 %v1967, %v2117
      %v2187 = vadd.f32 %v1968, %v2120
      %v2188 = vadd.f32 %v1969, %v2125
      %v2189 = vadd.f32 %v1970, %v2128
      %v2190 = vadd.f32 %v1971, %v2133
      %v2191 = vadd.f32 %v1972, %v2136
      %v2192 = vadd.f32 %v1973, %v2141
      %v2193 = vadd.f32 %v1974, %v2144
      %v2194 = vadd.f32 %v1975, %v2149
      %v2195 = vadd.f32 %v1976, %v2152
      %v2196 = vadd.f32 %v1977, %v2157
      %v2197 = vadd.f32 %v1978, %v2160
      %v2198 = vadd.f32 %v1979, %v2165
      %v2199 = vadd.f32 %v1980, %v2168
      %v2200 = vadd.f32 %v1981, %v2173
      %v2201 = vadd.f32 %v1982, %v2176
      %v2202 = vadd.f32 %v1983, %v2181
      %s2203 = scalar_lea.vmem %s3, 32
      %v2204 = vld [vmem:[%s2203] sm:$0xf]
      %v2205 = vrot.slane %v1824, 1
      %v2206 = vrot.slane %v1825, 1
      %v2207 = vsel %vm1122, %v2205, %v2206
      %v2208 = vrot.slane %v1826, 1
      %v2209 = vsel %vm1122, %v2206, %v2208
      %v2210 = vrot.slane %v1827, 1
      %v2211 = vsel %vm1122, %v2208, %v2210
      %v2212 = vrot.slane %v1828, 1
      %v2213 = vsel %vm1122, %v2210, %v2212
      %v2214 = vrot.slane %v1829, 1
      %v2215 = vsel %vm1122, %v2212, %v2214
      %v2216 = vrot.slane %v1830, 1
      %v2217 = vsel %vm1122, %v2214, %v2216
      %v2218 = vrot.slane %v1831, 1
      %v2219 = vsel %vm1122, %v2216, %v2218
      %v2220 = vrot.slane %v1988, 1
      %v2221 = vsel %vm1122, %v2218, %v2220
      %v2223 = vsel %vm857, %v2207, 0
      %v2226 = vsel %vm857, %v2209, 0
      %v2229 = vsel %vm857, %v2211, 0
      %v2232 = vsel %vm857, %v2213, 0
      %v2235 = vsel %vm857, %v2215, 0
      %v2238 = vsel %vm857, %v2217, 0
      %v2241 = vsel %vm857, %v2219, 0
      %v2244 = vsel %vm857, %v2221, 0
      %v2247 = vsel %vm857, %v2220, 0
      %v2250 = vsel %vm885, %v2204, 0
      %2252 = vmatprep.subr.bf16.mxu0 0
      %2253 = vmatpush1.bf16.msra.mxu0 %v2250
      %2254 = vmatprep.subr.bf16.mxu0 0
      %2255 = vmatpush1.bf16.msra.mxu0 0
      %2256 = vmatprep.subr.bf16.mxu0 0
      %2257 = vmatpush1.bf16.msra.mxu0 0
      %2258 = vmatprep.subr.bf16.mxu0 0
      %2259 = vmatpush1.bf16.msra.mxu0 0
      %2260 = vmatprep.subr.bf16.mxu0 0
      %2261 = vmatpush1.bf16.msra.mxu0 0
      %2262 = vmatprep.subr.bf16.mxu0 0
      %2263 = vmatpush1.bf16.msra.mxu0 0
      %2264 = vmatprep.subr.bf16.mxu0 0
      %2265 = vmatpush1.bf16.msra.mxu0 0
      %2266 = vmatprep.subr.bf16.mxu0 0
      %2267 = vmatpush1.bf16.msra.mxu0 0
      %2268 = vmatprep.subr.bf16.mxu0 0
      %2269 = vmatpush1.bf16.msra.mxu0 0
      %2270 = vmatprep.subr.bf16.mxu0 0
      %2271 = vmatpush1.bf16.msra.mxu0 0
      %2272 = vmatprep.subr.bf16.mxu0 0
      %2273 = vmatpush1.bf16.msra.mxu0 0
      %2274 = vmatprep.subr.bf16.mxu0 0
      %2275 = vmatpush1.bf16.msra.mxu0 0
      %2276 = vmatprep.subr.bf16.mxu0 0
      %2277 = vmatpush1.bf16.msra.mxu0 0
      %2278 = vmatprep.subr.bf16.mxu0 0
      %2279 = vmatpush1.bf16.msra.mxu0 0
      %2280 = vmatprep.subr.bf16.mxu0 0
      %2281 = vmatpush1.bf16.msra.mxu0 0
      %2282 = vmatprep.subr.bf16.mxu0 0
      %2283 = vmatpush1.bf16.msra.mxu0 0
      %2284 = vmatprep.mubr.bf16.mxu0 0
      %2285 = vmatmul.mubr.bf16.gmra.mrb[0].mxu0 %v2223
      %v2286 = vpop.f32.mrb[0].mxu0
      %v2287 = vadd.f32 0.0, %v2286
      %v2288 = vpop.f32.mrb[0].mxu0
      %v2289 = vpop.f32.mrb[0].mxu0
      %v2290 = vadd.f32 0.0, %v2289
      %v2291 = vpop.f32.mrb[0].mxu0
      %2292 = vmatprep.mubr.bf16.mxu0 0
      %2293 = vmatmul.mubr.bf16.gmra.mrb[0].mxu0 %v2226
      %v2294 = vpop.f32.mrb[0].mxu0
      %v2295 = vadd.f32 0.0, %v2294
      %v2296 = vpop.f32.mrb[0].mxu0
      %v2297 = vpop.f32.mrb[0].mxu0
      %v2298 = vadd.f32 0.0, %v2297
      %v2299 = vpop.f32.mrb[0].mxu0
      %2300 = vmatprep.mubr.bf16.mxu0 0
      %2301 = vmatmul.mubr.bf16.gmra.mrb[0].mxu0 %v2229
      %v2302 = vpop.f32.mrb[0].mxu0
      %v2303 = vadd.f32 0.0, %v2302
      %v2304 = vpop.f32.mrb[0].mxu0
      %v2305 = vpop.f32.mrb[0].mxu0
      %v2306 = vadd.f32 0.0, %v2305
      %v2307 = vpop.f32.mrb[0].mxu0
      %2308 = vmatprep.mubr.bf16.mxu0 0
      %2309 = vmatmul.mubr.bf16.gmra.mrb[0].mxu0 %v2232
      %v2310 = vpop.f32.mrb[0].mxu0
      %v2311 = vadd.f32 0.0, %v2310
      %v2312 = vpop.f32.mrb[0].mxu0
      %v2313 = vpop.f32.mrb[0].mxu0
      %v2314 = vadd.f32 0.0, %v2313
      %v2315 = vpop.f32.mrb[0].mxu0
      %2316 = vmatprep.mubr.bf16.mxu0 0
      %2317 = vmatmul.mubr.bf16.gmra.mrb[0].mxu0 %v2235
      %v2318 = vpop.f32.mrb[0].mxu0
      %v2319 = vadd.f32 0.0, %v2318
      %v2320 = vpop.f32.mrb[0].mxu0
      %v2321 = vpop.f32.mrb[0].mxu0
      %v2322 = vadd.f32 0.0, %v2321
      %v2323 = vpop.f32.mrb[0].mxu0
      %2324 = vmatprep.mubr.bf16.mxu0 0
      %2325 = vmatmul.mubr.bf16.gmra.mrb[0].mxu0 %v2238
      %v2326 = vpop.f32.mrb[0].mxu0
      %v2327 = vadd.f32 0.0, %v2326
      %v2328 = vpop.f32.mrb[0].mxu0
      %v2329 = vpop.f32.mrb[0].mxu0
      %v2330 = vadd.f32 0.0, %v2329
      %v2331 = vpop.f32.mrb[0].mxu0
      %2332 = vmatprep.mubr.bf16.mxu0 0
      %2333 = vmatmul.mubr.bf16.gmra.mrb[0].mxu0 %v2241
      %v2334 = vpop.f32.mrb[0].mxu0
      %v2335 = vadd.f32 0.0, %v2334
      %v2336 = vpop.f32.mrb[0].mxu0
      %v2337 = vpop.f32.mrb[0].mxu0
      %v2338 = vadd.f32 0.0, %v2337
      %v2339 = vpop.f32.mrb[0].mxu0
      %2340 = vmatprep.mubr.bf16.mxu0 0
      %2341 = vmatmul.mubr.bf16.gmra.mrb[0].mxu0 %v2244
      %v2342 = vpop.f32.mrb[0].mxu0
      %v2343 = vadd.f32 0.0, %v2342
      %v2344 = vpop.f32.mrb[0].mxu0
      %v2345 = vpop.f32.mrb[0].mxu0
      %v2346 = vadd.f32 0.0, %v2345
      %v2347 = vpop.f32.mrb[0].mxu0
      %2348 = vmatprep.mubr.bf16.mxu0 0
      %2349 = vmatmul.mubr.bf16.gmra.mrb[0].mxu0 %v2247
      %v2350 = vpop.f32.mrb[0].mxu0
      %v2351 = vadd.f32 0.0, %v2350
      %v2352 = vpop.f32.mrb[0].mxu0
      %v2353 = vpop.f32.mrb[0].mxu0
      %v2354 = vpop.f32.mrb[0].mxu0
      %2355 = vdwg.mxu0
      %v2356 = vadd.f32 %v2186, %v2287
      %v2357 = vadd.f32 %v2187, %v2290
      %v2358 = vadd.f32 %v2188, %v2295
      %v2359 = vadd.f32 %v2189, %v2298
      %v2360 = vadd.f32 %v2190, %v2303
      %v2361 = vadd.f32 %v2191, %v2306
      %v2362 = vadd.f32 %v2192, %v2311
      %v2363 = vadd.f32 %v2193, %v2314
      %v2364 = vadd.f32 %v2194, %v2319
      %v2365 = vadd.f32 %v2195, %v2322
      %v2366 = vadd.f32 %v2196, %v2327
      %v2367 = vadd.f32 %v2197, %v2330
      %v2368 = vadd.f32 %v2198, %v2335
      %v2369 = vadd.f32 %v2199, %v2338
      %v2370 = vadd.f32 %v2200, %v2343
      %v2371 = vadd.f32 %v2201, %v2346
      %v2372 = vadd.f32 %v2202, %v2351
      %v2374 = vlaneseq
      %v2375 = vshrl.u32 %v2374, 7
      %v2376 = vsub.s32 0, %v2375
      %v2377 = vrot.slane %v735, %v2376
      %v2379 = vmul.f32 %v2356, %v2377
      %v2380 = vmul.f32 %v2357, %v2377
      %v2381 = vmul.f32 %v2358, %v2377
      %v2382 = vmul.f32 %v2359, %v2377
      %v2383 = vmul.f32 %v2360, %v2377
      %v2384 = vmul.f32 %v2361, %v2377
      %v2385 = vmul.f32 %v2362, %v2377
      %v2386 = vmul.f32 %v2363, %v2377
      %v2387 = vmul.f32 %v2364, %v2377
      %v2388 = vmul.f32 %v2365, %v2377
      %v2389 = vmul.f32 %v2366, %v2377
      %v2390 = vmul.f32 %v2367, %v2377
      %v2391 = vmul.f32 %v2368, %v2377
      %v2392 = vmul.f32 %v2369, %v2377
      %v2393 = vmul.f32 %v2370, %v2377
      %v2394 = vmul.f32 %v2371, %v2377
      %v2395 = vmul.f32 %v2372, %v2377
      %v2397 = vlaneseq
      %v2398 = vshrl.u32 %v2397, 7
      %v2399 = vsub.s32 0, %v2398
      %v2400 = vrot.slane %v736, %v2399
      %v2402 = vadd.f32 %v2379, %v2400
      %v2403 = vadd.f32 %v2380, %v2400
      %v2404 = vadd.f32 %v2381, %v2400
      %v2405 = vadd.f32 %v2382, %v2400
      %v2406 = vadd.f32 %v2383, %v2400
      %v2407 = vadd.f32 %v2384, %v2400
      %v2408 = vadd.f32 %v2385, %v2400
      %v2409 = vadd.f32 %v2386, %v2400
      %v2410 = vadd.f32 %v2387, %v2400
      %v2411 = vadd.f32 %v2388, %v2400
      %v2412 = vadd.f32 %v2389, %v2400
      %v2413 = vadd.f32 %v2390, %v2400
      %v2414 = vadd.f32 %v2391, %v2400
      %v2415 = vadd.f32 %v2392, %v2400
      %v2416 = vadd.f32 %v2393, %v2400
      %v2417 = vadd.f32 %v2394, %v2400
      %v2418 = vadd.f32 %v2395, %v2400
      %v2419 = vmax.f32 %v2402, 0.0
      %v2420 = vmax.f32 %v2403, 0.0
      %v2421 = vmax.f32 %v2404, 0.0
      %v2422 = vmax.f32 %v2405, 0.0
      %v2423 = vmax.f32 %v2406, 0.0
      %v2424 = vmax.f32 %v2407, 0.0
      %v2425 = vmax.f32 %v2408, 0.0
      %v2426 = vmax.f32 %v2409, 0.0
      %v2427 = vmax.f32 %v2410, 0.0
      %v2428 = vmax.f32 %v2411, 0.0
      %v2429 = vmax.f32 %v2412, 0.0
      %v2430 = vmax.f32 %v2413, 0.0
      %v2431 = vmax.f32 %v2414, 0.0
      %v2432 = vmax.f32 %v2415, 0.0
      %v2433 = vmax.f32 %v2416, 0.0
      %v2434 = vmax.f32 %v2417, 0.0
      %v2435 = vmax.f32 %v2418, 0.0
      %2437 = vset.pattern.permute.xlu0 0
      %2438 = vperm.xlu0 %2437, %v685
      %v2439 = vpop.permute.xlu0 %2438
      %2442 = vset.pattern.permute.xlu0 0
      %2443 = vperm.xlu0 %2442, %v686
      %v2444 = vpop.permute.xlu0 %2443
      %2447 = vset.pattern.permute.xlu0 0
      %2448 = vperm.xlu0 %2447, %v687
      %v2449 = vpop.permute.xlu0 %2448
      %2452 = vset.pattern.permute.xlu0 0
      %2453 = vperm.xlu0 %2452, %v688
      %v2454 = vpop.permute.xlu0 %2453
      %2457 = vset.pattern.permute.xlu0 0
      %2458 = vperm.xlu0 %2457, %v689
      %v2459 = vpop.permute.xlu0 %2458
      %2462 = vset.pattern.permute.xlu0 0
      %2463 = vperm.xlu0 %2462, %v690
      %v2464 = vpop.permute.xlu0 %2463
      %2467 = vset.pattern.permute.xlu0 0
      %2468 = vperm.xlu0 %2467, %v691
      %v2469 = vpop.permute.xlu0 %2468
      %2472 = vset.pattern.permute.xlu0 0
      %2473 = vperm.xlu0 %2472, %v692
      %v2474 = vpop.permute.xlu0 %2473
      %2477 = vset.pattern.permute.xlu0 0
      %2478 = vperm.xlu0 %2477, %v693
      %v2479 = vpop.permute.xlu0 %2478
      %2482 = vset.pattern.permute.xlu0 0
      %2483 = vperm.xlu0 %2482, %v694
      %v2484 = vpop.permute.xlu0 %2483
      %2487 = vset.pattern.permute.xlu0 0
      %2488 = vperm.xlu0 %2487, %v695
      %v2489 = vpop.permute.xlu0 %2488
      %2492 = vset.pattern.permute.xlu0 0
      %2493 = vperm.xlu0 %2492, %v696
      %v2494 = vpop.permute.xlu0 %2493
      %2497 = vset.pattern.permute.xlu0 0
      %2498 = vperm.xlu0 %2497, %v697
      %v2499 = vpop.permute.xlu0 %2498
      %2502 = vset.pattern.permute.xlu0 0
      %2503 = vperm.xlu0 %2502, %v698
      %v2504 = vpop.permute.xlu0 %2503
      %2507 = vset.pattern.permute.xlu0 0
      %2508 = vperm.xlu0 %2507, %v699
      %v2509 = vpop.permute.xlu0 %2508
      %2512 = vset.pattern.permute.xlu0 0
      %2513 = vperm.xlu0 %2512, %v700
      %v2514 = vpop.permute.xlu0 %2513
      %2517 = vset.pattern.permute.xlu0 0
      %2518 = vperm.xlu0 %2517, %v701
      %v2519 = vpop.permute.xlu0 %2518
      %v2521 = vmul.f32 %v2419, %v2439
      %v2522 = vmul.f32 %v2420, %v2444
      %v2523 = vmul.f32 %v2421, %v2449
      %v2524 = vmul.f32 %v2422, %v2454
      %v2525 = vmul.f32 %v2423, %v2459
      %v2526 = vmul.f32 %v2424, %v2464
      %v2527 = vmul.f32 %v2425, %v2469
      %v2528 = vmul.f32 %v2426, %v2474
      %v2529 = vmul.f32 %v2427, %v2479
      %v2530 = vmul.f32 %v2428, %v2484
      %v2531 = vmul.f32 %v2429, %v2489
      %v2532 = vmul.f32 %v2430, %v2494
      %v2533 = vmul.f32 %v2431, %v2499
      %v2534 = vmul.f32 %v2432, %v2504
      %v2535 = vmul.f32 %v2433, %v2509
      %v2536 = vmul.f32 %v2434, %v2514
      %v2537 = vmul.f32 %v2435, %v2519
      %v2538 = vpack.c.bf16 %v2522, %v2521
      %v2539 = vpack.c.bf16 %v2524, %v2523
      %v2540 = vpack.c.bf16 %v2526, %v2525
      %v2541 = vpack.c.bf16 %v2528, %v2527
      %v2542 = vpack.c.bf16 %v2530, %v2529
      %v2543 = vpack.c.bf16 %v2532, %v2531
      %v2544 = vpack.c.bf16 %v2534, %v2533
      %v2545 = vpack.c.bf16 %v2536, %v2535
      %v2546 = vpack.c.bf16 %v2537, %v2537
      %v2556 = vunpack.c.l.b16 %v2538
      %v2557 = vunpack.c.h.b16 %v2538
      %v2558 = vunpack.c.l.b16 %v2539
      %v2559 = vunpack.c.h.b16 %v2539
      %v2560 = vunpack.c.l.b16 %v2540
      %v2561 = vunpack.c.h.b16 %v2540
      %v2562 = vunpack.c.l.b16 %v2541
      %v2563 = vunpack.c.h.b16 %v2541
      %v2564 = vunpack.c.l.b16 %v2542
      %v2565 = vunpack.c.h.b16 %v2542
      %v2566 = vunpack.c.l.b16 %v2543
      %v2567 = vunpack.c.h.b16 %v2543
      %v2568 = vunpack.c.l.b16 %v2544
      %v2569 = vunpack.c.h.b16 %v2544
      %v2570 = vunpack.c.l.b16 %v2545
      %v2571 = vunpack.c.h.b16 %v2545
      %v2572 = vunpack.c.l.b16 %v2546
      %v2573 = vpack.c.b16 %v2556, %v2556
      %v2574 = vpack.c.b16 %v2557, %v2557
      %v2575 = vpack.c.b16 %v2558, %v2558
      %v2576 = vpack.c.b16 %v2559, %v2559
      %v2577 = vpack.c.b16 %v2560, %v2560
      %v2578 = vpack.c.b16 %v2561, %v2561
      %v2579 = vpack.c.b16 %v2562, %v2562
      %v2580 = vpack.c.b16 %v2563, %v2563
      %v2581 = vpack.c.b16 %v2564, %v2564
      %v2582 = vpack.c.b16 %v2565, %v2565
      %v2583 = vpack.c.b16 %v2566, %v2566
      %v2584 = vpack.c.b16 %v2567, %v2567
      %v2585 = vpack.c.b16 %v2568, %v2568
      %v2586 = vpack.c.b16 %v2569, %v2569
      %v2587 = vpack.c.b16 %v2570, %v2570
      %v2588 = vpack.c.b16 %v2571, %v2571
      %v2589 = vpack.c.b16 %v2572, %v2572
      %vm2590 = vsmask.f32 6416
      %vm2591 = vmor %vm703, %vm2590
      %v2593 = vshrl.u32 %v2573, 16
      %v2595 = vrot.slane %v2593, 5
      %v2596 = vshll.u32 %v2573, 16
      %v2598 = vrot.slane %v2596, 6
      %v2599 = vor.u32 %v2595, %v2598
      %v2600 = vrot.slane %v2599, 4
      %v2602 = vshrl.u32 %v2574, 16
      %v2604 = vrot.slane %v2602, 5
      %v2605 = vshll.u32 %v2574, 16
      %v2607 = vrot.slane %v2605, 6
      %v2608 = vor.u32 %v2604, %v2607
      %v2609 = vsel %vm2591, %v2600, %v2608
      %v2610 = vrot.slane %v2608, 4
      %v2612 = vshrl.u32 %v2575, 16
      %v2614 = vrot.slane %v2612, 5
      %v2615 = vshll.u32 %v2575, 16
      %v2617 = vrot.slane %v2615, 6
      %v2618 = vor.u32 %v2614, %v2617
      %v2619 = vsel %vm2591, %v2610, %v2618
      %v2620 = vrot.slane %v2618, 4
      %v2622 = vshrl.u32 %v2576, 16
      %v2624 = vrot.slane %v2622, 5
      %v2625 = vshll.u32 %v2576, 16
      %v2627 = vrot.slane %v2625, 6
      %v2628 = vor.u32 %v2624, %v2627
      %v2629 = vsel %vm2591, %v2620, %v2628
      %v2630 = vrot.slane %v2628, 4
      %v2632 = vshrl.u32 %v2577, 16
      %v2634 = vrot.slane %v2632, 5
      %v2635 = vshll.u32 %v2577, 16
      %v2637 = vrot.slane %v2635, 6
      %v2638 = vor.u32 %v2634, %v2637
      %v2639 = vsel %vm2591, %v2630, %v2638
      %v2640 = vrot.slane %v2638, 4
      %v2642 = vshrl.u32 %v2578, 16
      %v2644 = vrot.slane %v2642, 5
      %v2645 = vshll.u32 %v2578, 16
      %v2647 = vrot.slane %v2645, 6
      %v2648 = vor.u32 %v2644, %v2647
      %v2649 = vsel %vm2591, %v2640, %v2648
      %v2650 = vrot.slane %v2648, 4
      %v2652 = vshrl.u32 %v2579, 16
      %v2654 = vrot.slane %v2652, 5
      %v2655 = vshll.u32 %v2579, 16
      %v2657 = vrot.slane %v2655, 6
      %v2658 = vor.u32 %v2654, %v2657
      %v2659 = vsel %vm2591, %v2650, %v2658
      %v2660 = vrot.slane %v2658, 4
      %v2662 = vshrl.u32 %v2580, 16
      %v2664 = vrot.slane %v2662, 5
      %v2665 = vshll.u32 %v2580, 16
      %v2667 = vrot.slane %v2665, 6
      %v2668 = vor.u32 %v2664, %v2667
      %v2669 = vsel %vm2591, %v2660, %v2668
      %v2670 = vrot.slane %v2668, 4
      %v2672 = vshrl.u32 %v2581, 16
      %v2674 = vrot.slane %v2672, 5
      %v2675 = vshll.u32 %v2581, 16
      %v2677 = vrot.slane %v2675, 6
      %v2678 = vor.u32 %v2674, %v2677
      %v2679 = vsel %vm2591, %v2670, %v2678
      %v2680 = vrot.slane %v2678, 4
      %v2682 = vshrl.u32 %v2582, 16
      %v2684 = vrot.slane %v2682, 5
      %v2685 = vshll.u32 %v2582, 16
      %v2687 = vrot.slane %v2685, 6
      %v2688 = vor.u32 %v2684, %v2687
      %v2689 = vsel %vm2591, %v2680, %v2688
      %v2690 = vrot.slane %v2688, 4
      %v2692 = vshrl.u32 %v2583, 16
      %v2694 = vrot.slane %v2692, 5
      %v2695 = vshll.u32 %v2583, 16
      %v2697 = vrot.slane %v2695, 6
      %v2698 = vor.u32 %v2694, %v2697
      %v2699 = vsel %vm2591, %v2690, %v2698
      %v2700 = vrot.slane %v2698, 4
      %v2702 = vshrl.u32 %v2584, 16
      %v2704 = vrot.slane %v2702, 5
      %v2705 = vshll.u32 %v2584, 16
      %v2707 = vrot.slane %v2705, 6
      %v2708 = vor.u32 %v2704, %v2707
      %v2709 = vsel %vm2591, %v2700, %v2708
      %v2710 = vrot.slane %v2708, 4
      %v2712 = vshrl.u32 %v2585, 16
      %v2714 = vrot.slane %v2712, 5
      %v2715 = vshll.u32 %v2585, 16
      %v2717 = vrot.slane %v2715, 6
      %v2718 = vor.u32 %v2714, %v2717
      %v2719 = vsel %vm2591, %v2710, %v2718
      %v2720 = vrot.slane %v2718, 4
      %v2722 = vshrl.u32 %v2586, 16
      %v2724 = vrot.slane %v2722, 5
      %v2725 = vshll.u32 %v2586, 16
      %v2727 = vrot.slane %v2725, 6
      %v2728 = vor.u32 %v2724, %v2727
      %v2729 = vsel %vm2591, %v2720, %v2728
      %v2730 = vrot.slane %v2728, 4
      %v2732 = vshrl.u32 %v2587, 16
      %v2734 = vrot.slane %v2732, 5
      %v2735 = vshll.u32 %v2587, 16
      %v2737 = vrot.slane %v2735, 6
      %v2738 = vor.u32 %v2734, %v2737
      %v2739 = vsel %vm2591, %v2730, %v2738
      %v2740 = vrot.slane %v2738, 4
      %v2742 = vshrl.u32 %v2588, 16
      %v2744 = vrot.slane %v2742, 5
      %v2745 = vshll.u32 %v2588, 16
      %v2747 = vrot.slane %v2745, 6
      %v2748 = vor.u32 %v2744, %v2747
      %v2749 = vsel %vm2591, %v2740, %v2748
      %v2750 = vrot.slane %v2748, 4
      %v2752 = vshrl.u32 %v2589, 16
      %v2754 = vrot.slane %v2752, 5
      %v2755 = vshll.u32 %v2589, 16
      %v2757 = vrot.slane %v2755, 6
      %v2758 = vor.u32 %v2754, %v2757
      %v2759 = vsel %vm2591, %v2750, %v2758
      %v2760 = vrot.slane %v2758, 4
      %v2779 = vld [vmem:[#allocation2] sm:$0xc]
      %v2780 = vsel %vm710, %v2599, %v2779
      %2781 = vst [vmem:[#allocation2] sm:$0xc] %v2780
      %vm2782 = vcmask 257024
      %2783 = vst.msk [vmem:[#allocation2 + $0x4] sm:$0xf] %vm2782, %v2609
      %2784 = vst.msk [vmem:[#allocation2 + $0x8] sm:$0xf] %vm2782, %v2619
      %2785 = vst.msk [vmem:[#allocation2 + $0xc] sm:$0xf] %vm2782, %v2629
      %2786 = vst.msk [vmem:[#allocation2 + $0x10] sm:$0xf] %vm2782, %v2639
      %2787 = vst.msk [vmem:[#allocation2 + $0x14] sm:$0xf] %vm2782, %v2649
      %2788 = vst.msk [vmem:[#allocation2 + $0x18] sm:$0xf] %vm2782, %v2659
      %2789 = vst.msk [vmem:[#allocation2 + $0x1c] sm:$0xf] %vm2782, %v2669
      %2790 = vst.msk [vmem:[#allocation2 + $0x20] sm:$0xf] %vm2782, %v2679
      %2791 = vst.msk [vmem:[#allocation2 + $0x24] sm:$0xf] %vm2782, %v2689
      %2792 = vst.msk [vmem:[#allocation2 + $0x28] sm:$0xf] %vm2782, %v2699
      %2793 = vst.msk [vmem:[#allocation2 + $0x2c] sm:$0xf] %vm2782, %v2709
      %2794 = vst.msk [vmem:[#allocation2 + $0x30] sm:$0xf] %vm2782, %v2719
      %2795 = vst.msk [vmem:[#allocation2 + $0x34] sm:$0xf] %vm2782, %v2729
      %2796 = vst.msk [vmem:[#allocation2 + $0x38] sm:$0xf] %vm2782, %v2739
      %2797 = vst.msk [vmem:[#allocation2 + $0x3c] sm:$0xf] %vm2782, %v2749
      %2798 = vst.msk [vmem:[#allocation2 + $0x40] sm:$0xf] %vm2782, %v2759
      %v2799 = vld [vmem:[#allocation2 + $0x44] sm:$0x7]
      %v2800 = vsel %vm704, %v2760, %v2799
      %2801 = vst [vmem:[#allocation2 + $0x44] sm:$0x7] %v2800
      %v2802 = vld [vmem:[%s7] sm:$0x1]
      %v2803 = vld [vmem:[%s8] sm:$0x1]
      %v2804 = vld [vmem:[#allocation2] sm:$0xf]
      %v2805 = vld [vmem:[#allocation2 + $0x4] sm:$0xf]
      %v2806 = vld [vmem:[#allocation2 + $0x8] sm:$0xf]
      %v2807 = vld [vmem:[#allocation2 + $0xc] sm:$0xf]
      %v2808 = vld [vmem:[#allocation2 + $0x10] sm:$0xf]
      %v2809 = vld [vmem:[#allocation2 + $0x14] sm:$0xf]
      %v2810 = vld [vmem:[#allocation2 + $0x18] sm:$0xf]
      %v2811 = vld [vmem:[#allocation2 + $0x1c] sm:$0xf]
      %v2812 = vld [vmem:[#allocation2 + $0x20] sm:$0xf]
      %v2813 = vld [vmem:[#allocation2 + $0x24] sm:$0xf]
      %v2814 = vld [vmem:[#allocation2 + $0x28] sm:$0xf]
      %v2815 = vld [vmem:[#allocation2 + $0x2c] sm:$0xf]
      %v2816 = vld [vmem:[#allocation2 + $0x30] sm:$0xf]
      %v2817 = vld [vmem:[#allocation2 + $0x34] sm:$0xf]
      %v2818 = vld [vmem:[#allocation2 + $0x38] sm:$0xf]
      %v2819 = vld [vmem:[#allocation2 + $0x3c] sm:$0xf]
      %v2820 = vld [vmem:[#allocation2 + $0x40] sm:$0xf]
      %v2821 = vld [vmem:[%s6] sm:$0xf]
      %v2822 = vld [vmem:[%s6 + $0x4] sm:$0xf]
      %v2823 = vld [vmem:[%s6 + $0x8] sm:$0xf]
      %v2824 = vld [vmem:[%s6 + $0xc] sm:$0xf]
      %v2825 = vld [vmem:[#allocation2 + $0x44] sm:$0x1]
      %s2826 = scalar_lea.vmem %s6, 16
      %v2827 = vld [vmem:[%s2826] sm:$0xf]
      %v2828 = vld [vmem:[%s2826 + $0x4] sm:$0xf]
      %v2829 = vld [vmem:[%s2826 + $0x8] sm:$0xf]
      %v2830 = vld [vmem:[%s2826 + $0xc] sm:$0xf]
      %v2849 = vunpack.c.l.b16 %v2804
      %v2850 = vunpack.c.l.b16 %v2805
      %v2851 = vunpack.c.l.b16 %v2806
      %v2852 = vunpack.c.l.b16 %v2807
      %v2853 = vunpack.c.l.b16 %v2808
      %v2854 = vunpack.c.l.b16 %v2809
      %v2855 = vunpack.c.l.b16 %v2810
      %v2856 = vunpack.c.l.b16 %v2811
      %v2857 = vunpack.c.l.b16 %v2812
      %v2858 = vunpack.c.l.b16 %v2813
      %v2859 = vunpack.c.l.b16 %v2814
      %v2860 = vunpack.c.l.b16 %v2815
      %v2861 = vunpack.c.l.b16 %v2816
      %v2862 = vunpack.c.l.b16 %v2817
      %v2863 = vunpack.c.l.b16 %v2818
      %v2864 = vunpack.c.l.b16 %v2819
      %v2865 = vunpack.c.l.b16 %v2820
      %v2866 = vunpack.c.l.b16 %v2825
      %v2867 = vpack.c.b16 %v2850, %v2849
      %v2868 = vpack.c.b16 %v2852, %v2851
      %v2869 = vpack.c.b16 %v2854, %v2853
      %v2870 = vpack.c.b16 %v2856, %v2855
      %v2871 = vpack.c.b16 %v2858, %v2857
      %v2872 = vpack.c.b16 %v2860, %v2859
      %v2873 = vpack.c.b16 %v2862, %v2861
      %v2874 = vpack.c.b16 %v2864, %v2863
      %v2875 = vpack.c.b16 %v2866, %v2865
      %v2877 = vshrl.u32 %v2867, 16
      %v2879 = vshll.u32 %v2867, 16
      %v2881 = vrot.slane %v2879, 1
      %v2882 = vor.u32 %v2877, %v2881
      %v2884 = vshll.u32 %v2868, 16
      %v2886 = vrot.slane %v2884, 1
      %v2887 = vsel %vm785, %v2882, %v2886
      %v2888 = vshrl.u32 %v2868, 16
      %v2890 = vor.u32 %v2888, %v2886
      %v2892 = vshll.u32 %v2869, 16
      %v2894 = vrot.slane %v2892, 1
      %v2895 = vsel %vm785, %v2890, %v2894
      %v2896 = vshrl.u32 %v2869, 16
      %v2898 = vor.u32 %v2896, %v2894
      %v2900 = vshll.u32 %v2870, 16
      %v2902 = vrot.slane %v2900, 1
      %v2903 = vsel %vm785, %v2898, %v2902
      %v2904 = vshrl.u32 %v2870, 16
      %v2906 = vor.u32 %v2904, %v2902
      %v2908 = vshll.u32 %v2871, 16
      %v2910 = vrot.slane %v2908, 1
      %v2911 = vsel %vm785, %v2906, %v2910
      %v2912 = vshrl.u32 %v2871, 16
      %v2914 = vor.u32 %v2912, %v2910
      %v2916 = vshll.u32 %v2872, 16
      %v2918 = vrot.slane %v2916, 1
      %v2919 = vsel %vm785, %v2914, %v2918
      %v2920 = vshrl.u32 %v2872, 16
      %v2922 = vor.u32 %v2920, %v2918
      %v2924 = vshll.u32 %v2873, 16
      %v2926 = vrot.slane %v2924, 1
      %v2927 = vsel %vm785, %v2922, %v2926
      %v2928 = vshrl.u32 %v2873, 16
      %v2930 = vor.u32 %v2928, %v2926
      %v2932 = vshll.u32 %v2874, 16
      %v2934 = vrot.slane %v2932, 1
      %v2935 = vsel %vm785, %v2930, %v2934
      %v2936 = vshrl.u32 %v2874, 16
      %v2938 = vor.u32 %v2936, %v2934
      %v2940 = vshll.u32 %v2875, 16
      %v2942 = vrot.slane %v2940, 1
      %v2943 = vsel %vm785, %v2938, %v2942
      %v2944 = vshrl.u32 %v2875, 16
      %v2946 = vor.u32 %v2944, %v2942
      %v2951 = vunpack.c.l.b16 %v2827
      %v2952 = vunpack.c.l.b16 %v2828
      %v2953 = vunpack.c.l.b16 %v2829
      %v2954 = vunpack.c.l.b16 %v2830
      %v2955 = vpack.c.b16 %v2952, %v2951
      %v2956 = vpack.c.b16 %v2954, %v2953
      %vm2959 = vcmask 261120
      %v2961 = vsel %vm2959, %v2887, 0
      %v2964 = vsel %vm2959, %v2895, 0
      %v2967 = vsel %vm2959, %v2903, 0
      %v2970 = vsel %vm2959, %v2911, 0
      %v2973 = vsel %vm2959, %v2919, 0
      %v2976 = vsel %vm2959, %v2927, 0
      %v2979 = vsel %vm2959, %v2935, 0
      %v2982 = vsel %vm2959, %v2943, 0
      %v2985 = vsel %vm2959, %v2946, 0
      %2987 = vmatprep.subr.bf16.mxu0 0
      %2988 = vmatpush1.bf16.msra.mxu0 %v2955
      %2989 = vmatprep.subr.bf16.mxu0 0
      %2990 = vmatpush1.bf16.msra.mxu0 %v2956
      %2991 = vmatprep.subr.bf16.mxu0 0
      %2992 = vmatpush1.bf16.msra.mxu0 0
      %2993 = vmatprep.subr.bf16.mxu0 0
      %2994 = vmatpush1.bf16.msra.mxu0 0
      %2995 = vmatprep.subr.bf16.mxu0 0
      %2996 = vmatpush1.bf16.msra.mxu0 0
      %2997 = vmatprep.subr.bf16.mxu0 0
      %2998 = vmatpush1.bf16.msra.mxu0 0
      %2999 = vmatprep.subr.bf16.mxu0 0
      %3000 = vmatpush1.bf16.msra.mxu0 0
      %3001 = vmatprep.subr.bf16.mxu0 0
      %3002 = vmatpush1.bf16.msra.mxu0 0
      %3003 = vmatprep.subr.bf16.mxu0 0
      %3004 = vmatpush1.bf16.msra.mxu0 0
      %3005 = vmatprep.subr.bf16.mxu0 0
      %3006 = vmatpush1.bf16.msra.mxu0 0
      %3007 = vmatprep.subr.bf16.mxu0 0
      %3008 = vmatpush1.bf16.msra.mxu0 0
      %3009 = vmatprep.subr.bf16.mxu0 0
      %3010 = vmatpush1.bf16.msra.mxu0 0
      %3011 = vmatprep.subr.bf16.mxu0 0
      %3012 = vmatpush1.bf16.msra.mxu0 0
      %3013 = vmatprep.subr.bf16.mxu0 0
      %3014 = vmatpush1.bf16.msra.mxu0 0
      %3015 = vmatprep.subr.bf16.mxu0 0
      %3016 = vmatpush1.bf16.msra.mxu0 0
      %3017 = vmatprep.subr.bf16.mxu0 0
      %3018 = vmatpush1.bf16.msra.mxu0 0
      %3019 = vmatprep.mubr.bf16.mxu0 0
      %3020 = vmatmul.mubr.bf16.gmra.mrb[0].mxu0 %v2961
      %v3021 = vpop.f32.mrb[0].mxu0
      %v3022 = vadd.f32 0.0, %v3021
      %v3023 = vpop.f32.mrb[0].mxu0
      %v3024 = vpop.f32.mrb[0].mxu0
      %v3025 = vadd.f32 0.0, %v3024
      %v3026 = vpop.f32.mrb[0].mxu0
      %3027 = vmatprep.mubr.bf16.mxu0 0
      %3028 = vmatmul.mubr.bf16.gmra.mrb[0].mxu0 %v2964
      %v3029 = vpop.f32.mrb[0].mxu0
      %v3030 = vadd.f32 0.0, %v3029
      %v3031 = vpop.f32.mrb[0].mxu0
      %v3032 = vpop.f32.mrb[0].mxu0
      %v3033 = vadd.f32 0.0, %v3032
      %v3034 = vpop.f32.mrb[0].mxu0
      %3035 = vmatprep.mubr.bf16.mxu0 0
      %3036 = vmatmul.mubr.bf16.gmra.mrb[0].mxu0 %v2967
      %v3037 = vpop.f32.mrb[0].mxu0
      %v3038 = vadd.f32 0.0, %v3037
      %v3039 = vpop.f32.mrb[0].mxu0
      %v3040 = vpop.f32.mrb[0].mxu0
      %v3041 = vadd.f32 0.0, %v3040
      %v3042 = vpop.f32.mrb[0].mxu0
      %3043 = vmatprep.mubr.bf16.mxu0 0
      %3044 = vmatmul.mubr.bf16.gmra.mrb[0].mxu0 %v2970
      %v3045 = vpop.f32.mrb[0].mxu0
      %v3046 = vadd.f32 0.0, %v3045
      %v3047 = vpop.f32.mrb[0].mxu0
      %v3048 = vpop.f32.mrb[0].mxu0
      %v3049 = vadd.f32 0.0, %v3048
      %v3050 = vpop.f32.mrb[0].mxu0
      %3051 = vmatprep.mubr.bf16.mxu0 0
      %3052 = vmatmul.mubr.bf16.gmra.mrb[0].mxu0 %v2973
      %v3053 = vpop.f32.mrb[0].mxu0
      %v3054 = vadd.f32 0.0, %v3053
      %v3055 = vpop.f32.mrb[0].mxu0
      %v3056 = vpop.f32.mrb[0].mxu0
      %v3057 = vadd.f32 0.0, %v3056
      %v3058 = vpop.f32.mrb[0].mxu0
      %3059 = vmatprep.mubr.bf16.mxu0 0
      %3060 = vmatmul.mubr.bf16.gmra.mrb[0].mxu0 %v2976
      %v3061 = vpop.f32.mrb[0].mxu0
      %v3062 = vadd.f32 0.0, %v3061
      %v3063 = vpop.f32.mrb[0].mxu0
      %v3064 = vpop.f32.mrb[0].mxu0
      %v3065 = vadd.f32 0.0, %v3064
      %v3066 = vpop.f32.mrb[0].mxu0
      %3067 = vmatprep.mubr.bf16.mxu0 0
      %3068 = vmatmul.mubr.bf16.gmra.mrb[0].mxu0 %v2979
      %v3069 = vpop.f32.mrb[0].mxu0
      %v3070 = vadd.f32 0.0, %v3069
      %v3071 = vpop.f32.mrb[0].mxu0
      %v3072 = vpop.f32.mrb[0].mxu0
      %v3073 = vadd.f32 0.0, %v3072
      %v3074 = vpop.f32.mrb[0].mxu0
      %3075 = vmatprep.mubr.bf16.mxu0 0
      %3076 = vmatmul.mubr.bf16.gmra.mrb[0].mxu0 %v2982
      %v3077 = vpop.f32.mrb[0].mxu0
      %v3078 = vadd.f32 0.0, %v3077
      %v3079 = vpop.f32.mrb[0].mxu0
      %v3080 = vpop.f32.mrb[0].mxu0
      %v3081 = vadd.f32 0.0, %v3080
      %v3082 = vpop.f32.mrb[0].mxu0
      %3083 = vmatprep.mubr.bf16.mxu0 0
      %3084 = vmatmul.mubr.bf16.gmra.mrb[0].mxu0 %v2985
      %v3085 = vpop.f32.mrb[0].mxu0
      %v3086 = vadd.f32 0.0, %v3085
      %v3087 = vpop.f32.mrb[0].mxu0
      %v3088 = vpop.f32.mrb[0].mxu0
      %v3089 = vpop.f32.mrb[0].mxu0
      %3090 = vdwg.mxu0
      %v3091 = vpack.c.b16 %v2865, %v2865
      %v3096 = vunpack.c.l.b16 %v2821
      %v3097 = vunpack.c.l.b16 %v2822
      %v3098 = vunpack.c.l.b16 %v2823
      %v3099 = vunpack.c.l.b16 %v2824
      %v3100 = vpack.c.b16 %v3097, %v3096
      %v3101 = vpack.c.b16 %v3099, %v3098
      %v3104 = vsel %vm2959, %v2867, 0
      %v3106 = vsel %vm2959, %v2868, 0
      %v3108 = vsel %vm2959, %v2869, 0
      %v3110 = vsel %vm2959, %v2870, 0
      %v3112 = vsel %vm2959, %v2871, 0
      %v3114 = vsel %vm2959, %v2872, 0
      %v3116 = vsel %vm2959, %v2873, 0
      %v3118 = vsel %vm2959, %v2874, 0
      %v3121 = vsel %vm2959, %v3091, 0
      %3123 = vmatprep.subr.bf16.mxu0 0
      %3124 = vmatpush1.bf16.msra.mxu0 %v3100
      %3125 = vmatprep.subr.bf16.mxu0 0
      %3126 = vmatpush1.bf16.msra.mxu0 %v3101
      %3127 = vmatprep.subr.bf16.mxu0 0
      %3128 = vmatpush1.bf16.msra.mxu0 0
      %3129 = vmatprep.subr.bf16.mxu0 0
      %3130 = vmatpush1.bf16.msra.mxu0 0
      %3131 = vmatprep.subr.bf16.mxu0 0
      %3132 = vmatpush1.bf16.msra.mxu0 0
      %3133 = vmatprep.subr.bf16.mxu0 0
      %3134 = vmatpush1.bf16.msra.mxu0 0
      %3135 = vmatprep.subr.bf16.mxu0 0
      %3136 = vmatpush1.bf16.msra.mxu0 0
      %3137 = vmatprep.subr.bf16.mxu0 0
      %3138 = vmatpush1.bf16.msra.mxu0 0
      %3139 = vmatprep.subr.bf16.mxu0 0
      %3140 = vmatpush1.bf16.msra.mxu0 0
      %3141 = vmatprep.subr.bf16.mxu0 0
      %3142 = vmatpush1.bf16.msra.mxu0 0
      %3143 = vmatprep.subr.bf16.mxu0 0
      %3144 = vmatpush1.bf16.msra.mxu0 0
      %3145 = vmatprep.subr.bf16.mxu0 0
      %3146 = vmatpush1.bf16.msra.mxu0 0
      %3147 = vmatprep.subr.bf16.mxu0 0
      %3148 = vmatpush1.bf16.msra.mxu0 0
      %3149 = vmatprep.subr.bf16.mxu0 0
      %3150 = vmatpush1.bf16.msra.mxu0 0
      %3151 = vmatprep.subr.bf16.mxu0 0
      %3152 = vmatpush1.bf16.msra.mxu0 0
      %3153 = vmatprep.subr.bf16.mxu0 0
      %3154 = vmatpush1.bf16.msra.mxu0 0
      %3155 = vmatprep.mubr.bf16.mxu0 0
      %3156 = vmatmul.mubr.bf16.gmra.mrb[0].mxu0 %v3104
      %v3157 = vpop.f32.mrb[0].mxu0
      %v3158 = vadd.f32 %v3022, %v3157
      %v3159 = vpop.f32.mrb[0].mxu0
      %v3160 = vpop.f32.mrb[0].mxu0
      %v3161 = vadd.f32 %v3025, %v3160
      %v3162 = vpop.f32.mrb[0].mxu0
      %3163 = vmatprep.mubr.bf16.mxu0 0
      %3164 = vmatmul.mubr.bf16.gmra.mrb[0].mxu0 %v3106
      %v3165 = vpop.f32.mrb[0].mxu0
      %v3166 = vadd.f32 %v3030, %v3165
      %v3167 = vpop.f32.mrb[0].mxu0
      %v3168 = vpop.f32.mrb[0].mxu0
      %v3169 = vadd.f32 %v3033, %v3168
      %v3170 = vpop.f32.mrb[0].mxu0
      %3171 = vmatprep.mubr.bf16.mxu0 0
      %3172 = vmatmul.mubr.bf16.gmra.mrb[0].mxu0 %v3108
      %v3173 = vpop.f32.mrb[0].mxu0
      %v3174 = vadd.f32 %v3038, %v3173
      %v3175 = vpop.f32.mrb[0].mxu0
      %v3176 = vpop.f32.mrb[0].mxu0
      %v3177 = vadd.f32 %v3041, %v3176
      %v3178 = vpop.f32.mrb[0].mxu0
      %3179 = vmatprep.mubr.bf16.mxu0 0
      %3180 = vmatmul.mubr.bf16.gmra.mrb[0].mxu0 %v3110
      %v3181 = vpop.f32.mrb[0].mxu0
      %v3182 = vadd.f32 %v3046, %v3181
      %v3183 = vpop.f32.mrb[0].mxu0
      %v3184 = vpop.f32.mrb[0].mxu0
      %v3185 = vadd.f32 %v3049, %v3184
      %v3186 = vpop.f32.mrb[0].mxu0
      %3187 = vmatprep.mubr.bf16.mxu0 0
      %3188 = vmatmul.mubr.bf16.gmra.mrb[0].mxu0 %v3112
      %v3189 = vpop.f32.mrb[0].mxu0
      %v3190 = vadd.f32 %v3054, %v3189
      %v3191 = vpop.f32.mrb[0].mxu0
      %v3192 = vpop.f32.mrb[0].mxu0
      %v3193 = vadd.f32 %v3057, %v3192
      %v3194 = vpop.f32.mrb[0].mxu0
      %3195 = vmatprep.mubr.bf16.mxu0 0
      %3196 = vmatmul.mubr.bf16.gmra.mrb[0].mxu0 %v3114
      %v3197 = vpop.f32.mrb[0].mxu0
      %v3198 = vadd.f32 %v3062, %v3197
      %v3199 = vpop.f32.mrb[0].mxu0
      %v3200 = vpop.f32.mrb[0].mxu0
      %v3201 = vadd.f32 %v3065, %v3200
      %v3202 = vpop.f32.mrb[0].mxu0
      %3203 = vmatprep.mubr.bf16.mxu0 0
      %3204 = vmatmul.mubr.bf16.gmra.mrb[0].mxu0 %v3116
      %v3205 = vpop.f32.mrb[0].mxu0
      %v3206 = vadd.f32 %v3070, %v3205
      %v3207 = vpop.f32.mrb[0].mxu0
      %v3208 = vpop.f32.mrb[0].mxu0
      %v3209 = vadd.f32 %v3073, %v3208
      %v3210 = vpop.f32.mrb[0].mxu0
      %3211 = vmatprep.mubr.bf16.mxu0 0
      %3212 = vmatmul.mubr.bf16.gmra.mrb[0].mxu0 %v3118
      %v3213 = vpop.f32.mrb[0].mxu0
      %v3214 = vadd.f32 %v3078, %v3213
      %v3215 = vpop.f32.mrb[0].mxu0
      %v3216 = vpop.f32.mrb[0].mxu0
      %v3217 = vadd.f32 %v3081, %v3216
      %v3218 = vpop.f32.mrb[0].mxu0
      %3219 = vmatprep.mubr.bf16.mxu0 0
      %3220 = vmatmul.mubr.bf16.gmra.mrb[0].mxu0 %v3121
      %v3221 = vpop.f32.mrb[0].mxu0
      %v3222 = vadd.f32 %v3086, %v3221
      %v3223 = vpop.f32.mrb[0].mxu0
      %v3224 = vpop.f32.mrb[0].mxu0
      %v3225 = vpop.f32.mrb[0].mxu0
      %3226 = vdwg.mxu0
      %v3227 = vld [vmem:[#allocation2] sm:$0xe]
      %s3228 = scalar_lea.vmem %s6, 32
      %v3229 = vld [vmem:[%s3228] sm:$0xf]
      %v3230 = vld [vmem:[%s3228 + $0x4] sm:$0xf]
      %v3231 = vld [vmem:[%s3228 + $0x8] sm:$0xf]
      %v3232 = vld [vmem:[%s3228 + $0xc] sm:$0xf]
      %v3234 = vunpack.c.l.b16 %v3227
      %v3235 = vpack.c.b16 %v2850, %v3234
      %v3236 = vrot.slane %v3235, 1
      %v3237 = vrot.slane %v2868, 1
      %v3238 = vsel %vm1122, %v3236, %v3237
      %v3239 = vrot.slane %v2869, 1
      %v3240 = vsel %vm1122, %v3237, %v3239
      %v3241 = vrot.slane %v2870, 1
      %v3242 = vsel %vm1122, %v3239, %v3241
      %v3243 = vrot.slane %v2871, 1
      %v3244 = vsel %vm1122, %v3241, %v3243
      %v3245 = vrot.slane %v2872, 1
      %v3246 = vsel %vm1122, %v3243, %v3245
      %v3247 = vrot.slane %v2873, 1
      %v3248 = vsel %vm1122, %v3245, %v3247
      %v3249 = vrot.slane %v2874, 1
      %v3250 = vsel %vm1122, %v3247, %v3249
      %v3251 = vrot.slane %v2875, 1
      %v3252 = vsel %vm1122, %v3249, %v3251
      %v3257 = vunpack.c.l.b16 %v3229
      %v3258 = vunpack.c.l.b16 %v3230
      %v3259 = vunpack.c.l.b16 %v3231
      %v3260 = vunpack.c.l.b16 %v3232
      %v3261 = vpack.c.b16 %v3258, %v3257
      %v3262 = vpack.c.b16 %v3260, %v3259
      %v3266 = vsel %vm2959, %v3238, 0
      %v3269 = vsel %vm2959, %v3240, 0
      %v3272 = vsel %vm2959, %v3242, 0
      %v3275 = vsel %vm2959, %v3244, 0
      %v3278 = vsel %vm2959, %v3246, 0
      %v3281 = vsel %vm2959, %v3248, 0
      %v3284 = vsel %vm2959, %v3250, 0
      %v3287 = vsel %vm2959, %v3252, 0
      %v3290 = vsel %vm2959, %v3251, 0
      %3292 = vmatprep.subr.bf16.mxu0 0
      %3293 = vmatpush1.bf16.msra.mxu0 %v3261
      %3294 = vmatprep.subr.bf16.mxu0 0
      %3295 = vmatpush1.bf16.msra.mxu0 %v3262
      %3296 = vmatprep.subr.bf16.mxu0 0
      %3297 = vmatpush1.bf16.msra.mxu0 0
      %3298 = vmatprep.subr.bf16.mxu0 0
      %3299 = vmatpush1.bf16.msra.mxu0 0
      %3300 = vmatprep.subr.bf16.mxu0 0
      %3301 = vmatpush1.bf16.msra.mxu0 0
      %3302 = vmatprep.subr.bf16.mxu0 0
      %3303 = vmatpush1.bf16.msra.mxu0 0
      %3304 = vmatprep.subr.bf16.mxu0 0
      %3305 = vmatpush1.bf16.msra.mxu0 0
      %3306 = vmatprep.subr.bf16.mxu0 0
      %3307 = vmatpush1.bf16.msra.mxu0 0
      %3308 = vmatprep.subr.bf16.mxu0 0
      %3309 = vmatpush1.bf16.msra.mxu0 0
      %3310 = vmatprep.subr.bf16.mxu0 0
      %3311 = vmatpush1.bf16.msra.mxu0 0
      %3312 = vmatprep.subr.bf16.mxu0 0
      %3313 = vmatpush1.bf16.msra.mxu0 0
      %3314 = vmatprep.subr.bf16.mxu0 0
      %3315 = vmatpush1.bf16.msra.mxu0 0
      %3316 = vmatprep.subr.bf16.mxu0 0
      %3317 = vmatpush1.bf16.msra.mxu0 0
      %3318 = vmatprep.subr.bf16.mxu0 0
      %3319 = vmatpush1.bf16.msra.mxu0 0
      %3320 = vmatprep.subr.bf16.mxu0 0
      %3321 = vmatpush1.bf16.msra.mxu0 0
      %3322 = vmatprep.subr.bf16.mxu0 0
      %3323 = vmatpush1.bf16.msra.mxu0 0
      %3324 = vmatprep.mubr.bf16.mxu0 0
      %3325 = vmatmul.mubr.bf16.gmra.mrb[0].mxu0 %v3266
      %v3326 = vpop.f32.mrb[0].mxu0
      %v3327 = vadd.f32 0.0, %v3326
      %v3328 = vpop.f32.mrb[0].mxu0
      %v3329 = vpop.f32.mrb[0].mxu0
      %v3330 = vadd.f32 0.0, %v3329
      %v3331 = vpop.f32.mrb[0].mxu0
      %3332 = vmatprep.mubr.bf16.mxu0 0
      %3333 = vmatmul.mubr.bf16.gmra.mrb[0].mxu0 %v3269
      %v3334 = vpop.f32.mrb[0].mxu0
      %v3335 = vadd.f32 0.0, %v3334
      %v3336 = vpop.f32.mrb[0].mxu0
      %v3337 = vpop.f32.mrb[0].mxu0
      %v3338 = vadd.f32 0.0, %v3337
      %v3339 = vpop.f32.mrb[0].mxu0
      %3340 = vmatprep.mubr.bf16.mxu0 0
      %3341 = vmatmul.mubr.bf16.gmra.mrb[0].mxu0 %v3272
      %v3342 = vpop.f32.mrb[0].mxu0
      %v3343 = vadd.f32 0.0, %v3342
      %v3344 = vpop.f32.mrb[0].mxu0
      %v3345 = vpop.f32.mrb[0].mxu0
      %v3346 = vadd.f32 0.0, %v3345
      %v3347 = vpop.f32.mrb[0].mxu0
      %3348 = vmatprep.mubr.bf16.mxu0 0
      %3349 = vmatmul.mubr.bf16.gmra.mrb[0].mxu0 %v3275
      %v3350 = vpop.f32.mrb[0].mxu0
      %v3351 = vadd.f32 0.0, %v3350
      %v3352 = vpop.f32.mrb[0].mxu0
      %v3353 = vpop.f32.mrb[0].mxu0
      %v3354 = vadd.f32 0.0, %v3353
      %v3355 = vpop.f32.mrb[0].mxu0
      %3356 = vmatprep.mubr.bf16.mxu0 0
      %3357 = vmatmul.mubr.bf16.gmra.mrb[0].mxu0 %v3278
      %v3358 = vpop.f32.mrb[0].mxu0
      %v3359 = vadd.f32 0.0, %v3358
      %v3360 = vpop.f32.mrb[0].mxu0
      %v3361 = vpop.f32.mrb[0].mxu0
      %v3362 = vadd.f32 0.0, %v3361
      %v3363 = vpop.f32.mrb[0].mxu0
      %3364 = vmatprep.mubr.bf16.mxu0 0
      %3365 = vmatmul.mubr.bf16.gmra.mrb[0].mxu0 %v3281
      %v3366 = vpop.f32.mrb[0].mxu0
      %v3367 = vadd.f32 0.0, %v3366
      %v3368 = vpop.f32.mrb[0].mxu0
      %v3369 = vpop.f32.mrb[0].mxu0
      %v3370 = vadd.f32 0.0, %v3369
      %v3371 = vpop.f32.mrb[0].mxu0
      %3372 = vmatprep.mubr.bf16.mxu0 0
      %3373 = vmatmul.mubr.bf16.gmra.mrb[0].mxu0 %v3284
      %v3374 = vpop.f32.mrb[0].mxu0
      %v3375 = vadd.f32 0.0, %v3374
      %v3376 = vpop.f32.mrb[0].mxu0
      %v3377 = vpop.f32.mrb[0].mxu0
      %v3378 = vadd.f32 0.0, %v3377
      %v3379 = vpop.f32.mrb[0].mxu0
      %3380 = vmatprep.mubr.bf16.mxu0 0
      %3381 = vmatmul.mubr.bf16.gmra.mrb[0].mxu0 %v3287
      %v3382 = vpop.f32.mrb[0].mxu0
      %v3383 = vadd.f32 0.0, %v3382
      %v3384 = vpop.f32.mrb[0].mxu0
      %v3385 = vpop.f32.mrb[0].mxu0
      %v3386 = vadd.f32 0.0, %v3385
      %v3387 = vpop.f32.mrb[0].mxu0
      %3388 = vmatprep.mubr.bf16.mxu0 0
      %3389 = vmatmul.mubr.bf16.gmra.mrb[0].mxu0 %v3290
      %v3390 = vpop.f32.mrb[0].mxu0
      %v3391 = vadd.f32 0.0, %v3390
      %v3392 = vpop.f32.mrb[0].mxu0
      %v3393 = vpop.f32.mrb[0].mxu0
      %v3394 = vpop.f32.mrb[0].mxu0
      %3395 = vdwg.mxu0
      %v3396 = vadd.f32 %v3158, %v3327
      %v3397 = vadd.f32 %v3161, %v3330
      %v3398 = vadd.f32 %v3166, %v3335
      %v3399 = vadd.f32 %v3169, %v3338
      %v3400 = vadd.f32 %v3174, %v3343
      %v3401 = vadd.f32 %v3177, %v3346
      %v3402 = vadd.f32 %v3182, %v3351
      %v3403 = vadd.f32 %v3185, %v3354
      %v3404 = vadd.f32 %v3190, %v3359
      %v3405 = vadd.f32 %v3193, %v3362
      %v3406 = vadd.f32 %v3198, %v3367
      %v3407 = vadd.f32 %v3201, %v3370
      %v3408 = vadd.f32 %v3206, %v3375
      %v3409 = vadd.f32 %v3209, %v3378
      %v3410 = vadd.f32 %v3214, %v3383
      %v3411 = vadd.f32 %v3217, %v3386
      %v3412 = vadd.f32 %v3222, %v3391
      %v3413 = vld [vmem:[#allocation2] sm:$0xc]
      %v3414 = vld [vmem:[#allocation2 + $0x44] sm:$0x3]
      %s3415 = scalar_lea.vmem %s6, 48
      %v3416 = vld [vmem:[%s3415] sm:$0xf]
      %v3417 = vld [vmem:[%s3415 + $0x4] sm:$0xf]
      %v3418 = vld [vmem:[%s3415 + $0x8] sm:$0xf]
      %v3419 = vld [vmem:[%s3415 + $0xc] sm:$0xf]
      %v3422 = vunpack.c.l.b16 %v3413
      %v3423 = vunpack.c.l.b16 %v3414
      %v3424 = vpack.c.b16 %v2850, %v3422
      %v3425 = vpack.c.b16 %v3423, %v2865
      %v3426 = vrot.slane %v3424, 2
      %v3427 = vrot.slane %v2868, 2
      %v3428 = vsel %vm1293, %v3426, %v3427
      %v3429 = vrot.slane %v2869, 2
      %v3430 = vsel %vm1293, %v3427, %v3429
      %v3431 = vrot.slane %v2870, 2
      %v3432 = vsel %vm1293, %v3429, %v3431
      %v3433 = vrot.slane %v2871, 2
      %v3434 = vsel %vm1293, %v3431, %v3433
      %v3435 = vrot.slane %v2872, 2
      %v3436 = vsel %vm1293, %v3433, %v3435
      %v3437 = vrot.slane %v2873, 2
      %v3438 = vsel %vm1293, %v3435, %v3437
      %v3439 = vrot.slane %v2874, 2
      %v3440 = vsel %vm1293, %v3437, %v3439
      %v3441 = vrot.slane %v3425, 2
      %v3442 = vsel %vm1293, %v3439, %v3441
      %v3447 = vunpack.c.l.b16 %v3416
      %v3448 = vunpack.c.l.b16 %v3417
      %v3449 = vunpack.c.l.b16 %v3418
      %v3450 = vunpack.c.l.b16 %v3419
      %v3451 = vpack.c.b16 %v3448, %v3447
      %v3452 = vpack.c.b16 %v3450, %v3449
      %v3456 = vsel %vm2959, %v3428, 0
      %v3459 = vsel %vm2959, %v3430, 0
      %v3462 = vsel %vm2959, %v3432, 0
      %v3465 = vsel %vm2959, %v3434, 0
      %v3468 = vsel %vm2959, %v3436, 0
      %v3471 = vsel %vm2959, %v3438, 0
      %v3474 = vsel %vm2959, %v3440, 0
      %v3477 = vsel %vm2959, %v3442, 0
      %v3480 = vsel %vm2959, %v3441, 0
      %3482 = vmatprep.subr.bf16.mxu0 0
      %3483 = vmatpush1.bf16.msra.mxu0 %v3451
      %3484 = vmatprep.subr.bf16.mxu0 0
      %3485 = vmatpush1.bf16.msra.mxu0 %v3452
      %3486 = vmatprep.subr.bf16.mxu0 0
      %3487 = vmatpush1.bf16.msra.mxu0 0
      %3488 = vmatprep.subr.bf16.mxu0 0
      %3489 = vmatpush1.bf16.msra.mxu0 0
      %3490 = vmatprep.subr.bf16.mxu0 0
      %3491 = vmatpush1.bf16.msra.mxu0 0
      %3492 = vmatprep.subr.bf16.mxu0 0
      %3493 = vmatpush1.bf16.msra.mxu0 0
      %3494 = vmatprep.subr.bf16.mxu0 0
      %3495 = vmatpush1.bf16.msra.mxu0 0
      %3496 = vmatprep.subr.bf16.mxu0 0
      %3497 = vmatpush1.bf16.msra.mxu0 0
      %3498 = vmatprep.subr.bf16.mxu0 0
      %3499 = vmatpush1.bf16.msra.mxu0 0
      %3500 = vmatprep.subr.bf16.mxu0 0
      %3501 = vmatpush1.bf16.msra.mxu0 0
      %3502 = vmatprep.subr.bf16.mxu0 0
      %3503 = vmatpush1.bf16.msra.mxu0 0
      %3504 = vmatprep.subr.bf16.mxu0 0
      %3505 = vmatpush1.bf16.msra.mxu0 0
      %3506 = vmatprep.subr.bf16.mxu0 0
      %3507 = vmatpush1.bf16.msra.mxu0 0
      %3508 = vmatprep.subr.bf16.mxu0 0
      %3509 = vmatpush1.bf16.msra.mxu0 0
      %3510 = vmatprep.subr.bf16.mxu0 0
      %3511 = vmatpush1.bf16.msra.mxu0 0
      %3512 = vmatprep.subr.bf16.mxu0 0
      %3513 = vmatpush1.bf16.msra.mxu0 0
      %3514 = vmatprep.mubr.bf16.mxu0 0
      %3515 = vmatmul.mubr.bf16.gmra.mrb[0].mxu0 %v3456
      %v3516 = vpop.f32.mrb[0].mxu0
      %v3517 = vadd.f32 0.0, %v3516
      %v3518 = vpop.f32.mrb[0].mxu0
      %v3519 = vpop.f32.mrb[0].mxu0
      %v3520 = vadd.f32 0.0, %v3519
      %v3521 = vpop.f32.mrb[0].mxu0
      %3522 = vmatprep.mubr.bf16.mxu0 0
      %3523 = vmatmul.mubr.bf16.gmra.mrb[0].mxu0 %v3459
      %v3524 = vpop.f32.mrb[0].mxu0
      %v3525 = vadd.f32 0.0, %v3524
      %v3526 = vpop.f32.mrb[0].mxu0
      %v3527 = vpop.f32.mrb[0].mxu0
      %v3528 = vadd.f32 0.0, %v3527
      %v3529 = vpop.f32.mrb[0].mxu0
      %3530 = vmatprep.mubr.bf16.mxu0 0
      %3531 = vmatmul.mubr.bf16.gmra.mrb[0].mxu0 %v3462
      %v3532 = vpop.f32.mrb[0].mxu0
      %v3533 = vadd.f32 0.0, %v3532
      %v3534 = vpop.f32.mrb[0].mxu0
      %v3535 = vpop.f32.mrb[0].mxu0
      %v3536 = vadd.f32 0.0, %v3535
      %v3537 = vpop.f32.mrb[0].mxu0
      %3538 = vmatprep.mubr.bf16.mxu0 0
      %3539 = vmatmul.mubr.bf16.gmra.mrb[0].mxu0 %v3465
      %v3540 = vpop.f32.mrb[0].mxu0
      %v3541 = vadd.f32 0.0, %v3540
      %v3542 = vpop.f32.mrb[0].mxu0
      %v3543 = vpop.f32.mrb[0].mxu0
      %v3544 = vadd.f32 0.0, %v3543
      %v3545 = vpop.f32.mrb[0].mxu0
      %3546 = vmatprep.mubr.bf16.mxu0 0
      %3547 = vmatmul.mubr.bf16.gmra.mrb[0].mxu0 %v3468
      %v3548 = vpop.f32.mrb[0].mxu0
      %v3549 = vadd.f32 0.0, %v3548
      %v3550 = vpop.f32.mrb[0].mxu0
      %v3551 = vpop.f32.mrb[0].mxu0
      %v3552 = vadd.f32 0.0, %v3551
      %v3553 = vpop.f32.mrb[0].mxu0
      %3554 = vmatprep.mubr.bf16.mxu0 0
      %3555 = vmatmul.mubr.bf16.gmra.mrb[0].mxu0 %v3471
      %v3556 = vpop.f32.mrb[0].mxu0
      %v3557 = vadd.f32 0.0, %v3556
      %v3558 = vpop.f32.mrb[0].mxu0
      %v3559 = vpop.f32.mrb[0].mxu0
      %v3560 = vadd.f32 0.0, %v3559
      %v3561 = vpop.f32.mrb[0].mxu0
      %3562 = vmatprep.mubr.bf16.mxu0 0
      %3563 = vmatmul.mubr.bf16.gmra.mrb[0].mxu0 %v3474
      %v3564 = vpop.f32.mrb[0].mxu0
      %v3565 = vadd.f32 0.0, %v3564
      %v3566 = vpop.f32.mrb[0].mxu0
      %v3567 = vpop.f32.mrb[0].mxu0
      %v3568 = vadd.f32 0.0, %v3567
      %v3569 = vpop.f32.mrb[0].mxu0
      %3570 = vmatprep.mubr.bf16.mxu0 0
      %3571 = vmatmul.mubr.bf16.gmra.mrb[0].mxu0 %v3477
      %v3572 = vpop.f32.mrb[0].mxu0
      %v3573 = vadd.f32 0.0, %v3572
      %v3574 = vpop.f32.mrb[0].mxu0
      %v3575 = vpop.f32.mrb[0].mxu0
      %v3576 = vadd.f32 0.0, %v3575
      %v3577 = vpop.f32.mrb[0].mxu0
      %3578 = vmatprep.mubr.bf16.mxu0 0
      %3579 = vmatmul.mubr.bf16.gmra.mrb[0].mxu0 %v3480
      %v3580 = vpop.f32.mrb[0].mxu0
      %v3581 = vadd.f32 0.0, %v3580
      %v3582 = vpop.f32.mrb[0].mxu0
      %v3583 = vpop.f32.mrb[0].mxu0
      %v3584 = vpop.f32.mrb[0].mxu0
      %3585 = vdwg.mxu0
      %v3586 = vadd.f32 %v3396, %v3517
      %v3587 = vadd.f32 %v3397, %v3520
      %v3588 = vadd.f32 %v3398, %v3525
      %v3589 = vadd.f32 %v3399, %v3528
      %v3590 = vadd.f32 %v3400, %v3533
      %v3591 = vadd.f32 %v3401, %v3536
      %v3592 = vadd.f32 %v3402, %v3541
      %v3593 = vadd.f32 %v3403, %v3544
      %v3594 = vadd.f32 %v3404, %v3549
      %v3595 = vadd.f32 %v3405, %v3552
      %v3596 = vadd.f32 %v3406, %v3557
      %v3597 = vadd.f32 %v3407, %v3560
      %v3598 = vadd.f32 %v3408, %v3565
      %v3599 = vadd.f32 %v3409, %v3568
      %v3600 = vadd.f32 %v3410, %v3573
      %v3601 = vadd.f32 %v3411, %v3576
      %v3602 = vadd.f32 %v3412, %v3581
      %v3603 = vld [vmem:[#allocation2 + $0x44] sm:$0x7]
      %s3604 = scalar_lea.vmem %s6, 64
      %v3605 = vld [vmem:[%s3604] sm:$0xf]
      %v3606 = vld [vmem:[%s3604 + $0x4] sm:$0xf]
      %v3607 = vld [vmem:[%s3604 + $0x8] sm:$0xf]
      %v3608 = vld [vmem:[%s3604 + $0xc] sm:$0xf]
      %v3610 = vunpack.c.l.b16 %v3603
      %v3611 = vpack.c.b16 %v3610, %v2865
      %v3613 = vshrl.u32 %v3424, 16
      %v3615 = vrot.slane %v3613, 2
      %v3616 = vshll.u32 %v3424, 16
      %v3618 = vrot.slane %v3616, 3
      %v3619 = vor.u32 %v3615, %v3618
      %v3620 = vrot.slane %v2888, 2
      %v3621 = vrot.slane %v2884, 3
      %v3622 = vor.u32 %v3620, %v3621
      %v3623 = vsel %vm1464, %v3619, %v3622
      %v3624 = vrot.slane %v2896, 2
      %v3625 = vrot.slane %v2892, 3
      %v3626 = vor.u32 %v3624, %v3625
      %v3627 = vsel %vm1464, %v3622, %v3626
      %v3628 = vrot.slane %v2904, 2
      %v3629 = vrot.slane %v2900, 3
      %v3630 = vor.u32 %v3628, %v3629
      %v3631 = vsel %vm1464, %v3626, %v3630
      %v3632 = vrot.slane %v2912, 2
      %v3633 = vrot.slane %v2908, 3
      %v3634 = vor.u32 %v3632, %v3633
      %v3635 = vsel %vm1464, %v3630, %v3634
      %v3636 = vrot.slane %v2920, 2
      %v3637 = vrot.slane %v2916, 3
      %v3638 = vor.u32 %v3636, %v3637
      %v3639 = vsel %vm1464, %v3634, %v3638
      %v3640 = vrot.slane %v2928, 2
      %v3641 = vrot.slane %v2924, 3
      %v3642 = vor.u32 %v3640, %v3641
      %v3643 = vsel %vm1464, %v3638, %v3642
      %v3644 = vrot.slane %v2936, 2
      %v3645 = vrot.slane %v2932, 3
      %v3646 = vor.u32 %v3644, %v3645
      %v3647 = vsel %vm1464, %v3642, %v3646
      %v3649 = vshrl.u32 %v3611, 16
      %v3651 = vrot.slane %v3649, 2
      %v3652 = vshll.u32 %v3611, 16
      %v3654 = vrot.slane %v3652, 3
      %v3655 = vor.u32 %v3651, %v3654
      %v3656 = vsel %vm1464, %v3646, %v3655
      %v3661 = vunpack.c.l.b16 %v3605
      %v3662 = vunpack.c.l.b16 %v3606
      %v3663 = vunpack.c.l.b16 %v3607
      %v3664 = vunpack.c.l.b16 %v3608
      %v3665 = vpack.c.b16 %v3662, %v3661
      %v3666 = vpack.c.b16 %v3664, %v3663
      %v3670 = vsel %vm2959, %v3623, 0
      %v3673 = vsel %vm2959, %v3627, 0
      %v3676 = vsel %vm2959, %v3631, 0
      %v3679 = vsel %vm2959, %v3635, 0
      %v3682 = vsel %vm2959, %v3639, 0
      %v3685 = vsel %vm2959, %v3643, 0
      %v3688 = vsel %vm2959, %v3647, 0
      %v3691 = vsel %vm2959, %v3656, 0
      %v3694 = vsel %vm2959, %v3655, 0
      %3696 = vmatprep.subr.bf16.mxu0 0
      %3697 = vmatpush1.bf16.msra.mxu0 %v3665
      %3698 = vmatprep.subr.bf16.mxu0 0
      %3699 = vmatpush1.bf16.msra.mxu0 %v3666
      %3700 = vmatprep.subr.bf16.mxu0 0
      %3701 = vmatpush1.bf16.msra.mxu0 0
      %3702 = vmatprep.subr.bf16.mxu0 0
      %3703 = vmatpush1.bf16.msra.mxu0 0
      %3704 = vmatprep.subr.bf16.mxu0 0
      %3705 = vmatpush1.bf16.msra.mxu0 0
      %3706 = vmatprep.subr.bf16.mxu0 0
      %3707 = vmatpush1.bf16.msra.mxu0 0
      %3708 = vmatprep.subr.bf16.mxu0 0
      %3709 = vmatpush1.bf16.msra.mxu0 0
      %3710 = vmatprep.subr.bf16.mxu0 0
      %3711 = vmatpush1.bf16.msra.mxu0 0
      %3712 = vmatprep.subr.bf16.mxu0 0
      %3713 = vmatpush1.bf16.msra.mxu0 0
      %3714 = vmatprep.subr.bf16.mxu0 0
      %3715 = vmatpush1.bf16.msra.mxu0 0
      %3716 = vmatprep.subr.bf16.mxu0 0
      %3717 = vmatpush1.bf16.msra.mxu0 0
      %3718 = vmatprep.subr.bf16.mxu0 0
      %3719 = vmatpush1.bf16.msra.mxu0 0
      %3720 = vmatprep.subr.bf16.mxu0 0
      %3721 = vmatpush1.bf16.msra.mxu0 0
      %3722 = vmatprep.subr.bf16.mxu0 0
      %3723 = vmatpush1.bf16.msra.mxu0 0
      %3724 = vmatprep.subr.bf16.mxu0 0
      %3725 = vmatpush1.bf16.msra.mxu0 0
      %3726 = vmatprep.subr.bf16.mxu0 0
      %3727 = vmatpush1.bf16.msra.mxu0 0
      %3728 = vmatprep.mubr.bf16.mxu0 0
      %3729 = vmatmul.mubr.bf16.gmra.mrb[0].mxu0 %v3670
      %v3730 = vpop.f32.mrb[0].mxu0
      %v3731 = vadd.f32 0.0, %v3730
      %v3732 = vpop.f32.mrb[0].mxu0
      %v3733 = vpop.f32.mrb[0].mxu0
      %v3734 = vadd.f32 0.0, %v3733
      %v3735 = vpop.f32.mrb[0].mxu0
      %3736 = vmatprep.mubr.bf16.mxu0 0
      %3737 = vmatmul.mubr.bf16.gmra.mrb[0].mxu0 %v3673
      %v3738 = vpop.f32.mrb[0].mxu0
      %v3739 = vadd.f32 0.0, %v3738
      %v3740 = vpop.f32.mrb[0].mxu0
      %v3741 = vpop.f32.mrb[0].mxu0
      %v3742 = vadd.f32 0.0, %v3741
      %v3743 = vpop.f32.mrb[0].mxu0
      %3744 = vmatprep.mubr.bf16.mxu0 0
      %3745 = vmatmul.mubr.bf16.gmra.mrb[0].mxu0 %v3676
      %v3746 = vpop.f32.mrb[0].mxu0
      %v3747 = vadd.f32 0.0, %v3746
      %v3748 = vpop.f32.mrb[0].mxu0
      %v3749 = vpop.f32.mrb[0].mxu0
      %v3750 = vadd.f32 0.0, %v3749
      %v3751 = vpop.f32.mrb[0].mxu0
      %3752 = vmatprep.mubr.bf16.mxu0 0
      %3753 = vmatmul.mubr.bf16.gmra.mrb[0].mxu0 %v3679
      %v3754 = vpop.f32.mrb[0].mxu0
      %v3755 = vadd.f32 0.0, %v3754
      %v3756 = vpop.f32.mrb[0].mxu0
      %v3757 = vpop.f32.mrb[0].mxu0
      %v3758 = vadd.f32 0.0, %v3757
      %v3759 = vpop.f32.mrb[0].mxu0
      %3760 = vmatprep.mubr.bf16.mxu0 0
      %3761 = vmatmul.mubr.bf16.gmra.mrb[0].mxu0 %v3682
      %v3762 = vpop.f32.mrb[0].mxu0
      %v3763 = vadd.f32 0.0, %v3762
      %v3764 = vpop.f32.mrb[0].mxu0
      %v3765 = vpop.f32.mrb[0].mxu0
      %v3766 = vadd.f32 0.0, %v3765
      %v3767 = vpop.f32.mrb[0].mxu0
      %3768 = vmatprep.mubr.bf16.mxu0 0
      %3769 = vmatmul.mubr.bf16.gmra.mrb[0].mxu0 %v3685
      %v3770 = vpop.f32.mrb[0].mxu0
      %v3771 = vadd.f32 0.0, %v3770
      %v3772 = vpop.f32.mrb[0].mxu0
      %v3773 = vpop.f32.mrb[0].mxu0
      %v3774 = vadd.f32 0.0, %v3773
      %v3775 = vpop.f32.mrb[0].mxu0
      %3776 = vmatprep.mubr.bf16.mxu0 0
      %3777 = vmatmul.mubr.bf16.gmra.mrb[0].mxu0 %v3688
      %v3778 = vpop.f32.mrb[0].mxu0
      %v3779 = vadd.f32 0.0, %v3778
      %v3780 = vpop.f32.mrb[0].mxu0
      %v3781 = vpop.f32.mrb[0].mxu0
      %v3782 = vadd.f32 0.0, %v3781
      %v3783 = vpop.f32.mrb[0].mxu0
      %3784 = vmatprep.mubr.bf16.mxu0 0
      %3785 = vmatmul.mubr.bf16.gmra.mrb[0].mxu0 %v3691
      %v3786 = vpop.f32.mrb[0].mxu0
      %v3787 = vadd.f32 0.0, %v3786
      %v3788 = vpop.f32.mrb[0].mxu0
      %v3789 = vpop.f32.mrb[0].mxu0
      %v3790 = vadd.f32 0.0, %v3789
      %v3791 = vpop.f32.mrb[0].mxu0
      %3792 = vmatprep.mubr.bf16.mxu0 0
      %3793 = vmatmul.mubr.bf16.gmra.mrb[0].mxu0 %v3694
      %v3794 = vpop.f32.mrb[0].mxu0
      %v3795 = vadd.f32 0.0, %v3794
      %v3796 = vpop.f32.mrb[0].mxu0
      %v3797 = vpop.f32.mrb[0].mxu0
      %v3798 = vpop.f32.mrb[0].mxu0
      %3799 = vdwg.mxu0
      %v3800 = vadd.f32 %v3586, %v3731
      %v3801 = vadd.f32 %v3587, %v3734
      %v3802 = vadd.f32 %v3588, %v3739
      %v3803 = vadd.f32 %v3589, %v3742
      %v3804 = vadd.f32 %v3590, %v3747
      %v3805 = vadd.f32 %v3591, %v3750
      %v3806 = vadd.f32 %v3592, %v3755
      %v3807 = vadd.f32 %v3593, %v3758
      %v3808 = vadd.f32 %v3594, %v3763
      %v3809 = vadd.f32 %v3595, %v3766
      %v3810 = vadd.f32 %v3596, %v3771
      %v3811 = vadd.f32 %v3597, %v3774
      %v3812 = vadd.f32 %v3598, %v3779
      %v3813 = vadd.f32 %v3599, %v3782
      %v3814 = vadd.f32 %v3600, %v3787
      %v3815 = vadd.f32 %v3601, %v3790
      %v3816 = vadd.f32 %v3602, %v3795
      %v3817 = vld [vmem:[#allocation2] sm:$0x8]
      %s3818 = scalar_lea.vmem %s6, 80
      %v3819 = vld [vmem:[%s3818] sm:$0xf]
      %v3820 = vld [vmem:[%s3818 + $0x4] sm:$0xf]
      %v3821 = vld [vmem:[%s3818 + $0x8] sm:$0xf]
      %v3822 = vld [vmem:[%s3818 + $0xc] sm:$0xf]
      %v3824 = vunpack.c.l.b16 %v3817
      %v3825 = vpack.c.b16 %v2850, %v3824
      %v3826 = vrot.slane %v3825, 3
      %v3827 = vrot.slane %v2868, 3
      %v3828 = vsel %vm1653, %v3826, %v3827
      %v3829 = vrot.slane %v2869, 3
      %v3830 = vsel %vm1653, %v3827, %v3829
      %v3831 = vrot.slane %v2870, 3
      %v3832 = vsel %vm1653, %v3829, %v3831
      %v3833 = vrot.slane %v2871, 3
      %v3834 = vsel %vm1653, %v3831, %v3833
      %v3835 = vrot.slane %v2872, 3
      %v3836 = vsel %vm1653, %v3833, %v3835
      %v3837 = vrot.slane %v2873, 3
      %v3838 = vsel %vm1653, %v3835, %v3837
      %v3839 = vrot.slane %v2874, 3
      %v3840 = vsel %vm1653, %v3837, %v3839
      %v3841 = vrot.slane %v3611, 3
      %v3842 = vsel %vm1653, %v3839, %v3841
      %v3847 = vunpack.c.l.b16 %v3819
      %v3848 = vunpack.c.l.b16 %v3820
      %v3849 = vunpack.c.l.b16 %v3821
      %v3850 = vunpack.c.l.b16 %v3822
      %v3851 = vpack.c.b16 %v3848, %v3847
      %v3852 = vpack.c.b16 %v3850, %v3849
      %v3856 = vsel %vm2959, %v3828, 0
      %v3859 = vsel %vm2959, %v3830, 0
      %v3862 = vsel %vm2959, %v3832, 0
      %v3865 = vsel %vm2959, %v3834, 0
      %v3868 = vsel %vm2959, %v3836, 0
      %v3871 = vsel %vm2959, %v3838, 0
      %v3874 = vsel %vm2959, %v3840, 0
      %v3877 = vsel %vm2959, %v3842, 0
      %v3880 = vsel %vm2959, %v3841, 0
      %3882 = vmatprep.subr.bf16.mxu0 0
      %3883 = vmatpush1.bf16.msra.mxu0 %v3851
      %3884 = vmatprep.subr.bf16.mxu0 0
      %3885 = vmatpush1.bf16.msra.mxu0 %v3852
      %3886 = vmatprep.subr.bf16.mxu0 0
      %3887 = vmatpush1.bf16.msra.mxu0 0
      %3888 = vmatprep.subr.bf16.mxu0 0
      %3889 = vmatpush1.bf16.msra.mxu0 0
      %3890 = vmatprep.subr.bf16.mxu0 0
      %3891 = vmatpush1.bf16.msra.mxu0 0
      %3892 = vmatprep.subr.bf16.mxu0 0
      %3893 = vmatpush1.bf16.msra.mxu0 0
      %3894 = vmatprep.subr.bf16.mxu0 0
      %3895 = vmatpush1.bf16.msra.mxu0 0
      %3896 = vmatprep.subr.bf16.mxu0 0
      %3897 = vmatpush1.bf16.msra.mxu0 0
      %3898 = vmatprep.subr.bf16.mxu0 0
      %3899 = vmatpush1.bf16.msra.mxu0 0
      %3900 = vmatprep.subr.bf16.mxu0 0
      %3901 = vmatpush1.bf16.msra.mxu0 0
      %3902 = vmatprep.subr.bf16.mxu0 0
      %3903 = vmatpush1.bf16.msra.mxu0 0
      %3904 = vmatprep.subr.bf16.mxu0 0
      %3905 = vmatpush1.bf16.msra.mxu0 0
      %3906 = vmatprep.subr.bf16.mxu0 0
      %3907 = vmatpush1.bf16.msra.mxu0 0
      %3908 = vmatprep.subr.bf16.mxu0 0
      %3909 = vmatpush1.bf16.msra.mxu0 0
      %3910 = vmatprep.subr.bf16.mxu0 0
      %3911 = vmatpush1.bf16.msra.mxu0 0
      %3912 = vmatprep.subr.bf16.mxu0 0
      %3913 = vmatpush1.bf16.msra.mxu0 0
      %3914 = vmatprep.mubr.bf16.mxu0 0
      %3915 = vmatmul.mubr.bf16.gmra.mrb[0].mxu0 %v3856
      %v3916 = vpop.f32.mrb[0].mxu0
      %v3917 = vadd.f32 0.0, %v3916
      %v3918 = vpop.f32.mrb[0].mxu0
      %v3919 = vpop.f32.mrb[0].mxu0
      %v3920 = vadd.f32 0.0, %v3919
      %v3921 = vpop.f32.mrb[0].mxu0
      %3922 = vmatprep.mubr.bf16.mxu0 0
      %3923 = vmatmul.mubr.bf16.gmra.mrb[0].mxu0 %v3859
      %v3924 = vpop.f32.mrb[0].mxu0
      %v3925 = vadd.f32 0.0, %v3924
      %v3926 = vpop.f32.mrb[0].mxu0
      %v3927 = vpop.f32.mrb[0].mxu0
      %v3928 = vadd.f32 0.0, %v3927
      %v3929 = vpop.f32.mrb[0].mxu0
      %3930 = vmatprep.mubr.bf16.mxu0 0
      %3931 = vmatmul.mubr.bf16.gmra.mrb[0].mxu0 %v3862
      %v3932 = vpop.f32.mrb[0].mxu0
      %v3933 = vadd.f32 0.0, %v3932
      %v3934 = vpop.f32.mrb[0].mxu0
      %v3935 = vpop.f32.mrb[0].mxu0
      %v3936 = vadd.f32 0.0, %v3935
      %v3937 = vpop.f32.mrb[0].mxu0
      %3938 = vmatprep.mubr.bf16.mxu0 0
      %3939 = vmatmul.mubr.bf16.gmra.mrb[0].mxu0 %v3865
      %v3940 = vpop.f32.mrb[0].mxu0
      %v3941 = vadd.f32 0.0, %v3940
      %v3942 = vpop.f32.mrb[0].mxu0
      %v3943 = vpop.f32.mrb[0].mxu0
      %v3944 = vadd.f32 0.0, %v3943
      %v3945 = vpop.f32.mrb[0].mxu0
      %3946 = vmatprep.mubr.bf16.mxu0 0
      %3947 = vmatmul.mubr.bf16.gmra.mrb[0].mxu0 %v3868
      %v3948 = vpop.f32.mrb[0].mxu0
      %v3949 = vadd.f32 0.0, %v3948
      %v3950 = vpop.f32.mrb[0].mxu0
      %v3951 = vpop.f32.mrb[0].mxu0
      %v3952 = vadd.f32 0.0, %v3951
      %v3953 = vpop.f32.mrb[0].mxu0
      %3954 = vmatprep.mubr.bf16.mxu0 0
      %3955 = vmatmul.mubr.bf16.gmra.mrb[0].mxu0 %v3871
      %v3956 = vpop.f32.mrb[0].mxu0
      %v3957 = vadd.f32 0.0, %v3956
      %v3958 = vpop.f32.mrb[0].mxu0
      %v3959 = vpop.f32.mrb[0].mxu0
      %v3960 = vadd.f32 0.0, %v3959
      %v3961 = vpop.f32.mrb[0].mxu0
      %3962 = vmatprep.mubr.bf16.mxu0 0
      %3963 = vmatmul.mubr.bf16.gmra.mrb[0].mxu0 %v3874
      %v3964 = vpop.f32.mrb[0].mxu0
      %v3965 = vadd.f32 0.0, %v3964
      %v3966 = vpop.f32.mrb[0].mxu0
      %v3967 = vpop.f32.mrb[0].mxu0
      %v3968 = vadd.f32 0.0, %v3967
      %v3969 = vpop.f32.mrb[0].mxu0
      %3970 = vmatprep.mubr.bf16.mxu0 0
      %3971 = vmatmul.mubr.bf16.gmra.mrb[0].mxu0 %v3877
      %v3972 = vpop.f32.mrb[0].mxu0
      %v3973 = vadd.f32 0.0, %v3972
      %v3974 = vpop.f32.mrb[0].mxu0
      %v3975 = vpop.f32.mrb[0].mxu0
      %v3976 = vadd.f32 0.0, %v3975
      %v3977 = vpop.f32.mrb[0].mxu0
      %3978 = vmatprep.mubr.bf16.mxu0 0
      %3979 = vmatmul.mubr.bf16.gmra.mrb[0].mxu0 %v3880
      %v3980 = vpop.f32.mrb[0].mxu0
      %v3981 = vadd.f32 0.0, %v3980
      %v3982 = vpop.f32.mrb[0].mxu0
      %v3983 = vpop.f32.mrb[0].mxu0
      %v3984 = vpop.f32.mrb[0].mxu0
      %3985 = vdwg.mxu0
      %v3986 = vadd.f32 %v3800, %v3917
      %v3987 = vadd.f32 %v3801, %v3920
      %v3988 = vadd.f32 %v3802, %v3925
      %v3989 = vadd.f32 %v3803, %v3928
      %v3990 = vadd.f32 %v3804, %v3933
      %v3991 = vadd.f32 %v3805, %v3936
      %v3992 = vadd.f32 %v3806, %v3941
      %v3993 = vadd.f32 %v3807, %v3944
      %v3994 = vadd.f32 %v3808, %v3949
      %v3995 = vadd.f32 %v3809, %v3952
      %v3996 = vadd.f32 %v3810, %v3957
      %v3997 = vadd.f32 %v3811, %v3960
      %v3998 = vadd.f32 %v3812, %v3965
      %v3999 = vadd.f32 %v3813, %v3968
      %v4000 = vadd.f32 %v3814, %v3973
      %v4001 = vadd.f32 %v3815, %v3976
      %v4002 = vadd.f32 %v3816, %v3981
      %v4003 = vld [vmem:[#allocation2 + $0x44] sm:$0xf]
      %s4004 = scalar_lea.vmem %s6, 96
      %v4005 = vld [vmem:[%s4004] sm:$0xf]
      %v4006 = vld [vmem:[%s4004 + $0x4] sm:$0xf]
      %v4007 = vld [vmem:[%s4004 + $0x8] sm:$0xf]
      %v4008 = vld [vmem:[%s4004 + $0xc] sm:$0xf]
      %v4010 = vunpack.c.l.b16 %v4003
      %v4011 = vpack.c.b16 %v2851, %v2850
      %v4012 = vpack.c.b16 %v2853, %v2852
      %v4013 = vpack.c.b16 %v2855, %v2854
      %v4014 = vpack.c.b16 %v2857, %v2856
      %v4015 = vpack.c.b16 %v2859, %v2858
      %v4016 = vpack.c.b16 %v2861, %v2860
      %v4017 = vpack.c.b16 %v2863, %v2862
      %v4018 = vpack.c.b16 %v2865, %v2864
      %v4019 = vpack.c.b16 %v4010, %v4010
      %v4024 = vunpack.c.l.b16 %v4005
      %v4025 = vunpack.c.l.b16 %v4006
      %v4026 = vunpack.c.l.b16 %v4007
      %v4027 = vunpack.c.l.b16 %v4008
      %v4028 = vpack.c.b16 %v4025, %v4024
      %v4029 = vpack.c.b16 %v4027, %v4026
      %v4033 = vsel %vm2959, %v4011, 0
      %v4036 = vsel %vm2959, %v4012, 0
      %v4039 = vsel %vm2959, %v4013, 0
      %v4042 = vsel %vm2959, %v4014, 0
      %v4045 = vsel %vm2959, %v4015, 0
      %v4048 = vsel %vm2959, %v4016, 0
      %v4051 = vsel %vm2959, %v4017, 0
      %v4054 = vsel %vm2959, %v4018, 0
      %v4057 = vsel %vm2959, %v4019, 0
      %4059 = vmatprep.subr.bf16.mxu0 0
      %4060 = vmatpush1.bf16.msra.mxu0 %v4028
      %4061 = vmatprep.subr.bf16.mxu0 0
      %4062 = vmatpush1.bf16.msra.mxu0 %v4029
      %4063 = vmatprep.subr.bf16.mxu0 0
      %4064 = vmatpush1.bf16.msra.mxu0 0
      %4065 = vmatprep.subr.bf16.mxu0 0
      %4066 = vmatpush1.bf16.msra.mxu0 0
      %4067 = vmatprep.subr.bf16.mxu0 0
      %4068 = vmatpush1.bf16.msra.mxu0 0
      %4069 = vmatprep.subr.bf16.mxu0 0
      %4070 = vmatpush1.bf16.msra.mxu0 0
      %4071 = vmatprep.subr.bf16.mxu0 0
      %4072 = vmatpush1.bf16.msra.mxu0 0
      %4073 = vmatprep.subr.bf16.mxu0 0
      %4074 = vmatpush1.bf16.msra.mxu0 0
      %4075 = vmatprep.subr.bf16.mxu0 0
      %4076 = vmatpush1.bf16.msra.mxu0 0
      %4077 = vmatprep.subr.bf16.mxu0 0
      %4078 = vmatpush1.bf16.msra.mxu0 0
      %4079 = vmatprep.subr.bf16.mxu0 0
      %4080 = vmatpush1.bf16.msra.mxu0 0
      %4081 = vmatprep.subr.bf16.mxu0 0
      %4082 = vmatpush1.bf16.msra.mxu0 0
      %4083 = vmatprep.subr.bf16.mxu0 0
      %4084 = vmatpush1.bf16.msra.mxu0 0
      %4085 = vmatprep.subr.bf16.mxu0 0
      %4086 = vmatpush1.bf16.msra.mxu0 0
      %4087 = vmatprep.subr.bf16.mxu0 0
      %4088 = vmatpush1.bf16.msra.mxu0 0
      %4089 = vmatprep.subr.bf16.mxu0 0
      %4090 = vmatpush1.bf16.msra.mxu0 0
      %4091 = vmatprep.mubr.bf16.mxu0 0
      %4092 = vmatmul.mubr.bf16.gmra.mrb[0].mxu0 %v4033
      %v4093 = vpop.f32.mrb[0].mxu0
      %v4094 = vadd.f32 0.0, %v4093
      %v4095 = vpop.f32.mrb[0].mxu0
      %v4096 = vpop.f32.mrb[0].mxu0
      %v4097 = vadd.f32 0.0, %v4096
      %v4098 = vpop.f32.mrb[0].mxu0
      %4099 = vmatprep.mubr.bf16.mxu0 0
      %4100 = vmatmul.mubr.bf16.gmra.mrb[0].mxu0 %v4036
      %v4101 = vpop.f32.mrb[0].mxu0
      %v4102 = vadd.f32 0.0, %v4101
      %v4103 = vpop.f32.mrb[0].mxu0
      %v4104 = vpop.f32.mrb[0].mxu0
      %v4105 = vadd.f32 0.0, %v4104
      %v4106 = vpop.f32.mrb[0].mxu0
      %4107 = vmatprep.mubr.bf16.mxu0 0
      %4108 = vmatmul.mubr.bf16.gmra.mrb[0].mxu0 %v4039
      %v4109 = vpop.f32.mrb[0].mxu0
      %v4110 = vadd.f32 0.0, %v4109
      %v4111 = vpop.f32.mrb[0].mxu0
      %v4112 = vpop.f32.mrb[0].mxu0
      %v4113 = vadd.f32 0.0, %v4112
      %v4114 = vpop.f32.mrb[0].mxu0
      %4115 = vmatprep.mubr.bf16.mxu0 0
      %4116 = vmatmul.mubr.bf16.gmra.mrb[0].mxu0 %v4042
      %v4117 = vpop.f32.mrb[0].mxu0
      %v4118 = vadd.f32 0.0, %v4117
      %v4119 = vpop.f32.mrb[0].mxu0
      %v4120 = vpop.f32.mrb[0].mxu0
      %v4121 = vadd.f32 0.0, %v4120
      %v4122 = vpop.f32.mrb[0].mxu0
      %4123 = vmatprep.mubr.bf16.mxu0 0
      %4124 = vmatmul.mubr.bf16.gmra.mrb[0].mxu0 %v4045
      %v4125 = vpop.f32.mrb[0].mxu0
      %v4126 = vadd.f32 0.0, %v4125
      %v4127 = vpop.f32.mrb[0].mxu0
      %v4128 = vpop.f32.mrb[0].mxu0
      %v4129 = vadd.f32 0.0, %v4128
      %v4130 = vpop.f32.mrb[0].mxu0
      %4131 = vmatprep.mubr.bf16.mxu0 0
      %4132 = vmatmul.mubr.bf16.gmra.mrb[0].mxu0 %v4048
      %v4133 = vpop.f32.mrb[0].mxu0
      %v4134 = vadd.f32 0.0, %v4133
      %v4135 = vpop.f32.mrb[0].mxu0
      %v4136 = vpop.f32.mrb[0].mxu0
      %v4137 = vadd.f32 0.0, %v4136
      %v4138 = vpop.f32.mrb[0].mxu0
      %4139 = vmatprep.mubr.bf16.mxu0 0
      %4140 = vmatmul.mubr.bf16.gmra.mrb[0].mxu0 %v4051
      %v4141 = vpop.f32.mrb[0].mxu0
      %v4142 = vadd.f32 0.0, %v4141
      %v4143 = vpop.f32.mrb[0].mxu0
      %v4144 = vpop.f32.mrb[0].mxu0
      %v4145 = vadd.f32 0.0, %v4144
      %v4146 = vpop.f32.mrb[0].mxu0
      %4147 = vmatprep.mubr.bf16.mxu0 0
      %4148 = vmatmul.mubr.bf16.gmra.mrb[0].mxu0 %v4054
      %v4149 = vpop.f32.mrb[0].mxu0
      %v4150 = vadd.f32 0.0, %v4149
      %v4151 = vpop.f32.mrb[0].mxu0
      %v4152 = vpop.f32.mrb[0].mxu0
      %v4153 = vadd.f32 0.0, %v4152
      %v4154 = vpop.f32.mrb[0].mxu0
      %4155 = vmatprep.mubr.bf16.mxu0 0
      %4156 = vmatmul.mubr.bf16.gmra.mrb[0].mxu0 %v4057
      %v4157 = vpop.f32.mrb[0].mxu0
      %v4158 = vadd.f32 0.0, %v4157
      %v4159 = vpop.f32.mrb[0].mxu0
      %v4160 = vpop.f32.mrb[0].mxu0
      %v4161 = vpop.f32.mrb[0].mxu0
      %4162 = vdwg.mxu0
      %v4163 = vadd.f32 %v3986, %v4094
      %v4164 = vadd.f32 %v3987, %v4097
      %v4165 = vadd.f32 %v3988, %v4102
      %v4166 = vadd.f32 %v3989, %v4105
      %v4167 = vadd.f32 %v3990, %v4110
      %v4168 = vadd.f32 %v3991, %v4113
      %v4169 = vadd.f32 %v3992, %v4118
      %v4170 = vadd.f32 %v3993, %v4121
      %v4171 = vadd.f32 %v3994, %v4126
      %v4172 = vadd.f32 %v3995, %v4129
      %v4173 = vadd.f32 %v3996, %v4134
      %v4174 = vadd.f32 %v3997, %v4137
      %v4175 = vadd.f32 %v3998, %v4142
      %v4176 = vadd.f32 %v3999, %v4145
      %v4177 = vadd.f32 %v4000, %v4150
      %v4178 = vadd.f32 %v4001, %v4153
      %v4179 = vadd.f32 %v4002, %v4158
      %v4180 = vld [vmem:[#allocation2 + $0x4] sm:$0xf]
      %v4181 = vld [vmem:[#allocation2 + $0x8] sm:$0xf]
      %v4182 = vld [vmem:[#allocation2 + $0xc] sm:$0xf]
      %v4183 = vld [vmem:[#allocation2 + $0x10] sm:$0xf]
      %v4184 = vld [vmem:[#allocation2 + $0x14] sm:$0xf]
      %v4185 = vld [vmem:[#allocation2 + $0x18] sm:$0xf]
      %v4186 = vld [vmem:[#allocation2 + $0x1c] sm:$0xf]
      %v4187 = vld [vmem:[#allocation2 + $0x20] sm:$0xf]
      %v4188 = vld [vmem:[#allocation2 + $0x24] sm:$0xf]
      %v4189 = vld [vmem:[#allocation2 + $0x28] sm:$0xf]
      %v4190 = vld [vmem:[#allocation2 + $0x2c] sm:$0xf]
      %v4191 = vld [vmem:[#allocation2 + $0x30] sm:$0xf]
      %v4192 = vld [vmem:[#allocation2 + $0x34] sm:$0xf]
      %v4193 = vld [vmem:[#allocation2 + $0x38] sm:$0xf]
      %v4194 = vld [vmem:[#allocation2 + $0x3c] sm:$0xf]
      %v4195 = vld [vmem:[#allocation2 + $0x40] sm:$0xf]
      %v4196 = vld [vmem:[#allocation2 + $0x44] sm:$0xf]
      %v4197 = vld [vmem:[#allocation2 + $0x48] sm:$0x1]
      %s4198 = scalar_lea.vmem %s6, 112
      %v4199 = vld [vmem:[%s4198] sm:$0xf]
      %v4200 = vld [vmem:[%s4198 + $0x4] sm:$0xf]
      %v4201 = vld [vmem:[%s4198 + $0x8] sm:$0xf]
      %v4202 = vld [vmem:[%s4198 + $0xc] sm:$0xf]
      %v4221 = vunpack.c.l.b16 %v4180
      %v4222 = vunpack.c.l.b16 %v4181
      %v4223 = vunpack.c.l.b16 %v4182
      %v4224 = vunpack.c.l.b16 %v4183
      %v4225 = vunpack.c.l.b16 %v4184
      %v4226 = vunpack.c.l.b16 %v4185
      %v4227 = vunpack.c.l.b16 %v4186
      %v4228 = vunpack.c.l.b16 %v4187
      %v4229 = vunpack.c.l.b16 %v4188
      %v4230 = vunpack.c.l.b16 %v4189
      %v4231 = vunpack.c.l.b16 %v4190
      %v4232 = vunpack.c.l.b16 %v4191
      %v4233 = vunpack.c.l.b16 %v4192
      %v4234 = vunpack.c.l.b16 %v4193
      %v4235 = vunpack.c.l.b16 %v4194
      %v4236 = vunpack.c.l.b16 %v4195
      %v4237 = vunpack.c.l.b16 %v4196
      %v4238 = vunpack.c.l.b16 %v4197
      %v4239 = vpack.c.b16 %v4222, %v4221
      %v4240 = vpack.c.b16 %v4224, %v4223
      %v4241 = vpack.c.b16 %v4226, %v4225
      %v4242 = vpack.c.b16 %v4228, %v4227
      %v4243 = vpack.c.b16 %v4230, %v4229
      %v4244 = vpack.c.b16 %v4232, %v4231
      %v4245 = vpack.c.b16 %v4234, %v4233
      %v4246 = vpack.c.b16 %v4236, %v4235
      %v4247 = vpack.c.b16 %v4238, %v4237
      %v4249 = vshrl.u32 %v4239, 16
      %v4251 = vshll.u32 %v4239, 16
      %v4253 = vrot.slane %v4251, 1
      %v4254 = vor.u32 %v4249, %v4253
      %v4256 = vshll.u32 %v4240, 16
      %v4258 = vrot.slane %v4256, 1
      %v4259 = vsel %vm785, %v4254, %v4258
      %v4260 = vshrl.u32 %v4240, 16
      %v4262 = vor.u32 %v4260, %v4258
      %v4264 = vshll.u32 %v4241, 16
      %v4266 = vrot.slane %v4264, 1
      %v4267 = vsel %vm785, %v4262, %v4266
      %v4268 = vshrl.u32 %v4241, 16
      %v4270 = vor.u32 %v4268, %v4266
      %v4272 = vshll.u32 %v4242, 16
      %v4274 = vrot.slane %v4272, 1
      %v4275 = vsel %vm785, %v4270, %v4274
      %v4276 = vshrl.u32 %v4242, 16
      %v4278 = vor.u32 %v4276, %v4274
      %v4280 = vshll.u32 %v4243, 16
      %v4282 = vrot.slane %v4280, 1
      %v4283 = vsel %vm785, %v4278, %v4282
      %v4284 = vshrl.u32 %v4243, 16
      %v4286 = vor.u32 %v4284, %v4282
      %v4288 = vshll.u32 %v4244, 16
      %v4290 = vrot.slane %v4288, 1
      %v4291 = vsel %vm785, %v4286, %v4290
      %v4292 = vshrl.u32 %v4244, 16
      %v4294 = vor.u32 %v4292, %v4290
      %v4296 = vshll.u32 %v4245, 16
      %v4298 = vrot.slane %v4296, 1
      %v4299 = vsel %vm785, %v4294, %v4298
      %v4300 = vshrl.u32 %v4245, 16
      %v4302 = vor.u32 %v4300, %v4298
      %v4304 = vshll.u32 %v4246, 16
      %v4306 = vrot.slane %v4304, 1
      %v4307 = vsel %vm785, %v4302, %v4306
      %v4308 = vshrl.u32 %v4246, 16
      %v4310 = vor.u32 %v4308, %v4306
      %v4312 = vshll.u32 %v4247, 16
      %v4314 = vrot.slane %v4312, 1
      %v4315 = vsel %vm785, %v4310, %v4314
      %v4316 = vshrl.u32 %v4247, 16
      %v4318 = vor.u32 %v4316, %v4314
      %v4323 = vunpack.c.l.b16 %v4199
      %v4324 = vunpack.c.l.b16 %v4200
      %v4325 = vunpack.c.l.b16 %v4201
      %v4326 = vunpack.c.l.b16 %v4202
      %v4327 = vpack.c.b16 %v4324, %v4323
      %v4328 = vpack.c.b16 %v4326, %v4325
      %v4332 = vsel %vm2959, %v4259, 0
      %v4335 = vsel %vm2959, %v4267, 0
      %v4338 = vsel %vm2959, %v4275, 0
      %v4341 = vsel %vm2959, %v4283, 0
      %v4344 = vsel %vm2959, %v4291, 0
      %v4347 = vsel %vm2959, %v4299, 0
      %v4350 = vsel %vm2959, %v4307, 0
      %v4353 = vsel %vm2959, %v4315, 0
      %v4356 = vsel %vm2959, %v4318, 0
      %4358 = vmatprep.subr.bf16.mxu0 0
      %4359 = vmatpush1.bf16.msra.mxu0 %v4327
      %4360 = vmatprep.subr.bf16.mxu0 0
      %4361 = vmatpush1.bf16.msra.mxu0 %v4328
      %4362 = vmatprep.subr.bf16.mxu0 0
      %4363 = vmatpush1.bf16.msra.mxu0 0
      %4364 = vmatprep.subr.bf16.mxu0 0
      %4365 = vmatpush1.bf16.msra.mxu0 0
      %4366 = vmatprep.subr.bf16.mxu0 0
      %4367 = vmatpush1.bf16.msra.mxu0 0
      %4368 = vmatprep.subr.bf16.mxu0 0
      %4369 = vmatpush1.bf16.msra.mxu0 0
      %4370 = vmatprep.subr.bf16.mxu0 0
      %4371 = vmatpush1.bf16.msra.mxu0 0
      %4372 = vmatprep.subr.bf16.mxu0 0
      %4373 = vmatpush1.bf16.msra.mxu0 0
      %4374 = vmatprep.subr.bf16.mxu0 0
      %4375 = vmatpush1.bf16.msra.mxu0 0
      %4376 = vmatprep.subr.bf16.mxu0 0
      %4377 = vmatpush1.bf16.msra.mxu0 0
      %4378 = vmatprep.subr.bf16.mxu0 0
      %4379 = vmatpush1.bf16.msra.mxu0 0
      %4380 = vmatprep.subr.bf16.mxu0 0
      %4381 = vmatpush1.bf16.msra.mxu0 0
      %4382 = vmatprep.subr.bf16.mxu0 0
      %4383 = vmatpush1.bf16.msra.mxu0 0
      %4384 = vmatprep.subr.bf16.mxu0 0
      %4385 = vmatpush1.bf16.msra.mxu0 0
      %4386 = vmatprep.subr.bf16.mxu0 0
      %4387 = vmatpush1.bf16.msra.mxu0 0
      %4388 = vmatprep.subr.bf16.mxu0 0
      %4389 = vmatpush1.bf16.msra.mxu0 0
      %4390 = vmatprep.mubr.bf16.mxu0 0
      %4391 = vmatmul.mubr.bf16.gmra.mrb[0].mxu0 %v4332
      %v4392 = vpop.f32.mrb[0].mxu0
      %v4393 = vadd.f32 0.0, %v4392
      %v4394 = vpop.f32.mrb[0].mxu0
      %v4395 = vpop.f32.mrb[0].mxu0
      %v4396 = vadd.f32 0.0, %v4395
      %v4397 = vpop.f32.mrb[0].mxu0
      %4398 = vmatprep.mubr.bf16.mxu0 0
      %4399 = vmatmul.mubr.bf16.gmra.mrb[0].mxu0 %v4335
      %v4400 = vpop.f32.mrb[0].mxu0
      %v4401 = vadd.f32 0.0, %v4400
      %v4402 = vpop.f32.mrb[0].mxu0
      %v4403 = vpop.f32.mrb[0].mxu0
      %v4404 = vadd.f32 0.0, %v4403
      %v4405 = vpop.f32.mrb[0].mxu0
      %4406 = vmatprep.mubr.bf16.mxu0 0
      %4407 = vmatmul.mubr.bf16.gmra.mrb[0].mxu0 %v4338
      %v4408 = vpop.f32.mrb[0].mxu0
      %v4409 = vadd.f32 0.0, %v4408
      %v4410 = vpop.f32.mrb[0].mxu0
      %v4411 = vpop.f32.mrb[0].mxu0
      %v4412 = vadd.f32 0.0, %v4411
      %v4413 = vpop.f32.mrb[0].mxu0
      %4414 = vmatprep.mubr.bf16.mxu0 0
      %4415 = vmatmul.mubr.bf16.gmra.mrb[0].mxu0 %v4341
      %v4416 = vpop.f32.mrb[0].mxu0
      %v4417 = vadd.f32 0.0, %v4416
      %v4418 = vpop.f32.mrb[0].mxu0
      %v4419 = vpop.f32.mrb[0].mxu0
      %v4420 = vadd.f32 0.0, %v4419
      %v4421 = vpop.f32.mrb[0].mxu0
      %4422 = vmatprep.mubr.bf16.mxu0 0
      %4423 = vmatmul.mubr.bf16.gmra.mrb[0].mxu0 %v4344
      %v4424 = vpop.f32.mrb[0].mxu0
      %v4425 = vadd.f32 0.0, %v4424
      %v4426 = vpop.f32.mrb[0].mxu0
      %v4427 = vpop.f32.mrb[0].mxu0
      %v4428 = vadd.f32 0.0, %v4427
      %v4429 = vpop.f32.mrb[0].mxu0
      %4430 = vmatprep.mubr.bf16.mxu0 0
      %4431 = vmatmul.mubr.bf16.gmra.mrb[0].mxu0 %v4347
      %v4432 = vpop.f32.mrb[0].mxu0
      %v4433 = vadd.f32 0.0, %v4432
      %v4434 = vpop.f32.mrb[0].mxu0
      %v4435 = vpop.f32.mrb[0].mxu0
      %v4436 = vadd.f32 0.0, %v4435
      %v4437 = vpop.f32.mrb[0].mxu0
      %4438 = vmatprep.mubr.bf16.mxu0 0
      %4439 = vmatmul.mubr.bf16.gmra.mrb[0].mxu0 %v4350
      %v4440 = vpop.f32.mrb[0].mxu0
      %v4441 = vadd.f32 0.0, %v4440
      %v4442 = vpop.f32.mrb[0].mxu0
      %v4443 = vpop.f32.mrb[0].mxu0
      %v4444 = vadd.f32 0.0, %v4443
      %v4445 = vpop.f32.mrb[0].mxu0
      %4446 = vmatprep.mubr.bf16.mxu0 0
      %4447 = vmatmul.mubr.bf16.gmra.mrb[0].mxu0 %v4353
      %v4448 = vpop.f32.mrb[0].mxu0
      %v4449 = vadd.f32 0.0, %v4448
      %v4450 = vpop.f32.mrb[0].mxu0
      %v4451 = vpop.f32.mrb[0].mxu0
      %v4452 = vadd.f32 0.0, %v4451
      %v4453 = vpop.f32.mrb[0].mxu0
      %4454 = vmatprep.mubr.bf16.mxu0 0
      %4455 = vmatmul.mubr.bf16.gmra.mrb[0].mxu0 %v4356
      %v4456 = vpop.f32.mrb[0].mxu0
      %v4457 = vadd.f32 0.0, %v4456
      %v4458 = vpop.f32.mrb[0].mxu0
      %v4459 = vpop.f32.mrb[0].mxu0
      %v4460 = vpop.f32.mrb[0].mxu0
      %4461 = vdwg.mxu0
      %v4462 = vadd.f32 %v4163, %v4393
      %v4463 = vadd.f32 %v4164, %v4396
      %v4464 = vadd.f32 %v4165, %v4401
      %v4465 = vadd.f32 %v4166, %v4404
      %v4466 = vadd.f32 %v4167, %v4409
      %v4467 = vadd.f32 %v4168, %v4412
      %v4468 = vadd.f32 %v4169, %v4417
      %v4469 = vadd.f32 %v4170, %v4420
      %v4470 = vadd.f32 %v4171, %v4425
      %v4471 = vadd.f32 %v4172, %v4428
      %v4472 = vadd.f32 %v4173, %v4433
      %v4473 = vadd.f32 %v4174, %v4436
      %v4474 = vadd.f32 %v4175, %v4441
      %v4475 = vadd.f32 %v4176, %v4444
      %v4476 = vadd.f32 %v4177, %v4449
      %v4477 = vadd.f32 %v4178, %v4452
      %v4478 = vadd.f32 %v4179, %v4457
      %v4479 = vld [vmem:[#allocation2 + $0x4] sm:$0xe]
      %s4480 = scalar_lea.vmem %s6, 128
      %v4481 = vld [vmem:[%s4480] sm:$0xf]
      %v4482 = vld [vmem:[%s4480 + $0x4] sm:$0xf]
      %v4483 = vld [vmem:[%s4480 + $0x8] sm:$0xf]
      %v4484 = vld [vmem:[%s4480 + $0xc] sm:$0xf]
      %v4486 = vunpack.c.l.b16 %v4479
      %v4487 = vpack.c.b16 %v4222, %v4486
      %v4488 = vrot.slane %v4487, 1
      %v4489 = vrot.slane %v4240, 1
      %v4490 = vsel %vm1122, %v4488, %v4489
      %v4491 = vrot.slane %v4241, 1
      %v4492 = vsel %vm1122, %v4489, %v4491
      %v4493 = vrot.slane %v4242, 1
      %v4494 = vsel %vm1122, %v4491, %v4493
      %v4495 = vrot.slane %v4243, 1
      %v4496 = vsel %vm1122, %v4493, %v4495
      %v4497 = vrot.slane %v4244, 1
      %v4498 = vsel %vm1122, %v4495, %v4497
      %v4499 = vrot.slane %v4245, 1
      %v4500 = vsel %vm1122, %v4497, %v4499
      %v4501 = vrot.slane %v4246, 1
      %v4502 = vsel %vm1122, %v4499, %v4501
      %v4503 = vrot.slane %v4247, 1
      %v4504 = vsel %vm1122, %v4501, %v4503
      %v4509 = vunpack.c.l.b16 %v4481
      %v4510 = vunpack.c.l.b16 %v4482
      %v4511 = vunpack.c.l.b16 %v4483
      %v4512 = vunpack.c.l.b16 %v4484
      %v4513 = vpack.c.b16 %v4510, %v4509
      %v4514 = vpack.c.b16 %v4512, %v4511
      %v4518 = vsel %vm2959, %v4490, 0
      %v4521 = vsel %vm2959, %v4492, 0
      %v4524 = vsel %vm2959, %v4494, 0
      %v4527 = vsel %vm2959, %v4496, 0
      %v4530 = vsel %vm2959, %v4498, 0
      %v4533 = vsel %vm2959, %v4500, 0
      %v4536 = vsel %vm2959, %v4502, 0
      %v4539 = vsel %vm2959, %v4504, 0
      %v4542 = vsel %vm2959, %v4503, 0
      %4544 = vmatprep.subr.bf16.mxu0 0
      %4545 = vmatpush1.bf16.msra.mxu0 %v4513
      %4546 = vmatprep.subr.bf16.mxu0 0
      %4547 = vmatpush1.bf16.msra.mxu0 %v4514
      %4548 = vmatprep.subr.bf16.mxu0 0
      %4549 = vmatpush1.bf16.msra.mxu0 0
      %4550 = vmatprep.subr.bf16.mxu0 0
      %4551 = vmatpush1.bf16.msra.mxu0 0
      %4552 = vmatprep.subr.bf16.mxu0 0
      %4553 = vmatpush1.bf16.msra.mxu0 0
      %4554 = vmatprep.subr.bf16.mxu0 0
      %4555 = vmatpush1.bf16.msra.mxu0 0
      %4556 = vmatprep.subr.bf16.mxu0 0
      %4557 = vmatpush1.bf16.msra.mxu0 0
      %4558 = vmatprep.subr.bf16.mxu0 0
      %4559 = vmatpush1.bf16.msra.mxu0 0
      %4560 = vmatprep.subr.bf16.mxu0 0
      %4561 = vmatpush1.bf16.msra.mxu0 0
      %4562 = vmatprep.subr.bf16.mxu0 0
      %4563 = vmatpush1.bf16.msra.mxu0 0
      %4564 = vmatprep.subr.bf16.mxu0 0
      %4565 = vmatpush1.bf16.msra.mxu0 0
      %4566 = vmatprep.subr.bf16.mxu0 0
      %4567 = vmatpush1.bf16.msra.mxu0 0
      %4568 = vmatprep.subr.bf16.mxu0 0
      %4569 = vmatpush1.bf16.msra.mxu0 0
      %4570 = vmatprep.subr.bf16.mxu0 0
      %4571 = vmatpush1.bf16.msra.mxu0 0
      %4572 = vmatprep.subr.bf16.mxu0 0
      %4573 = vmatpush1.bf16.msra.mxu0 0
      %4574 = vmatprep.subr.bf16.mxu0 0
      %4575 = vmatpush1.bf16.msra.mxu0 0
      %4576 = vmatprep.mubr.bf16.mxu0 0
      %4577 = vmatmul.mubr.bf16.gmra.mrb[0].mxu0 %v4518
      %v4578 = vpop.f32.mrb[0].mxu0
      %v4579 = vadd.f32 0.0, %v4578
      %v4580 = vpop.f32.mrb[0].mxu0
      %v4581 = vpop.f32.mrb[0].mxu0
      %v4582 = vadd.f32 0.0, %v4581
      %v4583 = vpop.f32.mrb[0].mxu0
      %4584 = vmatprep.mubr.bf16.mxu0 0
      %4585 = vmatmul.mubr.bf16.gmra.mrb[0].mxu0 %v4521
      %v4586 = vpop.f32.mrb[0].mxu0
      %v4587 = vadd.f32 0.0, %v4586
      %v4588 = vpop.f32.mrb[0].mxu0
      %v4589 = vpop.f32.mrb[0].mxu0
      %v4590 = vadd.f32 0.0, %v4589
      %v4591 = vpop.f32.mrb[0].mxu0
      %4592 = vmatprep.mubr.bf16.mxu0 0
      %4593 = vmatmul.mubr.bf16.gmra.mrb[0].mxu0 %v4524
      %v4594 = vpop.f32.mrb[0].mxu0
      %v4595 = vadd.f32 0.0, %v4594
      %v4596 = vpop.f32.mrb[0].mxu0
      %v4597 = vpop.f32.mrb[0].mxu0
      %v4598 = vadd.f32 0.0, %v4597
      %v4599 = vpop.f32.mrb[0].mxu0
      %4600 = vmatprep.mubr.bf16.mxu0 0
      %4601 = vmatmul.mubr.bf16.gmra.mrb[0].mxu0 %v4527
      %v4602 = vpop.f32.mrb[0].mxu0
      %v4603 = vadd.f32 0.0, %v4602
      %v4604 = vpop.f32.mrb[0].mxu0
      %v4605 = vpop.f32.mrb[0].mxu0
      %v4606 = vadd.f32 0.0, %v4605
      %v4607 = vpop.f32.mrb[0].mxu0
      %4608 = vmatprep.mubr.bf16.mxu0 0
      %4609 = vmatmul.mubr.bf16.gmra.mrb[0].mxu0 %v4530
      %v4610 = vpop.f32.mrb[0].mxu0
      %v4611 = vadd.f32 0.0, %v4610
      %v4612 = vpop.f32.mrb[0].mxu0
      %v4613 = vpop.f32.mrb[0].mxu0
      %v4614 = vadd.f32 0.0, %v4613
      %v4615 = vpop.f32.mrb[0].mxu0
      %4616 = vmatprep.mubr.bf16.mxu0 0
      %4617 = vmatmul.mubr.bf16.gmra.mrb[0].mxu0 %v4533
      %v4618 = vpop.f32.mrb[0].mxu0
      %v4619 = vadd.f32 0.0, %v4618
      %v4620 = vpop.f32.mrb[0].mxu0
      %v4621 = vpop.f32.mrb[0].mxu0
      %v4622 = vadd.f32 0.0, %v4621
      %v4623 = vpop.f32.mrb[0].mxu0
      %4624 = vmatprep.mubr.bf16.mxu0 0
      %4625 = vmatmul.mubr.bf16.gmra.mrb[0].mxu0 %v4536
      %v4626 = vpop.f32.mrb[0].mxu0
      %v4627 = vadd.f32 0.0, %v4626
      %v4628 = vpop.f32.mrb[0].mxu0
      %v4629 = vpop.f32.mrb[0].mxu0
      %v4630 = vadd.f32 0.0, %v4629
      %v4631 = vpop.f32.mrb[0].mxu0
      %4632 = vmatprep.mubr.bf16.mxu0 0
      %4633 = vmatmul.mubr.bf16.gmra.mrb[0].mxu0 %v4539
      %v4634 = vpop.f32.mrb[0].mxu0
      %v4635 = vadd.f32 0.0, %v4634
      %v4636 = vpop.f32.mrb[0].mxu0
      %v4637 = vpop.f32.mrb[0].mxu0
      %v4638 = vadd.f32 0.0, %v4637
      %v4639 = vpop.f32.mrb[0].mxu0
      %4640 = vmatprep.mubr.bf16.mxu0 0
      %4641 = vmatmul.mubr.bf16.gmra.mrb[0].mxu0 %v4542
      %v4642 = vpop.f32.mrb[0].mxu0
      %v4643 = vadd.f32 0.0, %v4642
      %v4644 = vpop.f32.mrb[0].mxu0
      %v4645 = vpop.f32.mrb[0].mxu0
      %v4646 = vpop.f32.mrb[0].mxu0
      %4647 = vdwg.mxu0
      %v4648 = vadd.f32 %v4462, %v4579
      %v4649 = vadd.f32 %v4463, %v4582
      %v4650 = vadd.f32 %v4464, %v4587
      %v4651 = vadd.f32 %v4465, %v4590
      %v4652 = vadd.f32 %v4466, %v4595
      %v4653 = vadd.f32 %v4467, %v4598
      %v4654 = vadd.f32 %v4468, %v4603
      %v4655 = vadd.f32 %v4469, %v4606
      %v4656 = vadd.f32 %v4470, %v4611
      %v4657 = vadd.f32 %v4471, %v4614
      %v4658 = vadd.f32 %v4472, %v4619
      %v4659 = vadd.f32 %v4473, %v4622
      %v4660 = vadd.f32 %v4474, %v4627
      %v4661 = vadd.f32 %v4475, %v4630
      %v4662 = vadd.f32 %v4476, %v4635
      %v4663 = vadd.f32 %v4477, %v4638
      %v4664 = vadd.f32 %v4478, %v4643
      %v4666 = vlaneseq
      %v4667 = vshrl.u32 %v4666, 7
      %v4668 = vsub.s32 0, %v4667
      %v4669 = vrot.slane %v2802, %v4668
      %v4671 = vmul.f32 %v4648, %v4669
      %v4672 = vmul.f32 %v4649, %v4669
      %v4673 = vmul.f32 %v4650, %v4669
      %v4674 = vmul.f32 %v4651, %v4669
      %v4675 = vmul.f32 %v4652, %v4669
      %v4676 = vmul.f32 %v4653, %v4669
      %v4677 = vmul.f32 %v4654, %v4669
      %v4678 = vmul.f32 %v4655, %v4669
      %v4679 = vmul.f32 %v4656, %v4669
      %v4680 = vmul.f32 %v4657, %v4669
      %v4681 = vmul.f32 %v4658, %v4669
      %v4682 = vmul.f32 %v4659, %v4669
      %v4683 = vmul.f32 %v4660, %v4669
      %v4684 = vmul.f32 %v4661, %v4669
      %v4685 = vmul.f32 %v4662, %v4669
      %v4686 = vmul.f32 %v4663, %v4669
      %v4687 = vmul.f32 %v4664, %v4669
      %v4689 = vlaneseq
      %v4690 = vshrl.u32 %v4689, 7
      %v4691 = vsub.s32 0, %v4690
      %v4692 = vrot.slane %v2803, %v4691
      %v4694 = vadd.f32 %v4671, %v4692
      %v4695 = vadd.f32 %v4672, %v4692
      %v4696 = vadd.f32 %v4673, %v4692
      %v4697 = vadd.f32 %v4674, %v4692
      %v4698 = vadd.f32 %v4675, %v4692
      %v4699 = vadd.f32 %v4676, %v4692
      %v4700 = vadd.f32 %v4677, %v4692
      %v4701 = vadd.f32 %v4678, %v4692
      %v4702 = vadd.f32 %v4679, %v4692
      %v4703 = vadd.f32 %v4680, %v4692
      %v4704 = vadd.f32 %v4681, %v4692
      %v4705 = vadd.f32 %v4682, %v4692
      %v4706 = vadd.f32 %v4683, %v4692
      %v4707 = vadd.f32 %v4684, %v4692
      %v4708 = vadd.f32 %v4685, %v4692
      %v4709 = vadd.f32 %v4686, %v4692
      %v4710 = vadd.f32 %v4687, %v4692
      %v4711 = vmax.f32 %v4694, 0.0
      %v4712 = vmax.f32 %v4695, 0.0
      %v4713 = vmax.f32 %v4696, 0.0
      %v4714 = vmax.f32 %v4697, 0.0
      %v4715 = vmax.f32 %v4698, 0.0
      %v4716 = vmax.f32 %v4699, 0.0
      %v4717 = vmax.f32 %v4700, 0.0
      %v4718 = vmax.f32 %v4701, 0.0
      %v4719 = vmax.f32 %v4702, 0.0
      %v4720 = vmax.f32 %v4703, 0.0
      %v4721 = vmax.f32 %v4704, 0.0
      %v4722 = vmax.f32 %v4705, 0.0
      %v4723 = vmax.f32 %v4706, 0.0
      %v4724 = vmax.f32 %v4707, 0.0
      %v4725 = vmax.f32 %v4708, 0.0
      %v4726 = vmax.f32 %v4709, 0.0
      %v4727 = vmax.f32 %v4710, 0.0
      %v4728 = vmul.f32 %v4711, %v2439
      %v4729 = vmul.f32 %v4712, %v2444
      %v4730 = vmul.f32 %v4713, %v2449
      %v4731 = vmul.f32 %v4714, %v2454
      %v4732 = vmul.f32 %v4715, %v2459
      %v4733 = vmul.f32 %v4716, %v2464
      %v4734 = vmul.f32 %v4717, %v2469
      %v4735 = vmul.f32 %v4718, %v2474
      %v4736 = vmul.f32 %v4719, %v2479
      %v4737 = vmul.f32 %v4720, %v2484
      %v4738 = vmul.f32 %v4721, %v2489
      %v4739 = vmul.f32 %v4722, %v2494
      %v4740 = vmul.f32 %v4723, %v2499
      %v4741 = vmul.f32 %v4724, %v2504
      %v4742 = vmul.f32 %v4725, %v2509
      %v4743 = vmul.f32 %v4726, %v2514
      %v4744 = vmul.f32 %v4727, %v2519
      %v4745 = vpack.c.bf16 %v4729, %v4728
      %v4746 = vpack.c.bf16 %v4731, %v4730
      %v4747 = vpack.c.bf16 %v4733, %v4732
      %v4748 = vpack.c.bf16 %v4735, %v4734
      %v4749 = vpack.c.bf16 %v4737, %v4736
      %v4750 = vpack.c.bf16 %v4739, %v4738
      %v4751 = vpack.c.bf16 %v4741, %v4740
      %v4752 = vpack.c.bf16 %v4743, %v4742
      %v4753 = vpack.c.bf16 %v4744, %v4744
      %v4763 = vunpack.c.l.b16 %v4745
      %v4764 = vunpack.c.h.b16 %v4745
      %v4765 = vunpack.c.l.b16 %v4746
      %v4766 = vunpack.c.h.b16 %v4746
      %v4767 = vunpack.c.l.b16 %v4747
      %v4768 = vunpack.c.h.b16 %v4747
      %v4769 = vunpack.c.l.b16 %v4748
      %v4770 = vunpack.c.h.b16 %v4748
      %v4771 = vunpack.c.l.b16 %v4749
      %v4772 = vunpack.c.h.b16 %v4749
      %v4773 = vunpack.c.l.b16 %v4750
      %v4774 = vunpack.c.h.b16 %v4750
      %v4775 = vunpack.c.l.b16 %v4751
      %v4776 = vunpack.c.h.b16 %v4751
      %v4777 = vunpack.c.l.b16 %v4752
      %v4778 = vunpack.c.h.b16 %v4752
      %v4779 = vunpack.c.l.b16 %v4753
      %v4780 = vpack.c.b16 %v4763, %v4763
      %v4781 = vpack.c.b16 %v4764, %v4764
      %v4782 = vpack.c.b16 %v4765, %v4765
      %v4783 = vpack.c.b16 %v4766, %v4766
      %v4784 = vpack.c.b16 %v4767, %v4767
      %v4785 = vpack.c.b16 %v4768, %v4768
      %v4786 = vpack.c.b16 %v4769, %v4769
      %v4787 = vpack.c.b16 %v4770, %v4770
      %v4788 = vpack.c.b16 %v4771, %v4771
      %v4789 = vpack.c.b16 %v4772, %v4772
      %v4790 = vpack.c.b16 %v4773, %v4773
      %v4791 = vpack.c.b16 %v4774, %v4774
      %v4792 = vpack.c.b16 %v4775, %v4775
      %v4793 = vpack.c.b16 %v4776, %v4776
      %v4794 = vpack.c.b16 %v4777, %v4777
      %v4795 = vpack.c.b16 %v4778, %v4778
      %v4796 = vpack.c.b16 %v4779, %v4779
      %v4798 = vshrl.u32 %v4780, 16
      %v4800 = vrot.slane %v4798, 5
      %v4801 = vshll.u32 %v4780, 16
      %v4803 = vrot.slane %v4801, 6
      %v4804 = vor.u32 %v4800, %v4803
      %v4805 = vrot.slane %v4804, 4
      %v4807 = vshrl.u32 %v4781, 16
      %v4809 = vrot.slane %v4807, 5
      %v4810 = vshll.u32 %v4781, 16
      %v4812 = vrot.slane %v4810, 6
      %v4813 = vor.u32 %v4809, %v4812
      %v4814 = vsel %vm2591, %v4805, %v4813
      %v4815 = vrot.slane %v4813, 4
      %v4817 = vshrl.u32 %v4782, 16
      %v4819 = vrot.slane %v4817, 5
      %v4820 = vshll.u32 %v4782, 16
      %v4822 = vrot.slane %v4820, 6
      %v4823 = vor.u32 %v4819, %v4822
      %v4824 = vsel %vm2591, %v4815, %v4823
      %v4825 = vrot.slane %v4823, 4
      %v4827 = vshrl.u32 %v4783, 16
      %v4829 = vrot.slane %v4827, 5
      %v4830 = vshll.u32 %v4783, 16
      %v4832 = vrot.slane %v4830, 6
      %v4833 = vor.u32 %v4829, %v4832
      %v4834 = vsel %vm2591, %v4825, %v4833
      %v4835 = vrot.slane %v4833, 4
      %v4837 = vshrl.u32 %v4784, 16
      %v4839 = vrot.slane %v4837, 5
      %v4840 = vshll.u32 %v4784, 16
      %v4842 = vrot.slane %v4840, 6
      %v4843 = vor.u32 %v4839, %v4842
      %v4844 = vsel %vm2591, %v4835, %v4843
      %v4845 = vrot.slane %v4843, 4
      %v4847 = vshrl.u32 %v4785, 16
      %v4849 = vrot.slane %v4847, 5
      %v4850 = vshll.u32 %v4785, 16
      %v4852 = vrot.slane %v4850, 6
      %v4853 = vor.u32 %v4849, %v4852
      %v4854 = vsel %vm2591, %v4845, %v4853
      %v4855 = vrot.slane %v4853, 4
      %v4857 = vshrl.u32 %v4786, 16
      %v4859 = vrot.slane %v4857, 5
      %v4860 = vshll.u32 %v4786, 16
      %v4862 = vrot.slane %v4860, 6
      %v4863 = vor.u32 %v4859, %v4862
      %v4864 = vsel %vm2591, %v4855, %v4863
      %v4865 = vrot.slane %v4863, 4
      %v4867 = vshrl.u32 %v4787, 16
      %v4869 = vrot.slane %v4867, 5
      %v4870 = vshll.u32 %v4787, 16
      %v4872 = vrot.slane %v4870, 6
      %v4873 = vor.u32 %v4869, %v4872
      %v4874 = vsel %vm2591, %v4865, %v4873
      %v4875 = vrot.slane %v4873, 4
      %v4877 = vshrl.u32 %v4788, 16
      %v4879 = vrot.slane %v4877, 5
      %v4880 = vshll.u32 %v4788, 16
      %v4882 = vrot.slane %v4880, 6
      %v4883 = vor.u32 %v4879, %v4882
      %v4884 = vsel %vm2591, %v4875, %v4883
      %v4885 = vrot.slane %v4883, 4
      %v4887 = vshrl.u32 %v4789, 16
      %v4889 = vrot.slane %v4887, 5
      %v4890 = vshll.u32 %v4789, 16
      %v4892 = vrot.slane %v4890, 6
      %v4893 = vor.u32 %v4889, %v4892
      %v4894 = vsel %vm2591, %v4885, %v4893
      %v4895 = vrot.slane %v4893, 4
      %v4897 = vshrl.u32 %v4790, 16
      %v4899 = vrot.slane %v4897, 5
      %v4900 = vshll.u32 %v4790, 16
      %v4902 = vrot.slane %v4900, 6
      %v4903 = vor.u32 %v4899, %v4902
      %v4904 = vsel %vm2591, %v4895, %v4903
      %v4905 = vrot.slane %v4903, 4
      %v4907 = vshrl.u32 %v4791, 16
      %v4909 = vrot.slane %v4907, 5
      %v4910 = vshll.u32 %v4791, 16
      %v4912 = vrot.slane %v4910, 6
      %v4913 = vor.u32 %v4909, %v4912
      %v4914 = vsel %vm2591, %v4905, %v4913
      %v4915 = vrot.slane %v4913, 4
      %v4917 = vshrl.u32 %v4792, 16
      %v4919 = vrot.slane %v4917, 5
      %v4920 = vshll.u32 %v4792, 16
      %v4922 = vrot.slane %v4920, 6
      %v4923 = vor.u32 %v4919, %v4922
      %v4924 = vsel %vm2591, %v4915, %v4923
      %v4925 = vrot.slane %v4923, 4
      %v4927 = vshrl.u32 %v4793, 16
      %v4929 = vrot.slane %v4927, 5
      %v4930 = vshll.u32 %v4793, 16
      %v4932 = vrot.slane %v4930, 6
      %v4933 = vor.u32 %v4929, %v4932
      %v4934 = vsel %vm2591, %v4925, %v4933
      %v4935 = vrot.slane %v4933, 4
      %v4937 = vshrl.u32 %v4794, 16
      %v4939 = vrot.slane %v4937, 5
      %v4940 = vshll.u32 %v4794, 16
      %v4942 = vrot.slane %v4940, 6
      %v4943 = vor.u32 %v4939, %v4942
      %v4944 = vsel %vm2591, %v4935, %v4943
      %v4945 = vrot.slane %v4943, 4
      %v4947 = vshrl.u32 %v4795, 16
      %v4949 = vrot.slane %v4947, 5
      %v4950 = vshll.u32 %v4795, 16
      %v4952 = vrot.slane %v4950, 6
      %v4953 = vor.u32 %v4949, %v4952
      %v4954 = vsel %vm2591, %v4945, %v4953
      %v4955 = vrot.slane %v4953, 4
      %v4957 = vshrl.u32 %v4796, 16
      %v4959 = vrot.slane %v4957, 5
      %v4960 = vshll.u32 %v4796, 16
      %v4962 = vrot.slane %v4960, 6
      %v4963 = vor.u32 %v4959, %v4962
      %v4964 = vsel %vm2591, %v4955, %v4963
      %v4965 = vrot.slane %v4963, 4
      %v4984 = vsel %vm710, %v4804, %v3413
      %4985 = vst [vmem:[#allocation2] sm:$0xc] %v4984
      %4986 = vst.msk [vmem:[#allocation2 + $0x4] sm:$0xf] %vm2782, %v4814
      %4987 = vst.msk [vmem:[#allocation2 + $0x8] sm:$0xf] %vm2782, %v4824
      %4988 = vst.msk [vmem:[#allocation2 + $0xc] sm:$0xf] %vm2782, %v4834
      %4989 = vst.msk [vmem:[#allocation2 + $0x10] sm:$0xf] %vm2782, %v4844
      %4990 = vst.msk [vmem:[#allocation2 + $0x14] sm:$0xf] %vm2782, %v4854
      %4991 = vst.msk [vmem:[#allocation2 + $0x18] sm:$0xf] %vm2782, %v4864
      %4992 = vst.msk [vmem:[#allocation2 + $0x1c] sm:$0xf] %vm2782, %v4874
      %4993 = vst.msk [vmem:[#allocation2 + $0x20] sm:$0xf] %vm2782, %v4884
      %4994 = vst.msk [vmem:[#allocation2 + $0x24] sm:$0xf] %vm2782, %v4894
      %4995 = vst.msk [vmem:[#allocation2 + $0x28] sm:$0xf] %vm2782, %v4904
      %4996 = vst.msk [vmem:[#allocation2 + $0x2c] sm:$0xf] %vm2782, %v4914
      %4997 = vst.msk [vmem:[#allocation2 + $0x30] sm:$0xf] %vm2782, %v4924
      %4998 = vst.msk [vmem:[#allocation2 + $0x34] sm:$0xf] %vm2782, %v4934
      %4999 = vst.msk [vmem:[#allocation2 + $0x38] sm:$0xf] %vm2782, %v4944
      %5000 = vst.msk [vmem:[#allocation2 + $0x3c] sm:$0xf] %vm2782, %v4954
      %5001 = vst.msk [vmem:[#allocation2 + $0x40] sm:$0xf] %vm2782, %v4964
      %v5002 = vld [vmem:[#allocation2 + $0x44] sm:$0x7]
      %v5003 = vsel %vm704, %v4965, %v5002
      %5004 = vst [vmem:[#allocation2 + $0x44] sm:$0x7] %v5003
      %v5005 = vld [vmem:[%s10] sm:$0x1]
      %v5006 = vld [vmem:[%s11] sm:$0x1]
      %v5007 = vld [vmem:[#allocation2] sm:$0xf]
      %v5008 = vld [vmem:[#allocation2 + $0x4] sm:$0xf]
      %v5009 = vld [vmem:[#allocation2 + $0x8] sm:$0xf]
      %v5010 = vld [vmem:[#allocation2 + $0xc] sm:$0xf]
      %v5011 = vld [vmem:[#allocation2 + $0x10] sm:$0xf]
      %v5012 = vld [vmem:[#allocation2 + $0x14] sm:$0xf]
      %v5013 = vld [vmem:[#allocation2 + $0x18] sm:$0xf]
      %v5014 = vld [vmem:[#allocation2 + $0x1c] sm:$0xf]
      %v5015 = vld [vmem:[#allocation2 + $0x20] sm:$0xf]
      %v5016 = vld [vmem:[#allocation2 + $0x24] sm:$0xf]
      %v5017 = vld [vmem:[#allocation2 + $0x28] sm:$0xf]
      %v5018 = vld [vmem:[#allocation2 + $0x2c] sm:$0xf]
      %v5019 = vld [vmem:[#allocation2 + $0x30] sm:$0xf]
      %v5020 = vld [vmem:[#allocation2 + $0x34] sm:$0xf]
      %v5021 = vld [vmem:[#allocation2 + $0x38] sm:$0xf]
      %v5022 = vld [vmem:[#allocation2 + $0x3c] sm:$0xf]
      %v5023 = vld [vmem:[#allocation2 + $0x40] sm:$0xf]
      %v5024 = vld [vmem:[%s9] sm:$0xf]
      %v5025 = vld [vmem:[%s9 + $0x4] sm:$0xf]
      %v5026 = vld [vmem:[%s9 + $0x8] sm:$0xf]
      %v5027 = vld [vmem:[%s9 + $0xc] sm:$0xf]
      %v5028 = vld [vmem:[#allocation2 + $0x44] sm:$0x1]
      %s5029 = scalar_lea.vmem %s9, 16
      %v5030 = vld [vmem:[%s5029] sm:$0xf]
      %v5031 = vld [vmem:[%s5029 + $0x4] sm:$0xf]
      %v5032 = vld [vmem:[%s5029 + $0x8] sm:$0xf]
      %v5033 = vld [vmem:[%s5029 + $0xc] sm:$0xf]
      %v5052 = vunpack.c.l.b16 %v5007
      %v5053 = vunpack.c.l.b16 %v5008
      %v5054 = vunpack.c.l.b16 %v5009
      %v5055 = vunpack.c.l.b16 %v5010
      %v5056 = vunpack.c.l.b16 %v5011
      %v5057 = vunpack.c.l.b16 %v5012
      %v5058 = vunpack.c.l.b16 %v5013
      %v5059 = vunpack.c.l.b16 %v5014
      %v5060 = vunpack.c.l.b16 %v5015
      %v5061 = vunpack.c.l.b16 %v5016
      %v5062 = vunpack.c.l.b16 %v5017
      %v5063 = vunpack.c.l.b16 %v5018
      %v5064 = vunpack.c.l.b16 %v5019
      %v5065 = vunpack.c.l.b16 %v5020
      %v5066 = vunpack.c.l.b16 %v5021
      %v5067 = vunpack.c.l.b16 %v5022
      %v5068 = vunpack.c.l.b16 %v5023
      %v5069 = vunpack.c.l.b16 %v5028
      %v5070 = vpack.c.b16 %v5053, %v5052
      %v5071 = vpack.c.b16 %v5055, %v5054
      %v5072 = vpack.c.b16 %v5057, %v5056
      %v5073 = vpack.c.b16 %v5059, %v5058
      %v5074 = vpack.c.b16 %v5061, %v5060
      %v5075 = vpack.c.b16 %v5063, %v5062
      %v5076 = vpack.c.b16 %v5065, %v5064
      %v5077 = vpack.c.b16 %v5067, %v5066
      %v5078 = vpack.c.b16 %v5069, %v5068
      %v5080 = vshrl.u32 %v5070, 16
      %v5082 = vshll.u32 %v5070, 16
      %v5084 = vrot.slane %v5082, 1
      %v5085 = vor.u32 %v5080, %v5084
      %v5087 = vshll.u32 %v5071, 16
      %v5089 = vrot.slane %v5087, 1
      %v5090 = vsel %vm785, %v5085, %v5089
      %v5091 = vshrl.u32 %v5071, 16
      %v5093 = vor.u32 %v5091, %v5089
      %v5095 = vshll.u32 %v5072, 16
      %v5097 = vrot.slane %v5095, 1
      %v5098 = vsel %vm785, %v5093, %v5097
      %v5099 = vshrl.u32 %v5072, 16
      %v5101 = vor.u32 %v5099, %v5097
      %v5103 = vshll.u32 %v5073, 16
      %v5105 = vrot.slane %v5103, 1
      %v5106 = vsel %vm785, %v5101, %v5105
      %v5107 = vshrl.u32 %v5073, 16
      %v5109 = vor.u32 %v5107, %v5105
      %v5111 = vshll.u32 %v5074, 16
      %v5113 = vrot.slane %v5111, 1
      %v5114 = vsel %vm785, %v5109, %v5113
      %v5115 = vshrl.u32 %v5074, 16
      %v5117 = vor.u32 %v5115, %v5113
      %v5119 = vshll.u32 %v5075, 16
      %v5121 = vrot.slane %v5119, 1
      %v5122 = vsel %vm785, %v5117, %v5121
      %v5123 = vshrl.u32 %v5075, 16
      %v5125 = vor.u32 %v5123, %v5121
      %v5127 = vshll.u32 %v5076, 16
      %v5129 = vrot.slane %v5127, 1
      %v5130 = vsel %vm785, %v5125, %v5129
      %v5131 = vshrl.u32 %v5076, 16
      %v5133 = vor.u32 %v5131, %v5129
      %v5135 = vshll.u32 %v5077, 16
      %v5137 = vrot.slane %v5135, 1
      %v5138 = vsel %vm785, %v5133, %v5137
      %v5139 = vshrl.u32 %v5077, 16
      %v5141 = vor.u32 %v5139, %v5137
      %v5143 = vshll.u32 %v5078, 16
      %v5145 = vrot.slane %v5143, 1
      %v5146 = vsel %vm785, %v5141, %v5145
      %v5147 = vshrl.u32 %v5078, 16
      %v5149 = vor.u32 %v5147, %v5145
      %v5154 = vunpack.c.l.b16 %v5030
      %v5155 = vunpack.c.l.b16 %v5031
      %v5156 = vunpack.c.l.b16 %v5032
      %v5157 = vunpack.c.l.b16 %v5033
      %v5158 = vpack.c.b16 %v5155, %v5154
      %v5159 = vpack.c.b16 %v5157, %v5156
      %v5163 = vsel %vm2959, %v5090, 0
      %v5166 = vsel %vm2959, %v5098, 0
      %v5169 = vsel %vm2959, %v5106, 0
      %v5172 = vsel %vm2959, %v5114, 0
      %v5175 = vsel %vm2959, %v5122, 0
      %v5178 = vsel %vm2959, %v5130, 0
      %v5181 = vsel %vm2959, %v5138, 0
      %v5184 = vsel %vm2959, %v5146, 0
      %v5187 = vsel %vm2959, %v5149, 0
      %5189 = vmatprep.subr.bf16.mxu0 0
      %5190 = vmatpush1.bf16.msra.mxu0 %v5158
      %5191 = vmatprep.subr.bf16.mxu0 0
      %5192 = vmatpush1.bf16.msra.mxu0 %v5159
      %5193 = vmatprep.subr.bf16.mxu0 0
      %5194 = vmatpush1.bf16.msra.mxu0 0
      %5195 = vmatprep.subr.bf16.mxu0 0
      %5196 = vmatpush1.bf16.msra.mxu0 0
      %5197 = vmatprep.subr.bf16.mxu0 0
      %5198 = vmatpush1.bf16.msra.mxu0 0
      %5199 = vmatprep.subr.bf16.mxu0 0
      %5200 = vmatpush1.bf16.msra.mxu0 0
      %5201 = vmatprep.subr.bf16.mxu0 0
      %5202 = vmatpush1.bf16.msra.mxu0 0
      %5203 = vmatprep.subr.bf16.mxu0 0
      %5204 = vmatpush1.bf16.msra.mxu0 0
      %5205 = vmatprep.subr.bf16.mxu0 0
      %5206 = vmatpush1.bf16.msra.mxu0 0
      %5207 = vmatprep.subr.bf16.mxu0 0
      %5208 = vmatpush1.bf16.msra.mxu0 0
      %5209 = vmatprep.subr.bf16.mxu0 0
      %5210 = vmatpush1.bf16.msra.mxu0 0
      %5211 = vmatprep.subr.bf16.mxu0 0
      %5212 = vmatpush1.bf16.msra.mxu0 0
      %5213 = vmatprep.subr.bf16.mxu0 0
      %5214 = vmatpush1.bf16.msra.mxu0 0
      %5215 = vmatprep.subr.bf16.mxu0 0
      %5216 = vmatpush1.bf16.msra.mxu0 0
      %5217 = vmatprep.subr.bf16.mxu0 0
      %5218 = vmatpush1.bf16.msra.mxu0 0
      %5219 = vmatprep.subr.bf16.mxu0 0
      %5220 = vmatpush1.bf16.msra.mxu0 0
      %5221 = vmatprep.mubr.bf16.mxu0 0
      %5222 = vmatmul.mubr.bf16.gmra.mrb[0].mxu0 %v5163
      %v5223 = vpop.f32.mrb[0].mxu0
      %v5224 = vadd.f32 0.0, %v5223
      %v5225 = vpop.f32.mrb[0].mxu0
      %v5226 = vpop.f32.mrb[0].mxu0
      %v5227 = vadd.f32 0.0, %v5226
      %v5228 = vpop.f32.mrb[0].mxu0
      %5229 = vmatprep.mubr.bf16.mxu0 0
      %5230 = vmatmul.mubr.bf16.gmra.mrb[0].mxu0 %v5166
      %v5231 = vpop.f32.mrb[0].mxu0
      %v5232 = vadd.f32 0.0, %v5231
      %v5233 = vpop.f32.mrb[0].mxu0
      %v5234 = vpop.f32.mrb[0].mxu0
      %v5235 = vadd.f32 0.0, %v5234
      %v5236 = vpop.f32.mrb[0].mxu0
      %5237 = vmatprep.mubr.bf16.mxu0 0
      %5238 = vmatmul.mubr.bf16.gmra.mrb[0].mxu0 %v5169
      %v5239 = vpop.f32.mrb[0].mxu0
      %v5240 = vadd.f32 0.0, %v5239
      %v5241 = vpop.f32.mrb[0].mxu0
      %v5242 = vpop.f32.mrb[0].mxu0
      %v5243 = vadd.f32 0.0, %v5242
      %v5244 = vpop.f32.mrb[0].mxu0
      %5245 = vmatprep.mubr.bf16.mxu0 0
      %5246 = vmatmul.mubr.bf16.gmra.mrb[0].mxu0 %v5172
      %v5247 = vpop.f32.mrb[0].mxu0
      %v5248 = vadd.f32 0.0, %v5247
      %v5249 = vpop.f32.mrb[0].mxu0
      %v5250 = vpop.f32.mrb[0].mxu0
      %v5251 = vadd.f32 0.0, %v5250
      %v5252 = vpop.f32.mrb[0].mxu0
      %5253 = vmatprep.mubr.bf16.mxu0 0
      %5254 = vmatmul.mubr.bf16.gmra.mrb[0].mxu0 %v5175
      %v5255 = vpop.f32.mrb[0].mxu0
      %v5256 = vadd.f32 0.0, %v5255
      %v5257 = vpop.f32.mrb[0].mxu0
      %v5258 = vpop.f32.mrb[0].mxu0
      %v5259 = vadd.f32 0.0, %v5258
      %v5260 = vpop.f32.mrb[0].mxu0
      %5261 = vmatprep.mubr.bf16.mxu0 0
      %5262 = vmatmul.mubr.bf16.gmra.mrb[0].mxu0 %v5178
      %v5263 = vpop.f32.mrb[0].mxu0
      %v5264 = vadd.f32 0.0, %v5263
      %v5265 = vpop.f32.mrb[0].mxu0
      %v5266 = vpop.f32.mrb[0].mxu0
      %v5267 = vadd.f32 0.0, %v5266
      %v5268 = vpop.f32.mrb[0].mxu0
      %5269 = vmatprep.mubr.bf16.mxu0 0
      %5270 = vmatmul.mubr.bf16.gmra.mrb[0].mxu0 %v5181
      %v5271 = vpop.f32.mrb[0].mxu0
      %v5272 = vadd.f32 0.0, %v5271
      %v5273 = vpop.f32.mrb[0].mxu0
      %v5274 = vpop.f32.mrb[0].mxu0
      %v5275 = vadd.f32 0.0, %v5274
      %v5276 = vpop.f32.mrb[0].mxu0
      %5277 = vmatprep.mubr.bf16.mxu0 0
      %5278 = vmatmul.mubr.bf16.gmra.mrb[0].mxu0 %v5184
      %v5279 = vpop.f32.mrb[0].mxu0
      %v5280 = vadd.f32 0.0, %v5279
      %v5281 = vpop.f32.mrb[0].mxu0
      %v5282 = vpop.f32.mrb[0].mxu0
      %v5283 = vadd.f32 0.0, %v5282
      %v5284 = vpop.f32.mrb[0].mxu0
      %5285 = vmatprep.mubr.bf16.mxu0 0
      %5286 = vmatmul.mubr.bf16.gmra.mrb[0].mxu0 %v5187
      %v5287 = vpop.f32.mrb[0].mxu0
      %v5288 = vadd.f32 0.0, %v5287
      %v5289 = vpop.f32.mrb[0].mxu0
      %v5290 = vpop.f32.mrb[0].mxu0
      %v5291 = vpop.f32.mrb[0].mxu0
      %5292 = vdwg.mxu0
      %v5293 = vpack.c.b16 %v5068, %v5068
      %v5298 = vunpack.c.l.b16 %v5024
      %v5299 = vunpack.c.l.b16 %v5025
      %v5300 = vunpack.c.l.b16 %v5026
      %v5301 = vunpack.c.l.b16 %v5027
      %v5302 = vpack.c.b16 %v5299, %v5298
      %v5303 = vpack.c.b16 %v5301, %v5300
      %v5306 = vsel %vm2959, %v5070, 0
      %v5308 = vsel %vm2959, %v5071, 0
      %v5310 = vsel %vm2959, %v5072, 0
      %v5312 = vsel %vm2959, %v5073, 0
      %v5314 = vsel %vm2959, %v5074, 0
      %v5316 = vsel %vm2959, %v5075, 0
      %v5318 = vsel %vm2959, %v5076, 0
      %v5320 = vsel %vm2959, %v5077, 0
      %v5323 = vsel %vm2959, %v5293, 0
      %5325 = vmatprep.subr.bf16.mxu0 0
      %5326 = vmatpush1.bf16.msra.mxu0 %v5302
      %5327 = vmatprep.subr.bf16.mxu0 0
      %5328 = vmatpush1.bf16.msra.mxu0 %v5303
      %5329 = vmatprep.subr.bf16.mxu0 0
      %5330 = vmatpush1.bf16.msra.mxu0 0
      %5331 = vmatprep.subr.bf16.mxu0 0
      %5332 = vmatpush1.bf16.msra.mxu0 0
      %5333 = vmatprep.subr.bf16.mxu0 0
      %5334 = vmatpush1.bf16.msra.mxu0 0
      %5335 = vmatprep.subr.bf16.mxu0 0
      %5336 = vmatpush1.bf16.msra.mxu0 0
      %5337 = vmatprep.subr.bf16.mxu0 0
      %5338 = vmatpush1.bf16.msra.mxu0 0
      %5339 = vmatprep.subr.bf16.mxu0 0
      %5340 = vmatpush1.bf16.msra.mxu0 0
      %5341 = vmatprep.subr.bf16.mxu0 0
      %5342 = vmatpush1.bf16.msra.mxu0 0
      %5343 = vmatprep.subr.bf16.mxu0 0
      %5344 = vmatpush1.bf16.msra.mxu0 0
      %5345 = vmatprep.subr.bf16.mxu0 0
      %5346 = vmatpush1.bf16.msra.mxu0 0
      %5347 = vmatprep.subr.bf16.mxu0 0
      %5348 = vmatpush1.bf16.msra.mxu0 0
      %5349 = vmatprep.subr.bf16.mxu0 0
      %5350 = vmatpush1.bf16.msra.mxu0 0
      %5351 = vmatprep.subr.bf16.mxu0 0
      %5352 = vmatpush1.bf16.msra.mxu0 0
      %5353 = vmatprep.subr.bf16.mxu0 0
      %5354 = vmatpush1.bf16.msra.mxu0 0
      %5355 = vmatprep.subr.bf16.mxu0 0
      %5356 = vmatpush1.bf16.msra.mxu0 0
      %5357 = vmatprep.mubr.bf16.mxu0 0
      %5358 = vmatmul.mubr.bf16.gmra.mrb[0].mxu0 %v5306
      %v5359 = vpop.f32.mrb[0].mxu0
      %v5360 = vadd.f32 %v5224, %v5359
      %v5361 = vpop.f32.mrb[0].mxu0
      %v5362 = vpop.f32.mrb[0].mxu0
      %v5363 = vadd.f32 %v5227, %v5362
      %v5364 = vpop.f32.mrb[0].mxu0
      %5365 = vmatprep.mubr.bf16.mxu0 0
      %5366 = vmatmul.mubr.bf16.gmra.mrb[0].mxu0 %v5308
      %v5367 = vpop.f32.mrb[0].mxu0
      %v5368 = vadd.f32 %v5232, %v5367
      %v5369 = vpop.f32.mrb[0].mxu0
      %v5370 = vpop.f32.mrb[0].mxu0
      %v5371 = vadd.f32 %v5235, %v5370
      %v5372 = vpop.f32.mrb[0].mxu0
      %5373 = vmatprep.mubr.bf16.mxu0 0
      %5374 = vmatmul.mubr.bf16.gmra.mrb[0].mxu0 %v5310
      %v5375 = vpop.f32.mrb[0].mxu0
      %v5376 = vadd.f32 %v5240, %v5375
      %v5377 = vpop.f32.mrb[0].mxu0
      %v5378 = vpop.f32.mrb[0].mxu0
      %v5379 = vadd.f32 %v5243, %v5378
      %v5380 = vpop.f32.mrb[0].mxu0
      %5381 = vmatprep.mubr.bf16.mxu0 0
      %5382 = vmatmul.mubr.bf16.gmra.mrb[0].mxu0 %v5312
      %v5383 = vpop.f32.mrb[0].mxu0
      %v5384 = vadd.f32 %v5248, %v5383
      %v5385 = vpop.f32.mrb[0].mxu0
      %v5386 = vpop.f32.mrb[0].mxu0
      %v5387 = vadd.f32 %v5251, %v5386
      %v5388 = vpop.f32.mrb[0].mxu0
      %5389 = vmatprep.mubr.bf16.mxu0 0
      %5390 = vmatmul.mubr.bf16.gmra.mrb[0].mxu0 %v5314
      %v5391 = vpop.f32.mrb[0].mxu0
      %v5392 = vadd.f32 %v5256, %v5391
      %v5393 = vpop.f32.mrb[0].mxu0
      %v5394 = vpop.f32.mrb[0].mxu0
      %v5395 = vadd.f32 %v5259, %v5394
      %v5396 = vpop.f32.mrb[0].mxu0
      %5397 = vmatprep.mubr.bf16.mxu0 0
      %5398 = vmatmul.mubr.bf16.gmra.mrb[0].mxu0 %v5316
      %v5399 = vpop.f32.mrb[0].mxu0
      %v5400 = vadd.f32 %v5264, %v5399
      %v5401 = vpop.f32.mrb[0].mxu0
      %v5402 = vpop.f32.mrb[0].mxu0
      %v5403 = vadd.f32 %v5267, %v5402
      %v5404 = vpop.f32.mrb[0].mxu0
      %5405 = vmatprep.mubr.bf16.mxu0 0
      %5406 = vmatmul.mubr.bf16.gmra.mrb[0].mxu0 %v5318
      %v5407 = vpop.f32.mrb[0].mxu0
      %v5408 = vadd.f32 %v5272, %v5407
      %v5409 = vpop.f32.mrb[0].mxu0
      %v5410 = vpop.f32.mrb[0].mxu0
      %v5411 = vadd.f32 %v5275, %v5410
      %v5412 = vpop.f32.mrb[0].mxu0
      %5413 = vmatprep.mubr.bf16.mxu0 0
      %5414 = vmatmul.mubr.bf16.gmra.mrb[0].mxu0 %v5320
      %v5415 = vpop.f32.mrb[0].mxu0
      %v5416 = vadd.f32 %v5280, %v5415
      %v5417 = vpop.f32.mrb[0].mxu0
      %v5418 = vpop.f32.mrb[0].mxu0
      %v5419 = vadd.f32 %v5283, %v5418
      %v5420 = vpop.f32.mrb[0].mxu0
      %5421 = vmatprep.mubr.bf16.mxu0 0
      %5422 = vmatmul.mubr.bf16.gmra.mrb[0].mxu0 %v5323
      %v5423 = vpop.f32.mrb[0].mxu0
      %v5424 = vadd.f32 %v5288, %v5423
      %v5425 = vpop.f32.mrb[0].mxu0
      %v5426 = vpop.f32.mrb[0].mxu0
      %v5427 = vpop.f32.mrb[0].mxu0
      %5428 = vdwg.mxu0
      %v5429 = vld [vmem:[#allocation2] sm:$0xe]
      %s5430 = scalar_lea.vmem %s9, 32
      %v5431 = vld [vmem:[%s5430] sm:$0xf]
      %v5432 = vld [vmem:[%s5430 + $0x4] sm:$0xf]
      %v5433 = vld [vmem:[%s5430 + $0x8] sm:$0xf]
      %v5434 = vld [vmem:[%s5430 + $0xc] sm:$0xf]
      %v5436 = vunpack.c.l.b16 %v5429
      %v5437 = vpack.c.b16 %v5053, %v5436
      %v5438 = vrot.slane %v5437, 1
      %v5439 = vrot.slane %v5071, 1
      %v5440 = vsel %vm1122, %v5438, %v5439
      %v5441 = vrot.slane %v5072, 1
      %v5442 = vsel %vm1122, %v5439, %v5441
      %v5443 = vrot.slane %v5073, 1
      %v5444 = vsel %vm1122, %v5441, %v5443
      %v5445 = vrot.slane %v5074, 1
      %v5446 = vsel %vm1122, %v5443, %v5445
      %v5447 = vrot.slane %v5075, 1
      %v5448 = vsel %vm1122, %v5445, %v5447
      %v5449 = vrot.slane %v5076, 1
      %v5450 = vsel %vm1122, %v5447, %v5449
      %v5451 = vrot.slane %v5077, 1
      %v5452 = vsel %vm1122, %v5449, %v5451
      %v5453 = vrot.slane %v5078, 1
      %v5454 = vsel %vm1122, %v5451, %v5453
      %v5459 = vunpack.c.l.b16 %v5431
      %v5460 = vunpack.c.l.b16 %v5432
      %v5461 = vunpack.c.l.b16 %v5433
      %v5462 = vunpack.c.l.b16 %v5434
      %v5463 = vpack.c.b16 %v5460, %v5459
      %v5464 = vpack.c.b16 %v5462, %v5461
      %v5468 = vsel %vm2959, %v5440, 0
      %v5471 = vsel %vm2959, %v5442, 0
      %v5474 = vsel %vm2959, %v5444, 0
      %v5477 = vsel %vm2959, %v5446, 0
      %v5480 = vsel %vm2959, %v5448, 0
      %v5483 = vsel %vm2959, %v5450, 0
      %v5486 = vsel %vm2959, %v5452, 0
      %v5489 = vsel %vm2959, %v5454, 0
      %v5492 = vsel %vm2959, %v5453, 0
      %5494 = vmatprep.subr.bf16.mxu0 0
      %5495 = vmatpush1.bf16.msra.mxu0 %v5463
      %5496 = vmatprep.subr.bf16.mxu0 0
      %5497 = vmatpush1.bf16.msra.mxu0 %v5464
      %5498 = vmatprep.subr.bf16.mxu0 0
      %5499 = vmatpush1.bf16.msra.mxu0 0
      %5500 = vmatprep.subr.bf16.mxu0 0
      %5501 = vmatpush1.bf16.msra.mxu0 0
      %5502 = vmatprep.subr.bf16.mxu0 0
      %5503 = vmatpush1.bf16.msra.mxu0 0
      %5504 = vmatprep.subr.bf16.mxu0 0
      %5505 = vmatpush1.bf16.msra.mxu0 0
      %5506 = vmatprep.subr.bf16.mxu0 0
      %5507 = vmatpush1.bf16.msra.mxu0 0
      %5508 = vmatprep.subr.bf16.mxu0 0
      %5509 = vmatpush1.bf16.msra.mxu0 0
      %5510 = vmatprep.subr.bf16.mxu0 0
      %5511 = vmatpush1.bf16.msra.mxu0 0
      %5512 = vmatprep.subr.bf16.mxu0 0
      %5513 = vmatpush1.bf16.msra.mxu0 0
      %5514 = vmatprep.subr.bf16.mxu0 0
      %5515 = vmatpush1.bf16.msra.mxu0 0
      %5516 = vmatprep.subr.bf16.mxu0 0
      %5517 = vmatpush1.bf16.msra.mxu0 0
      %5518 = vmatprep.subr.bf16.mxu0 0
      %5519 = vmatpush1.bf16.msra.mxu0 0
      %5520 = vmatprep.subr.bf16.mxu0 0
      %5521 = vmatpush1.bf16.msra.mxu0 0
      %5522 = vmatprep.subr.bf16.mxu0 0
      %5523 = vmatpush1.bf16.msra.mxu0 0
      %5524 = vmatprep.subr.bf16.mxu0 0
      %5525 = vmatpush1.bf16.msra.mxu0 0
      %5526 = vmatprep.mubr.bf16.mxu0 0
      %5527 = vmatmul.mubr.bf16.gmra.mrb[0].mxu0 %v5468
      %v5528 = vpop.f32.mrb[0].mxu0
      %v5529 = vadd.f32 0.0, %v5528
      %v5530 = vpop.f32.mrb[0].mxu0
      %v5531 = vpop.f32.mrb[0].mxu0
      %v5532 = vadd.f32 0.0, %v5531
      %v5533 = vpop.f32.mrb[0].mxu0
      %5534 = vmatprep.mubr.bf16.mxu0 0
      %5535 = vmatmul.mubr.bf16.gmra.mrb[0].mxu0 %v5471
      %v5536 = vpop.f32.mrb[0].mxu0
      %v5537 = vadd.f32 0.0, %v5536
      %v5538 = vpop.f32.mrb[0].mxu0
      %v5539 = vpop.f32.mrb[0].mxu0
      %v5540 = vadd.f32 0.0, %v5539
      %v5541 = vpop.f32.mrb[0].mxu0
      %5542 = vmatprep.mubr.bf16.mxu0 0
      %5543 = vmatmul.mubr.bf16.gmra.mrb[0].mxu0 %v5474
      %v5544 = vpop.f32.mrb[0].mxu0
      %v5545 = vadd.f32 0.0, %v5544
      %v5546 = vpop.f32.mrb[0].mxu0
      %v5547 = vpop.f32.mrb[0].mxu0
      %v5548 = vadd.f32 0.0, %v5547
      %v5549 = vpop.f32.mrb[0].mxu0
      %5550 = vmatprep.mubr.bf16.mxu0 0
      %5551 = vmatmul.mubr.bf16.gmra.mrb[0].mxu0 %v5477
      %v5552 = vpop.f32.mrb[0].mxu0
      %v5553 = vadd.f32 0.0, %v5552
      %v5554 = vpop.f32.mrb[0].mxu0
      %v5555 = vpop.f32.mrb[0].mxu0
      %v5556 = vadd.f32 0.0, %v5555
      %v5557 = vpop.f32.mrb[0].mxu0
      %5558 = vmatprep.mubr.bf16.mxu0 0
      %5559 = vmatmul.mubr.bf16.gmra.mrb[0].mxu0 %v5480
      %v5560 = vpop.f32.mrb[0].mxu0
      %v5561 = vadd.f32 0.0, %v5560
      %v5562 = vpop.f32.mrb[0].mxu0
      %v5563 = vpop.f32.mrb[0].mxu0
      %v5564 = vadd.f32 0.0, %v5563
      %v5565 = vpop.f32.mrb[0].mxu0
      %5566 = vmatprep.mubr.bf16.mxu0 0
      %5567 = vmatmul.mubr.bf16.gmra.mrb[0].mxu0 %v5483
      %v5568 = vpop.f32.mrb[0].mxu0
      %v5569 = vadd.f32 0.0, %v5568
      %v5570 = vpop.f32.mrb[0].mxu0
      %v5571 = vpop.f32.mrb[0].mxu0
      %v5572 = vadd.f32 0.0, %v5571
      %v5573 = vpop.f32.mrb[0].mxu0
      %5574 = vmatprep.mubr.bf16.mxu0 0
      %5575 = vmatmul.mubr.bf16.gmra.mrb[0].mxu0 %v5486
      %v5576 = vpop.f32.mrb[0].mxu0
      %v5577 = vadd.f32 0.0, %v5576
      %v5578 = vpop.f32.mrb[0].mxu0
      %v5579 = vpop.f32.mrb[0].mxu0
      %v5580 = vadd.f32 0.0, %v5579
      %v5581 = vpop.f32.mrb[0].mxu0
      %5582 = vmatprep.mubr.bf16.mxu0 0
      %5583 = vmatmul.mubr.bf16.gmra.mrb[0].mxu0 %v5489
      %v5584 = vpop.f32.mrb[0].mxu0
      %v5585 = vadd.f32 0.0, %v5584
      %v5586 = vpop.f32.mrb[0].mxu0
      %v5587 = vpop.f32.mrb[0].mxu0
      %v5588 = vadd.f32 0.0, %v5587
      %v5589 = vpop.f32.mrb[0].mxu0
      %5590 = vmatprep.mubr.bf16.mxu0 0
      %5591 = vmatmul.mubr.bf16.gmra.mrb[0].mxu0 %v5492
      %v5592 = vpop.f32.mrb[0].mxu0
      %v5593 = vadd.f32 0.0, %v5592
      %v5594 = vpop.f32.mrb[0].mxu0
      %v5595 = vpop.f32.mrb[0].mxu0
      %v5596 = vpop.f32.mrb[0].mxu0
      %5597 = vdwg.mxu0
      %v5598 = vadd.f32 %v5360, %v5529
      %v5599 = vadd.f32 %v5363, %v5532
      %v5600 = vadd.f32 %v5368, %v5537
      %v5601 = vadd.f32 %v5371, %v5540
      %v5602 = vadd.f32 %v5376, %v5545
      %v5603 = vadd.f32 %v5379, %v5548
      %v5604 = vadd.f32 %v5384, %v5553
      %v5605 = vadd.f32 %v5387, %v5556
      %v5606 = vadd.f32 %v5392, %v5561
      %v5607 = vadd.f32 %v5395, %v5564
      %v5608 = vadd.f32 %v5400, %v5569
      %v5609 = vadd.f32 %v5403, %v5572
      %v5610 = vadd.f32 %v5408, %v5577
      %v5611 = vadd.f32 %v5411, %v5580
      %v5612 = vadd.f32 %v5416, %v5585
      %v5613 = vadd.f32 %v5419, %v5588
      %v5614 = vadd.f32 %v5424, %v5593
      %v5615 = vld [vmem:[#allocation2] sm:$0xc]
      %v5616 = vld [vmem:[#allocation2 + $0x44] sm:$0x3]
      %s5617 = scalar_lea.vmem %s9, 48
      %v5618 = vld [vmem:[%s5617] sm:$0xf]
      %v5619 = vld [vmem:[%s5617 + $0x4] sm:$0xf]
      %v5620 = vld [vmem:[%s5617 + $0x8] sm:$0xf]
      %v5621 = vld [vmem:[%s5617 + $0xc] sm:$0xf]
      %v5624 = vunpack.c.l.b16 %v5615
      %v5625 = vunpack.c.l.b16 %v5616
      %v5626 = vpack.c.b16 %v5053, %v5624
      %v5627 = vpack.c.b16 %v5625, %v5068
      %v5628 = vrot.slane %v5626, 2
      %v5629 = vrot.slane %v5071, 2
      %v5630 = vsel %vm1293, %v5628, %v5629
      %v5631 = vrot.slane %v5072, 2
      %v5632 = vsel %vm1293, %v5629, %v5631
      %v5633 = vrot.slane %v5073, 2
      %v5634 = vsel %vm1293, %v5631, %v5633
      %v5635 = vrot.slane %v5074, 2
      %v5636 = vsel %vm1293, %v5633, %v5635
      %v5637 = vrot.slane %v5075, 2
      %v5638 = vsel %vm1293, %v5635, %v5637
      %v5639 = vrot.slane %v5076, 2
      %v5640 = vsel %vm1293, %v5637, %v5639
      %v5641 = vrot.slane %v5077, 2
      %v5642 = vsel %vm1293, %v5639, %v5641
      %v5643 = vrot.slane %v5627, 2
      %v5644 = vsel %vm1293, %v5641, %v5643
      %v5649 = vunpack.c.l.b16 %v5618
      %v5650 = vunpack.c.l.b16 %v5619
      %v5651 = vunpack.c.l.b16 %v5620
      %v5652 = vunpack.c.l.b16 %v5621
      %v5653 = vpack.c.b16 %v5650, %v5649
      %v5654 = vpack.c.b16 %v5652, %v5651
      %v5658 = vsel %vm2959, %v5630, 0
      %v5661 = vsel %vm2959, %v5632, 0
      %v5664 = vsel %vm2959, %v5634, 0
      %v5667 = vsel %vm2959, %v5636, 0
      %v5670 = vsel %vm2959, %v5638, 0
      %v5673 = vsel %vm2959, %v5640, 0
      %v5676 = vsel %vm2959, %v5642, 0
      %v5679 = vsel %vm2959, %v5644, 0
      %v5682 = vsel %vm2959, %v5643, 0
      %5684 = vmatprep.subr.bf16.mxu0 0
      %5685 = vmatpush1.bf16.msra.mxu0 %v5653
      %5686 = vmatprep.subr.bf16.mxu0 0
      %5687 = vmatpush1.bf16.msra.mxu0 %v5654
      %5688 = vmatprep.subr.bf16.mxu0 0
      %5689 = vmatpush1.bf16.msra.mxu0 0
      %5690 = vmatprep.subr.bf16.mxu0 0
      %5691 = vmatpush1.bf16.msra.mxu0 0
      %5692 = vmatprep.subr.bf16.mxu0 0
      %5693 = vmatpush1.bf16.msra.mxu0 0
      %5694 = vmatprep.subr.bf16.mxu0 0
      %5695 = vmatpush1.bf16.msra.mxu0 0
      %5696 = vmatprep.subr.bf16.mxu0 0
      %5697 = vmatpush1.bf16.msra.mxu0 0
      %5698 = vmatprep.subr.bf16.mxu0 0
      %5699 = vmatpush1.bf16.msra.mxu0 0
      %5700 = vmatprep.subr.bf16.mxu0 0
      %5701 = vmatpush1.bf16.msra.mxu0 0
      %5702 = vmatprep.subr.bf16.mxu0 0
      %5703 = vmatpush1.bf16.msra.mxu0 0
      %5704 = vmatprep.subr.bf16.mxu0 0
      %5705 = vmatpush1.bf16.msra.mxu0 0
      %5706 = vmatprep.subr.bf16.mxu0 0
      %5707 = vmatpush1.bf16.msra.mxu0 0
      %5708 = vmatprep.subr.bf16.mxu0 0
      %5709 = vmatpush1.bf16.msra.mxu0 0
      %5710 = vmatprep.subr.bf16.mxu0 0
      %5711 = vmatpush1.bf16.msra.mxu0 0
      %5712 = vmatprep.subr.bf16.mxu0 0
      %5713 = vmatpush1.bf16.msra.mxu0 0
      %5714 = vmatprep.subr.bf16.mxu0 0
      %5715 = vmatpush1.bf16.msra.mxu0 0
      %5716 = vmatprep.mubr.bf16.mxu0 0
      %5717 = vmatmul.mubr.bf16.gmra.mrb[0].mxu0 %v5658
      %v5718 = vpop.f32.mrb[0].mxu0
      %v5719 = vadd.f32 0.0, %v5718
      %v5720 = vpop.f32.mrb[0].mxu0
      %v5721 = vpop.f32.mrb[0].mxu0
      %v5722 = vadd.f32 0.0, %v5721
      %v5723 = vpop.f32.mrb[0].mxu0
      %5724 = vmatprep.mubr.bf16.mxu0 0
      %5725 = vmatmul.mubr.bf16.gmra.mrb[0].mxu0 %v5661
      %v5726 = vpop.f32.mrb[0].mxu0
      %v5727 = vadd.f32 0.0, %v5726
      %v5728 = vpop.f32.mrb[0].mxu0
      %v5729 = vpop.f32.mrb[0].mxu0
      %v5730 = vadd.f32 0.0, %v5729
      %v5731 = vpop.f32.mrb[0].mxu0
      %5732 = vmatprep.mubr.bf16.mxu0 0
      %5733 = vmatmul.mubr.bf16.gmra.mrb[0].mxu0 %v5664
      %v5734 = vpop.f32.mrb[0].mxu0
      %v5735 = vadd.f32 0.0, %v5734
      %v5736 = vpop.f32.mrb[0].mxu0
      %v5737 = vpop.f32.mrb[0].mxu0
      %v5738 = vadd.f32 0.0, %v5737
      %v5739 = vpop.f32.mrb[0].mxu0
      %5740 = vmatprep.mubr.bf16.mxu0 0
      %5741 = vmatmul.mubr.bf16.gmra.mrb[0].mxu0 %v5667
      %v5742 = vpop.f32.mrb[0].mxu0
      %v5743 = vadd.f32 0.0, %v5742
      %v5744 = vpop.f32.mrb[0].mxu0
      %v5745 = vpop.f32.mrb[0].mxu0
      %v5746 = vadd.f32 0.0, %v5745
      %v5747 = vpop.f32.mrb[0].mxu0
      %5748 = vmatprep.mubr.bf16.mxu0 0
      %5749 = vmatmul.mubr.bf16.gmra.mrb[0].mxu0 %v5670
      %v5750 = vpop.f32.mrb[0].mxu0
      %v5751 = vadd.f32 0.0, %v5750
      %v5752 = vpop.f32.mrb[0].mxu0
      %v5753 = vpop.f32.mrb[0].mxu0
      %v5754 = vadd.f32 0.0, %v5753
      %v5755 = vpop.f32.mrb[0].mxu0
      %5756 = vmatprep.mubr.bf16.mxu0 0
      %5757 = vmatmul.mubr.bf16.gmra.mrb[0].mxu0 %v5673
      %v5758 = vpop.f32.mrb[0].mxu0
      %v5759 = vadd.f32 0.0, %v5758
      %v5760 = vpop.f32.mrb[0].mxu0
      %v5761 = vpop.f32.mrb[0].mxu0
      %v5762 = vadd.f32 0.0, %v5761
      %v5763 = vpop.f32.mrb[0].mxu0
      %5764 = vmatprep.mubr.bf16.mxu0 0
      %5765 = vmatmul.mubr.bf16.gmra.mrb[0].mxu0 %v5676
      %v5766 = vpop.f32.mrb[0].mxu0
      %v5767 = vadd.f32 0.0, %v5766
      %v5768 = vpop.f32.mrb[0].mxu0
      %v5769 = vpop.f32.mrb[0].mxu0
      %v5770 = vadd.f32 0.0, %v5769
      %v5771 = vpop.f32.mrb[0].mxu0
      %5772 = vmatprep.mubr.bf16.mxu0 0
      %5773 = vmatmul.mubr.bf16.gmra.mrb[0].mxu0 %v5679
      %v5774 = vpop.f32.mrb[0].mxu0
      %v5775 = vadd.f32 0.0, %v5774
      %v5776 = vpop.f32.mrb[0].mxu0
      %v5777 = vpop.f32.mrb[0].mxu0
      %v5778 = vadd.f32 0.0, %v5777
      %v5779 = vpop.f32.mrb[0].mxu0
      %5780 = vmatprep.mubr.bf16.mxu0 0
      %5781 = vmatmul.mubr.bf16.gmra.mrb[0].mxu0 %v5682
      %v5782 = vpop.f32.mrb[0].mxu0
      %v5783 = vadd.f32 0.0, %v5782
      %v5784 = vpop.f32.mrb[0].mxu0
      %v5785 = vpop.f32.mrb[0].mxu0
      %v5786 = vpop.f32.mrb[0].mxu0
      %5787 = vdwg.mxu0
      %v5788 = vadd.f32 %v5598, %v5719
      %v5789 = vadd.f32 %v5599, %v5722
      %v5790 = vadd.f32 %v5600, %v5727
      %v5791 = vadd.f32 %v5601, %v5730
      %v5792 = vadd.f32 %v5602, %v5735
      %v5793 = vadd.f32 %v5603, %v5738
      %v5794 = vadd.f32 %v5604, %v5743
      %v5795 = vadd.f32 %v5605, %v5746
      %v5796 = vadd.f32 %v5606, %v5751
      %v5797 = vadd.f32 %v5607, %v5754
      %v5798 = vadd.f32 %v5608, %v5759
      %v5799 = vadd.f32 %v5609, %v5762
      %v5800 = vadd.f32 %v5610, %v5767
      %v5801 = vadd.f32 %v5611, %v5770
      %v5802 = vadd.f32 %v5612, %v5775
      %v5803 = vadd.f32 %v5613, %v5778
      %v5804 = vadd.f32 %v5614, %v5783
      %v5805 = vld [vmem:[#allocation2 + $0x44] sm:$0x7]
      %s5806 = scalar_lea.vmem %s9, 64
      %v5807 = vld [vmem:[%s5806] sm:$0xf]
      %v5808 = vld [vmem:[%s5806 + $0x4] sm:$0xf]
      %v5809 = vld [vmem:[%s5806 + $0x8] sm:$0xf]
      %v5810 = vld [vmem:[%s5806 + $0xc] sm:$0xf]
      %v5812 = vunpack.c.l.b16 %v5805
      %v5813 = vpack.c.b16 %v5812, %v5068
      %v5815 = vshrl.u32 %v5626, 16
      %v5817 = vrot.slane %v5815, 2
      %v5818 = vshll.u32 %v5626, 16
      %v5820 = vrot.slane %v5818, 3
      %v5821 = vor.u32 %v5817, %v5820
      %v5822 = vrot.slane %v5091, 2
      %v5823 = vrot.slane %v5087, 3
      %v5824 = vor.u32 %v5822, %v5823
      %v5825 = vsel %vm1464, %v5821, %v5824
      %v5826 = vrot.slane %v5099, 2
      %v5827 = vrot.slane %v5095, 3
      %v5828 = vor.u32 %v5826, %v5827
      %v5829 = vsel %vm1464, %v5824, %v5828
      %v5830 = vrot.slane %v5107, 2
      %v5831 = vrot.slane %v5103, 3
      %v5832 = vor.u32 %v5830, %v5831
      %v5833 = vsel %vm1464, %v5828, %v5832
      %v5834 = vrot.slane %v5115, 2
      %v5835 = vrot.slane %v5111, 3
      %v5836 = vor.u32 %v5834, %v5835
      %v5837 = vsel %vm1464, %v5832, %v5836
      %v5838 = vrot.slane %v5123, 2
      %v5839 = vrot.slane %v5119, 3
      %v5840 = vor.u32 %v5838, %v5839
      %v5841 = vsel %vm1464, %v5836, %v5840
      %v5842 = vrot.slane %v5131, 2
      %v5843 = vrot.slane %v5127, 3
      %v5844 = vor.u32 %v5842, %v5843
      %v5845 = vsel %vm1464, %v5840, %v5844
      %v5846 = vrot.slane %v5139, 2
      %v5847 = vrot.slane %v5135, 3
      %v5848 = vor.u32 %v5846, %v5847
      %v5849 = vsel %vm1464, %v5844, %v5848
      %v5851 = vshrl.u32 %v5813, 16
      %v5853 = vrot.slane %v5851, 2
      %v5854 = vshll.u32 %v5813, 16
      %v5856 = vrot.slane %v5854, 3
      %v5857 = vor.u32 %v5853, %v5856
      %v5858 = vsel %vm1464, %v5848, %v5857
      %v5863 = vunpack.c.l.b16 %v5807
      %v5864 = vunpack.c.l.b16 %v5808
      %v5865 = vunpack.c.l.b16 %v5809
      %v5866 = vunpack.c.l.b16 %v5810
      %v5867 = vpack.c.b16 %v5864, %v5863
      %v5868 = vpack.c.b16 %v5866, %v5865
      %v5872 = vsel %vm2959, %v5825, 0
      %v5875 = vsel %vm2959, %v5829, 0
      %v5878 = vsel %vm2959, %v5833, 0
      %v5881 = vsel %vm2959, %v5837, 0
      %v5884 = vsel %vm2959, %v5841, 0
      %v5887 = vsel %vm2959, %v5845, 0
      %v5890 = vsel %vm2959, %v5849, 0
      %v5893 = vsel %vm2959, %v5858, 0
      %v5896 = vsel %vm2959, %v5857, 0
      %5898 = vmatprep.subr.bf16.mxu0 0
      %5899 = vmatpush1.bf16.msra.mxu0 %v5867
      %5900 = vmatprep.subr.bf16.mxu0 0
      %5901 = vmatpush1.bf16.msra.mxu0 %v5868
      %5902 = vmatprep.subr.bf16.mxu0 0
      %5903 = vmatpush1.bf16.msra.mxu0 0
      %5904 = vmatprep.subr.bf16.mxu0 0
      %5905 = vmatpush1.bf16.msra.mxu0 0
      %5906 = vmatprep.subr.bf16.mxu0 0
      %5907 = vmatpush1.bf16.msra.mxu0 0
      %5908 = vmatprep.subr.bf16.mxu0 0
      %5909 = vmatpush1.bf16.msra.mxu0 0
      %5910 = vmatprep.subr.bf16.mxu0 0
      %5911 = vmatpush1.bf16.msra.mxu0 0
      %5912 = vmatprep.subr.bf16.mxu0 0
      %5913 = vmatpush1.bf16.msra.mxu0 0
      %5914 = vmatprep.subr.bf16.mxu0 0
      %5915 = vmatpush1.bf16.msra.mxu0 0
      %5916 = vmatprep.subr.bf16.mxu0 0
      %5917 = vmatpush1.bf16.msra.mxu0 0
      %5918 = vmatprep.subr.bf16.mxu0 0
      %5919 = vmatpush1.bf16.msra.mxu0 0
      %5920 = vmatprep.subr.bf16.mxu0 0
      %5921 = vmatpush1.bf16.msra.mxu0 0
      %5922 = vmatprep.subr.bf16.mxu0 0
      %5923 = vmatpush1.bf16.msra.mxu0 0
      %5924 = vmatprep.subr.bf16.mxu0 0
      %5925 = vmatpush1.bf16.msra.mxu0 0
      %5926 = vmatprep.subr.bf16.mxu0 0
      %5927 = vmatpush1.bf16.msra.mxu0 0
      %5928 = vmatprep.subr.bf16.mxu0 0
      %5929 = vmatpush1.bf16.msra.mxu0 0
      %5930 = vmatprep.mubr.bf16.mxu0 0
      %5931 = vmatmul.mubr.bf16.gmra.mrb[0].mxu0 %v5872
      %v5932 = vpop.f32.mrb[0].mxu0
      %v5933 = vadd.f32 0.0, %v5932
      %v5934 = vpop.f32.mrb[0].mxu0
      %v5935 = vpop.f32.mrb[0].mxu0
      %v5936 = vadd.f32 0.0, %v5935
      %v5937 = vpop.f32.mrb[0].mxu0
      %5938 = vmatprep.mubr.bf16.mxu0 0
      %5939 = vmatmul.mubr.bf16.gmra.mrb[0].mxu0 %v5875
      %v5940 = vpop.f32.mrb[0].mxu0
      %v5941 = vadd.f32 0.0, %v5940
      %v5942 = vpop.f32.mrb[0].mxu0
      %v5943 = vpop.f32.mrb[0].mxu0
      %v5944 = vadd.f32 0.0, %v5943
      %v5945 = vpop.f32.mrb[0].mxu0
      %5946 = vmatprep.mubr.bf16.mxu0 0
      %5947 = vmatmul.mubr.bf16.gmra.mrb[0].mxu0 %v5878
      %v5948 = vpop.f32.mrb[0].mxu0
      %v5949 = vadd.f32 0.0, %v5948
      %v5950 = vpop.f32.mrb[0].mxu0
      %v5951 = vpop.f32.mrb[0].mxu0
      %v5952 = vadd.f32 0.0, %v5951
      %v5953 = vpop.f32.mrb[0].mxu0
      %5954 = vmatprep.mubr.bf16.mxu0 0
      %5955 = vmatmul.mubr.bf16.gmra.mrb[0].mxu0 %v5881
      %v5956 = vpop.f32.mrb[0].mxu0
      %v5957 = vadd.f32 0.0, %v5956
      %v5958 = vpop.f32.mrb[0].mxu0
      %v5959 = vpop.f32.mrb[0].mxu0
      %v5960 = vadd.f32 0.0, %v5959
      %v5961 = vpop.f32.mrb[0].mxu0
      %5962 = vmatprep.mubr.bf16.mxu0 0
      %5963 = vmatmul.mubr.bf16.gmra.mrb[0].mxu0 %v5884
      %v5964 = vpop.f32.mrb[0].mxu0
      %v5965 = vadd.f32 0.0, %v5964
      %v5966 = vpop.f32.mrb[0].mxu0
      %v5967 = vpop.f32.mrb[0].mxu0
      %v5968 = vadd.f32 0.0, %v5967
      %v5969 = vpop.f32.mrb[0].mxu0
      %5970 = vmatprep.mubr.bf16.mxu0 0
      %5971 = vmatmul.mubr.bf16.gmra.mrb[0].mxu0 %v5887
      %v5972 = vpop.f32.mrb[0].mxu0
      %v5973 = vadd.f32 0.0, %v5972
      %v5974 = vpop.f32.mrb[0].mxu0
      %v5975 = vpop.f32.mrb[0].mxu0
      %v5976 = vadd.f32 0.0, %v5975
      %v5977 = vpop.f32.mrb[0].mxu0
      %5978 = vmatprep.mubr.bf16.mxu0 0
      %5979 = vmatmul.mubr.bf16.gmra.mrb[0].mxu0 %v5890
      %v5980 = vpop.f32.mrb[0].mxu0
      %v5981 = vadd.f32 0.0, %v5980
      %v5982 = vpop.f32.mrb[0].mxu0
      %v5983 = vpop.f32.mrb[0].mxu0
      %v5984 = vadd.f32 0.0, %v5983
      %v5985 = vpop.f32.mrb[0].mxu0
      %5986 = vmatprep.mubr.bf16.mxu0 0
      %5987 = vmatmul.mubr.bf16.gmra.mrb[0].mxu0 %v5893
      %v5988 = vpop.f32.mrb[0].mxu0
      %v5989 = vadd.f32 0.0, %v5988
      %v5990 = vpop.f32.mrb[0].mxu0
      %v5991 = vpop.f32.mrb[0].mxu0
      %v5992 = vadd.f32 0.0, %v5991
      %v5993 = vpop.f32.mrb[0].mxu0
      %5994 = vmatprep.mubr.bf16.mxu0 0
      %5995 = vmatmul.mubr.bf16.gmra.mrb[0].mxu0 %v5896
      %v5996 = vpop.f32.mrb[0].mxu0
      %v5997 = vadd.f32 0.0, %v5996
      %v5998 = vpop.f32.mrb[0].mxu0
      %v5999 = vpop.f32.mrb[0].mxu0
      %v6000 = vpop.f32.mrb[0].mxu0
      %6001 = vdwg.mxu0
      %v6002 = vadd.f32 %v5788, %v5933
      %v6003 = vadd.f32 %v5789, %v5936
      %v6004 = vadd.f32 %v5790, %v5941
      %v6005 = vadd.f32 %v5791, %v5944
      %v6006 = vadd.f32 %v5792, %v5949
      %v6007 = vadd.f32 %v5793, %v5952
      %v6008 = vadd.f32 %v5794, %v5957
      %v6009 = vadd.f32 %v5795, %v5960
      %v6010 = vadd.f32 %v5796, %v5965
      %v6011 = vadd.f32 %v5797, %v5968
      %v6012 = vadd.f32 %v5798, %v5973
      %v6013 = vadd.f32 %v5799, %v5976
      %v6014 = vadd.f32 %v5800, %v5981
      %v6015 = vadd.f32 %v5801, %v5984
      %v6016 = vadd.f32 %v5802, %v5989
      %v6017 = vadd.f32 %v5803, %v5992
      %v6018 = vadd.f32 %v5804, %v5997
      %v6019 = vld [vmem:[#allocation2] sm:$0x8]
      %s6020 = scalar_lea.vmem %s9, 80
      %v6021 = vld [vmem:[%s6020] sm:$0xf]
      %v6022 = vld [vmem:[%s6020 + $0x4] sm:$0xf]
      %v6023 = vld [vmem:[%s6020 + $0x8] sm:$0xf]
      %v6024 = vld [vmem:[%s6020 + $0xc] sm:$0xf]
      %v6026 = vunpack.c.l.b16 %v6019
      %v6027 = vpack.c.b16 %v5053, %v6026
      %v6028 = vrot.slane %v6027, 3
      %v6029 = vrot.slane %v5071, 3
      %v6030 = vsel %vm1653, %v6028, %v6029
      %v6031 = vrot.slane %v5072, 3
      %v6032 = vsel %vm1653, %v6029, %v6031
      %v6033 = vrot.slane %v5073, 3
      %v6034 = vsel %vm1653, %v6031, %v6033
      %v6035 = vrot.slane %v5074, 3
      %v6036 = vsel %vm1653, %v6033, %v6035
      %v6037 = vrot.slane %v5075, 3
      %v6038 = vsel %vm1653, %v6035, %v6037
      %v6039 = vrot.slane %v5076, 3
      %v6040 = vsel %vm1653, %v6037, %v6039
      %v6041 = vrot.slane %v5077, 3
      %v6042 = vsel %vm1653, %v6039, %v6041
      %v6043 = vrot.slane %v5813, 3
      %v6044 = vsel %vm1653, %v6041, %v6043
      %v6049 = vunpack.c.l.b16 %v6021
      %v6050 = vunpack.c.l.b16 %v6022
      %v6051 = vunpack.c.l.b16 %v6023
      %v6052 = vunpack.c.l.b16 %v6024
      %v6053 = vpack.c.b16 %v6050, %v6049
      %v6054 = vpack.c.b16 %v6052, %v6051
      %v6058 = vsel %vm2959, %v6030, 0
      %v6061 = vsel %vm2959, %v6032, 0
      %v6064 = vsel %vm2959, %v6034, 0
      %v6067 = vsel %vm2959, %v6036, 0
      %v6070 = vsel %vm2959, %v6038, 0
      %v6073 = vsel %vm2959, %v6040, 0
      %v6076 = vsel %vm2959, %v6042, 0
      %v6079 = vsel %vm2959, %v6044, 0
      %v6082 = vsel %vm2959, %v6043, 0
      %6084 = vmatprep.subr.bf16.mxu0 0
      %6085 = vmatpush1.bf16.msra.mxu0 %v6053
      %6086 = vmatprep.subr.bf16.mxu0 0
      %6087 = vmatpush1.bf16.msra.mxu0 %v6054
      %6088 = vmatprep.subr.bf16.mxu0 0
      %6089 = vmatpush1.bf16.msra.mxu0 0
      %6090 = vmatprep.subr.bf16.mxu0 0
      %6091 = vmatpush1.bf16.msra.mxu0 0
      %6092 = vmatprep.subr.bf16.mxu0 0
      %6093 = vmatpush1.bf16.msra.mxu0 0
      %6094 = vmatprep.subr.bf16.mxu0 0
      %6095 = vmatpush1.bf16.msra.mxu0 0
      %6096 = vmatprep.subr.bf16.mxu0 0
      %6097 = vmatpush1.bf16.msra.mxu0 0
      %6098 = vmatprep.subr.bf16.mxu0 0
      %6099 = vmatpush1.bf16.msra.mxu0 0
      %6100 = vmatprep.subr.bf16.mxu0 0
      %6101 = vmatpush1.bf16.msra.mxu0 0
      %6102 = vmatprep.subr.bf16.mxu0 0
      %6103 = vmatpush1.bf16.msra.mxu0 0
      %6104 = vmatprep.subr.bf16.mxu0 0
      %6105 = vmatpush1.bf16.msra.mxu0 0
      %6106 = vmatprep.subr.bf16.mxu0 0
      %6107 = vmatpush1.bf16.msra.mxu0 0
      %6108 = vmatprep.subr.bf16.mxu0 0
      %6109 = vmatpush1.bf16.msra.mxu0 0
      %6110 = vmatprep.subr.bf16.mxu0 0
      %6111 = vmatpush1.bf16.msra.mxu0 0
      %6112 = vmatprep.subr.bf16.mxu0 0
      %6113 = vmatpush1.bf16.msra.mxu0 0
      %6114 = vmatprep.subr.bf16.mxu0 0
      %6115 = vmatpush1.bf16.msra.mxu0 0
      %6116 = vmatprep.mubr.bf16.mxu0 0
      %6117 = vmatmul.mubr.bf16.gmra.mrb[0].mxu0 %v6058
      %v6118 = vpop.f32.mrb[0].mxu0
      %v6119 = vadd.f32 0.0, %v6118
      %v6120 = vpop.f32.mrb[0].mxu0
      %v6121 = vpop.f32.mrb[0].mxu0
      %v6122 = vadd.f32 0.0, %v6121
      %v6123 = vpop.f32.mrb[0].mxu0
      %6124 = vmatprep.mubr.bf16.mxu0 0
      %6125 = vmatmul.mubr.bf16.gmra.mrb[0].mxu0 %v6061
      %v6126 = vpop.f32.mrb[0].mxu0
      %v6127 = vadd.f32 0.0, %v6126
      %v6128 = vpop.f32.mrb[0].mxu0
      %v6129 = vpop.f32.mrb[0].mxu0
      %v6130 = vadd.f32 0.0, %v6129
      %v6131 = vpop.f32.mrb[0].mxu0
      %6132 = vmatprep.mubr.bf16.mxu0 0
      %6133 = vmatmul.mubr.bf16.gmra.mrb[0].mxu0 %v6064
      %v6134 = vpop.f32.mrb[0].mxu0
      %v6135 = vadd.f32 0.0, %v6134
      %v6136 = vpop.f32.mrb[0].mxu0
      %v6137 = vpop.f32.mrb[0].mxu0
      %v6138 = vadd.f32 0.0, %v6137
      %v6139 = vpop.f32.mrb[0].mxu0
      %6140 = vmatprep.mubr.bf16.mxu0 0
      %6141 = vmatmul.mubr.bf16.gmra.mrb[0].mxu0 %v6067
      %v6142 = vpop.f32.mrb[0].mxu0
      %v6143 = vadd.f32 0.0, %v6142
      %v6144 = vpop.f32.mrb[0].mxu0
      %v6145 = vpop.f32.mrb[0].mxu0
      %v6146 = vadd.f32 0.0, %v6145
      %v6147 = vpop.f32.mrb[0].mxu0
      %6148 = vmatprep.mubr.bf16.mxu0 0
      %6149 = vmatmul.mubr.bf16.gmra.mrb[0].mxu0 %v6070
      %v6150 = vpop.f32.mrb[0].mxu0
      %v6151 = vadd.f32 0.0, %v6150
      %v6152 = vpop.f32.mrb[0].mxu0
      %v6153 = vpop.f32.mrb[0].mxu0
      %v6154 = vadd.f32 0.0, %v6153
      %v6155 = vpop.f32.mrb[0].mxu0
      %6156 = vmatprep.mubr.bf16.mxu0 0
      %6157 = vmatmul.mubr.bf16.gmra.mrb[0].mxu0 %v6073
      %v6158 = vpop.f32.mrb[0].mxu0
      %v6159 = vadd.f32 0.0, %v6158
      %v6160 = vpop.f32.mrb[0].mxu0
      %v6161 = vpop.f32.mrb[0].mxu0
      %v6162 = vadd.f32 0.0, %v6161
      %v6163 = vpop.f32.mrb[0].mxu0
      %6164 = vmatprep.mubr.bf16.mxu0 0
      %6165 = vmatmul.mubr.bf16.gmra.mrb[0].mxu0 %v6076
      %v6166 = vpop.f32.mrb[0].mxu0
      %v6167 = vadd.f32 0.0, %v6166
      %v6168 = vpop.f32.mrb[0].mxu0
      %v6169 = vpop.f32.mrb[0].mxu0
      %v6170 = vadd.f32 0.0, %v6169
      %v6171 = vpop.f32.mrb[0].mxu0
      %6172 = vmatprep.mubr.bf16.mxu0 0
      %6173 = vmatmul.mubr.bf16.gmra.mrb[0].mxu0 %v6079
      %v6174 = vpop.f32.mrb[0].mxu0
      %v6175 = vadd.f32 0.0, %v6174
      %v6176 = vpop.f32.mrb[0].mxu0
      %v6177 = vpop.f32.mrb[0].mxu0
      %v6178 = vadd.f32 0.0, %v6177
      %v6179 = vpop.f32.mrb[0].mxu0
      %6180 = vmatprep.mubr.bf16.mxu0 0
      %6181 = vmatmul.mubr.bf16.gmra.mrb[0].mxu0 %v6082
      %v6182 = vpop.f32.mrb[0].mxu0
      %v6183 = vadd.f32 0.0, %v6182
      %v6184 = vpop.f32.mrb[0].mxu0
      %v6185 = vpop.f32.mrb[0].mxu0
      %v6186 = vpop.f32.mrb[0].mxu0
      %6187 = vdwg.mxu0
      %v6188 = vadd.f32 %v6002, %v6119
      %v6189 = vadd.f32 %v6003, %v6122
      %v6190 = vadd.f32 %v6004, %v6127
      %v6191 = vadd.f32 %v6005, %v6130
      %v6192 = vadd.f32 %v6006, %v6135
      %v6193 = vadd.f32 %v6007, %v6138
      %v6194 = vadd.f32 %v6008, %v6143
      %v6195 = vadd.f32 %v6009, %v6146
      %v6196 = vadd.f32 %v6010, %v6151
      %v6197 = vadd.f32 %v6011, %v6154
      %v6198 = vadd.f32 %v6012, %v6159
      %v6199 = vadd.f32 %v6013, %v6162
      %v6200 = vadd.f32 %v6014, %v6167
      %v6201 = vadd.f32 %v6015, %v6170
      %v6202 = vadd.f32 %v6016, %v6175
      %v6203 = vadd.f32 %v6017, %v6178
      %v6204 = vadd.f32 %v6018, %v6183
      %v6205 = vld [vmem:[#allocation2 + $0x44] sm:$0xf]
      %s6206 = scalar_lea.vmem %s9, 96
      %v6207 = vld [vmem:[%s6206] sm:$0xf]
      %v6208 = vld [vmem:[%s6206 + $0x4] sm:$0xf]
      %v6209 = vld [vmem:[%s6206 + $0x8] sm:$0xf]
      %v6210 = vld [vmem:[%s6206 + $0xc] sm:$0xf]
      %v6212 = vunpack.c.l.b16 %v6205
      %v6213 = vpack.c.b16 %v5054, %v5053
      %v6214 = vpack.c.b16 %v5056, %v5055
      %v6215 = vpack.c.b16 %v5058, %v5057
      %v6216 = vpack.c.b16 %v5060, %v5059
      %v6217 = vpack.c.b16 %v5062, %v5061
      %v6218 = vpack.c.b16 %v5064, %v5063
      %v6219 = vpack.c.b16 %v5066, %v5065
      %v6220 = vpack.c.b16 %v5068, %v5067
      %v6221 = vpack.c.b16 %v6212, %v6212
      %v6226 = vunpack.c.l.b16 %v6207
      %v6227 = vunpack.c.l.b16 %v6208
      %v6228 = vunpack.c.l.b16 %v6209
      %v6229 = vunpack.c.l.b16 %v6210
      %v6230 = vpack.c.b16 %v6227, %v6226
      %v6231 = vpack.c.b16 %v6229, %v6228
      %v6235 = vsel %vm2959, %v6213, 0
      %v6238 = vsel %vm2959, %v6214, 0
      %v6241 = vsel %vm2959, %v6215, 0
      %v6244 = vsel %vm2959, %v6216, 0
      %v6247 = vsel %vm2959, %v6217, 0
      %v6250 = vsel %vm2959, %v6218, 0
      %v6253 = vsel %vm2959, %v6219, 0
      %v6256 = vsel %vm2959, %v6220, 0
      %v6259 = vsel %vm2959, %v6221, 0
      %6261 = vmatprep.subr.bf16.mxu0 0
      %6262 = vmatpush1.bf16.msra.mxu0 %v6230
      %6263 = vmatprep.subr.bf16.mxu0 0
      %6264 = vmatpush1.bf16.msra.mxu0 %v6231
      %6265 = vmatprep.subr.bf16.mxu0 0
      %6266 = vmatpush1.bf16.msra.mxu0 0
      %6267 = vmatprep.subr.bf16.mxu0 0
      %6268 = vmatpush1.bf16.msra.mxu0 0
      %6269 = vmatprep.subr.bf16.mxu0 0
      %6270 = vmatpush1.bf16.msra.mxu0 0
      %6271 = vmatprep.subr.bf16.mxu0 0
      %6272 = vmatpush1.bf16.msra.mxu0 0
      %6273 = vmatprep.subr.bf16.mxu0 0
      %6274 = vmatpush1.bf16.msra.mxu0 0
      %6275 = vmatprep.subr.bf16.mxu0 0
      %6276 = vmatpush1.bf16.msra.mxu0 0
      %6277 = vmatprep.subr.bf16.mxu0 0
      %6278 = vmatpush1.bf16.msra.mxu0 0
      %6279 = vmatprep.subr.bf16.mxu0 0
      %6280 = vmatpush1.bf16.msra.mxu0 0
      %6281 = vmatprep.subr.bf16.mxu0 0
      %6282 = vmatpush1.bf16.msra.mxu0 0
      %6283 = vmatprep.subr.bf16.mxu0 0
      %6284 = vmatpush1.bf16.msra.mxu0 0
      %6285 = vmatprep.subr.bf16.mxu0 0
      %6286 = vmatpush1.bf16.msra.mxu0 0
      %6287 = vmatprep.subr.bf16.mxu0 0
      %6288 = vmatpush1.bf16.msra.mxu0 0
      %6289 = vmatprep.subr.bf16.mxu0 0
      %6290 = vmatpush1.bf16.msra.mxu0 0
      %6291 = vmatprep.subr.bf16.mxu0 0
      %6292 = vmatpush1.bf16.msra.mxu0 0
      %6293 = vmatprep.mubr.bf16.mxu0 0
      %6294 = vmatmul.mubr.bf16.gmra.mrb[0].mxu0 %v6235
      %v6295 = vpop.f32.mrb[0].mxu0
      %v6296 = vadd.f32 0.0, %v6295
      %v6297 = vpop.f32.mrb[0].mxu0
      %v6298 = vpop.f32.mrb[0].mxu0
      %v6299 = vadd.f32 0.0, %v6298
      %v6300 = vpop.f32.mrb[0].mxu0
      %6301 = vmatprep.mubr.bf16.mxu0 0
      %6302 = vmatmul.mubr.bf16.gmra.mrb[0].mxu0 %v6238
      %v6303 = vpop.f32.mrb[0].mxu0
      %v6304 = vadd.f32 0.0, %v6303
      %v6305 = vpop.f32.mrb[0].mxu0
      %v6306 = vpop.f32.mrb[0].mxu0
      %v6307 = vadd.f32 0.0, %v6306
      %v6308 = vpop.f32.mrb[0].mxu0
      %6309 = vmatprep.mubr.bf16.mxu0 0
      %6310 = vmatmul.mubr.bf16.gmra.mrb[0].mxu0 %v6241
      %v6311 = vpop.f32.mrb[0].mxu0
      %v6312 = vadd.f32 0.0, %v6311
      %v6313 = vpop.f32.mrb[0].mxu0
      %v6314 = vpop.f32.mrb[0].mxu0
      %v6315 = vadd.f32 0.0, %v6314
      %v6316 = vpop.f32.mrb[0].mxu0
      %6317 = vmatprep.mubr.bf16.mxu0 0
      %6318 = vmatmul.mubr.bf16.gmra.mrb[0].mxu0 %v6244
      %v6319 = vpop.f32.mrb[0].mxu0
      %v6320 = vadd.f32 0.0, %v6319
      %v6321 = vpop.f32.mrb[0].mxu0
      %v6322 = vpop.f32.mrb[0].mxu0
      %v6323 = vadd.f32 0.0, %v6322
      %v6324 = vpop.f32.mrb[0].mxu0
      %6325 = vmatprep.mubr.bf16.mxu0 0
      %6326 = vmatmul.mubr.bf16.gmra.mrb[0].mxu0 %v6247
      %v6327 = vpop.f32.mrb[0].mxu0
      %v6328 = vadd.f32 0.0, %v6327
      %v6329 = vpop.f32.mrb[0].mxu0
      %v6330 = vpop.f32.mrb[0].mxu0
      %v6331 = vadd.f32 0.0, %v6330
      %v6332 = vpop.f32.mrb[0].mxu0
      %6333 = vmatprep.mubr.bf16.mxu0 0
      %6334 = vmatmul.mubr.bf16.gmra.mrb[0].mxu0 %v6250
      %v6335 = vpop.f32.mrb[0].mxu0
      %v6336 = vadd.f32 0.0, %v6335
      %v6337 = vpop.f32.mrb[0].mxu0
      %v6338 = vpop.f32.mrb[0].mxu0
      %v6339 = vadd.f32 0.0, %v6338
      %v6340 = vpop.f32.mrb[0].mxu0
      %6341 = vmatprep.mubr.bf16.mxu0 0
      %6342 = vmatmul.mubr.bf16.gmra.mrb[0].mxu0 %v6253
      %v6343 = vpop.f32.mrb[0].mxu0
      %v6344 = vadd.f32 0.0, %v6343
      %v6345 = vpop.f32.mrb[0].mxu0
      %v6346 = vpop.f32.mrb[0].mxu0
      %v6347 = vadd.f32 0.0, %v6346
      %v6348 = vpop.f32.mrb[0].mxu0
      %6349 = vmatprep.mubr.bf16.mxu0 0
      %6350 = vmatmul.mubr.bf16.gmra.mrb[0].mxu0 %v6256
      %v6351 = vpop.f32.mrb[0].mxu0
      %v6352 = vadd.f32 0.0, %v6351
      %v6353 = vpop.f32.mrb[0].mxu0
      %v6354 = vpop.f32.mrb[0].mxu0
      %v6355 = vadd.f32 0.0, %v6354
      %v6356 = vpop.f32.mrb[0].mxu0
      %6357 = vmatprep.mubr.bf16.mxu0 0
      %6358 = vmatmul.mubr.bf16.gmra.mrb[0].mxu0 %v6259
      %v6359 = vpop.f32.mrb[0].mxu0
      %v6360 = vadd.f32 0.0, %v6359
      %v6361 = vpop.f32.mrb[0].mxu0
      %v6362 = vpop.f32.mrb[0].mxu0
      %v6363 = vpop.f32.mrb[0].mxu0
      %6364 = vdwg.mxu0
      %v6365 = vadd.f32 %v6188, %v6296
      %v6366 = vadd.f32 %v6189, %v6299
      %v6367 = vadd.f32 %v6190, %v6304
      %v6368 = vadd.f32 %v6191, %v6307
      %v6369 = vadd.f32 %v6192, %v6312
      %v6370 = vadd.f32 %v6193, %v6315
      %v6371 = vadd.f32 %v6194, %v6320
      %v6372 = vadd.f32 %v6195, %v6323
      %v6373 = vadd.f32 %v6196, %v6328
      %v6374 = vadd.f32 %v6197, %v6331
      %v6375 = vadd.f32 %v6198, %v6336
      %v6376 = vadd.f32 %v6199, %v6339
      %v6377 = vadd.f32 %v6200, %v6344
      %v6378 = vadd.f32 %v6201, %v6347
      %v6379 = vadd.f32 %v6202, %v6352
      %v6380 = vadd.f32 %v6203, %v6355
      %v6381 = vadd.f32 %v6204, %v6360
      %v6382 = vld [vmem:[#allocation2 + $0x4] sm:$0xf]
      %v6383 = vld [vmem:[#allocation2 + $0x8] sm:$0xf]
      %v6384 = vld [vmem:[#allocation2 + $0xc] sm:$0xf]
      %v6385 = vld [vmem:[#allocation2 + $0x10] sm:$0xf]
      %v6386 = vld [vmem:[#allocation2 + $0x14] sm:$0xf]
      %v6387 = vld [vmem:[#allocation2 + $0x18] sm:$0xf]
      %v6388 = vld [vmem:[#allocation2 + $0x1c] sm:$0xf]
      %v6389 = vld [vmem:[#allocation2 + $0x20] sm:$0xf]
      %v6390 = vld [vmem:[#allocation2 + $0x24] sm:$0xf]
      %v6391 = vld [vmem:[#allocation2 + $0x28] sm:$0xf]
      %v6392 = vld [vmem:[#allocation2 + $0x2c] sm:$0xf]
      %v6393 = vld [vmem:[#allocation2 + $0x30] sm:$0xf]
      %v6394 = vld [vmem:[#allocation2 + $0x34] sm:$0xf]
      %v6395 = vld [vmem:[#allocation2 + $0x38] sm:$0xf]
      %v6396 = vld [vmem:[#allocation2 + $0x3c] sm:$0xf]
      %v6397 = vld [vmem:[#allocation2 + $0x40] sm:$0xf]
      %v6398 = vld [vmem:[#allocation2 + $0x44] sm:$0xf]
      %v6399 = vld [vmem:[#allocation2 + $0x48] sm:$0x1]
      %s6400 = scalar_lea.vmem %s9, 112
      %v6401 = vld [vmem:[%s6400] sm:$0xf]
      %v6402 = vld [vmem:[%s6400 + $0x4] sm:$0xf]
      %v6403 = vld [vmem:[%s6400 + $0x8] sm:$0xf]
      %v6404 = vld [vmem:[%s6400 + $0xc] sm:$0xf]
      %v6423 = vunpack.c.l.b16 %v6382
      %v6424 = vunpack.c.l.b16 %v6383
      %v6425 = vunpack.c.l.b16 %v6384
      %v6426 = vunpack.c.l.b16 %v6385
      %v6427 = vunpack.c.l.b16 %v6386
      %v6428 = vunpack.c.l.b16 %v6387
      %v6429 = vunpack.c.l.b16 %v6388
      %v6430 = vunpack.c.l.b16 %v6389
      %v6431 = vunpack.c.l.b16 %v6390
      %v6432 = vunpack.c.l.b16 %v6391
      %v6433 = vunpack.c.l.b16 %v6392
      %v6434 = vunpack.c.l.b16 %v6393
      %v6435 = vunpack.c.l.b16 %v6394
      %v6436 = vunpack.c.l.b16 %v6395
      %v6437 = vunpack.c.l.b16 %v6396
      %v6438 = vunpack.c.l.b16 %v6397
      %v6439 = vunpack.c.l.b16 %v6398
      %v6440 = vunpack.c.l.b16 %v6399
      %v6441 = vpack.c.b16 %v6424, %v6423
      %v6442 = vpack.c.b16 %v6426, %v6425
      %v6443 = vpack.c.b16 %v6428, %v6427
      %v6444 = vpack.c.b16 %v6430, %v6429
      %v6445 = vpack.c.b16 %v6432, %v6431
      %v6446 = vpack.c.b16 %v6434, %v6433
      %v6447 = vpack.c.b16 %v6436, %v6435
      %v6448 = vpack.c.b16 %v6438, %v6437
      %v6449 = vpack.c.b16 %v6440, %v6439
      %v6451 = vshrl.u32 %v6441, 16
      %v6453 = vshll.u32 %v6441, 16
      %v6455 = vrot.slane %v6453, 1
      %v6456 = vor.u32 %v6451, %v6455
      %v6458 = vshll.u32 %v6442, 16
      %v6460 = vrot.slane %v6458, 1
      %v6461 = vsel %vm785, %v6456, %v6460
      %v6462 = vshrl.u32 %v6442, 16
      %v6464 = vor.u32 %v6462, %v6460
      %v6466 = vshll.u32 %v6443, 16
      %v6468 = vrot.slane %v6466, 1
      %v6469 = vsel %vm785, %v6464, %v6468
      %v6470 = vshrl.u32 %v6443, 16
      %v6472 = vor.u32 %v6470, %v6468
      %v6474 = vshll.u32 %v6444, 16
      %v6476 = vrot.slane %v6474, 1
      %v6477 = vsel %vm785, %v6472, %v6476
      %v6478 = vshrl.u32 %v6444, 16
      %v6480 = vor.u32 %v6478, %v6476
      %v6482 = vshll.u32 %v6445, 16
      %v6484 = vrot.slane %v6482, 1
      %v6485 = vsel %vm785, %v6480, %v6484
      %v6486 = vshrl.u32 %v6445, 16
      %v6488 = vor.u32 %v6486, %v6484
      %v6490 = vshll.u32 %v6446, 16
      %v6492 = vrot.slane %v6490, 1
      %v6493 = vsel %vm785, %v6488, %v6492
      %v6494 = vshrl.u32 %v6446, 16
      %v6496 = vor.u32 %v6494, %v6492
      %v6498 = vshll.u32 %v6447, 16
      %v6500 = vrot.slane %v6498, 1
      %v6501 = vsel %vm785, %v6496, %v6500
      %v6502 = vshrl.u32 %v6447, 16
      %v6504 = vor.u32 %v6502, %v6500
      %v6506 = vshll.u32 %v6448, 16
      %v6508 = vrot.slane %v6506, 1
      %v6509 = vsel %vm785, %v6504, %v6508
      %v6510 = vshrl.u32 %v6448, 16
      %v6512 = vor.u32 %v6510, %v6508
      %v6514 = vshll.u32 %v6449, 16
      %v6516 = vrot.slane %v6514, 1
      %v6517 = vsel %vm785, %v6512, %v6516
      %v6518 = vshrl.u32 %v6449, 16
      %v6520 = vor.u32 %v6518, %v6516
      %v6525 = vunpack.c.l.b16 %v6401
      %v6526 = vunpack.c.l.b16 %v6402
      %v6527 = vunpack.c.l.b16 %v6403
      %v6528 = vunpack.c.l.b16 %v6404
      %v6529 = vpack.c.b16 %v6526, %v6525
      %v6530 = vpack.c.b16 %v6528, %v6527
      %v6534 = vsel %vm2959, %v6461, 0
      %v6537 = vsel %vm2959, %v6469, 0
      %v6540 = vsel %vm2959, %v6477, 0
      %v6543 = vsel %vm2959, %v6485, 0
      %v6546 = vsel %vm2959, %v6493, 0
      %v6549 = vsel %vm2959, %v6501, 0
      %v6552 = vsel %vm2959, %v6509, 0
      %v6555 = vsel %vm2959, %v6517, 0
      %v6558 = vsel %vm2959, %v6520, 0
      %6560 = vmatprep.subr.bf16.mxu0 0
      %6561 = vmatpush1.bf16.msra.mxu0 %v6529
      %6562 = vmatprep.subr.bf16.mxu0 0
      %6563 = vmatpush1.bf16.msra.mxu0 %v6530
      %6564 = vmatprep.subr.bf16.mxu0 0
      %6565 = vmatpush1.bf16.msra.mxu0 0
      %6566 = vmatprep.subr.bf16.mxu0 0
      %6567 = vmatpush1.bf16.msra.mxu0 0
      %6568 = vmatprep.subr.bf16.mxu0 0
      %6569 = vmatpush1.bf16.msra.mxu0 0
      %6570 = vmatprep.subr.bf16.mxu0 0
      %6571 = vmatpush1.bf16.msra.mxu0 0
      %6572 = vmatprep.subr.bf16.mxu0 0
      %6573 = vmatpush1.bf16.msra.mxu0 0
      %6574 = vmatprep.subr.bf16.mxu0 0
      %6575 = vmatpush1.bf16.msra.mxu0 0
      %6576 = vmatprep.subr.bf16.mxu0 0
      %6577 = vmatpush1.bf16.msra.mxu0 0
      %6578 = vmatprep.subr.bf16.mxu0 0
      %6579 = vmatpush1.bf16.msra.mxu0 0
      %6580 = vmatprep.subr.bf16.mxu0 0
      %6581 = vmatpush1.bf16.msra.mxu0 0
      %6582 = vmatprep.subr.bf16.mxu0 0
      %6583 = vmatpush1.bf16.msra.mxu0 0
      %6584 = vmatprep.subr.bf16.mxu0 0
      %6585 = vmatpush1.bf16.msra.mxu0 0
      %6586 = vmatprep.subr.bf16.mxu0 0
      %6587 = vmatpush1.bf16.msra.mxu0 0
      %6588 = vmatprep.subr.bf16.mxu0 0
      %6589 = vmatpush1.bf16.msra.mxu0 0
      %6590 = vmatprep.subr.bf16.mxu0 0
      %6591 = vmatpush1.bf16.msra.mxu0 0
      %6592 = vmatprep.mubr.bf16.mxu0 0
      %6593 = vmatmul.mubr.bf16.gmra.mrb[0].mxu0 %v6534
      %v6594 = vpop.f32.mrb[0].mxu0
      %v6595 = vadd.f32 0.0, %v6594
      %v6596 = vpop.f32.mrb[0].mxu0
      %v6597 = vpop.f32.mrb[0].mxu0
      %v6598 = vadd.f32 0.0, %v6597
      %v6599 = vpop.f32.mrb[0].mxu0
      %6600 = vmatprep.mubr.bf16.mxu0 0
      %6601 = vmatmul.mubr.bf16.gmra.mrb[0].mxu0 %v6537
      %v6602 = vpop.f32.mrb[0].mxu0
      %v6603 = vadd.f32 0.0, %v6602
      %v6604 = vpop.f32.mrb[0].mxu0
      %v6605 = vpop.f32.mrb[0].mxu0
      %v6606 = vadd.f32 0.0, %v6605
      %v6607 = vpop.f32.mrb[0].mxu0
      %6608 = vmatprep.mubr.bf16.mxu0 0
      %6609 = vmatmul.mubr.bf16.gmra.mrb[0].mxu0 %v6540
      %v6610 = vpop.f32.mrb[0].mxu0
      %v6611 = vadd.f32 0.0, %v6610
      %v6612 = vpop.f32.mrb[0].mxu0
      %v6613 = vpop.f32.mrb[0].mxu0
      %v6614 = vadd.f32 0.0, %v6613
      %v6615 = vpop.f32.mrb[0].mxu0
      %6616 = vmatprep.mubr.bf16.mxu0 0
      %6617 = vmatmul.mubr.bf16.gmra.mrb[0].mxu0 %v6543
      %v6618 = vpop.f32.mrb[0].mxu0
      %v6619 = vadd.f32 0.0, %v6618
      %v6620 = vpop.f32.mrb[0].mxu0
      %v6621 = vpop.f32.mrb[0].mxu0
      %v6622 = vadd.f32 0.0, %v6621
      %v6623 = vpop.f32.mrb[0].mxu0
      %6624 = vmatprep.mubr.bf16.mxu0 0
      %6625 = vmatmul.mubr.bf16.gmra.mrb[0].mxu0 %v6546
      %v6626 = vpop.f32.mrb[0].mxu0
      %v6627 = vadd.f32 0.0, %v6626
      %v6628 = vpop.f32.mrb[0].mxu0
      %v6629 = vpop.f32.mrb[0].mxu0
      %v6630 = vadd.f32 0.0, %v6629
      %v6631 = vpop.f32.mrb[0].mxu0
      %6632 = vmatprep.mubr.bf16.mxu0 0
      %6633 = vmatmul.mubr.bf16.gmra.mrb[0].mxu0 %v6549
      %v6634 = vpop.f32.mrb[0].mxu0
      %v6635 = vadd.f32 0.0, %v6634
      %v6636 = vpop.f32.mrb[0].mxu0
      %v6637 = vpop.f32.mrb[0].mxu0
      %v6638 = vadd.f32 0.0, %v6637
      %v6639 = vpop.f32.mrb[0].mxu0
      %6640 = vmatprep.mubr.bf16.mxu0 0
      %6641 = vmatmul.mubr.bf16.gmra.mrb[0].mxu0 %v6552
      %v6642 = vpop.f32.mrb[0].mxu0
      %v6643 = vadd.f32 0.0, %v6642
      %v6644 = vpop.f32.mrb[0].mxu0
      %v6645 = vpop.f32.mrb[0].mxu0
      %v6646 = vadd.f32 0.0, %v6645
      %v6647 = vpop.f32.mrb[0].mxu0
      %6648 = vmatprep.mubr.bf16.mxu0 0
      %6649 = vmatmul.mubr.bf16.gmra.mrb[0].mxu0 %v6555
      %v6650 = vpop.f32.mrb[0].mxu0
      %v6651 = vadd.f32 0.0, %v6650
      %v6652 = vpop.f32.mrb[0].mxu0
      %v6653 = vpop.f32.mrb[0].mxu0
      %v6654 = vadd.f32 0.0, %v6653
      %v6655 = vpop.f32.mrb[0].mxu0
      %6656 = vmatprep.mubr.bf16.mxu0 0
      %6657 = vmatmul.mubr.bf16.gmra.mrb[0].mxu0 %v6558
      %v6658 = vpop.f32.mrb[0].mxu0
      %v6659 = vadd.f32 0.0, %v6658
      %v6660 = vpop.f32.mrb[0].mxu0
      %v6661 = vpop.f32.mrb[0].mxu0
      %v6662 = vpop.f32.mrb[0].mxu0
      %6663 = vdwg.mxu0
      %v6664 = vadd.f32 %v6365, %v6595
      %v6665 = vadd.f32 %v6366, %v6598
      %v6666 = vadd.f32 %v6367, %v6603
      %v6667 = vadd.f32 %v6368, %v6606
      %v6668 = vadd.f32 %v6369, %v6611
      %v6669 = vadd.f32 %v6370, %v6614
      %v6670 = vadd.f32 %v6371, %v6619
      %v6671 = vadd.f32 %v6372, %v6622
      %v6672 = vadd.f32 %v6373, %v6627
      %v6673 = vadd.f32 %v6374, %v6630
      %v6674 = vadd.f32 %v6375, %v6635
      %v6675 = vadd.f32 %v6376, %v6638
      %v6676 = vadd.f32 %v6377, %v6643
      %v6677 = vadd.f32 %v6378, %v6646
      %v6678 = vadd.f32 %v6379, %v6651
      %v6679 = vadd.f32 %v6380, %v6654
      %v6680 = vadd.f32 %v6381, %v6659
      %v6681 = vld [vmem:[#allocation2 + $0x4] sm:$0xe]
      %s6682 = scalar_lea.vmem %s9, 128
      %v6683 = vld [vmem:[%s6682] sm:$0xf]
      %v6684 = vld [vmem:[%s6682 + $0x4] sm:$0xf]
      %v6685 = vld [vmem:[%s6682 + $0x8] sm:$0xf]
      %v6686 = vld [vmem:[%s6682 + $0xc] sm:$0xf]
      %v6688 = vunpack.c.l.b16 %v6681
      %v6689 = vpack.c.b16 %v6424, %v6688
      %v6690 = vrot.slane %v6689, 1
      %v6691 = vrot.slane %v6442, 1
      %v6692 = vsel %vm1122, %v6690, %v6691
      %v6693 = vrot.slane %v6443, 1
      %v6694 = vsel %vm1122, %v6691, %v6693
      %v6695 = vrot.slane %v6444, 1
      %v6696 = vsel %vm1122, %v6693, %v6695
      %v6697 = vrot.slane %v6445, 1
      %v6698 = vsel %vm1122, %v6695, %v6697
      %v6699 = vrot.slane %v6446, 1
      %v6700 = vsel %vm1122, %v6697, %v6699
      %v6701 = vrot.slane %v6447, 1
      %v6702 = vsel %vm1122, %v6699, %v6701
      %v6703 = vrot.slane %v6448, 1
      %v6704 = vsel %vm1122, %v6701, %v6703
      %v6705 = vrot.slane %v6449, 1
      %v6706 = vsel %vm1122, %v6703, %v6705
      %v6711 = vunpack.c.l.b16 %v6683
      %v6712 = vunpack.c.l.b16 %v6684
      %v6713 = vunpack.c.l.b16 %v6685
      %v6714 = vunpack.c.l.b16 %v6686
      %v6715 = vpack.c.b16 %v6712, %v6711
      %v6716 = vpack.c.b16 %v6714, %v6713
      %v6720 = vsel %vm2959, %v6692, 0
      %v6723 = vsel %vm2959, %v6694, 0
      %v6726 = vsel %vm2959, %v6696, 0
      %v6729 = vsel %vm2959, %v6698, 0
      %v6732 = vsel %vm2959, %v6700, 0
      %v6735 = vsel %vm2959, %v6702, 0
      %v6738 = vsel %vm2959, %v6704, 0
      %v6741 = vsel %vm2959, %v6706, 0
      %v6744 = vsel %vm2959, %v6705, 0
      %6746 = vmatprep.subr.bf16.mxu0 0
      %6747 = vmatpush1.bf16.msra.mxu0 %v6715
      %6748 = vmatprep.subr.bf16.mxu0 0
      %6749 = vmatpush1.bf16.msra.mxu0 %v6716
      %6750 = vmatprep.subr.bf16.mxu0 0
      %6751 = vmatpush1.bf16.msra.mxu0 0
      %6752 = vmatprep.subr.bf16.mxu0 0
      %6753 = vmatpush1.bf16.msra.mxu0 0
      %6754 = vmatprep.subr.bf16.mxu0 0
      %6755 = vmatpush1.bf16.msra.mxu0 0
      %6756 = vmatprep.subr.bf16.mxu0 0
      %6757 = vmatpush1.bf16.msra.mxu0 0
      %6758 = vmatprep.subr.bf16.mxu0 0
      %6759 = vmatpush1.bf16.msra.mxu0 0
      %6760 = vmatprep.subr.bf16.mxu0 0
      %6761 = vmatpush1.bf16.msra.mxu0 0
      %6762 = vmatprep.subr.bf16.mxu0 0
      %6763 = vmatpush1.bf16.msra.mxu0 0
      %6764 = vmatprep.subr.bf16.mxu0 0
      %6765 = vmatpush1.bf16.msra.mxu0 0
      %6766 = vmatprep.subr.bf16.mxu0 0
      %6767 = vmatpush1.bf16.msra.mxu0 0
      %6768 = vmatprep.subr.bf16.mxu0 0
      %6769 = vmatpush1.bf16.msra.mxu0 0
      %6770 = vmatprep.subr.bf16.mxu0 0
      %6771 = vmatpush1.bf16.msra.mxu0 0
      %6772 = vmatprep.subr.bf16.mxu0 0
      %6773 = vmatpush1.bf16.msra.mxu0 0
      %6774 = vmatprep.subr.bf16.mxu0 0
      %6775 = vmatpush1.bf16.msra.mxu0 0
      %6776 = vmatprep.subr.bf16.mxu0 0
      %6777 = vmatpush1.bf16.msra.mxu0 0
      %6778 = vmatprep.mubr.bf16.mxu0 0
      %6779 = vmatmul.mubr.bf16.gmra.mrb[0].mxu0 %v6720
      %v6780 = vpop.f32.mrb[0].mxu0
      %v6781 = vadd.f32 0.0, %v6780
      %v6782 = vpop.f32.mrb[0].mxu0
      %v6783 = vpop.f32.mrb[0].mxu0
      %v6784 = vadd.f32 0.0, %v6783
      %v6785 = vpop.f32.mrb[0].mxu0
      %6786 = vmatprep.mubr.bf16.mxu0 0
      %6787 = vmatmul.mubr.bf16.gmra.mrb[0].mxu0 %v6723
      %v6788 = vpop.f32.mrb[0].mxu0
      %v6789 = vadd.f32 0.0, %v6788
      %v6790 = vpop.f32.mrb[0].mxu0
      %v6791 = vpop.f32.mrb[0].mxu0
      %v6792 = vadd.f32 0.0, %v6791
      %v6793 = vpop.f32.mrb[0].mxu0
      %6794 = vmatprep.mubr.bf16.mxu0 0
      %6795 = vmatmul.mubr.bf16.gmra.mrb[0].mxu0 %v6726
      %v6796 = vpop.f32.mrb[0].mxu0
      %v6797 = vadd.f32 0.0, %v6796
      %v6798 = vpop.f32.mrb[0].mxu0
      %v6799 = vpop.f32.mrb[0].mxu0
      %v6800 = vadd.f32 0.0, %v6799
      %v6801 = vpop.f32.mrb[0].mxu0
      %6802 = vmatprep.mubr.bf16.mxu0 0
      %6803 = vmatmul.mubr.bf16.gmra.mrb[0].mxu0 %v6729
      %v6804 = vpop.f32.mrb[0].mxu0
      %v6805 = vadd.f32 0.0, %v6804
      %v6806 = vpop.f32.mrb[0].mxu0
      %v6807 = vpop.f32.mrb[0].mxu0
      %v6808 = vadd.f32 0.0, %v6807
      %v6809 = vpop.f32.mrb[0].mxu0
      %6810 = vmatprep.mubr.bf16.mxu0 0
      %6811 = vmatmul.mubr.bf16.gmra.mrb[0].mxu0 %v6732
      %v6812 = vpop.f32.mrb[0].mxu0
      %v6813 = vadd.f32 0.0, %v6812
      %v6814 = vpop.f32.mrb[0].mxu0
      %v6815 = vpop.f32.mrb[0].mxu0
      %v6816 = vadd.f32 0.0, %v6815
      %v6817 = vpop.f32.mrb[0].mxu0
      %6818 = vmatprep.mubr.bf16.mxu0 0
      %6819 = vmatmul.mubr.bf16.gmra.mrb[0].mxu0 %v6735
      %v6820 = vpop.f32.mrb[0].mxu0
      %v6821 = vadd.f32 0.0, %v6820
      %v6822 = vpop.f32.mrb[0].mxu0
      %v6823 = vpop.f32.mrb[0].mxu0
      %v6824 = vadd.f32 0.0, %v6823
      %v6825 = vpop.f32.mrb[0].mxu0
      %6826 = vmatprep.mubr.bf16.mxu0 0
      %6827 = vmatmul.mubr.bf16.gmra.mrb[0].mxu0 %v6738
      %v6828 = vpop.f32.mrb[0].mxu0
      %v6829 = vadd.f32 0.0, %v6828
      %v6830 = vpop.f32.mrb[0].mxu0
      %v6831 = vpop.f32.mrb[0].mxu0
      %v6832 = vadd.f32 0.0, %v6831
      %v6833 = vpop.f32.mrb[0].mxu0
      %6834 = vmatprep.mubr.bf16.mxu0 0
      %6835 = vmatmul.mubr.bf16.gmra.mrb[0].mxu0 %v6741
      %v6836 = vpop.f32.mrb[0].mxu0
      %v6837 = vadd.f32 0.0, %v6836
      %v6838 = vpop.f32.mrb[0].mxu0
      %v6839 = vpop.f32.mrb[0].mxu0
      %v6840 = vadd.f32 0.0, %v6839
      %v6841 = vpop.f32.mrb[0].mxu0
      %6842 = vmatprep.mubr.bf16.mxu0 0
      %6843 = vmatmul.mubr.bf16.gmra.mrb[0].mxu0 %v6744
      %v6844 = vpop.f32.mrb[0].mxu0
      %v6845 = vadd.f32 0.0, %v6844
      %v6846 = vpop.f32.mrb[0].mxu0
      %v6847 = vpop.f32.mrb[0].mxu0
      %v6848 = vpop.f32.mrb[0].mxu0
      %6849 = vdwg.mxu0
      %v6850 = vadd.f32 %v6664, %v6781
      %v6851 = vadd.f32 %v6665, %v6784
      %v6852 = vadd.f32 %v6666, %v6789
      %v6853 = vadd.f32 %v6667, %v6792
      %v6854 = vadd.f32 %v6668, %v6797
      %v6855 = vadd.f32 %v6669, %v6800
      %v6856 = vadd.f32 %v6670, %v6805
      %v6857 = vadd.f32 %v6671, %v6808
      %v6858 = vadd.f32 %v6672, %v6813
      %v6859 = vadd.f32 %v6673, %v6816
      %v6860 = vadd.f32 %v6674, %v6821
      %v6861 = vadd.f32 %v6675, %v6824
      %v6862 = vadd.f32 %v6676, %v6829
      %v6863 = vadd.f32 %v6677, %v6832
      %v6864 = vadd.f32 %v6678, %v6837
      %v6865 = vadd.f32 %v6679, %v6840
      %v6866 = vadd.f32 %v6680, %v6845
      %v6868 = vlaneseq
      %v6869 = vshrl.u32 %v6868, 7
      %v6870 = vsub.s32 0, %v6869
      %v6871 = vrot.slane %v5005, %v6870
      %v6873 = vmul.f32 %v6850, %v6871
      %v6874 = vmul.f32 %v6851, %v6871
      %v6875 = vmul.f32 %v6852, %v6871
      %v6876 = vmul.f32 %v6853, %v6871
      %v6877 = vmul.f32 %v6854, %v6871
      %v6878 = vmul.f32 %v6855, %v6871
      %v6879 = vmul.f32 %v6856, %v6871
      %v6880 = vmul.f32 %v6857, %v6871
      %v6881 = vmul.f32 %v6858, %v6871
      %v6882 = vmul.f32 %v6859, %v6871
      %v6883 = vmul.f32 %v6860, %v6871
      %v6884 = vmul.f32 %v6861, %v6871
      %v6885 = vmul.f32 %v6862, %v6871
      %v6886 = vmul.f32 %v6863, %v6871
      %v6887 = vmul.f32 %v6864, %v6871
      %v6888 = vmul.f32 %v6865, %v6871
      %v6889 = vmul.f32 %v6866, %v6871
      %v6891 = vlaneseq
      %v6892 = vshrl.u32 %v6891, 7
      %v6893 = vsub.s32 0, %v6892
      %v6894 = vrot.slane %v5006, %v6893
      %v6896 = vadd.f32 %v6873, %v6894
      %v6897 = vadd.f32 %v6874, %v6894
      %v6898 = vadd.f32 %v6875, %v6894
      %v6899 = vadd.f32 %v6876, %v6894
      %v6900 = vadd.f32 %v6877, %v6894
      %v6901 = vadd.f32 %v6878, %v6894
      %v6902 = vadd.f32 %v6879, %v6894
      %v6903 = vadd.f32 %v6880, %v6894
      %v6904 = vadd.f32 %v6881, %v6894
      %v6905 = vadd.f32 %v6882, %v6894
      %v6906 = vadd.f32 %v6883, %v6894
      %v6907 = vadd.f32 %v6884, %v6894
      %v6908 = vadd.f32 %v6885, %v6894
      %v6909 = vadd.f32 %v6886, %v6894
      %v6910 = vadd.f32 %v6887, %v6894
      %v6911 = vadd.f32 %v6888, %v6894
      %v6912 = vadd.f32 %v6889, %v6894
      %v6913 = vadd.f32 %v6896, %v2521
      %v6914 = vadd.f32 %v6897, %v2522
      %v6915 = vadd.f32 %v6898, %v2523
      %v6916 = vadd.f32 %v6899, %v2524
      %v6917 = vadd.f32 %v6900, %v2525
      %v6918 = vadd.f32 %v6901, %v2526
      %v6919 = vadd.f32 %v6902, %v2527
      %v6920 = vadd.f32 %v6903, %v2528
      %v6921 = vadd.f32 %v6904, %v2529
      %v6922 = vadd.f32 %v6905, %v2530
      %v6923 = vadd.f32 %v6906, %v2531
      %v6924 = vadd.f32 %v6907, %v2532
      %v6925 = vadd.f32 %v6908, %v2533
      %v6926 = vadd.f32 %v6909, %v2534
      %v6927 = vadd.f32 %v6910, %v2535
      %v6928 = vadd.f32 %v6911, %v2536
      %v6929 = vadd.f32 %v6912, %v2537
      %v6930 = vmax.f32 %v6913, 0.0
      %v6931 = vmax.f32 %v6914, 0.0
      %v6932 = vmax.f32 %v6915, 0.0
      %v6933 = vmax.f32 %v6916, 0.0
      %v6934 = vmax.f32 %v6917, 0.0
      %v6935 = vmax.f32 %v6918, 0.0
      %v6936 = vmax.f32 %v6919, 0.0
      %v6937 = vmax.f32 %v6920, 0.0
      %v6938 = vmax.f32 %v6921, 0.0
      %v6939 = vmax.f32 %v6922, 0.0
      %v6940 = vmax.f32 %v6923, 0.0
      %v6941 = vmax.f32 %v6924, 0.0
      %v6942 = vmax.f32 %v6925, 0.0
      %v6943 = vmax.f32 %v6926, 0.0
      %v6944 = vmax.f32 %v6927, 0.0
      %v6945 = vmax.f32 %v6928, 0.0
      %v6946 = vmax.f32 %v6929, 0.0
      %v6947 = vmul.f32 %v6930, %v2439
      %v6948 = vmul.f32 %v6931, %v2444
      %v6949 = vmul.f32 %v6932, %v2449
      %v6950 = vmul.f32 %v6933, %v2454
      %v6951 = vmul.f32 %v6934, %v2459
      %v6952 = vmul.f32 %v6935, %v2464
      %v6953 = vmul.f32 %v6936, %v2469
      %v6954 = vmul.f32 %v6937, %v2474
      %v6955 = vmul.f32 %v6938, %v2479
      %v6956 = vmul.f32 %v6939, %v2484
      %v6957 = vmul.f32 %v6940, %v2489
      %v6958 = vmul.f32 %v6941, %v2494
      %v6959 = vmul.f32 %v6942, %v2499
      %v6960 = vmul.f32 %v6943, %v2504
      %v6961 = vmul.f32 %v6944, %v2509
      %v6962 = vmul.f32 %v6945, %v2514
      %v6963 = vmul.f32 %v6946, %v2519
      %v6964 = vpack.c.bf16 %v6948, %v6947
      %v6965 = vpack.c.bf16 %v6950, %v6949
      %v6966 = vpack.c.bf16 %v6952, %v6951
      %v6967 = vpack.c.bf16 %v6954, %v6953
      %v6968 = vpack.c.bf16 %v6956, %v6955
      %v6969 = vpack.c.bf16 %v6958, %v6957
      %v6970 = vpack.c.bf16 %v6960, %v6959
      %v6971 = vpack.c.bf16 %v6962, %v6961
      %v6972 = vpack.c.bf16 %v6963, %v6963
      %v6982 = vunpack.c.l.b16 %v6964
      %v6983 = vunpack.c.h.b16 %v6964
      %v6984 = vunpack.c.l.b16 %v6965
      %v6985 = vunpack.c.h.b16 %v6965
      %v6986 = vunpack.c.l.b16 %v6966
      %v6987 = vunpack.c.h.b16 %v6966
      %v6988 = vunpack.c.l.b16 %v6967
      %v6989 = vunpack.c.h.b16 %v6967
      %v6990 = vunpack.c.l.b16 %v6968
      %v6991 = vunpack.c.h.b16 %v6968
      %v6992 = vunpack.c.l.b16 %v6969
      %v6993 = vunpack.c.h.b16 %v6969
      %v6994 = vunpack.c.l.b16 %v6970
      %v6995 = vunpack.c.h.b16 %v6970
      %v6996 = vunpack.c.l.b16 %v6971
      %v6997 = vunpack.c.h.b16 %v6971
      %v6998 = vunpack.c.l.b16 %v6972
      %v6999 = vpack.c.b16 %v6982, %v6982
      %v7000 = vpack.c.b16 %v6983, %v6983
      %v7001 = vpack.c.b16 %v6984, %v6984
      %v7002 = vpack.c.b16 %v6985, %v6985
      %v7003 = vpack.c.b16 %v6986, %v6986
      %v7004 = vpack.c.b16 %v6987, %v6987
      %v7005 = vpack.c.b16 %v6988, %v6988
      %v7006 = vpack.c.b16 %v6989, %v6989
      %v7007 = vpack.c.b16 %v6990, %v6990
      %v7008 = vpack.c.b16 %v6991, %v6991
      %v7009 = vpack.c.b16 %v6992, %v6992
      %v7010 = vpack.c.b16 %v6993, %v6993
      %v7011 = vpack.c.b16 %v6994, %v6994
      %v7012 = vpack.c.b16 %v6995, %v6995
      %v7013 = vpack.c.b16 %v6996, %v6996
      %v7014 = vpack.c.b16 %v6997, %v6997
      %v7015 = vpack.c.b16 %v6998, %v6998
      %v7017 = vshrl.u32 %v6999, 16
      %v7019 = vrot.slane %v7017, 5
      %v7020 = vshll.u32 %v6999, 16
      %v7022 = vrot.slane %v7020, 6
      %v7023 = vor.u32 %v7019, %v7022
      %v7024 = vrot.slane %v7023, 4
      %v7026 = vshrl.u32 %v7000, 16
      %v7028 = vrot.slane %v7026, 5
      %v7029 = vshll.u32 %v7000, 16
      %v7031 = vrot.slane %v7029, 6
      %v7032 = vor.u32 %v7028, %v7031
      %v7033 = vsel %vm2591, %v7024, %v7032
      %v7034 = vrot.slane %v7032, 4
      %v7036 = vshrl.u32 %v7001, 16
      %v7038 = vrot.slane %v7036, 5
      %v7039 = vshll.u32 %v7001, 16
      %v7041 = vrot.slane %v7039, 6
      %v7042 = vor.u32 %v7038, %v7041
      %v7043 = vsel %vm2591, %v7034, %v7042
      %v7044 = vrot.slane %v7042, 4
      %v7046 = vshrl.u32 %v7002, 16
      %v7048 = vrot.slane %v7046, 5
      %v7049 = vshll.u32 %v7002, 16
      %v7051 = vrot.slane %v7049, 6
      %v7052 = vor.u32 %v7048, %v7051
      %v7053 = vsel %vm2591, %v7044, %v7052
      %v7054 = vrot.slane %v7052, 4
      %v7056 = vshrl.u32 %v7003, 16
      %v7058 = vrot.slane %v7056, 5
      %v7059 = vshll.u32 %v7003, 16
      %v7061 = vrot.slane %v7059, 6
      %v7062 = vor.u32 %v7058, %v7061
      %v7063 = vsel %vm2591, %v7054, %v7062
      %v7064 = vrot.slane %v7062, 4
      %v7066 = vshrl.u32 %v7004, 16
      %v7068 = vrot.slane %v7066, 5
      %v7069 = vshll.u32 %v7004, 16
      %v7071 = vrot.slane %v7069, 6
      %v7072 = vor.u32 %v7068, %v7071
      %v7073 = vsel %vm2591, %v7064, %v7072
      %v7074 = vrot.slane %v7072, 4
      %v7076 = vshrl.u32 %v7005, 16
      %v7078 = vrot.slane %v7076, 5
      %v7079 = vshll.u32 %v7005, 16
      %v7081 = vrot.slane %v7079, 6
      %v7082 = vor.u32 %v7078, %v7081
      %v7083 = vsel %vm2591, %v7074, %v7082
      %v7084 = vrot.slane %v7082, 4
      %v7086 = vshrl.u32 %v7006, 16
      %v7088 = vrot.slane %v7086, 5
      %v7089 = vshll.u32 %v7006, 16
      %v7091 = vrot.slane %v7089, 6
      %v7092 = vor.u32 %v7088, %v7091
      %v7093 = vsel %vm2591, %v7084, %v7092
      %v7094 = vrot.slane %v7092, 4
      %v7096 = vshrl.u32 %v7007, 16
      %v7098 = vrot.slane %v7096, 5
      %v7099 = vshll.u32 %v7007, 16
      %v7101 = vrot.slane %v7099, 6
      %v7102 = vor.u32 %v7098, %v7101
      %v7103 = vsel %vm2591, %v7094, %v7102
      %v7104 = vrot.slane %v7102, 4
      %v7106 = vshrl.u32 %v7008, 16
      %v7108 = vrot.slane %v7106, 5
      %v7109 = vshll.u32 %v7008, 16
      %v7111 = vrot.slane %v7109, 6
      %v7112 = vor.u32 %v7108, %v7111
      %v7113 = vsel %vm2591, %v7104, %v7112
      %v7114 = vrot.slane %v7112, 4
      %v7116 = vshrl.u32 %v7009, 16
      %v7118 = vrot.slane %v7116, 5
      %v7119 = vshll.u32 %v7009, 16
      %v7121 = vrot.slane %v7119, 6
      %v7122 = vor.u32 %v7118, %v7121
      %v7123 = vsel %vm2591, %v7114, %v7122
      %v7124 = vrot.slane %v7122, 4
      %v7126 = vshrl.u32 %v7010, 16
      %v7128 = vrot.slane %v7126, 5
      %v7129 = vshll.u32 %v7010, 16
      %v7131 = vrot.slane %v7129, 6
      %v7132 = vor.u32 %v7128, %v7131
      %v7133 = vsel %vm2591, %v7124, %v7132
      %v7134 = vrot.slane %v7132, 4
      %v7136 = vshrl.u32 %v7011, 16
      %v7138 = vrot.slane %v7136, 5
      %v7139 = vshll.u32 %v7011, 16
      %v7141 = vrot.slane %v7139, 6
      %v7142 = vor.u32 %v7138, %v7141
      %v7143 = vsel %vm2591, %v7134, %v7142
      %v7144 = vrot.slane %v7142, 4
      %v7146 = vshrl.u32 %v7012, 16
      %v7148 = vrot.slane %v7146, 5
      %v7149 = vshll.u32 %v7012, 16
      %v7151 = vrot.slane %v7149, 6
      %v7152 = vor.u32 %v7148, %v7151
      %v7153 = vsel %vm2591, %v7144, %v7152
      %v7154 = vrot.slane %v7152, 4
      %v7156 = vshrl.u32 %v7013, 16
      %v7158 = vrot.slane %v7156, 5
      %v7159 = vshll.u32 %v7013, 16
      %v7161 = vrot.slane %v7159, 6
      %v7162 = vor.u32 %v7158, %v7161
      %v7163 = vsel %vm2591, %v7154, %v7162
      %v7164 = vrot.slane %v7162, 4
      %v7166 = vshrl.u32 %v7014, 16
      %v7168 = vrot.slane %v7166, 5
      %v7169 = vshll.u32 %v7014, 16
      %v7171 = vrot.slane %v7169, 6
      %v7172 = vor.u32 %v7168, %v7171
      %v7173 = vsel %vm2591, %v7164, %v7172
      %v7174 = vrot.slane %v7172, 4
      %v7176 = vshrl.u32 %v7015, 16
      %v7178 = vrot.slane %v7176, 5
      %v7179 = vshll.u32 %v7015, 16
      %v7181 = vrot.slane %v7179, 6
      %v7182 = vor.u32 %v7178, %v7181
      %v7183 = vsel %vm2591, %v7174, %v7182
      %v7184 = vrot.slane %v7182, 4
      %v7203 = vsel %vm710, %v7023, %v5615
      %7204 = vst [vmem:[#allocation2] sm:$0xc] %v7203
      %7205 = vst.msk [vmem:[#allocation2 + $0x4] sm:$0xf] %vm2782, %v7033
      %7206 = vst.msk [vmem:[#allocation2 + $0x8] sm:$0xf] %vm2782, %v7043
      %7207 = vst.msk [vmem:[#allocation2 + $0xc] sm:$0xf] %vm2782, %v7053
      %7208 = vst.msk [vmem:[#allocation2 + $0x10] sm:$0xf] %vm2782, %v7063
      %7209 = vst.msk [vmem:[#allocation2 + $0x14] sm:$0xf] %vm2782, %v7073
      %7210 = vst.msk [vmem:[#allocation2 + $0x18] sm:$0xf] %vm2782, %v7083
      %7211 = vst.msk [vmem:[#allocation2 + $0x1c] sm:$0xf] %vm2782, %v7093
      %7212 = vst.msk [vmem:[#allocation2 + $0x20] sm:$0xf] %vm2782, %v7103
      %7213 = vst.msk [vmem:[#allocation2 + $0x24] sm:$0xf] %vm2782, %v7113
      %7214 = vst.msk [vmem:[#allocation2 + $0x28] sm:$0xf] %vm2782, %v7123
      %7215 = vst.msk [vmem:[#allocation2 + $0x2c] sm:$0xf] %vm2782, %v7133
      %7216 = vst.msk [vmem:[#allocation2 + $0x30] sm:$0xf] %vm2782, %v7143
      %7217 = vst.msk [vmem:[#allocation2 + $0x34] sm:$0xf] %vm2782, %v7153
      %7218 = vst.msk [vmem:[#allocation2 + $0x38] sm:$0xf] %vm2782, %v7163
      %7219 = vst.msk [vmem:[#allocation2 + $0x3c] sm:$0xf] %vm2782, %v7173
      %7220 = vst.msk [vmem:[#allocation2 + $0x40] sm:$0xf] %vm2782, %v7183
      %v7221 = vld [vmem:[#allocation2 + $0x44] sm:$0x7]
      %v7222 = vsel %vm704, %v7184, %v7221
      %7223 = vst [vmem:[#allocation2 + $0x44] sm:$0x7] %v7222
      %v7224 = vld [vmem:[%s7] sm:$0x1]
      %v7225 = vld [vmem:[%s8] sm:$0x1]
      %v7226 = vld [vmem:[#allocation2] sm:$0xf]
      %v7227 = vld [vmem:[#allocation2 + $0x4] sm:$0xf]
      %v7228 = vld [vmem:[#allocation2 + $0x8] sm:$0xf]
      %v7229 = vld [vmem:[#allocation2 + $0xc] sm:$0xf]
      %v7230 = vld [vmem:[#allocation2 + $0x10] sm:$0xf]
      %v7231 = vld [vmem:[#allocation2 + $0x14] sm:$0xf]
      %v7232 = vld [vmem:[#allocation2 + $0x18] sm:$0xf]
      %v7233 = vld [vmem:[#allocation2 + $0x1c] sm:$0xf]
      %v7234 = vld [vmem:[#allocation2 + $0x20] sm:$0xf]
      %v7235 = vld [vmem:[#allocation2 + $0x24] sm:$0xf]
      %v7236 = vld [vmem:[#allocation2 + $0x28] sm:$0xf]
      %v7237 = vld [vmem:[#allocation2 + $0x2c] sm:$0xf]
      %v7238 = vld [vmem:[#allocation2 + $0x30] sm:$0xf]
      %v7239 = vld [vmem:[#allocation2 + $0x34] sm:$0xf]
      %v7240 = vld [vmem:[#allocation2 + $0x38] sm:$0xf]
      %v7241 = vld [vmem:[#allocation2 + $0x3c] sm:$0xf]
      %v7242 = vld [vmem:[#allocation2 + $0x40] sm:$0xf]
      %v7243 = vld [vmem:[%s6] sm:$0xf]
      %v7244 = vld [vmem:[%s6 + $0x4] sm:$0xf]
      %v7245 = vld [vmem:[%s6 + $0x8] sm:$0xf]
      %v7246 = vld [vmem:[%s6 + $0xc] sm:$0xf]
      %v7247 = vld [vmem:[#allocation2 + $0x44] sm:$0x1]
      %v7248 = vld [vmem:[%s2826] sm:$0xf]
      %v7249 = vld [vmem:[%s2826 + $0x4] sm:$0xf]
      %v7250 = vld [vmem:[%s2826 + $0x8] sm:$0xf]
      %v7251 = vld [vmem:[%s2826 + $0xc] sm:$0xf]
      %v7270 = vunpack.c.l.b16 %v7226
      %v7271 = vunpack.c.l.b16 %v7227
      %v7272 = vunpack.c.l.b16 %v7228
      %v7273 = vunpack.c.l.b16 %v7229
      %v7274 = vunpack.c.l.b16 %v7230
      %v7275 = vunpack.c.l.b16 %v7231
      %v7276 = vunpack.c.l.b16 %v7232
      %v7277 = vunpack.c.l.b16 %v7233
      %v7278 = vunpack.c.l.b16 %v7234
      %v7279 = vunpack.c.l.b16 %v7235
      %v7280 = vunpack.c.l.b16 %v7236
      %v7281 = vunpack.c.l.b16 %v7237
      %v7282 = vunpack.c.l.b16 %v7238
      %v7283 = vunpack.c.l.b16 %v7239
      %v7284 = vunpack.c.l.b16 %v7240
      %v7285 = vunpack.c.l.b16 %v7241
      %v7286 = vunpack.c.l.b16 %v7242
      %v7287 = vunpack.c.l.b16 %v7247
      %v7288 = vpack.c.b16 %v7271, %v7270
      %v7289 = vpack.c.b16 %v7273, %v7272
      %v7290 = vpack.c.b16 %v7275, %v7274
      %v7291 = vpack.c.b16 %v7277, %v7276
      %v7292 = vpack.c.b16 %v7279, %v7278
      %v7293 = vpack.c.b16 %v7281, %v7280
      %v7294 = vpack.c.b16 %v7283, %v7282
      %v7295 = vpack.c.b16 %v7285, %v7284
      %v7296 = vpack.c.b16 %v7287, %v7286
      %v7298 = vshrl.u32 %v7288, 16
      %v7300 = vshll.u32 %v7288, 16
      %v7302 = vrot.slane %v7300, 1
      %v7303 = vor.u32 %v7298, %v7302
      %v7305 = vshll.u32 %v7289, 16
      %v7307 = vrot.slane %v7305, 1
      %v7308 = vsel %vm785, %v7303, %v7307
      %v7309 = vshrl.u32 %v7289, 16
      %v7311 = vor.u32 %v7309, %v7307
      %v7313 = vshll.u32 %v7290, 16
      %v7315 = vrot.slane %v7313, 1
      %v7316 = vsel %vm785, %v7311, %v7315
      %v7317 = vshrl.u32 %v7290, 16
      %v7319 = vor.u32 %v7317, %v7315
      %v7321 = vshll.u32 %v7291, 16
      %v7323 = vrot.slane %v7321, 1
      %v7324 = vsel %vm785, %v7319, %v7323
      %v7325 = vshrl.u32 %v7291, 16
      %v7327 = vor.u32 %v7325, %v7323
      %v7329 = vshll.u32 %v7292, 16
      %v7331 = vrot.slane %v7329, 1
      %v7332 = vsel %vm785, %v7327, %v7331
      %v7333 = vshrl.u32 %v7292, 16
      %v7335 = vor.u32 %v7333, %v7331
      %v7337 = vshll.u32 %v7293, 16
      %v7339 = vrot.slane %v7337, 1
      %v7340 = vsel %vm785, %v7335, %v7339
      %v7341 = vshrl.u32 %v7293, 16
      %v7343 = vor.u32 %v7341, %v7339
      %v7345 = vshll.u32 %v7294, 16
      %v7347 = vrot.slane %v7345, 1
      %v7348 = vsel %vm785, %v7343, %v7347
      %v7349 = vshrl.u32 %v7294, 16
      %v7351 = vor.u32 %v7349, %v7347
      %v7353 = vshll.u32 %v7295, 16
      %v7355 = vrot.slane %v7353, 1
      %v7356 = vsel %vm785, %v7351, %v7355
      %v7357 = vshrl.u32 %v7295, 16
      %v7359 = vor.u32 %v7357, %v7355
      %v7361 = vshll.u32 %v7296, 16
      %v7363 = vrot.slane %v7361, 1
      %v7364 = vsel %vm785, %v7359, %v7363
      %v7365 = vshrl.u32 %v7296, 16
      %v7367 = vor.u32 %v7365, %v7363
      %v7372 = vunpack.c.l.b16 %v7248
      %v7373 = vunpack.c.l.b16 %v7249
      %v7374 = vunpack.c.l.b16 %v7250
      %v7375 = vunpack.c.l.b16 %v7251
      %v7376 = vpack.c.b16 %v7373, %v7372
      %v7377 = vpack.c.b16 %v7375, %v7374
      %v7381 = vsel %vm2959, %v7308, 0
      %v7384 = vsel %vm2959, %v7316, 0
      %v7387 = vsel %vm2959, %v7324, 0
      %v7390 = vsel %vm2959, %v7332, 0
      %v7393 = vsel %vm2959, %v7340, 0
      %v7396 = vsel %vm2959, %v7348, 0
      %v7399 = vsel %vm2959, %v7356, 0
      %v7402 = vsel %vm2959, %v7364, 0
      %v7405 = vsel %vm2959, %v7367, 0
      %7407 = vmatprep.subr.bf16.mxu0 0
      %7408 = vmatpush1.bf16.msra.mxu0 %v7376
      %7409 = vmatprep.subr.bf16.mxu0 0
      %7410 = vmatpush1.bf16.msra.mxu0 %v7377
      %7411 = vmatprep.subr.bf16.mxu0 0
      %7412 = vmatpush1.bf16.msra.mxu0 0
      %7413 = vmatprep.subr.bf16.mxu0 0
      %7414 = vmatpush1.bf16.msra.mxu0 0
      %7415 = vmatprep.subr.bf16.mxu0 0
      %7416 = vmatpush1.bf16.msra.mxu0 0
      %7417 = vmatprep.subr.bf16.mxu0 0
      %7418 = vmatpush1.bf16.msra.mxu0 0
      %7419 = vmatprep.subr.bf16.mxu0 0
      %7420 = vmatpush1.bf16.msra.mxu0 0
      %7421 = vmatprep.subr.bf16.mxu0 0
      %7422 = vmatpush1.bf16.msra.mxu0 0
      %7423 = vmatprep.subr.bf16.mxu0 0
      %7424 = vmatpush1.bf16.msra.mxu0 0
      %7425 = vmatprep.subr.bf16.mxu0 0
      %7426 = vmatpush1.bf16.msra.mxu0 0
      %7427 = vmatprep.subr.bf16.mxu0 0
      %7428 = vmatpush1.bf16.msra.mxu0 0
      %7429 = vmatprep.subr.bf16.mxu0 0
      %7430 = vmatpush1.bf16.msra.mxu0 0
      %7431 = vmatprep.subr.bf16.mxu0 0
      %7432 = vmatpush1.bf16.msra.mxu0 0
      %7433 = vmatprep.subr.bf16.mxu0 0
      %7434 = vmatpush1.bf16.msra.mxu0 0
      %7435 = vmatprep.subr.bf16.mxu0 0
      %7436 = vmatpush1.bf16.msra.mxu0 0
      %7437 = vmatprep.subr.bf16.mxu0 0
      %7438 = vmatpush1.bf16.msra.mxu0 0
      %7439 = vmatprep.mubr.bf16.mxu0 0
      %7440 = vmatmul.mubr.bf16.gmra.mrb[0].mxu0 %v7381
      %v7441 = vpop.f32.mrb[0].mxu0
      %v7442 = vadd.f32 0.0, %v7441
      %v7443 = vpop.f32.mrb[0].mxu0
      %v7444 = vpop.f32.mrb[0].mxu0
      %v7445 = vadd.f32 0.0, %v7444
      %v7446 = vpop.f32.mrb[0].mxu0
      %7447 = vmatprep.mubr.bf16.mxu0 0
      %7448 = vmatmul.mubr.bf16.gmra.mrb[0].mxu0 %v7384
      %v7449 = vpop.f32.mrb[0].mxu0
      %v7450 = vadd.f32 0.0, %v7449
      %v7451 = vpop.f32.mrb[0].mxu0
      %v7452 = vpop.f32.mrb[0].mxu0
      %v7453 = vadd.f32 0.0, %v7452
      %v7454 = vpop.f32.mrb[0].mxu0
      %7455 = vmatprep.mubr.bf16.mxu0 0
      %7456 = vmatmul.mubr.bf16.gmra.mrb[0].mxu0 %v7387
      %v7457 = vpop.f32.mrb[0].mxu0
      %v7458 = vadd.f32 0.0, %v7457
      %v7459 = vpop.f32.mrb[0].mxu0
      %v7460 = vpop.f32.mrb[0].mxu0
      %v7461 = vadd.f32 0.0, %v7460
      %v7462 = vpop.f32.mrb[0].mxu0
      %7463 = vmatprep.mubr.bf16.mxu0 0
      %7464 = vmatmul.mubr.bf16.gmra.mrb[0].mxu0 %v7390
      %v7465 = vpop.f32.mrb[0].mxu0
      %v7466 = vadd.f32 0.0, %v7465
      %v7467 = vpop.f32.mrb[0].mxu0
      %v7468 = vpop.f32.mrb[0].mxu0
      %v7469 = vadd.f32 0.0, %v7468
      %v7470 = vpop.f32.mrb[0].mxu0
      %7471 = vmatprep.mubr.bf16.mxu0 0
      %7472 = vmatmul.mubr.bf16.gmra.mrb[0].mxu0 %v7393
      %v7473 = vpop.f32.mrb[0].mxu0
      %v7474 = vadd.f32 0.0, %v7473
      %v7475 = vpop.f32.mrb[0].mxu0
      %v7476 = vpop.f32.mrb[0].mxu0
      %v7477 = vadd.f32 0.0, %v7476
      %v7478 = vpop.f32.mrb[0].mxu0
      %7479 = vmatprep.mubr.bf16.mxu0 0
      %7480 = vmatmul.mubr.bf16.gmra.mrb[0].mxu0 %v7396
      %v7481 = vpop.f32.mrb[0].mxu0
      %v7482 = vadd.f32 0.0, %v7481
      %v7483 = vpop.f32.mrb[0].mxu0
      %v7484 = vpop.f32.mrb[0].mxu0
      %v7485 = vadd.f32 0.0, %v7484
      %v7486 = vpop.f32.mrb[0].mxu0
      %7487 = vmatprep.mubr.bf16.mxu0 0
      %7488 = vmatmul.mubr.bf16.gmra.mrb[0].mxu0 %v7399
      %v7489 = vpop.f32.mrb[0].mxu0
      %v7490 = vadd.f32 0.0, %v7489
      %v7491 = vpop.f32.mrb[0].mxu0
      %v7492 = vpop.f32.mrb[0].mxu0
      %v7493 = vadd.f32 0.0, %v7492
      %v7494 = vpop.f32.mrb[0].mxu0
      %7495 = vmatprep.mubr.bf16.mxu0 0
      %7496 = vmatmul.mubr.bf16.gmra.mrb[0].mxu0 %v7402
      %v7497 = vpop.f32.mrb[0].mxu0
      %v7498 = vadd.f32 0.0, %v7497
      %v7499 = vpop.f32.mrb[0].mxu0
      %v7500 = vpop.f32.mrb[0].mxu0
      %v7501 = vadd.f32 0.0, %v7500
      %v7502 = vpop.f32.mrb[0].mxu0
      %7503 = vmatprep.mubr.bf16.mxu0 0
      %7504 = vmatmul.mubr.bf16.gmra.mrb[0].mxu0 %v7405
      %v7505 = vpop.f32.mrb[0].mxu0
      %v7506 = vadd.f32 0.0, %v7505
      %v7507 = vpop.f32.mrb[0].mxu0
      %v7508 = vpop.f32.mrb[0].mxu0
      %v7509 = vpop.f32.mrb[0].mxu0
      %7510 = vdwg.mxu0
      %v7511 = vpack.c.b16 %v7286, %v7286
      %v7516 = vunpack.c.l.b16 %v7243
      %v7517 = vunpack.c.l.b16 %v7244
      %v7518 = vunpack.c.l.b16 %v7245
      %v7519 = vunpack.c.l.b16 %v7246
      %v7520 = vpack.c.b16 %v7517, %v7516
      %v7521 = vpack.c.b16 %v7519, %v7518
      %v7524 = vsel %vm2959, %v7288, 0
      %v7526 = vsel %vm2959, %v7289, 0
      %v7528 = vsel %vm2959, %v7290, 0
      %v7530 = vsel %vm2959, %v7291, 0
      %v7532 = vsel %vm2959, %v7292, 0
      %v7534 = vsel %vm2959, %v7293, 0
      %v7536 = vsel %vm2959, %v7294, 0
      %v7538 = vsel %vm2959, %v7295, 0
      %v7541 = vsel %vm2959, %v7511, 0
      %7543 = vmatprep.subr.bf16.mxu0 0
      %7544 = vmatpush1.bf16.msra.mxu0 %v7520
      %7545 = vmatprep.subr.bf16.mxu0 0
      %7546 = vmatpush1.bf16.msra.mxu0 %v7521
      %7547 = vmatprep.subr.bf16.mxu0 0
      %7548 = vmatpush1.bf16.msra.mxu0 0
      %7549 = vmatprep.subr.bf16.mxu0 0
      %7550 = vmatpush1.bf16.msra.mxu0 0
      %7551 = vmatprep.subr.bf16.mxu0 0
      %7552 = vmatpush1.bf16.msra.mxu0 0
      %7553 = vmatprep.subr.bf16.mxu0 0
      %7554 = vmatpush1.bf16.msra.mxu0 0
      %7555 = vmatprep.subr.bf16.mxu0 0
      %7556 = vmatpush1.bf16.msra.mxu0 0
      %7557 = vmatprep.subr.bf16.mxu0 0
      %7558 = vmatpush1.bf16.msra.mxu0 0
      %7559 = vmatprep.subr.bf16.mxu0 0
      %7560 = vmatpush1.bf16.msra.mxu0 0
      %7561 = vmatprep.subr.bf16.mxu0 0
      %7562 = vmatpush1.bf16.msra.mxu0 0
      %7563 = vmatprep.subr.bf16.mxu0 0
      %7564 = vmatpush1.bf16.msra.mxu0 0
      %7565 = vmatprep.subr.bf16.mxu0 0
      %7566 = vmatpush1.bf16.msra.mxu0 0
      %7567 = vmatprep.subr.bf16.mxu0 0
      %7568 = vmatpush1.bf16.msra.mxu0 0
      %7569 = vmatprep.subr.bf16.mxu0 0
      %7570 = vmatpush1.bf16.msra.mxu0 0
      %7571 = vmatprep.subr.bf16.mxu0 0
      %7572 = vmatpush1.bf16.msra.mxu0 0
      %7573 = vmatprep.subr.bf16.mxu0 0
      %7574 = vmatpush1.bf16.msra.mxu0 0
      %7575 = vmatprep.mubr.bf16.mxu0 0
      %7576 = vmatmul.mubr.bf16.gmra.mrb[0].mxu0 %v7524
      %v7577 = vpop.f32.mrb[0].mxu0
      %v7578 = vadd.f32 %v7442, %v7577
      %v7579 = vpop.f32.mrb[0].mxu0
      %v7580 = vpop.f32.mrb[0].mxu0
      %v7581 = vadd.f32 %v7445, %v7580
      %v7582 = vpop.f32.mrb[0].mxu0
      %7583 = vmatprep.mubr.bf16.mxu0 0
      %7584 = vmatmul.mubr.bf16.gmra.mrb[0].mxu0 %v7526
      %v7585 = vpop.f32.mrb[0].mxu0
      %v7586 = vadd.f32 %v7450, %v7585
      %v7587 = vpop.f32.mrb[0].mxu0
      %v7588 = vpop.f32.mrb[0].mxu0
      %v7589 = vadd.f32 %v7453, %v7588
      %v7590 = vpop.f32.mrb[0].mxu0
      %7591 = vmatprep.mubr.bf16.mxu0 0
      %7592 = vmatmul.mubr.bf16.gmra.mrb[0].mxu0 %v7528
      %v7593 = vpop.f32.mrb[0].mxu0
      %v7594 = vadd.f32 %v7458, %v7593
      %v7595 = vpop.f32.mrb[0].mxu0
      %v7596 = vpop.f32.mrb[0].mxu0
      %v7597 = vadd.f32 %v7461, %v7596
      %v7598 = vpop.f32.mrb[0].mxu0
      %7599 = vmatprep.mubr.bf16.mxu0 0
      %7600 = vmatmul.mubr.bf16.gmra.mrb[0].mxu0 %v7530
      %v7601 = vpop.f32.mrb[0].mxu0
      %v7602 = vadd.f32 %v7466, %v7601
      %v7603 = vpop.f32.mrb[0].mxu0
      %v7604 = vpop.f32.mrb[0].mxu0
      %v7605 = vadd.f32 %v7469, %v7604
      %v7606 = vpop.f32.mrb[0].mxu0
      %7607 = vmatprep.mubr.bf16.mxu0 0
      %7608 = vmatmul.mubr.bf16.gmra.mrb[0].mxu0 %v7532
      %v7609 = vpop.f32.mrb[0].mxu0
      %v7610 = vadd.f32 %v7474, %v7609
      %v7611 = vpop.f32.mrb[0].mxu0
      %v7612 = vpop.f32.mrb[0].mxu0
      %v7613 = vadd.f32 %v7477, %v7612
      %v7614 = vpop.f32.mrb[0].mxu0
      %7615 = vmatprep.mubr.bf16.mxu0 0
      %7616 = vmatmul.mubr.bf16.gmra.mrb[0].mxu0 %v7534
      %v7617 = vpop.f32.mrb[0].mxu0
      %v7618 = vadd.f32 %v7482, %v7617
      %v7619 = vpop.f32.mrb[0].mxu0
      %v7620 = vpop.f32.mrb[0].mxu0
      %v7621 = vadd.f32 %v7485, %v7620
      %v7622 = vpop.f32.mrb[0].mxu0
      %7623 = vmatprep.mubr.bf16.mxu0 0
      %7624 = vmatmul.mubr.bf16.gmra.mrb[0].mxu0 %v7536
      %v7625 = vpop.f32.mrb[0].mxu0
      %v7626 = vadd.f32 %v7490, %v7625
      %v7627 = vpop.f32.mrb[0].mxu0
      %v7628 = vpop.f32.mrb[0].mxu0
      %v7629 = vadd.f32 %v7493, %v7628
      %v7630 = vpop.f32.mrb[0].mxu0
      %7631 = vmatprep.mubr.bf16.mxu0 0
      %7632 = vmatmul.mubr.bf16.gmra.mrb[0].mxu0 %v7538
      %v7633 = vpop.f32.mrb[0].mxu0
      %v7634 = vadd.f32 %v7498, %v7633
      %v7635 = vpop.f32.mrb[0].mxu0
      %v7636 = vpop.f32.mrb[0].mxu0
      %v7637 = vadd.f32 %v7501, %v7636
      %v7638 = vpop.f32.mrb[0].mxu0
      %7639 = vmatprep.mubr.bf16.mxu0 0
      %7640 = vmatmul.mubr.bf16.gmra.mrb[0].mxu0 %v7541
      %v7641 = vpop.f32.mrb[0].mxu0
      %v7642 = vadd.f32 %v7506, %v7641
      %v7643 = vpop.f32.mrb[0].mxu0
      %v7644 = vpop.f32.mrb[0].mxu0
      %v7645 = vpop.f32.mrb[0].mxu0
      %7646 = vdwg.mxu0
      %v7647 = vld [vmem:[#allocation2] sm:$0xe]
      %v7648 = vld [vmem:[%s3228] sm:$0xf]
      %v7649 = vld [vmem:[%s3228 + $0x4] sm:$0xf]
      %v7650 = vld [vmem:[%s3228 + $0x8] sm:$0xf]
      %v7651 = vld [vmem:[%s3228 + $0xc] sm:$0xf]
      %v7653 = vunpack.c.l.b16 %v7647
      %v7654 = vpack.c.b16 %v7271, %v7653
      %v7655 = vrot.slane %v7654, 1
      %v7656 = vrot.slane %v7289, 1
      %v7657 = vsel %vm1122, %v7655, %v7656
      %v7658 = vrot.slane %v7290, 1
      %v7659 = vsel %vm1122, %v7656, %v7658
      %v7660 = vrot.slane %v7291, 1
      %v7661 = vsel %vm1122, %v7658, %v7660
      %v7662 = vrot.slane %v7292, 1
      %v7663 = vsel %vm1122, %v7660, %v7662
      %v7664 = vrot.slane %v7293, 1
      %v7665 = vsel %vm1122, %v7662, %v7664
      %v7666 = vrot.slane %v7294, 1
      %v7667 = vsel %vm1122, %v7664, %v7666
      %v7668 = vrot.slane %v7295, 1
      %v7669 = vsel %vm1122, %v7666, %v7668
      %v7670 = vrot.slane %v7296, 1
      %v7671 = vsel %vm1122, %v7668, %v7670
      %v7676 = vunpack.c.l.b16 %v7648
      %v7677 = vunpack.c.l.b16 %v7649
      %v7678 = vunpack.c.l.b16 %v7650
      %v7679 = vunpack.c.l.b16 %v7651
      %v7680 = vpack.c.b16 %v7677, %v7676
      %v7681 = vpack.c.b16 %v7679, %v7678
      %v7685 = vsel %vm2959, %v7657, 0
      %v7688 = vsel %vm2959, %v7659, 0
      %v7691 = vsel %vm2959, %v7661, 0
      %v7694 = vsel %vm2959, %v7663, 0
      %v7697 = vsel %vm2959, %v7665, 0
      %v7700 = vsel %vm2959, %v7667, 0
      %v7703 = vsel %vm2959, %v7669, 0
      %v7706 = vsel %vm2959, %v7671, 0
      %v7709 = vsel %vm2959, %v7670, 0
      %7711 = vmatprep.subr.bf16.mxu0 0
      %7712 = vmatpush1.bf16.msra.mxu0 %v7680
      %7713 = vmatprep.subr.bf16.mxu0 0
      %7714 = vmatpush1.bf16.msra.mxu0 %v7681
      %7715 = vmatprep.subr.bf16.mxu0 0
      %7716 = vmatpush1.bf16.msra.mxu0 0
      %7717 = vmatprep.subr.bf16.mxu0 0
      %7718 = vmatpush1.bf16.msra.mxu0 0
      %7719 = vmatprep.subr.bf16.mxu0 0
      %7720 = vmatpush1.bf16.msra.mxu0 0
      %7721 = vmatprep.subr.bf16.mxu0 0
      %7722 = vmatpush1.bf16.msra.mxu0 0
      %7723 = vmatprep.subr.bf16.mxu0 0
      %7724 = vmatpush1.bf16.msra.mxu0 0
      %7725 = vmatprep.subr.bf16.mxu0 0
      %7726 = vmatpush1.bf16.msra.mxu0 0
      %7727 = vmatprep.subr.bf16.mxu0 0
      %7728 = vmatpush1.bf16.msra.mxu0 0
      %7729 = vmatprep.subr.bf16.mxu0 0
      %7730 = vmatpush1.bf16.msra.mxu0 0
      %7731 = vmatprep.subr.bf16.mxu0 0
      %7732 = vmatpush1.bf16.msra.mxu0 0
      %7733 = vmatprep.subr.bf16.mxu0 0
      %7734 = vmatpush1.bf16.msra.mxu0 0
      %7735 = vmatprep.subr.bf16.mxu0 0
      %7736 = vmatpush1.bf16.msra.mxu0 0
      %7737 = vmatprep.subr.bf16.mxu0 0
      %7738 = vmatpush1.bf16.msra.mxu0 0
      %7739 = vmatprep.subr.bf16.mxu0 0
      %7740 = vmatpush1.bf16.msra.mxu0 0
      %7741 = vmatprep.subr.bf16.mxu0 0
      %7742 = vmatpush1.bf16.msra.mxu0 0
      %7743 = vmatprep.mubr.bf16.mxu0 0
      %7744 = vmatmul.mubr.bf16.gmra.mrb[0].mxu0 %v7685
      %v7745 = vpop.f32.mrb[0].mxu0
      %v7746 = vadd.f32 0.0, %v7745
      %v7747 = vpop.f32.mrb[0].mxu0
      %v7748 = vpop.f32.mrb[0].mxu0
      %v7749 = vadd.f32 0.0, %v7748
      %v7750 = vpop.f32.mrb[0].mxu0
      %7751 = vmatprep.mubr.bf16.mxu0 0
      %7752 = vmatmul.mubr.bf16.gmra.mrb[0].mxu0 %v7688
      %v7753 = vpop.f32.mrb[0].mxu0
      %v7754 = vadd.f32 0.0, %v7753
      %v7755 = vpop.f32.mrb[0].mxu0
      %v7756 = vpop.f32.mrb[0].mxu0
      %v7757 = vadd.f32 0.0, %v7756
      %v7758 = vpop.f32.mrb[0].mxu0
      %7759 = vmatprep.mubr.bf16.mxu0 0
      %7760 = vmatmul.mubr.bf16.gmra.mrb[0].mxu0 %v7691
      %v7761 = vpop.f32.mrb[0].mxu0
      %v7762 = vadd.f32 0.0, %v7761
      %v7763 = vpop.f32.mrb[0].mxu0
      %v7764 = vpop.f32.mrb[0].mxu0
      %v7765 = vadd.f32 0.0, %v7764
      %v7766 = vpop.f32.mrb[0].mxu0
      %7767 = vmatprep.mubr.bf16.mxu0 0
      %7768 = vmatmul.mubr.bf16.gmra.mrb[0].mxu0 %v7694
      %v7769 = vpop.f32.mrb[0].mxu0
      %v7770 = vadd.f32 0.0, %v7769
      %v7771 = vpop.f32.mrb[0].mxu0
      %v7772 = vpop.f32.mrb[0].mxu0
      %v7773 = vadd.f32 0.0, %v7772
      %v7774 = vpop.f32.mrb[0].mxu0
      %7775 = vmatprep.mubr.bf16.mxu0 0
      %7776 = vmatmul.mubr.bf16.gmra.mrb[0].mxu0 %v7697
      %v7777 = vpop.f32.mrb[0].mxu0
      %v7778 = vadd.f32 0.0, %v7777
      %v7779 = vpop.f32.mrb[0].mxu0
      %v7780 = vpop.f32.mrb[0].mxu0
      %v7781 = vadd.f32 0.0, %v7780
      %v7782 = vpop.f32.mrb[0].mxu0
      %7783 = vmatprep.mubr.bf16.mxu0 0
      %7784 = vmatmul.mubr.bf16.gmra.mrb[0].mxu0 %v7700
      %v7785 = vpop.f32.mrb[0].mxu0
      %v7786 = vadd.f32 0.0, %v7785
      %v7787 = vpop.f32.mrb[0].mxu0
      %v7788 = vpop.f32.mrb[0].mxu0
      %v7789 = vadd.f32 0.0, %v7788
      %v7790 = vpop.f32.mrb[0].mxu0
      %7791 = vmatprep.mubr.bf16.mxu0 0
      %7792 = vmatmul.mubr.bf16.gmra.mrb[0].mxu0 %v7703
      %v7793 = vpop.f32.mrb[0].mxu0
      %v7794 = vadd.f32 0.0, %v7793
      %v7795 = vpop.f32.mrb[0].mxu0
      %v7796 = vpop.f32.mrb[0].mxu0
      %v7797 = vadd.f32 0.0, %v7796
      %v7798 = vpop.f32.mrb[0].mxu0
      %7799 = vmatprep.mubr.bf16.mxu0 0
      %7800 = vmatmul.mubr.bf16.gmra.mrb[0].mxu0 %v7706
      %v7801 = vpop.f32.mrb[0].mxu0
      %v7802 = vadd.f32 0.0, %v7801
      %v7803 = vpop.f32.mrb[0].mxu0
      %v7804 = vpop.f32.mrb[0].mxu0
      %v7805 = vadd.f32 0.0, %v7804
      %v7806 = vpop.f32.mrb[0].mxu0
      %7807 = vmatprep.mubr.bf16.mxu0 0
      %7808 = vmatmul.mubr.bf16.gmra.mrb[0].mxu0 %v7709
      %v7809 = vpop.f32.mrb[0].mxu0
      %v7810 = vadd.f32 0.0, %v7809
      %v7811 = vpop.f32.mrb[0].mxu0
      %v7812 = vpop.f32.mrb[0].mxu0
      %v7813 = vpop.f32.mrb[0].mxu0
      %7814 = vdwg.mxu0
      %v7815 = vadd.f32 %v7578, %v7746
      %v7816 = vadd.f32 %v7581, %v7749
      %v7817 = vadd.f32 %v7586, %v7754
      %v7818 = vadd.f32 %v7589, %v7757
      %v7819 = vadd.f32 %v7594, %v7762
      %v7820 = vadd.f32 %v7597, %v7765
      %v7821 = vadd.f32 %v7602, %v7770
      %v7822 = vadd.f32 %v7605, %v7773
      %v7823 = vadd.f32 %v7610, %v7778
      %v7824 = vadd.f32 %v7613, %v7781
      %v7825 = vadd.f32 %v7618, %v7786
      %v7826 = vadd.f32 %v7621, %v7789
      %v7827 = vadd.f32 %v7626, %v7794
      %v7828 = vadd.f32 %v7629, %v7797
      %v7829 = vadd.f32 %v7634, %v7802
      %v7830 = vadd.f32 %v7637, %v7805
      %v7831 = vadd.f32 %v7642, %v7810
      %v7832 = vld [vmem:[#allocation2] sm:$0xc]
      %v7833 = vld [vmem:[#allocation2 + $0x44] sm:$0x3]
      %v7834 = vld [vmem:[%s3415] sm:$0xf]
      %v7835 = vld [vmem:[%s3415 + $0x4] sm:$0xf]
      %v7836 = vld [vmem:[%s3415 + $0x8] sm:$0xf]
      %v7837 = vld [vmem:[%s3415 + $0xc] sm:$0xf]
      %v7840 = vunpack.c.l.b16 %v7832
      %v7841 = vunpack.c.l.b16 %v7833
      %v7842 = vpack.c.b16 %v7271, %v7840
      %v7843 = vpack.c.b16 %v7841, %v7286
      %v7844 = vrot.slane %v7842, 2
      %v7845 = vrot.slane %v7289, 2
      %v7846 = vsel %vm1293, %v7844, %v7845
      %v7847 = vrot.slane %v7290, 2
      %v7848 = vsel %vm1293, %v7845, %v7847
      %v7849 = vrot.slane %v7291, 2
      %v7850 = vsel %vm1293, %v7847, %v7849
      %v7851 = vrot.slane %v7292, 2
      %v7852 = vsel %vm1293, %v7849, %v7851
      %v7853 = vrot.slane %v7293, 2
      %v7854 = vsel %vm1293, %v7851, %v7853
      %v7855 = vrot.slane %v7294, 2
      %v7856 = vsel %vm1293, %v7853, %v7855
      %v7857 = vrot.slane %v7295, 2
      %v7858 = vsel %vm1293, %v7855, %v7857
      %v7859 = vrot.slane %v7843, 2
      %v7860 = vsel %vm1293, %v7857, %v7859
      %v7865 = vunpack.c.l.b16 %v7834
      %v7866 = vunpack.c.l.b16 %v7835
      %v7867 = vunpack.c.l.b16 %v7836
      %v7868 = vunpack.c.l.b16 %v7837
      %v7869 = vpack.c.b16 %v7866, %v7865
      %v7870 = vpack.c.b16 %v7868, %v7867
      %v7874 = vsel %vm2959, %v7846, 0
      %v7877 = vsel %vm2959, %v7848, 0
      %v7880 = vsel %vm2959, %v7850, 0
      %v7883 = vsel %vm2959, %v7852, 0
      %v7886 = vsel %vm2959, %v7854, 0
      %v7889 = vsel %vm2959, %v7856, 0
      %v7892 = vsel %vm2959, %v7858, 0
      %v7895 = vsel %vm2959, %v7860, 0
      %v7898 = vsel %vm2959, %v7859, 0
      %7900 = vmatprep.subr.bf16.mxu0 0
      %7901 = vmatpush1.bf16.msra.mxu0 %v7869
      %7902 = vmatprep.subr.bf16.mxu0 0
      %7903 = vmatpush1.bf16.msra.mxu0 %v7870
      %7904 = vmatprep.subr.bf16.mxu0 0
      %7905 = vmatpush1.bf16.msra.mxu0 0
      %7906 = vmatprep.subr.bf16.mxu0 0
      %7907 = vmatpush1.bf16.msra.mxu0 0
      %7908 = vmatprep.subr.bf16.mxu0 0
      %7909 = vmatpush1.bf16.msra.mxu0 0
      %7910 = vmatprep.subr.bf16.mxu0 0
      %7911 = vmatpush1.bf16.msra.mxu0 0
      %7912 = vmatprep.subr.bf16.mxu0 0
      %7913 = vmatpush1.bf16.msra.mxu0 0
      %7914 = vmatprep.subr.bf16.mxu0 0
      %7915 = vmatpush1.bf16.msra.mxu0 0
      %7916 = vmatprep.subr.bf16.mxu0 0
      %7917 = vmatpush1.bf16.msra.mxu0 0
      %7918 = vmatprep.subr.bf16.mxu0 0
      %7919 = vmatpush1.bf16.msra.mxu0 0
      %7920 = vmatprep.subr.bf16.mxu0 0
      %7921 = vmatpush1.bf16.msra.mxu0 0
      %7922 = vmatprep.subr.bf16.mxu0 0
      %7923 = vmatpush1.bf16.msra.mxu0 0
      %7924 = vmatprep.subr.bf16.mxu0 0
      %7925 = vmatpush1.bf16.msra.mxu0 0
      %7926 = vmatprep.subr.bf16.mxu0 0
      %7927 = vmatpush1.bf16.msra.mxu0 0
      %7928 = vmatprep.subr.bf16.mxu0 0
      %7929 = vmatpush1.bf16.msra.mxu0 0
      %7930 = vmatprep.subr.bf16.mxu0 0
      %7931 = vmatpush1.bf16.msra.mxu0 0
      %7932 = vmatprep.mubr.bf16.mxu0 0
      %7933 = vmatmul.mubr.bf16.gmra.mrb[0].mxu0 %v7874
      %v7934 = vpop.f32.mrb[0].mxu0
      %v7935 = vadd.f32 0.0, %v7934
      %v7936 = vpop.f32.mrb[0].mxu0
      %v7937 = vpop.f32.mrb[0].mxu0
      %v7938 = vadd.f32 0.0, %v7937
      %v7939 = vpop.f32.mrb[0].mxu0
      %7940 = vmatprep.mubr.bf16.mxu0 0
      %7941 = vmatmul.mubr.bf16.gmra.mrb[0].mxu0 %v7877
      %v7942 = vpop.f32.mrb[0].mxu0
      %v7943 = vadd.f32 0.0, %v7942
      %v7944 = vpop.f32.mrb[0].mxu0
      %v7945 = vpop.f32.mrb[0].mxu0
      %v7946 = vadd.f32 0.0, %v7945
      %v7947 = vpop.f32.mrb[0].mxu0
      %7948 = vmatprep.mubr.bf16.mxu0 0
      %7949 = vmatmul.mubr.bf16.gmra.mrb[0].mxu0 %v7880
      %v7950 = vpop.f32.mrb[0].mxu0
      %v7951 = vadd.f32 0.0, %v7950
      %v7952 = vpop.f32.mrb[0].mxu0
      %v7953 = vpop.f32.mrb[0].mxu0
      %v7954 = vadd.f32 0.0, %v7953
      %v7955 = vpop.f32.mrb[0].mxu0
      %7956 = vmatprep.mubr.bf16.mxu0 0
      %7957 = vmatmul.mubr.bf16.gmra.mrb[0].mxu0 %v7883
      %v7958 = vpop.f32.mrb[0].mxu0
      %v7959 = vadd.f32 0.0, %v7958
      %v7960 = vpop.f32.mrb[0].mxu0
      %v7961 = vpop.f32.mrb[0].mxu0
      %v7962 = vadd.f32 0.0, %v7961
      %v7963 = vpop.f32.mrb[0].mxu0
      %7964 = vmatprep.mubr.bf16.mxu0 0
      %7965 = vmatmul.mubr.bf16.gmra.mrb[0].mxu0 %v7886
      %v7966 = vpop.f32.mrb[0].mxu0
      %v7967 = vadd.f32 0.0, %v7966
      %v7968 = vpop.f32.mrb[0].mxu0
      %v7969 = vpop.f32.mrb[0].mxu0
      %v7970 = vadd.f32 0.0, %v7969
      %v7971 = vpop.f32.mrb[0].mxu0
      %7972 = vmatprep.mubr.bf16.mxu0 0
      %7973 = vmatmul.mubr.bf16.gmra.mrb[0].mxu0 %v7889
      %v7974 = vpop.f32.mrb[0].mxu0
      %v7975 = vadd.f32 0.0, %v7974
      %v7976 = vpop.f32.mrb[0].mxu0
      %v7977 = vpop.f32.mrb[0].mxu0
      %v7978 = vadd.f32 0.0, %v7977
      %v7979 = vpop.f32.mrb[0].mxu0
      %7980 = vmatprep.mubr.bf16.mxu0 0
      %7981 = vmatmul.mubr.bf16.gmra.mrb[0].mxu0 %v7892
      %v7982 = vpop.f32.mrb[0].mxu0
      %v7983 = vadd.f32 0.0, %v7982
      %v7984 = vpop.f32.mrb[0].mxu0
      %v7985 = vpop.f32.mrb[0].mxu0
      %v7986 = vadd.f32 0.0, %v7985
      %v7987 = vpop.f32.mrb[0].mxu0
      %7988 = vmatprep.mubr.bf16.mxu0 0
      %7989 = vmatmul.mubr.bf16.gmra.mrb[0].mxu0 %v7895
      %v7990 = vpop.f32.mrb[0].mxu0
      %v7991 = vadd.f32 0.0, %v7990
      %v7992 = vpop.f32.mrb[0].mxu0
      %v7993 = vpop.f32.mrb[0].mxu0
      %v7994 = vadd.f32 0.0, %v7993
      %v7995 = vpop.f32.mrb[0].mxu0
      %7996 = vmatprep.mubr.bf16.mxu0 0
      %7997 = vmatmul.mubr.bf16.gmra.mrb[0].mxu0 %v7898
      %v7998 = vpop.f32.mrb[0].mxu0
      %v7999 = vadd.f32 0.0, %v7998
      %v8000 = vpop.f32.mrb[0].mxu0
      %v8001 = vpop.f32.mrb[0].mxu0
      %v8002 = vpop.f32.mrb[0].mxu0
      %8003 = vdwg.mxu0
      %v8004 = vadd.f32 %v7815, %v7935
      %v8005 = vadd.f32 %v7816, %v7938
      %v8006 = vadd.f32 %v7817, %v7943
      %v8007 = vadd.f32 %v7818, %v7946
      %v8008 = vadd.f32 %v7819, %v7951
      %v8009 = vadd.f32 %v7820, %v7954
      %v8010 = vadd.f32 %v7821, %v7959
      %v8011 = vadd.f32 %v7822, %v7962
      %v8012 = vadd.f32 %v7823, %v7967
      %v8013 = vadd.f32 %v7824, %v7970
      %v8014 = vadd.f32 %v7825, %v7975
      %v8015 = vadd.f32 %v7826, %v7978
      %v8016 = vadd.f32 %v7827, %v7983
      %v8017 = vadd.f32 %v7828, %v7986
      %v8018 = vadd.f32 %v7829, %v7991
      %v8019 = vadd.f32 %v7830, %v7994
      %v8020 = vadd.f32 %v7831, %v7999
      %v8021 = vld [vmem:[#allocation2 + $0x44] sm:$0x7]
      %v8022 = vld [vmem:[%s3604] sm:$0xf]
      %v8023 = vld [vmem:[%s3604 + $0x4] sm:$0xf]
      %v8024 = vld [vmem:[%s3604 + $0x8] sm:$0xf]
      %v8025 = vld [vmem:[%s3604 + $0xc] sm:$0xf]
      %v8027 = vunpack.c.l.b16 %v8021
      %v8028 = vpack.c.b16 %v8027, %v7286
      %v8030 = vshrl.u32 %v7842, 16
      %v8032 = vrot.slane %v8030, 2
      %v8033 = vshll.u32 %v7842, 16
      %v8035 = vrot.slane %v8033, 3
      %v8036 = vor.u32 %v8032, %v8035
      %v8037 = vrot.slane %v7309, 2
      %v8038 = vrot.slane %v7305, 3
      %v8039 = vor.u32 %v8037, %v8038
      %v8040 = vsel %vm1464, %v8036, %v8039
      %v8041 = vrot.slane %v7317, 2
      %v8042 = vrot.slane %v7313, 3
      %v8043 = vor.u32 %v8041, %v8042
      %v8044 = vsel %vm1464, %v8039, %v8043
      %v8045 = vrot.slane %v7325, 2
      %v8046 = vrot.slane %v7321, 3
      %v8047 = vor.u32 %v8045, %v8046
      %v8048 = vsel %vm1464, %v8043, %v8047
      %v8049 = vrot.slane %v7333, 2
      %v8050 = vrot.slane %v7329, 3
      %v8051 = vor.u32 %v8049, %v8050
      %v8052 = vsel %vm1464, %v8047, %v8051
      %v8053 = vrot.slane %v7341, 2
      %v8054 = vrot.slane %v7337, 3
      %v8055 = vor.u32 %v8053, %v8054
      %v8056 = vsel %vm1464, %v8051, %v8055
      %v8057 = vrot.slane %v7349, 2
      %v8058 = vrot.slane %v7345, 3
      %v8059 = vor.u32 %v8057, %v8058
      %v8060 = vsel %vm1464, %v8055, %v8059
      %v8061 = vrot.slane %v7357, 2
      %v8062 = vrot.slane %v7353, 3
      %v8063 = vor.u32 %v8061, %v8062
      %v8064 = vsel %vm1464, %v8059, %v8063
      %v8066 = vshrl.u32 %v8028, 16
      %v8068 = vrot.slane %v8066, 2
      %v8069 = vshll.u32 %v8028, 16
      %v8071 = vrot.slane %v8069, 3
      %v8072 = vor.u32 %v8068, %v8071
      %v8073 = vsel %vm1464, %v8063, %v8072
      %v8078 = vunpack.c.l.b16 %v8022
      %v8079 = vunpack.c.l.b16 %v8023
      %v8080 = vunpack.c.l.b16 %v8024
      %v8081 = vunpack.c.l.b16 %v8025
      %v8082 = vpack.c.b16 %v8079, %v8078
      %v8083 = vpack.c.b16 %v8081, %v8080
      %v8087 = vsel %vm2959, %v8040, 0
      %v8090 = vsel %vm2959, %v8044, 0
      %v8093 = vsel %vm2959, %v8048, 0
      %v8096 = vsel %vm2959, %v8052, 0
      %v8099 = vsel %vm2959, %v8056, 0
      %v8102 = vsel %vm2959, %v8060, 0
      %v8105 = vsel %vm2959, %v8064, 0
      %v8108 = vsel %vm2959, %v8073, 0
      %v8111 = vsel %vm2959, %v8072, 0
      %8113 = vmatprep.subr.bf16.mxu0 0
      %8114 = vmatpush1.bf16.msra.mxu0 %v8082
      %8115 = vmatprep.subr.bf16.mxu0 0
      %8116 = vmatpush1.bf16.msra.mxu0 %v8083
      %8117 = vmatprep.subr.bf16.mxu0 0
      %8118 = vmatpush1.bf16.msra.mxu0 0
      %8119 = vmatprep.subr.bf16.mxu0 0
      %8120 = vmatpush1.bf16.msra.mxu0 0
      %8121 = vmatprep.subr.bf16.mxu0 0
      %8122 = vmatpush1.bf16.msra.mxu0 0
      %8123 = vmatprep.subr.bf16.mxu0 0
      %8124 = vmatpush1.bf16.msra.mxu0 0
      %8125 = vmatprep.subr.bf16.mxu0 0
      %8126 = vmatpush1.bf16.msra.mxu0 0
      %8127 = vmatprep.subr.bf16.mxu0 0
      %8128 = vmatpush1.bf16.msra.mxu0 0
      %8129 = vmatprep.subr.bf16.mxu0 0
      %8130 = vmatpush1.bf16.msra.mxu0 0
      %8131 = vmatprep.subr.bf16.mxu0 0
      %8132 = vmatpush1.bf16.msra.mxu0 0
      %8133 = vmatprep.subr.bf16.mxu0 0
      %8134 = vmatpush1.bf16.msra.mxu0 0
      %8135 = vmatprep.subr.bf16.mxu0 0
      %8136 = vmatpush1.bf16.msra.mxu0 0
      %8137 = vmatprep.subr.bf16.mxu0 0
      %8138 = vmatpush1.bf16.msra.mxu0 0
      %8139 = vmatprep.subr.bf16.mxu0 0
      %8140 = vmatpush1.bf16.msra.mxu0 0
      %8141 = vmatprep.subr.bf16.mxu0 0
      %8142 = vmatpush1.bf16.msra.mxu0 0
      %8143 = vmatprep.subr.bf16.mxu0 0
      %8144 = vmatpush1.bf16.msra.mxu0 0
      %8145 = vmatprep.mubr.bf16.mxu0 0
      %8146 = vmatmul.mubr.bf16.gmra.mrb[0].mxu0 %v8087
      %v8147 = vpop.f32.mrb[0].mxu0
      %v8148 = vadd.f32 0.0, %v8147
      %v8149 = vpop.f32.mrb[0].mxu0
      %v8150 = vpop.f32.mrb[0].mxu0
      %v8151 = vadd.f32 0.0, %v8150
      %v8152 = vpop.f32.mrb[0].mxu0
      %8153 = vmatprep.mubr.bf16.mxu0 0
      %8154 = vmatmul.mubr.bf16.gmra.mrb[0].mxu0 %v8090
      %v8155 = vpop.f32.mrb[0].mxu0
      %v8156 = vadd.f32 0.0, %v8155
      %v8157 = vpop.f32.mrb[0].mxu0
      %v8158 = vpop.f32.mrb[0].mxu0
      %v8159 = vadd.f32 0.0, %v8158
      %v8160 = vpop.f32.mrb[0].mxu0
      %8161 = vmatprep.mubr.bf16.mxu0 0
      %8162 = vmatmul.mubr.bf16.gmra.mrb[0].mxu0 %v8093
      %v8163 = vpop.f32.mrb[0].mxu0
      %v8164 = vadd.f32 0.0, %v8163
      %v8165 = vpop.f32.mrb[0].mxu0
      %v8166 = vpop.f32.mrb[0].mxu0
      %v8167 = vadd.f32 0.0, %v8166
      %v8168 = vpop.f32.mrb[0].mxu0
      %8169 = vmatprep.mubr.bf16.mxu0 0
      %8170 = vmatmul.mubr.bf16.gmra.mrb[0].mxu0 %v8096
      %v8171 = vpop.f32.mrb[0].mxu0
      %v8172 = vadd.f32 0.0, %v8171
      %v8173 = vpop.f32.mrb[0].mxu0
      %v8174 = vpop.f32.mrb[0].mxu0
      %v8175 = vadd.f32 0.0, %v8174
      %v8176 = vpop.f32.mrb[0].mxu0
      %8177 = vmatprep.mubr.bf16.mxu0 0
      %8178 = vmatmul.mubr.bf16.gmra.mrb[0].mxu0 %v8099
      %v8179 = vpop.f32.mrb[0].mxu0
      %v8180 = vadd.f32 0.0, %v8179
      %v8181 = vpop.f32.mrb[0].mxu0
      %v8182 = vpop.f32.mrb[0].mxu0
      %v8183 = vadd.f32 0.0, %v8182
      %v8184 = vpop.f32.mrb[0].mxu0
      %8185 = vmatprep.mubr.bf16.mxu0 0
      %8186 = vmatmul.mubr.bf16.gmra.mrb[0].mxu0 %v8102
      %v8187 = vpop.f32.mrb[0].mxu0
      %v8188 = vadd.f32 0.0, %v8187
      %v8189 = vpop.f32.mrb[0].mxu0
      %v8190 = vpop.f32.mrb[0].mxu0
      %v8191 = vadd.f32 0.0, %v8190
      %v8192 = vpop.f32.mrb[0].mxu0
      %8193 = vmatprep.mubr.bf16.mxu0 0
      %8194 = vmatmul.mubr.bf16.gmra.mrb[0].mxu0 %v8105
      %v8195 = vpop.f32.mrb[0].mxu0
      %v8196 = vadd.f32 0.0, %v8195
      %v8197 = vpop.f32.mrb[0].mxu0
      %v8198 = vpop.f32.mrb[0].mxu0
      %v8199 = vadd.f32 0.0, %v8198
      %v8200 = vpop.f32.mrb[0].mxu0
      %8201 = vmatprep.mubr.bf16.mxu0 0
      %8202 = vmatmul.mubr.bf16.gmra.mrb[0].mxu0 %v8108
      %v8203 = vpop.f32.mrb[0].mxu0
      %v8204 = vadd.f32 0.0, %v8203
      %v8205 = vpop.f32.mrb[0].mxu0
      %v8206 = vpop.f32.mrb[0].mxu0
      %v8207 = vadd.f32 0.0, %v8206
      %v8208 = vpop.f32.mrb[0].mxu0
      %8209 = vmatprep.mubr.bf16.mxu0 0
      %8210 = vmatmul.mubr.bf16.gmra.mrb[0].mxu0 %v8111
      %v8211 = vpop.f32.mrb[0].mxu0
      %v8212 = vadd.f32 0.0, %v8211
      %v8213 = vpop.f32.mrb[0].mxu0
      %v8214 = vpop.f32.mrb[0].mxu0
      %v8215 = vpop.f32.mrb[0].mxu0
      %8216 = vdwg.mxu0
      %v8217 = vadd.f32 %v8004, %v8148
      %v8218 = vadd.f32 %v8005, %v8151
      %v8219 = vadd.f32 %v8006, %v8156
      %v8220 = vadd.f32 %v8007, %v8159
      %v8221 = vadd.f32 %v8008, %v8164
      %v8222 = vadd.f32 %v8009, %v8167
      %v8223 = vadd.f32 %v8010, %v8172
      %v8224 = vadd.f32 %v8011, %v8175
      %v8225 = vadd.f32 %v8012, %v8180
      %v8226 = vadd.f32 %v8013, %v8183
      %v8227 = vadd.f32 %v8014, %v8188
      %v8228 = vadd.f32 %v8015, %v8191
      %v8229 = vadd.f32 %v8016, %v8196
      %v8230 = vadd.f32 %v8017, %v8199
      %v8231 = vadd.f32 %v8018, %v8204
      %v8232 = vadd.f32 %v8019, %v8207
      %v8233 = vadd.f32 %v8020, %v8212
      %v8234 = vld [vmem:[#allocation2] sm:$0x8]
      %v8235 = vld [vmem:[%s3818] sm:$0xf]
      %v8236 = vld [vmem:[%s3818 + $0x4] sm:$0xf]
      %v8237 = vld [vmem:[%s3818 + $0x8] sm:$0xf]
      %v8238 = vld [vmem:[%s3818 + $0xc] sm:$0xf]
      %v8240 = vunpack.c.l.b16 %v8234
      %v8241 = vpack.c.b16 %v7271, %v8240
      %v8242 = vrot.slane %v8241, 3
      %v8243 = vrot.slane %v7289, 3
      %v8244 = vsel %vm1653, %v8242, %v8243
      %v8245 = vrot.slane %v7290, 3
      %v8246 = vsel %vm1653, %v8243, %v8245
      %v8247 = vrot.slane %v7291, 3
      %v8248 = vsel %vm1653, %v8245, %v8247
      %v8249 = vrot.slane %v7292, 3
      %v8250 = vsel %vm1653, %v8247, %v8249
      %v8251 = vrot.slane %v7293, 3
      %v8252 = vsel %vm1653, %v8249, %v8251
      %v8253 = vrot.slane %v7294, 3
      %v8254 = vsel %vm1653, %v8251, %v8253
      %v8255 = vrot.slane %v7295, 3
      %v8256 = vsel %vm1653, %v8253, %v8255
      %v8257 = vrot.slane %v8028, 3
      %v8258 = vsel %vm1653, %v8255, %v8257
      %v8263 = vunpack.c.l.b16 %v8235
      %v8264 = vunpack.c.l.b16 %v8236
      %v8265 = vunpack.c.l.b16 %v8237
      %v8266 = vunpack.c.l.b16 %v8238
      %v8267 = vpack.c.b16 %v8264, %v8263
      %v8268 = vpack.c.b16 %v8266, %v8265
      %v8272 = vsel %vm2959, %v8244, 0
      %v8275 = vsel %vm2959, %v8246, 0
      %v8278 = vsel %vm2959, %v8248, 0
      %v8281 = vsel %vm2959, %v8250, 0
      %v8284 = vsel %vm2959, %v8252, 0
      %v8287 = vsel %vm2959, %v8254, 0
      %v8290 = vsel %vm2959, %v8256, 0
      %v8293 = vsel %vm2959, %v8258, 0
      %v8296 = vsel %vm2959, %v8257, 0
      %8298 = vmatprep.subr.bf16.mxu0 0
      %8299 = vmatpush1.bf16.msra.mxu0 %v8267
      %8300 = vmatprep.subr.bf16.mxu0 0
      %8301 = vmatpush1.bf16.msra.mxu0 %v8268
      %8302 = vmatprep.subr.bf16.mxu0 0
      %8303 = vmatpush1.bf16.msra.mxu0 0
      %8304 = vmatprep.subr.bf16.mxu0 0
      %8305 = vmatpush1.bf16.msra.mxu0 0
      %8306 = vmatprep.subr.bf16.mxu0 0
      %8307 = vmatpush1.bf16.msra.mxu0 0
      %8308 = vmatprep.subr.bf16.mxu0 0
      %8309 = vmatpush1.bf16.msra.mxu0 0
      %8310 = vmatprep.subr.bf16.mxu0 0
      %8311 = vmatpush1.bf16.msra.mxu0 0
      %8312 = vmatprep.subr.bf16.mxu0 0
      %8313 = vmatpush1.bf16.msra.mxu0 0
      %8314 = vmatprep.subr.bf16.mxu0 0
      %8315 = vmatpush1.bf16.msra.mxu0 0
      %8316 = vmatprep.subr.bf16.mxu0 0
      %8317 = vmatpush1.bf16.msra.mxu0 0
      %8318 = vmatprep.subr.bf16.mxu0 0
      %8319 = vmatpush1.bf16.msra.mxu0 0
      %8320 = vmatprep.subr.bf16.mxu0 0
      %8321 = vmatpush1.bf16.msra.mxu0 0
      %8322 = vmatprep.subr.bf16.mxu0 0
      %8323 = vmatpush1.bf16.msra.mxu0 0
      %8324 = vmatprep.subr.bf16.mxu0 0
      %8325 = vmatpush1.bf16.msra.mxu0 0
      %8326 = vmatprep.subr.bf16.mxu0 0
      %8327 = vmatpush1.bf16.msra.mxu0 0
      %8328 = vmatprep.subr.bf16.mxu0 0
      %8329 = vmatpush1.bf16.msra.mxu0 0
      %8330 = vmatprep.mubr.bf16.mxu0 0
      %8331 = vmatmul.mubr.bf16.gmra.mrb[0].mxu0 %v8272
      %v8332 = vpop.f32.mrb[0].mxu0
      %v8333 = vadd.f32 0.0, %v8332
      %v8334 = vpop.f32.mrb[0].mxu0
      %v8335 = vpop.f32.mrb[0].mxu0
      %v8336 = vadd.f32 0.0, %v8335
      %v8337 = vpop.f32.mrb[0].mxu0
      %8338 = vmatprep.mubr.bf16.mxu0 0
      %8339 = vmatmul.mubr.bf16.gmra.mrb[0].mxu0 %v8275
      %v8340 = vpop.f32.mrb[0].mxu0
      %v8341 = vadd.f32 0.0, %v8340
      %v8342 = vpop.f32.mrb[0].mxu0
      %v8343 = vpop.f32.mrb[0].mxu0
      %v8344 = vadd.f32 0.0, %v8343
      %v8345 = vpop.f32.mrb[0].mxu0
      %8346 = vmatprep.mubr.bf16.mxu0 0
      %8347 = vmatmul.mubr.bf16.gmra.mrb[0].mxu0 %v8278
      %v8348 = vpop.f32.mrb[0].mxu0
      %v8349 = vadd.f32 0.0, %v8348
      %v8350 = vpop.f32.mrb[0].mxu0
      %v8351 = vpop.f32.mrb[0].mxu0
      %v8352 = vadd.f32 0.0, %v8351
      %v8353 = vpop.f32.mrb[0].mxu0
      %8354 = vmatprep.mubr.bf16.mxu0 0
      %8355 = vmatmul.mubr.bf16.gmra.mrb[0].mxu0 %v8281
      %v8356 = vpop.f32.mrb[0].mxu0
      %v8357 = vadd.f32 0.0, %v8356
      %v8358 = vpop.f32.mrb[0].mxu0
      %v8359 = vpop.f32.mrb[0].mxu0
      %v8360 = vadd.f32 0.0, %v8359
      %v8361 = vpop.f32.mrb[0].mxu0
      %8362 = vmatprep.mubr.bf16.mxu0 0
      %8363 = vmatmul.mubr.bf16.gmra.mrb[0].mxu0 %v8284
      %v8364 = vpop.f32.mrb[0].mxu0
      %v8365 = vadd.f32 0.0, %v8364
      %v8366 = vpop.f32.mrb[0].mxu0
      %v8367 = vpop.f32.mrb[0].mxu0
      %v8368 = vadd.f32 0.0, %v8367
      %v8369 = vpop.f32.mrb[0].mxu0
      %8370 = vmatprep.mubr.bf16.mxu0 0
      %8371 = vmatmul.mubr.bf16.gmra.mrb[0].mxu0 %v8287
      %v8372 = vpop.f32.mrb[0].mxu0
      %v8373 = vadd.f32 0.0, %v8372
      %v8374 = vpop.f32.mrb[0].mxu0
      %v8375 = vpop.f32.mrb[0].mxu0
      %v8376 = vadd.f32 0.0, %v8375
      %v8377 = vpop.f32.mrb[0].mxu0
      %8378 = vmatprep.mubr.bf16.mxu0 0
      %8379 = vmatmul.mubr.bf16.gmra.mrb[0].mxu0 %v8290
      %v8380 = vpop.f32.mrb[0].mxu0
      %v8381 = vadd.f32 0.0, %v8380
      %v8382 = vpop.f32.mrb[0].mxu0
      %v8383 = vpop.f32.mrb[0].mxu0
      %v8384 = vadd.f32 0.0, %v8383
      %v8385 = vpop.f32.mrb[0].mxu0
      %8386 = vmatprep.mubr.bf16.mxu0 0
      %8387 = vmatmul.mubr.bf16.gmra.mrb[0].mxu0 %v8293
      %v8388 = vpop.f32.mrb[0].mxu0
      %v8389 = vadd.f32 0.0, %v8388
      %v8390 = vpop.f32.mrb[0].mxu0
      %v8391 = vpop.f32.mrb[0].mxu0
      %v8392 = vadd.f32 0.0, %v8391
      %v8393 = vpop.f32.mrb[0].mxu0
      %8394 = vmatprep.mubr.bf16.mxu0 0
      %8395 = vmatmul.mubr.bf16.gmra.mrb[0].mxu0 %v8296
      %v8396 = vpop.f32.mrb[0].mxu0
      %v8397 = vadd.f32 0.0, %v8396
      %v8398 = vpop.f32.mrb[0].mxu0
      %v8399 = vpop.f32.mrb[0].mxu0
      %v8400 = vpop.f32.mrb[0].mxu0
      %8401 = vdwg.mxu0
      %v8402 = vadd.f32 %v8217, %v8333
      %v8403 = vadd.f32 %v8218, %v8336
      %v8404 = vadd.f32 %v8219, %v8341
      %v8405 = vadd.f32 %v8220, %v8344
      %v8406 = vadd.f32 %v8221, %v8349
      %v8407 = vadd.f32 %v8222, %v8352
      %v8408 = vadd.f32 %v8223, %v8357
      %v8409 = vadd.f32 %v8224, %v8360
      %v8410 = vadd.f32 %v8225, %v8365
      %v8411 = vadd.f32 %v8226, %v8368
      %v8412 = vadd.f32 %v8227, %v8373
      %v8413 = vadd.f32 %v8228, %v8376
      %v8414 = vadd.f32 %v8229, %v8381
      %v8415 = vadd.f32 %v8230, %v8384
      %v8416 = vadd.f32 %v8231, %v8389
      %v8417 = vadd.f32 %v8232, %v8392
      %v8418 = vadd.f32 %v8233, %v8397
      %v8419 = vld [vmem:[#allocation2 + $0x44] sm:$0xf]
      %v8420 = vld [vmem:[%s4004] sm:$0xf]
      %v8421 = vld [vmem:[%s4004 + $0x4] sm:$0xf]
      %v8422 = vld [vmem:[%s4004 + $0x8] sm:$0xf]
      %v8423 = vld [vmem:[%s4004 + $0xc] sm:$0xf]
      %v8425 = vunpack.c.l.b16 %v8419
      %v8426 = vpack.c.b16 %v7272, %v7271
      %v8427 = vpack.c.b16 %v7274, %v7273
      %v8428 = vpack.c.b16 %v7276, %v7275
      %v8429 = vpack.c.b16 %v7278, %v7277
      %v8430 = vpack.c.b16 %v7280, %v7279
      %v8431 = vpack.c.b16 %v7282, %v7281
      %v8432 = vpack.c.b16 %v7284, %v7283
      %v8433 = vpack.c.b16 %v7286, %v7285
      %v8434 = vpack.c.b16 %v8425, %v8425
      %v8439 = vunpack.c.l.b16 %v8420
      %v8440 = vunpack.c.l.b16 %v8421
      %v8441 = vunpack.c.l.b16 %v8422
      %v8442 = vunpack.c.l.b16 %v8423
      %v8443 = vpack.c.b16 %v8440, %v8439
      %v8444 = vpack.c.b16 %v8442, %v8441
      %v8448 = vsel %vm2959, %v8426, 0
      %v8451 = vsel %vm2959, %v8427, 0
      %v8454 = vsel %vm2959, %v8428, 0
      %v8457 = vsel %vm2959, %v8429, 0
      %v8460 = vsel %vm2959, %v8430, 0
      %v8463 = vsel %vm2959, %v8431, 0
      %v8466 = vsel %vm2959, %v8432, 0
      %v8469 = vsel %vm2959, %v8433, 0
      %v8472 = vsel %vm2959, %v8434, 0
      %8474 = vmatprep.subr.bf16.mxu0 0
      %8475 = vmatpush1.bf16.msra.mxu0 %v8443
      %8476 = vmatprep.subr.bf16.mxu0 0
      %8477 = vmatpush1.bf16.msra.mxu0 %v8444
      %8478 = vmatprep.subr.bf16.mxu0 0
      %8479 = vmatpush1.bf16.msra.mxu0 0
      %8480 = vmatprep.subr.bf16.mxu0 0
      %8481 = vmatpush1.bf16.msra.mxu0 0
      %8482 = vmatprep.subr.bf16.mxu0 0
      %8483 = vmatpush1.bf16.msra.mxu0 0
      %8484 = vmatprep.subr.bf16.mxu0 0
      %8485 = vmatpush1.bf16.msra.mxu0 0
      %8486 = vmatprep.subr.bf16.mxu0 0
      %8487 = vmatpush1.bf16.msra.mxu0 0
      %8488 = vmatprep.subr.bf16.mxu0 0
      %8489 = vmatpush1.bf16.msra.mxu0 0
      %8490 = vmatprep.subr.bf16.mxu0 0
      %8491 = vmatpush1.bf16.msra.mxu0 0
      %8492 = vmatprep.subr.bf16.mxu0 0
      %8493 = vmatpush1.bf16.msra.mxu0 0
      %8494 = vmatprep.subr.bf16.mxu0 0
      %8495 = vmatpush1.bf16.msra.mxu0 0
      %8496 = vmatprep.subr.bf16.mxu0 0
      %8497 = vmatpush1.bf16.msra.mxu0 0
      %8498 = vmatprep.subr.bf16.mxu0 0
      %8499 = vmatpush1.bf16.msra.mxu0 0
      %8500 = vmatprep.subr.bf16.mxu0 0
      %8501 = vmatpush1.bf16.msra.mxu0 0
      %8502 = vmatprep.subr.bf16.mxu0 0
      %8503 = vmatpush1.bf16.msra.mxu0 0
      %8504 = vmatprep.subr.bf16.mxu0 0
      %8505 = vmatpush1.bf16.msra.mxu0 0
      %8506 = vmatprep.mubr.bf16.mxu0 0
      %8507 = vmatmul.mubr.bf16.gmra.mrb[0].mxu0 %v8448
      %v8508 = vpop.f32.mrb[0].mxu0
      %v8509 = vadd.f32 0.0, %v8508
      %v8510 = vpop.f32.mrb[0].mxu0
      %v8511 = vpop.f32.mrb[0].mxu0
      %v8512 = vadd.f32 0.0, %v8511
      %v8513 = vpop.f32.mrb[0].mxu0
      %8514 = vmatprep.mubr.bf16.mxu0 0
      %8515 = vmatmul.mubr.bf16.gmra.mrb[0].mxu0 %v8451
      %v8516 = vpop.f32.mrb[0].mxu0
      %v8517 = vadd.f32 0.0, %v8516
      %v8518 = vpop.f32.mrb[0].mxu0
      %v8519 = vpop.f32.mrb[0].mxu0
      %v8520 = vadd.f32 0.0, %v8519
      %v8521 = vpop.f32.mrb[0].mxu0
      %8522 = vmatprep.mubr.bf16.mxu0 0
      %8523 = vmatmul.mubr.bf16.gmra.mrb[0].mxu0 %v8454
      %v8524 = vpop.f32.mrb[0].mxu0
      %v8525 = vadd.f32 0.0, %v8524
      %v8526 = vpop.f32.mrb[0].mxu0
      %v8527 = vpop.f32.mrb[0].mxu0
      %v8528 = vadd.f32 0.0, %v8527
      %v8529 = vpop.f32.mrb[0].mxu0
      %8530 = vmatprep.mubr.bf16.mxu0 0
      %8531 = vmatmul.mubr.bf16.gmra.mrb[0].mxu0 %v8457
      %v8532 = vpop.f32.mrb[0].mxu0
      %v8533 = vadd.f32 0.0, %v8532
      %v8534 = vpop.f32.mrb[0].mxu0
      %v8535 = vpop.f32.mrb[0].mxu0
      %v8536 = vadd.f32 0.0, %v8535
      %v8537 = vpop.f32.mrb[0].mxu0
      %8538 = vmatprep.mubr.bf16.mxu0 0
      %8539 = vmatmul.mubr.bf16.gmra.mrb[0].mxu0 %v8460
      %v8540 = vpop.f32.mrb[0].mxu0
      %v8541 = vadd.f32 0.0, %v8540
      %v8542 = vpop.f32.mrb[0].mxu0
      %v8543 = vpop.f32.mrb[0].mxu0
      %v8544 = vadd.f32 0.0, %v8543
      %v8545 = vpop.f32.mrb[0].mxu0
      %8546 = vmatprep.mubr.bf16.mxu0 0
      %8547 = vmatmul.mubr.bf16.gmra.mrb[0].mxu0 %v8463
      %v8548 = vpop.f32.mrb[0].mxu0
      %v8549 = vadd.f32 0.0, %v8548
      %v8550 = vpop.f32.mrb[0].mxu0
      %v8551 = vpop.f32.mrb[0].mxu0
      %v8552 = vadd.f32 0.0, %v8551
      %v8553 = vpop.f32.mrb[0].mxu0
      %8554 = vmatprep.mubr.bf16.mxu0 0
      %8555 = vmatmul.mubr.bf16.gmra.mrb[0].mxu0 %v8466
      %v8556 = vpop.f32.mrb[0].mxu0
      %v8557 = vadd.f32 0.0, %v8556
      %v8558 = vpop.f32.mrb[0].mxu0
      %v8559 = vpop.f32.mrb[0].mxu0
      %v8560 = vadd.f32 0.0, %v8559
      %v8561 = vpop.f32.mrb[0].mxu0
      %8562 = vmatprep.mubr.bf16.mxu0 0
      %8563 = vmatmul.mubr.bf16.gmra.mrb[0].mxu0 %v8469
      %v8564 = vpop.f32.mrb[0].mxu0
      %v8565 = vadd.f32 0.0, %v8564
      %v8566 = vpop.f32.mrb[0].mxu0
      %v8567 = vpop.f32.mrb[0].mxu0
      %v8568 = vadd.f32 0.0, %v8567
      %v8569 = vpop.f32.mrb[0].mxu0
      %8570 = vmatprep.mubr.bf16.mxu0 0
      %8571 = vmatmul.mubr.bf16.gmra.mrb[0].mxu0 %v8472
      %v8572 = vpop.f32.mrb[0].mxu0
      %v8573 = vadd.f32 0.0, %v8572
      %v8574 = vpop.f32.mrb[0].mxu0
      %v8575 = vpop.f32.mrb[0].mxu0
      %v8576 = vpop.f32.mrb[0].mxu0
      %8577 = vdwg.mxu0
      %v8578 = vadd.f32 %v8402, %v8509
      %v8579 = vadd.f32 %v8403, %v8512
      %v8580 = vadd.f32 %v8404, %v8517
      %v8581 = vadd.f32 %v8405, %v8520
      %v8582 = vadd.f32 %v8406, %v8525
      %v8583 = vadd.f32 %v8407, %v8528
      %v8584 = vadd.f32 %v8408, %v8533
      %v8585 = vadd.f32 %v8409, %v8536
      %v8586 = vadd.f32 %v8410, %v8541
      %v8587 = vadd.f32 %v8411, %v8544
      %v8588 = vadd.f32 %v8412, %v8549
      %v8589 = vadd.f32 %v8413, %v8552
      %v8590 = vadd.f32 %v8414, %v8557
      %v8591 = vadd.f32 %v8415, %v8560
      %v8592 = vadd.f32 %v8416, %v8565
      %v8593 = vadd.f32 %v8417, %v8568
      %v8594 = vadd.f32 %v8418, %v8573
      %v8595 = vld [vmem:[#allocation2 + $0x4] sm:$0xf]
      %v8596 = vld [vmem:[#allocation2 + $0x8] sm:$0xf]
      %v8597 = vld [vmem:[#allocation2 + $0xc] sm:$0xf]
      %v8598 = vld [vmem:[#allocation2 + $0x10] sm:$0xf]
      %v8599 = vld [vmem:[#allocation2 + $0x14] sm:$0xf]
      %v8600 = vld [vmem:[#allocation2 + $0x18] sm:$0xf]
      %v8601 = vld [vmem:[#allocation2 + $0x1c] sm:$0xf]
      %v8602 = vld [vmem:[#allocation2 + $0x20] sm:$0xf]
      %v8603 = vld [vmem:[#allocation2 + $0x24] sm:$0xf]
      %v8604 = vld [vmem:[#allocation2 + $0x28] sm:$0xf]
      %v8605 = vld [vmem:[#allocation2 + $0x2c] sm:$0xf]
      %v8606 = vld [vmem:[#allocation2 + $0x30] sm:$0xf]
      %v8607 = vld [vmem:[#allocation2 + $0x34] sm:$0xf]
      %v8608 = vld [vmem:[#allocation2 + $0x38] sm:$0xf]
      %v8609 = vld [vmem:[#allocation2 + $0x3c] sm:$0xf]
      %v8610 = vld [vmem:[#allocation2 + $0x40] sm:$0xf]
      %v8611 = vld [vmem:[#allocation2 + $0x44] sm:$0xf]
      %v8612 = vld [vmem:[#allocation2 + $0x48] sm:$0x1]
      %v8613 = vld [vmem:[%s4198] sm:$0xf]
      %v8614 = vld [vmem:[%s4198 + $0x4] sm:$0xf]
      %v8615 = vld [vmem:[%s4198 + $0x8] sm:$0xf]
      %v8616 = vld [vmem:[%s4198 + $0xc] sm:$0xf]
      %v8635 = vunpack.c.l.b16 %v8595
      %v8636 = vunpack.c.l.b16 %v8596
      %v8637 = vunpack.c.l.b16 %v8597
      %v8638 = vunpack.c.l.b16 %v8598
      %v8639 = vunpack.c.l.b16 %v8599
      %v8640 = vunpack.c.l.b16 %v8600
      %v8641 = vunpack.c.l.b16 %v8601
      %v8642 = vunpack.c.l.b16 %v8602
      %v8643 = vunpack.c.l.b16 %v8603
      %v8644 = vunpack.c.l.b16 %v8604
      %v8645 = vunpack.c.l.b16 %v8605
      %v8646 = vunpack.c.l.b16 %v8606
      %v8647 = vunpack.c.l.b16 %v8607
      %v8648 = vunpack.c.l.b16 %v8608
      %v8649 = vunpack.c.l.b16 %v8609
      %v8650 = vunpack.c.l.b16 %v8610
      %v8651 = vunpack.c.l.b16 %v8611
      %v8652 = vunpack.c.l.b16 %v8612
      %v8653 = vpack.c.b16 %v8636, %v8635
      %v8654 = vpack.c.b16 %v8638, %v8637
      %v8655 = vpack.c.b16 %v8640, %v8639
      %v8656 = vpack.c.b16 %v8642, %v8641
      %v8657 = vpack.c.b16 %v8644, %v8643
      %v8658 = vpack.c.b16 %v8646, %v8645
      %v8659 = vpack.c.b16 %v8648, %v8647
      %v8660 = vpack.c.b16 %v8650, %v8649
      %v8661 = vpack.c.b16 %v8652, %v8651
      %v8663 = vshrl.u32 %v8653, 16
      %v8665 = vshll.u32 %v8653, 16
      %v8667 = vrot.slane %v8665, 1
      %v8668 = vor.u32 %v8663, %v8667
      %v8670 = vshll.u32 %v8654, 16
      %v8672 = vrot.slane %v8670, 1
      %v8673 = vsel %vm785, %v8668, %v8672
      %v8674 = vshrl.u32 %v8654, 16
      %v8676 = vor.u32 %v8674, %v8672
      %v8678 = vshll.u32 %v8655, 16
      %v8680 = vrot.slane %v8678, 1
      %v8681 = vsel %vm785, %v8676, %v8680
      %v8682 = vshrl.u32 %v8655, 16
      %v8684 = vor.u32 %v8682, %v8680
      %v8686 = vshll.u32 %v8656, 16
      %v8688 = vrot.slane %v8686, 1
      %v8689 = vsel %vm785, %v8684, %v8688
      %v8690 = vshrl.u32 %v8656, 16
      %v8692 = vor.u32 %v8690, %v8688
      %v8694 = vshll.u32 %v8657, 16
      %v8696 = vrot.slane %v8694, 1
      %v8697 = vsel %vm785, %v8692, %v8696
      %v8698 = vshrl.u32 %v8657, 16
      %v8700 = vor.u32 %v8698, %v8696
      %v8702 = vshll.u32 %v8658, 16
      %v8704 = vrot.slane %v8702, 1
      %v8705 = vsel %vm785, %v8700, %v8704
      %v8706 = vshrl.u32 %v8658, 16
      %v8708 = vor.u32 %v8706, %v8704
      %v8710 = vshll.u32 %v8659, 16
      %v8712 = vrot.slane %v8710, 1
      %v8713 = vsel %vm785, %v8708, %v8712
      %v8714 = vshrl.u32 %v8659, 16
      %v8716 = vor.u32 %v8714, %v8712
      %v8718 = vshll.u32 %v8660, 16
      %v8720 = vrot.slane %v8718, 1
      %v8721 = vsel %vm785, %v8716, %v8720
      %v8722 = vshrl.u32 %v8660, 16
      %v8724 = vor.u32 %v8722, %v8720
      %v8726 = vshll.u32 %v8661, 16
      %v8728 = vrot.slane %v8726, 1
      %v8729 = vsel %vm785, %v8724, %v8728
      %v8730 = vshrl.u32 %v8661, 16
      %v8732 = vor.u32 %v8730, %v8728
      %v8737 = vunpack.c.l.b16 %v8613
      %v8738 = vunpack.c.l.b16 %v8614
      %v8739 = vunpack.c.l.b16 %v8615
      %v8740 = vunpack.c.l.b16 %v8616
      %v8741 = vpack.c.b16 %v8738, %v8737
      %v8742 = vpack.c.b16 %v8740, %v8739
      %v8746 = vsel %vm2959, %v8673, 0
      %v8749 = vsel %vm2959, %v8681, 0
      %v8752 = vsel %vm2959, %v8689, 0
      %v8755 = vsel %vm2959, %v8697, 0
      %v8758 = vsel %vm2959, %v8705, 0
      %v8761 = vsel %vm2959, %v8713, 0
      %v8764 = vsel %vm2959, %v8721, 0
      %v8767 = vsel %vm2959, %v8729, 0
      %v8770 = vsel %vm2959, %v8732, 0
      %8772 = vmatprep.subr.bf16.mxu0 0
      %8773 = vmatpush1.bf16.msra.mxu0 %v8741
      %8774 = vmatprep.subr.bf16.mxu0 0
      %8775 = vmatpush1.bf16.msra.mxu0 %v8742
      %8776 = vmatprep.subr.bf16.mxu0 0
      %8777 = vmatpush1.bf16.msra.mxu0 0
      %8778 = vmatprep.subr.bf16.mxu0 0
      %8779 = vmatpush1.bf16.msra.mxu0 0
      %8780 = vmatprep.subr.bf16.mxu0 0
      %8781 = vmatpush1.bf16.msra.mxu0 0
      %8782 = vmatprep.subr.bf16.mxu0 0
      %8783 = vmatpush1.bf16.msra.mxu0 0
      %8784 = vmatprep.subr.bf16.mxu0 0
      %8785 = vmatpush1.bf16.msra.mxu0 0
      %8786 = vmatprep.subr.bf16.mxu0 0
      %8787 = vmatpush1.bf16.msra.mxu0 0
      %8788 = vmatprep.subr.bf16.mxu0 0
      %8789 = vmatpush1.bf16.msra.mxu0 0
      %8790 = vmatprep.subr.bf16.mxu0 0
      %8791 = vmatpush1.bf16.msra.mxu0 0
      %8792 = vmatprep.subr.bf16.mxu0 0
      %8793 = vmatpush1.bf16.msra.mxu0 0
      %8794 = vmatprep.subr.bf16.mxu0 0
      %8795 = vmatpush1.bf16.msra.mxu0 0
      %8796 = vmatprep.subr.bf16.mxu0 0
      %8797 = vmatpush1.bf16.msra.mxu0 0
      %8798 = vmatprep.subr.bf16.mxu0 0
      %8799 = vmatpush1.bf16.msra.mxu0 0
      %8800 = vmatprep.subr.bf16.mxu0 0
      %8801 = vmatpush1.bf16.msra.mxu0 0
      %8802 = vmatprep.subr.bf16.mxu0 0
      %8803 = vmatpush1.bf16.msra.mxu0 0
      %8804 = vmatprep.mubr.bf16.mxu0 0
      %8805 = vmatmul.mubr.bf16.gmra.mrb[0].mxu0 %v8746
      %v8806 = vpop.f32.mrb[0].mxu0
      %v8807 = vadd.f32 0.0, %v8806
      %v8808 = vpop.f32.mrb[0].mxu0
      %v8809 = vpop.f32.mrb[0].mxu0
      %v8810 = vadd.f32 0.0, %v8809
      %v8811 = vpop.f32.mrb[0].mxu0
      %8812 = vmatprep.mubr.bf16.mxu0 0
      %8813 = vmatmul.mubr.bf16.gmra.mrb[0].mxu0 %v8749
      %v8814 = vpop.f32.mrb[0].mxu0
      %v8815 = vadd.f32 0.0, %v8814
      %v8816 = vpop.f32.mrb[0].mxu0
      %v8817 = vpop.f32.mrb[0].mxu0
      %v8818 = vadd.f32 0.0, %v8817
      %v8819 = vpop.f32.mrb[0].mxu0
      %8820 = vmatprep.mubr.bf16.mxu0 0
      %8821 = vmatmul.mubr.bf16.gmra.mrb[0].mxu0 %v8752
      %v8822 = vpop.f32.mrb[0].mxu0
      %v8823 = vadd.f32 0.0, %v8822
      %v8824 = vpop.f32.mrb[0].mxu0
      %v8825 = vpop.f32.mrb[0].mxu0
      %v8826 = vadd.f32 0.0, %v8825
      %v8827 = vpop.f32.mrb[0].mxu0
      %8828 = vmatprep.mubr.bf16.mxu0 0
      %8829 = vmatmul.mubr.bf16.gmra.mrb[0].mxu0 %v8755
      %v8830 = vpop.f32.mrb[0].mxu0
      %v8831 = vadd.f32 0.0, %v8830
      %v8832 = vpop.f32.mrb[0].mxu0
      %v8833 = vpop.f32.mrb[0].mxu0
      %v8834 = vadd.f32 0.0, %v8833
      %v8835 = vpop.f32.mrb[0].mxu0
      %8836 = vmatprep.mubr.bf16.mxu0 0
      %8837 = vmatmul.mubr.bf16.gmra.mrb[0].mxu0 %v8758
      %v8838 = vpop.f32.mrb[0].mxu0
      %v8839 = vadd.f32 0.0, %v8838
      %v8840 = vpop.f32.mrb[0].mxu0
      %v8841 = vpop.f32.mrb[0].mxu0
      %v8842 = vadd.f32 0.0, %v8841
      %v8843 = vpop.f32.mrb[0].mxu0
      %8844 = vmatprep.mubr.bf16.mxu0 0
      %8845 = vmatmul.mubr.bf16.gmra.mrb[0].mxu0 %v8761
      %v8846 = vpop.f32.mrb[0].mxu0
      %v8847 = vadd.f32 0.0, %v8846
      %v8848 = vpop.f32.mrb[0].mxu0
      %v8849 = vpop.f32.mrb[0].mxu0
      %v8850 = vadd.f32 0.0, %v8849
      %v8851 = vpop.f32.mrb[0].mxu0
      %8852 = vmatprep.mubr.bf16.mxu0 0
      %8853 = vmatmul.mubr.bf16.gmra.mrb[0].mxu0 %v8764
      %v8854 = vpop.f32.mrb[0].mxu0
      %v8855 = vadd.f32 0.0, %v8854
      %v8856 = vpop.f32.mrb[0].mxu0
      %v8857 = vpop.f32.mrb[0].mxu0
      %v8858 = vadd.f32 0.0, %v8857
      %v8859 = vpop.f32.mrb[0].mxu0
      %8860 = vmatprep.mubr.bf16.mxu0 0
      %8861 = vmatmul.mubr.bf16.gmra.mrb[0].mxu0 %v8767
      %v8862 = vpop.f32.mrb[0].mxu0
      %v8863 = vadd.f32 0.0, %v8862
      %v8864 = vpop.f32.mrb[0].mxu0
      %v8865 = vpop.f32.mrb[0].mxu0
      %v8866 = vadd.f32 0.0, %v8865
      %v8867 = vpop.f32.mrb[0].mxu0
      %8868 = vmatprep.mubr.bf16.mxu0 0
      %8869 = vmatmul.mubr.bf16.gmra.mrb[0].mxu0 %v8770
      %v8870 = vpop.f32.mrb[0].mxu0
      %v8871 = vadd.f32 0.0, %v8870
      %v8872 = vpop.f32.mrb[0].mxu0
      %v8873 = vpop.f32.mrb[0].mxu0
      %v8874 = vpop.f32.mrb[0].mxu0
      %8875 = vdwg.mxu0
      %v8876 = vadd.f32 %v8578, %v8807
      %v8877 = vadd.f32 %v8579, %v8810
      %v8878 = vadd.f32 %v8580, %v8815
      %v8879 = vadd.f32 %v8581, %v8818
      %v8880 = vadd.f32 %v8582, %v8823
      %v8881 = vadd.f32 %v8583, %v8826
      %v8882 = vadd.f32 %v8584, %v8831
      %v8883 = vadd.f32 %v8585, %v8834
      %v8884 = vadd.f32 %v8586, %v8839
      %v8885 = vadd.f32 %v8587, %v8842
      %v8886 = vadd.f32 %v8588, %v8847
      %v8887 = vadd.f32 %v8589, %v8850
      %v8888 = vadd.f32 %v8590, %v8855
      %v8889 = vadd.f32 %v8591, %v8858
      %v8890 = vadd.f32 %v8592, %v8863
      %v8891 = vadd.f32 %v8593, %v8866
      %v8892 = vadd.f32 %v8594, %v8871
      %v8893 = vld [vmem:[#allocation2 + $0x4] sm:$0xe]
      %v8894 = vld [vmem:[%s4480] sm:$0xf]
      %v8895 = vld [vmem:[%s4480 + $0x4] sm:$0xf]
      %v8896 = vld [vmem:[%s4480 + $0x8] sm:$0xf]
      %v8897 = vld [vmem:[%s4480 + $0xc] sm:$0xf]
      %v8899 = vunpack.c.l.b16 %v8893
      %v8900 = vpack.c.b16 %v8636, %v8899
      %v8901 = vrot.slane %v8900, 1
      %v8902 = vrot.slane %v8654, 1
      %v8903 = vsel %vm1122, %v8901, %v8902
      %v8904 = vrot.slane %v8655, 1
      %v8905 = vsel %vm1122, %v8902, %v8904
      %v8906 = vrot.slane %v8656, 1
      %v8907 = vsel %vm1122, %v8904, %v8906
      %v8908 = vrot.slane %v8657, 1
      %v8909 = vsel %vm1122, %v8906, %v8908
      %v8910 = vrot.slane %v8658, 1
      %v8911 = vsel %vm1122, %v8908, %v8910
      %v8912 = vrot.slane %v8659, 1
      %v8913 = vsel %vm1122, %v8910, %v8912
      %v8914 = vrot.slane %v8660, 1
      %v8915 = vsel %vm1122, %v8912, %v8914
      %v8916 = vrot.slane %v8661, 1
      %v8917 = vsel %vm1122, %v8914, %v8916
      %v8922 = vunpack.c.l.b16 %v8894
      %v8923 = vunpack.c.l.b16 %v8895
      %v8924 = vunpack.c.l.b16 %v8896
      %v8925 = vunpack.c.l.b16 %v8897
      %v8926 = vpack.c.b16 %v8923, %v8922
      %v8927 = vpack.c.b16 %v8925, %v8924
      %v8931 = vsel %vm2959, %v8903, 0
      %v8934 = vsel %vm2959, %v8905, 0
      %v8937 = vsel %vm2959, %v8907, 0
      %v8940 = vsel %vm2959, %v8909, 0
      %v8943 = vsel %vm2959, %v8911, 0
      %v8946 = vsel %vm2959, %v8913, 0
      %v8949 = vsel %vm2959, %v8915, 0
      %v8952 = vsel %vm2959, %v8917, 0
      %v8955 = vsel %vm2959, %v8916, 0
      %8957 = vmatprep.subr.bf16.mxu0 0
      %8958 = vmatpush1.bf16.msra.mxu0 %v8926
      %8959 = vmatprep.subr.bf16.mxu0 0
      %8960 = vmatpush1.bf16.msra.mxu0 %v8927
      %8961 = vmatprep.subr.bf16.mxu0 0
      %8962 = vmatpush1.bf16.msra.mxu0 0
      %8963 = vmatprep.subr.bf16.mxu0 0
      %8964 = vmatpush1.bf16.msra.mxu0 0
      %8965 = vmatprep.subr.bf16.mxu0 0
      %8966 = vmatpush1.bf16.msra.mxu0 0
      %8967 = vmatprep.subr.bf16.mxu0 0
      %8968 = vmatpush1.bf16.msra.mxu0 0
      %8969 = vmatprep.subr.bf16.mxu0 0
      %8970 = vmatpush1.bf16.msra.mxu0 0
      %8971 = vmatprep.subr.bf16.mxu0 0
      %8972 = vmatpush1.bf16.msra.mxu0 0
      %8973 = vmatprep.subr.bf16.mxu0 0
      %8974 = vmatpush1.bf16.msra.mxu0 0
      %8975 = vmatprep.subr.bf16.mxu0 0
      %8976 = vmatpush1.bf16.msra.mxu0 0
      %8977 = vmatprep.subr.bf16.mxu0 0
      %8978 = vmatpush1.bf16.msra.mxu0 0
      %8979 = vmatprep.subr.bf16.mxu0 0
      %8980 = vmatpush1.bf16.msra.mxu0 0
      %8981 = vmatprep.subr.bf16.mxu0 0
      %8982 = vmatpush1.bf16.msra.mxu0 0
      %8983 = vmatprep.subr.bf16.mxu0 0
      %8984 = vmatpush1.bf16.msra.mxu0 0
      %8985 = vmatprep.subr.bf16.mxu0 0
      %8986 = vmatpush1.bf16.msra.mxu0 0
      %8987 = vmatprep.subr.bf16.mxu0 0
      %8988 = vmatpush1.bf16.msra.mxu0 0
      %8989 = vmatprep.mubr.bf16.mxu0 0
      %8990 = vmatmul.mubr.bf16.gmra.mrb[0].mxu0 %v8931
      %v8991 = vpop.f32.mrb[0].mxu0
      %v8992 = vadd.f32 0.0, %v8991
      %v8993 = vpop.f32.mrb[0].mxu0
      %v8994 = vpop.f32.mrb[0].mxu0
      %v8995 = vadd.f32 0.0, %v8994
      %v8996 = vpop.f32.mrb[0].mxu0
      %8997 = vmatprep.mubr.bf16.mxu0 0
      %8998 = vmatmul.mubr.bf16.gmra.mrb[0].mxu0 %v8934
      %v8999 = vpop.f32.mrb[0].mxu0
      %v9000 = vadd.f32 0.0, %v8999
      %v9001 = vpop.f32.mrb[0].mxu0
      %v9002 = vpop.f32.mrb[0].mxu0
      %v9003 = vadd.f32 0.0, %v9002
      %v9004 = vpop.f32.mrb[0].mxu0
      %9005 = vmatprep.mubr.bf16.mxu0 0
      %9006 = vmatmul.mubr.bf16.gmra.mrb[0].mxu0 %v8937
      %v9007 = vpop.f32.mrb[0].mxu0
      %v9008 = vadd.f32 0.0, %v9007
      %v9009 = vpop.f32.mrb[0].mxu0
      %v9010 = vpop.f32.mrb[0].mxu0
      %v9011 = vadd.f32 0.0, %v9010
      %v9012 = vpop.f32.mrb[0].mxu0
      %9013 = vmatprep.mubr.bf16.mxu0 0
      %9014 = vmatmul.mubr.bf16.gmra.mrb[0].mxu0 %v8940
      %v9015 = vpop.f32.mrb[0].mxu0
      %v9016 = vadd.f32 0.0, %v9015
      %v9017 = vpop.f32.mrb[0].mxu0
      %v9018 = vpop.f32.mrb[0].mxu0
      %v9019 = vadd.f32 0.0, %v9018
      %v9020 = vpop.f32.mrb[0].mxu0
      %9021 = vmatprep.mubr.bf16.mxu0 0
      %9022 = vmatmul.mubr.bf16.gmra.mrb[0].mxu0 %v8943
      %v9023 = vpop.f32.mrb[0].mxu0
      %v9024 = vadd.f32 0.0, %v9023
      %v9025 = vpop.f32.mrb[0].mxu0
      %v9026 = vpop.f32.mrb[0].mxu0
      %v9027 = vadd.f32 0.0, %v9026
      %v9028 = vpop.f32.mrb[0].mxu0
      %9029 = vmatprep.mubr.bf16.mxu0 0
      %9030 = vmatmul.mubr.bf16.gmra.mrb[0].mxu0 %v8946
      %v9031 = vpop.f32.mrb[0].mxu0
      %v9032 = vadd.f32 0.0, %v9031
      %v9033 = vpop.f32.mrb[0].mxu0
      %v9034 = vpop.f32.mrb[0].mxu0
      %v9035 = vadd.f32 0.0, %v9034
      %v9036 = vpop.f32.mrb[0].mxu0
      %9037 = vmatprep.mubr.bf16.mxu0 0
      %9038 = vmatmul.mubr.bf16.gmra.mrb[0].mxu0 %v8949
      %v9039 = vpop.f32.mrb[0].mxu0
      %v9040 = vadd.f32 0.0, %v9039
      %v9041 = vpop.f32.mrb[0].mxu0
      %v9042 = vpop.f32.mrb[0].mxu0
      %v9043 = vadd.f32 0.0, %v9042
      %v9044 = vpop.f32.mrb[0].mxu0
      %9045 = vmatprep.mubr.bf16.mxu0 0
      %9046 = vmatmul.mubr.bf16.gmra.mrb[0].mxu0 %v8952
      %v9047 = vpop.f32.mrb[0].mxu0
      %v9048 = vadd.f32 0.0, %v9047
      %v9049 = vpop.f32.mrb[0].mxu0
      %v9050 = vpop.f32.mrb[0].mxu0
      %v9051 = vadd.f32 0.0, %v9050
      %v9052 = vpop.f32.mrb[0].mxu0
      %9053 = vmatprep.mubr.bf16.mxu0 0
      %9054 = vmatmul.mubr.bf16.gmra.mrb[0].mxu0 %v8955
      %v9055 = vpop.f32.mrb[0].mxu0
      %v9056 = vadd.f32 0.0, %v9055
      %v9057 = vpop.f32.mrb[0].mxu0
      %v9058 = vpop.f32.mrb[0].mxu0
      %v9059 = vpop.f32.mrb[0].mxu0
      %9060 = vdwg.mxu0
      %v9061 = vadd.f32 %v8876, %v8992
      %v9062 = vadd.f32 %v8877, %v8995
      %v9063 = vadd.f32 %v8878, %v9000
      %v9064 = vadd.f32 %v8879, %v9003
      %v9065 = vadd.f32 %v8880, %v9008
      %v9066 = vadd.f32 %v8881, %v9011
      %v9067 = vadd.f32 %v8882, %v9016
      %v9068 = vadd.f32 %v8883, %v9019
      %v9069 = vadd.f32 %v8884, %v9024
      %v9070 = vadd.f32 %v8885, %v9027
      %v9071 = vadd.f32 %v8886, %v9032
      %v9072 = vadd.f32 %v8887, %v9035
      %v9073 = vadd.f32 %v8888, %v9040
      %v9074 = vadd.f32 %v8889, %v9043
      %v9075 = vadd.f32 %v8890, %v9048
      %v9076 = vadd.f32 %v8891, %v9051
      %v9077 = vadd.f32 %v8892, %v9056
      %v9079 = vlaneseq
      %v9080 = vshrl.u32 %v9079, 7
      %v9081 = vsub.s32 0, %v9080
      %v9082 = vrot.slane %v7224, %v9081
      %v9084 = vmul.f32 %v9061, %v9082
      %v9085 = vmul.f32 %v9062, %v9082
      %v9086 = vmul.f32 %v9063, %v9082
      %v9087 = vmul.f32 %v9064, %v9082
      %v9088 = vmul.f32 %v9065, %v9082
      %v9089 = vmul.f32 %v9066, %v9082
      %v9090 = vmul.f32 %v9067, %v9082
      %v9091 = vmul.f32 %v9068, %v9082
      %v9092 = vmul.f32 %v9069, %v9082
      %v9093 = vmul.f32 %v9070, %v9082
      %v9094 = vmul.f32 %v9071, %v9082
      %v9095 = vmul.f32 %v9072, %v9082
      %v9096 = vmul.f32 %v9073, %v9082
      %v9097 = vmul.f32 %v9074, %v9082
      %v9098 = vmul.f32 %v9075, %v9082
      %v9099 = vmul.f32 %v9076, %v9082
      %v9100 = vmul.f32 %v9077, %v9082
      %v9102 = vlaneseq
      %v9103 = vshrl.u32 %v9102, 7
      %v9104 = vsub.s32 0, %v9103
      %v9105 = vrot.slane %v7225, %v9104
      %v9107 = vadd.f32 %v9084, %v9105
      %v9108 = vadd.f32 %v9085, %v9105
      %v9109 = vadd.f32 %v9086, %v9105
      %v9110 = vadd.f32 %v9087, %v9105
      %v9111 = vadd.f32 %v9088, %v9105
      %v9112 = vadd.f32 %v9089, %v9105
      %v9113 = vadd.f32 %v9090, %v9105
      %v9114 = vadd.f32 %v9091, %v9105
      %v9115 = vadd.f32 %v9092, %v9105
      %v9116 = vadd.f32 %v9093, %v9105
      %v9117 = vadd.f32 %v9094, %v9105
      %v9118 = vadd.f32 %v9095, %v9105
      %v9119 = vadd.f32 %v9096, %v9105
      %v9120 = vadd.f32 %v9097, %v9105
      %v9121 = vadd.f32 %v9098, %v9105
      %v9122 = vadd.f32 %v9099, %v9105
      %v9123 = vadd.f32 %v9100, %v9105
      %v9124 = vmax.f32 %v9107, 0.0
      %v9125 = vmax.f32 %v9108, 0.0
      %v9126 = vmax.f32 %v9109, 0.0
      %v9127 = vmax.f32 %v9110, 0.0
      %v9128 = vmax.f32 %v9111, 0.0
      %v9129 = vmax.f32 %v9112, 0.0
      %v9130 = vmax.f32 %v9113, 0.0
      %v9131 = vmax.f32 %v9114, 0.0
      %v9132 = vmax.f32 %v9115, 0.0
      %v9133 = vmax.f32 %v9116, 0.0
      %v9134 = vmax.f32 %v9117, 0.0
      %v9135 = vmax.f32 %v9118, 0.0
      %v9136 = vmax.f32 %v9119, 0.0
      %v9137 = vmax.f32 %v9120, 0.0
      %v9138 = vmax.f32 %v9121, 0.0
      %v9139 = vmax.f32 %v9122, 0.0
      %v9140 = vmax.f32 %v9123, 0.0
      %v9141 = vmul.f32 %v9124, %v2439
      %v9142 = vmul.f32 %v9125, %v2444
      %v9143 = vmul.f32 %v9126, %v2449
      %v9144 = vmul.f32 %v9127, %v2454
      %v9145 = vmul.f32 %v9128, %v2459
      %v9146 = vmul.f32 %v9129, %v2464
      %v9147 = vmul.f32 %v9130, %v2469
      %v9148 = vmul.f32 %v9131, %v2474
      %v9149 = vmul.f32 %v9132, %v2479
      %v9150 = vmul.f32 %v9133, %v2484
      %v9151 = vmul.f32 %v9134, %v2489
      %v9152 = vmul.f32 %v9135, %v2494
      %v9153 = vmul.f32 %v9136, %v2499
      %v9154 = vmul.f32 %v9137, %v2504
      %v9155 = vmul.f32 %v9138, %v2509
      %v9156 = vmul.f32 %v9139, %v2514
      %v9157 = vmul.f32 %v9140, %v2519
      %v9158 = vpack.c.bf16 %v9142, %v9141
      %v9159 = vpack.c.bf16 %v9144, %v9143
      %v9160 = vpack.c.bf16 %v9146, %v9145
      %v9161 = vpack.c.bf16 %v9148, %v9147
      %v9162 = vpack.c.bf16 %v9150, %v9149
      %v9163 = vpack.c.bf16 %v9152, %v9151
      %v9164 = vpack.c.bf16 %v9154, %v9153
      %v9165 = vpack.c.bf16 %v9156, %v9155
      %v9166 = vpack.c.bf16 %v9157, %v9157
      %v9176 = vunpack.c.l.b16 %v9158
      %v9177 = vunpack.c.h.b16 %v9158
      %v9178 = vunpack.c.l.b16 %v9159
      %v9179 = vunpack.c.h.b16 %v9159
      %v9180 = vunpack.c.l.b16 %v9160
      %v9181 = vunpack.c.h.b16 %v9160
      %v9182 = vunpack.c.l.b16 %v9161
      %v9183 = vunpack.c.h.b16 %v9161
      %v9184 = vunpack.c.l.b16 %v9162
      %v9185 = vunpack.c.h.b16 %v9162
      %v9186 = vunpack.c.l.b16 %v9163
      %v9187 = vunpack.c.h.b16 %v9163
      %v9188 = vunpack.c.l.b16 %v9164
      %v9189 = vunpack.c.h.b16 %v9164
      %v9190 = vunpack.c.l.b16 %v9165
      %v9191 = vunpack.c.h.b16 %v9165
      %v9192 = vunpack.c.l.b16 %v9166
      %v9193 = vpack.c.b16 %v9176, %v9176
      %v9194 = vpack.c.b16 %v9177, %v9177
      %v9195 = vpack.c.b16 %v9178, %v9178
      %v9196 = vpack.c.b16 %v9179, %v9179
      %v9197 = vpack.c.b16 %v9180, %v9180
      %v9198 = vpack.c.b16 %v9181, %v9181
      %v9199 = vpack.c.b16 %v9182, %v9182
      %v9200 = vpack.c.b16 %v9183, %v9183
      %v9201 = vpack.c.b16 %v9184, %v9184
      %v9202 = vpack.c.b16 %v9185, %v9185
      %v9203 = vpack.c.b16 %v9186, %v9186
      %v9204 = vpack.c.b16 %v9187, %v9187
      %v9205 = vpack.c.b16 %v9188, %v9188
      %v9206 = vpack.c.b16 %v9189, %v9189
      %v9207 = vpack.c.b16 %v9190, %v9190
      %v9208 = vpack.c.b16 %v9191, %v9191
      %v9209 = vpack.c.b16 %v9192, %v9192
      %v9211 = vshrl.u32 %v9193, 16
      %v9213 = vrot.slane %v9211, 5
      %v9214 = vshll.u32 %v9193, 16
      %v9216 = vrot.slane %v9214, 6
      %v9217 = vor.u32 %v9213, %v9216
      %v9218 = vrot.slane %v9217, 4
      %v9220 = vshrl.u32 %v9194, 16
      %v9222 = vrot.slane %v9220, 5
      %v9223 = vshll.u32 %v9194, 16
      %v9225 = vrot.slane %v9223, 6
      %v9226 = vor.u32 %v9222, %v9225
      %v9227 = vsel %vm2591, %v9218, %v9226
      %v9228 = vrot.slane %v9226, 4
      %v9230 = vshrl.u32 %v9195, 16
      %v9232 = vrot.slane %v9230, 5
      %v9233 = vshll.u32 %v9195, 16
      %v9235 = vrot.slane %v9233, 6
      %v9236 = vor.u32 %v9232, %v9235
      %v9237 = vsel %vm2591, %v9228, %v9236
      %v9238 = vrot.slane %v9236, 4
      %v9240 = vshrl.u32 %v9196, 16
      %v9242 = vrot.slane %v9240, 5
      %v9243 = vshll.u32 %v9196, 16
      %v9245 = vrot.slane %v9243, 6
      %v9246 = vor.u32 %v9242, %v9245
      %v9247 = vsel %vm2591, %v9238, %v9246
      %v9248 = vrot.slane %v9246, 4
      %v9250 = vshrl.u32 %v9197, 16
      %v9252 = vrot.slane %v9250, 5
      %v9253 = vshll.u32 %v9197, 16
      %v9255 = vrot.slane %v9253, 6
      %v9256 = vor.u32 %v9252, %v9255
      %v9257 = vsel %vm2591, %v9248, %v9256
      %v9258 = vrot.slane %v9256, 4
      %v9260 = vshrl.u32 %v9198, 16
      %v9262 = vrot.slane %v9260, 5
      %v9263 = vshll.u32 %v9198, 16
      %v9265 = vrot.slane %v9263, 6
      %v9266 = vor.u32 %v9262, %v9265
      %v9267 = vsel %vm2591, %v9258, %v9266
      %v9268 = vrot.slane %v9266, 4
      %v9270 = vshrl.u32 %v9199, 16
      %v9272 = vrot.slane %v9270, 5
      %v9273 = vshll.u32 %v9199, 16
      %v9275 = vrot.slane %v9273, 6
      %v9276 = vor.u32 %v9272, %v9275
      %v9277 = vsel %vm2591, %v9268, %v9276
      %v9278 = vrot.slane %v9276, 4
      %v9280 = vshrl.u32 %v9200, 16
      %v9282 = vrot.slane %v9280, 5
      %v9283 = vshll.u32 %v9200, 16
      %v9285 = vrot.slane %v9283, 6
      %v9286 = vor.u32 %v9282, %v9285
      %v9287 = vsel %vm2591, %v9278, %v9286
      %v9288 = vrot.slane %v9286, 4
      %v9290 = vshrl.u32 %v9201, 16
      %v9292 = vrot.slane %v9290, 5
      %v9293 = vshll.u32 %v9201, 16
      %v9295 = vrot.slane %v9293, 6
      %v9296 = vor.u32 %v9292, %v9295
      %v9297 = vsel %vm2591, %v9288, %v9296
      %v9298 = vrot.slane %v9296, 4
      %v9300 = vshrl.u32 %v9202, 16
      %v9302 = vrot.slane %v9300, 5
      %v9303 = vshll.u32 %v9202, 16
      %v9305 = vrot.slane %v9303, 6
      %v9306 = vor.u32 %v9302, %v9305
      %v9307 = vsel %vm2591, %v9298, %v9306
      %v9308 = vrot.slane %v9306, 4
      %v9310 = vshrl.u32 %v9203, 16
      %v9312 = vrot.slane %v9310, 5
      %v9313 = vshll.u32 %v9203, 16
      %v9315 = vrot.slane %v9313, 6
      %v9316 = vor.u32 %v9312, %v9315
      %v9317 = vsel %vm2591, %v9308, %v9316
      %v9318 = vrot.slane %v9316, 4
      %v9320 = vshrl.u32 %v9204, 16
      %v9322 = vrot.slane %v9320, 5
      %v9323 = vshll.u32 %v9204, 16
      %v9325 = vrot.slane %v9323, 6
      %v9326 = vor.u32 %v9322, %v9325
      %v9327 = vsel %vm2591, %v9318, %v9326
      %v9328 = vrot.slane %v9326, 4
      %v9330 = vshrl.u32 %v9205, 16
      %v9332 = vrot.slane %v9330, 5
      %v9333 = vshll.u32 %v9205, 16
      %v9335 = vrot.slane %v9333, 6
      %v9336 = vor.u32 %v9332, %v9335
      %v9337 = vsel %vm2591, %v9328, %v9336
      %v9338 = vrot.slane %v9336, 4
      %v9340 = vshrl.u32 %v9206, 16
      %v9342 = vrot.slane %v9340, 5
      %v9343 = vshll.u32 %v9206, 16
      %v9345 = vrot.slane %v9343, 6
      %v9346 = vor.u32 %v9342, %v9345
      %v9347 = vsel %vm2591, %v9338, %v9346
      %v9348 = vrot.slane %v9346, 4
      %v9350 = vshrl.u32 %v9207, 16
      %v9352 = vrot.slane %v9350, 5
      %v9353 = vshll.u32 %v9207, 16
      %v9355 = vrot.slane %v9353, 6
      %v9356 = vor.u32 %v9352, %v9355
      %v9357 = vsel %vm2591, %v9348, %v9356
      %v9358 = vrot.slane %v9356, 4
      %v9360 = vshrl.u32 %v9208, 16
      %v9362 = vrot.slane %v9360, 5
      %v9363 = vshll.u32 %v9208, 16
      %v9365 = vrot.slane %v9363, 6
      %v9366 = vor.u32 %v9362, %v9365
      %v9367 = vsel %vm2591, %v9358, %v9366
      %v9368 = vrot.slane %v9366, 4
      %v9370 = vshrl.u32 %v9209, 16
      %v9372 = vrot.slane %v9370, 5
      %v9373 = vshll.u32 %v9209, 16
      %v9375 = vrot.slane %v9373, 6
      %v9376 = vor.u32 %v9372, %v9375
      %v9377 = vsel %vm2591, %v9368, %v9376
      %v9378 = vrot.slane %v9376, 4
      %v9397 = vsel %vm710, %v9217, %v7832
      %9398 = vst [vmem:[#allocation2] sm:$0xc] %v9397
      %9399 = vst.msk [vmem:[#allocation2 + $0x4] sm:$0xf] %vm2782, %v9227
      %9400 = vst.msk [vmem:[#allocation2 + $0x8] sm:$0xf] %vm2782, %v9237
      %9401 = vst.msk [vmem:[#allocation2 + $0xc] sm:$0xf] %vm2782, %v9247
      %9402 = vst.msk [vmem:[#allocation2 + $0x10] sm:$0xf] %vm2782, %v9257
      %9403 = vst.msk [vmem:[#allocation2 + $0x14] sm:$0xf] %vm2782, %v9267
      %9404 = vst.msk [vmem:[#allocation2 + $0x18] sm:$0xf] %vm2782, %v9277
      %9405 = vst.msk [vmem:[#allocation2 + $0x1c] sm:$0xf] %vm2782, %v9287
      %9406 = vst.msk [vmem:[#allocation2 + $0x20] sm:$0xf] %vm2782, %v9297
      %9407 = vst.msk [vmem:[#allocation2 + $0x24] sm:$0xf] %vm2782, %v9307
      %9408 = vst.msk [vmem:[#allocation2 + $0x28] sm:$0xf] %vm2782, %v9317
      %9409 = vst.msk [vmem:[#allocation2 + $0x2c] sm:$0xf] %vm2782, %v9327
      %9410 = vst.msk [vmem:[#allocation2 + $0x30] sm:$0xf] %vm2782, %v9337
      %9411 = vst.msk [vmem:[#allocation2 + $0x34] sm:$0xf] %vm2782, %v9347
      %9412 = vst.msk [vmem:[#allocation2 + $0x38] sm:$0xf] %vm2782, %v9357
      %9413 = vst.msk [vmem:[#allocation2 + $0x3c] sm:$0xf] %vm2782, %v9367
      %9414 = vst.msk [vmem:[#allocation2 + $0x40] sm:$0xf] %vm2782, %v9377
      %v9415 = vld [vmem:[#allocation2 + $0x44] sm:$0x7]
      %v9416 = vsel %vm704, %v9378, %v9415
      %9417 = vst [vmem:[#allocation2 + $0x44] sm:$0x7] %v9416
      %v9418 = vld [vmem:[%s10] sm:$0x1]
      %v9419 = vld [vmem:[%s11] sm:$0x1]
      %v9420 = vld [vmem:[#allocation2] sm:$0xf]
      %v9421 = vld [vmem:[#allocation2 + $0x4] sm:$0xf]
      %v9422 = vld [vmem:[#allocation2 + $0x8] sm:$0xf]
      %v9423 = vld [vmem:[#allocation2 + $0xc] sm:$0xf]
      %v9424 = vld [vmem:[#allocation2 + $0x10] sm:$0xf]
      %v9425 = vld [vmem:[#allocation2 + $0x14] sm:$0xf]
      %v9426 = vld [vmem:[#allocation2 + $0x18] sm:$0xf]
      %v9427 = vld [vmem:[#allocation2 + $0x1c] sm:$0xf]
      %v9428 = vld [vmem:[#allocation2 + $0x20] sm:$0xf]
      %v9429 = vld [vmem:[#allocation2 + $0x24] sm:$0xf]
      %v9430 = vld [vmem:[#allocation2 + $0x28] sm:$0xf]
      %v9431 = vld [vmem:[#allocation2 + $0x2c] sm:$0xf]
      %v9432 = vld [vmem:[#allocation2 + $0x30] sm:$0xf]
      %v9433 = vld [vmem:[#allocation2 + $0x34] sm:$0xf]
      %v9434 = vld [vmem:[#allocation2 + $0x38] sm:$0xf]
      %v9435 = vld [vmem:[#allocation2 + $0x3c] sm:$0xf]
      %v9436 = vld [vmem:[#allocation2 + $0x40] sm:$0xf]
      %v9437 = vld [vmem:[%s9] sm:$0xf]
      %v9438 = vld [vmem:[%s9 + $0x4] sm:$0xf]
      %v9439 = vld [vmem:[%s9 + $0x8] sm:$0xf]
      %v9440 = vld [vmem:[%s9 + $0xc] sm:$0xf]
      %v9441 = vld [vmem:[#allocation2 + $0x44] sm:$0x1]
      %v9442 = vld [vmem:[%s5029] sm:$0xf]
      %v9443 = vld [vmem:[%s5029 + $0x4] sm:$0xf]
      %v9444 = vld [vmem:[%s5029 + $0x8] sm:$0xf]
      %v9445 = vld [vmem:[%s5029 + $0xc] sm:$0xf]
      %v9464 = vunpack.c.l.b16 %v9420
      %v9465 = vunpack.c.l.b16 %v9421
      %v9466 = vunpack.c.l.b16 %v9422
      %v9467 = vunpack.c.l.b16 %v9423
      %v9468 = vunpack.c.l.b16 %v9424
      %v9469 = vunpack.c.l.b16 %v9425
      %v9470 = vunpack.c.l.b16 %v9426
      %v9471 = vunpack.c.l.b16 %v9427
      %v9472 = vunpack.c.l.b16 %v9428
      %v9473 = vunpack.c.l.b16 %v9429
      %v9474 = vunpack.c.l.b16 %v9430
      %v9475 = vunpack.c.l.b16 %v9431
      %v9476 = vunpack.c.l.b16 %v9432
      %v9477 = vunpack.c.l.b16 %v9433
      %v9478 = vunpack.c.l.b16 %v9434
      %v9479 = vunpack.c.l.b16 %v9435
      %v9480 = vunpack.c.l.b16 %v9436
      %v9481 = vunpack.c.l.b16 %v9441
      %v9482 = vpack.c.b16 %v9465, %v9464
      %v9483 = vpack.c.b16 %v9467, %v9466
      %v9484 = vpack.c.b16 %v9469, %v9468
      %v9485 = vpack.c.b16 %v9471, %v9470
      %v9486 = vpack.c.b16 %v9473, %v9472
      %v9487 = vpack.c.b16 %v9475, %v9474
      %v9488 = vpack.c.b16 %v9477, %v9476
      %v9489 = vpack.c.b16 %v9479, %v9478
      %v9490 = vpack.c.b16 %v9481, %v9480
      %v9492 = vshrl.u32 %v9482, 16
      %v9494 = vshll.u32 %v9482, 16
      %v9496 = vrot.slane %v9494, 1
      %v9497 = vor.u32 %v9492, %v9496
      %v9499 = vshll.u32 %v9483, 16
      %v9501 = vrot.slane %v9499, 1
      %v9502 = vsel %vm785, %v9497, %v9501
      %v9503 = vshrl.u32 %v9483, 16
      %v9505 = vor.u32 %v9503, %v9501
      %v9507 = vshll.u32 %v9484, 16
      %v9509 = vrot.slane %v9507, 1
      %v9510 = vsel %vm785, %v9505, %v9509
      %v9511 = vshrl.u32 %v9484, 16
      %v9513 = vor.u32 %v9511, %v9509
      %v9515 = vshll.u32 %v9485, 16
      %v9517 = vrot.slane %v9515, 1
      %v9518 = vsel %vm785, %v9513, %v9517
      %v9519 = vshrl.u32 %v9485, 16
      %v9521 = vor.u32 %v9519, %v9517
      %v9523 = vshll.u32 %v9486, 16
      %v9525 = vrot.slane %v9523, 1
      %v9526 = vsel %vm785, %v9521, %v9525
      %v9527 = vshrl.u32 %v9486, 16
      %v9529 = vor.u32 %v9527, %v9525
      %v9531 = vshll.u32 %v9487, 16
      %v9533 = vrot.slane %v9531, 1
      %v9534 = vsel %vm785, %v9529, %v9533
      %v9535 = vshrl.u32 %v9487, 16
      %v9537 = vor.u32 %v9535, %v9533
      %v9539 = vshll.u32 %v9488, 16
      %v9541 = vrot.slane %v9539, 1
      %v9542 = vsel %vm785, %v9537, %v9541
      %v9543 = vshrl.u32 %v9488, 16
      %v9545 = vor.u32 %v9543, %v9541
      %v9547 = vshll.u32 %v9489, 16
      %v9549 = vrot.slane %v9547, 1
      %v9550 = vsel %vm785, %v9545, %v9549
      %v9551 = vshrl.u32 %v9489, 16
      %v9553 = vor.u32 %v9551, %v9549
      %v9555 = vshll.u32 %v9490, 16
      %v9557 = vrot.slane %v9555, 1
      %v9558 = vsel %vm785, %v9553, %v9557
      %v9559 = vshrl.u32 %v9490, 16
      %v9561 = vor.u32 %v9559, %v9557
      %v9566 = vunpack.c.l.b16 %v9442
      %v9567 = vunpack.c.l.b16 %v9443
      %v9568 = vunpack.c.l.b16 %v9444
      %v9569 = vunpack.c.l.b16 %v9445
      %v9570 = vpack.c.b16 %v9567, %v9566
      %v9571 = vpack.c.b16 %v9569, %v9568
      %v9575 = vsel %vm2959, %v9502, 0
      %v9578 = vsel %vm2959, %v9510, 0
      %v9581 = vsel %vm2959, %v9518, 0
      %v9584 = vsel %vm2959, %v9526, 0
      %v9587 = vsel %vm2959, %v9534, 0
      %v9590 = vsel %vm2959, %v9542, 0
      %v9593 = vsel %vm2959, %v9550, 0
      %v9596 = vsel %vm2959, %v9558, 0
      %v9599 = vsel %vm2959, %v9561, 0
      %9601 = vmatprep.subr.bf16.mxu0 0
      %9602 = vmatpush1.bf16.msra.mxu0 %v9570
      %9603 = vmatprep.subr.bf16.mxu0 0
      %9604 = vmatpush1.bf16.msra.mxu0 %v9571
      %9605 = vmatprep.subr.bf16.mxu0 0
      %9606 = vmatpush1.bf16.msra.mxu0 0
      %9607 = vmatprep.subr.bf16.mxu0 0
      %9608 = vmatpush1.bf16.msra.mxu0 0
      %9609 = vmatprep.subr.bf16.mxu0 0
      %9610 = vmatpush1.bf16.msra.mxu0 0
      %9611 = vmatprep.subr.bf16.mxu0 0
      %9612 = vmatpush1.bf16.msra.mxu0 0
      %9613 = vmatprep.subr.bf16.mxu0 0
      %9614 = vmatpush1.bf16.msra.mxu0 0
      %9615 = vmatprep.subr.bf16.mxu0 0
      %9616 = vmatpush1.bf16.msra.mxu0 0
      %9617 = vmatprep.subr.bf16.mxu0 0
      %9618 = vmatpush1.bf16.msra.mxu0 0
      %9619 = vmatprep.subr.bf16.mxu0 0
      %9620 = vmatpush1.bf16.msra.mxu0 0
      %9621 = vmatprep.subr.bf16.mxu0 0
      %9622 = vmatpush1.bf16.msra.mxu0 0
      %9623 = vmatprep.subr.bf16.mxu0 0
      %9624 = vmatpush1.bf16.msra.mxu0 0
      %9625 = vmatprep.subr.bf16.mxu0 0
      %9626 = vmatpush1.bf16.msra.mxu0 0
      %9627 = vmatprep.subr.bf16.mxu0 0
      %9628 = vmatpush1.bf16.msra.mxu0 0
      %9629 = vmatprep.subr.bf16.mxu0 0
      %9630 = vmatpush1.bf16.msra.mxu0 0
      %9631 = vmatprep.subr.bf16.mxu0 0
      %9632 = vmatpush1.bf16.msra.mxu0 0
      %9633 = vmatprep.mubr.bf16.mxu0 0
      %9634 = vmatmul.mubr.bf16.gmra.mrb[0].mxu0 %v9575
      %v9635 = vpop.f32.mrb[0].mxu0
      %v9636 = vadd.f32 0.0, %v9635
      %v9637 = vpop.f32.mrb[0].mxu0
      %v9638 = vpop.f32.mrb[0].mxu0
      %v9639 = vadd.f32 0.0, %v9638
      %v9640 = vpop.f32.mrb[0].mxu0
      %9641 = vmatprep.mubr.bf16.mxu0 0
      %9642 = vmatmul.mubr.bf16.gmra.mrb[0].mxu0 %v9578
      %v9643 = vpop.f32.mrb[0].mxu0
      %v9644 = vadd.f32 0.0, %v9643
      %v9645 = vpop.f32.mrb[0].mxu0
      %v9646 = vpop.f32.mrb[0].mxu0
      %v9647 = vadd.f32 0.0, %v9646
      %v9648 = vpop.f32.mrb[0].mxu0
      %9649 = vmatprep.mubr.bf16.mxu0 0
      %9650 = vmatmul.mubr.bf16.gmra.mrb[0].mxu0 %v9581
      %v9651 = vpop.f32.mrb[0].mxu0
      %v9652 = vadd.f32 0.0, %v9651
      %v9653 = vpop.f32.mrb[0].mxu0
      %v9654 = vpop.f32.mrb[0].mxu0
      %v9655 = vadd.f32 0.0, %v9654
      %v9656 = vpop.f32.mrb[0].mxu0
      %9657 = vmatprep.mubr.bf16.mxu0 0
      %9658 = vmatmul.mubr.bf16.gmra.mrb[0].mxu0 %v9584
      %v9659 = vpop.f32.mrb[0].mxu0
      %v9660 = vadd.f32 0.0, %v9659
      %v9661 = vpop.f32.mrb[0].mxu0
      %v9662 = vpop.f32.mrb[0].mxu0
      %v9663 = vadd.f32 0.0, %v9662
      %v9664 = vpop.f32.mrb[0].mxu0
      %9665 = vmatprep.mubr.bf16.mxu0 0
      %9666 = vmatmul.mubr.bf16.gmra.mrb[0].mxu0 %v9587
      %v9667 = vpop.f32.mrb[0].mxu0
      %v9668 = vadd.f32 0.0, %v9667
      %v9669 = vpop.f32.mrb[0].mxu0
      %v9670 = vpop.f32.mrb[0].mxu0
      %v9671 = vadd.f32 0.0, %v9670
      %v9672 = vpop.f32.mrb[0].mxu0
      %9673 = vmatprep.mubr.bf16.mxu0 0
      %9674 = vmatmul.mubr.bf16.gmra.mrb[0].mxu0 %v9590
      %v9675 = vpop.f32.mrb[0].mxu0
      %v9676 = vadd.f32 0.0, %v9675
      %v9677 = vpop.f32.mrb[0].mxu0
      %v9678 = vpop.f32.mrb[0].mxu0
      %v9679 = vadd.f32 0.0, %v9678
      %v9680 = vpop.f32.mrb[0].mxu0
      %9681 = vmatprep.mubr.bf16.mxu0 0
      %9682 = vmatmul.mubr.bf16.gmra.mrb[0].mxu0 %v9593
      %v9683 = vpop.f32.mrb[0].mxu0
      %v9684 = vadd.f32 0.0, %v9683
      %v9685 = vpop.f32.mrb[0].mxu0
      %v9686 = vpop.f32.mrb[0].mxu0
      %v9687 = vadd.f32 0.0, %v9686
      %v9688 = vpop.f32.mrb[0].mxu0
      %9689 = vmatprep.mubr.bf16.mxu0 0
      %9690 = vmatmul.mubr.bf16.gmra.mrb[0].mxu0 %v9596
      %v9691 = vpop.f32.mrb[0].mxu0
      %v9692 = vadd.f32 0.0, %v9691
      %v9693 = vpop.f32.mrb[0].mxu0
      %v9694 = vpop.f32.mrb[0].mxu0
      %v9695 = vadd.f32 0.0, %v9694
      %v9696 = vpop.f32.mrb[0].mxu0
      %9697 = vmatprep.mubr.bf16.mxu0 0
      %9698 = vmatmul.mubr.bf16.gmra.mrb[0].mxu0 %v9599
      %v9699 = vpop.f32.mrb[0].mxu0
      %v9700 = vadd.f32 0.0, %v9699
      %v9701 = vpop.f32.mrb[0].mxu0
      %v9702 = vpop.f32.mrb[0].mxu0
      %v9703 = vpop.f32.mrb[0].mxu0
      %9704 = vdwg.mxu0
      %v9705 = vpack.c.b16 %v9480, %v9480
      %v9710 = vunpack.c.l.b16 %v9437
      %v9711 = vunpack.c.l.b16 %v9438
      %v9712 = vunpack.c.l.b16 %v9439
      %v9713 = vunpack.c.l.b16 %v9440
      %v9714 = vpack.c.b16 %v9711, %v9710
      %v9715 = vpack.c.b16 %v9713, %v9712
      %v9718 = vsel %vm2959, %v9482, 0
      %v9720 = vsel %vm2959, %v9483, 0
      %v9722 = vsel %vm2959, %v9484, 0
      %v9724 = vsel %vm2959, %v9485, 0
      %v9726 = vsel %vm2959, %v9486, 0
      %v9728 = vsel %vm2959, %v9487, 0
      %v9730 = vsel %vm2959, %v9488, 0
      %v9732 = vsel %vm2959, %v9489, 0
      %v9735 = vsel %vm2959, %v9705, 0
      %9737 = vmatprep.subr.bf16.mxu0 0
      %9738 = vmatpush1.bf16.msra.mxu0 %v9714
      %9739 = vmatprep.subr.bf16.mxu0 0
      %9740 = vmatpush1.bf16.msra.mxu0 %v9715
      %9741 = vmatprep.subr.bf16.mxu0 0
      %9742 = vmatpush1.bf16.msra.mxu0 0
      %9743 = vmatprep.subr.bf16.mxu0 0
      %9744 = vmatpush1.bf16.msra.mxu0 0
      %9745 = vmatprep.subr.bf16.mxu0 0
      %9746 = vmatpush1.bf16.msra.mxu0 0
      %9747 = vmatprep.subr.bf16.mxu0 0
      %9748 = vmatpush1.bf16.msra.mxu0 0
      %9749 = vmatprep.subr.bf16.mxu0 0
      %9750 = vmatpush1.bf16.msra.mxu0 0
      %9751 = vmatprep.subr.bf16.mxu0 0
      %9752 = vmatpush1.bf16.msra.mxu0 0
      %9753 = vmatprep.subr.bf16.mxu0 0
      %9754 = vmatpush1.bf16.msra.mxu0 0
      %9755 = vmatprep.subr.bf16.mxu0 0
      %9756 = vmatpush1.bf16.msra.mxu0 0
      %9757 = vmatprep.subr.bf16.mxu0 0
      %9758 = vmatpush1.bf16.msra.mxu0 0
      %9759 = vmatprep.subr.bf16.mxu0 0
      %9760 = vmatpush1.bf16.msra.mxu0 0
      %9761 = vmatprep.subr.bf16.mxu0 0
      %9762 = vmatpush1.bf16.msra.mxu0 0
      %9763 = vmatprep.subr.bf16.mxu0 0
      %9764 = vmatpush1.bf16.msra.mxu0 0
      %9765 = vmatprep.subr.bf16.mxu0 0
      %9766 = vmatpush1.bf16.msra.mxu0 0
      %9767 = vmatprep.subr.bf16.mxu0 0
      %9768 = vmatpush1.bf16.msra.mxu0 0
      %9769 = vmatprep.mubr.bf16.mxu0 0
      %9770 = vmatmul.mubr.bf16.gmra.mrb[0].mxu0 %v9718
      %v9771 = vpop.f32.mrb[0].mxu0
      %v9772 = vadd.f32 %v9636, %v9771
      %v9773 = vpop.f32.mrb[0].mxu0
      %v9774 = vpop.f32.mrb[0].mxu0
      %v9775 = vadd.f32 %v9639, %v9774
      %v9776 = vpop.f32.mrb[0].mxu0
      %9777 = vmatprep.mubr.bf16.mxu0 0
      %9778 = vmatmul.mubr.bf16.gmra.mrb[0].mxu0 %v9720
      %v9779 = vpop.f32.mrb[0].mxu0
      %v9780 = vadd.f32 %v9644, %v9779
      %v9781 = vpop.f32.mrb[0].mxu0
      %v9782 = vpop.f32.mrb[0].mxu0
      %v9783 = vadd.f32 %v9647, %v9782
      %v9784 = vpop.f32.mrb[0].mxu0
      %9785 = vmatprep.mubr.bf16.mxu0 0
      %9786 = vmatmul.mubr.bf16.gmra.mrb[0].mxu0 %v9722
      %v9787 = vpop.f32.mrb[0].mxu0
      %v9788 = vadd.f32 %v9652, %v9787
      %v9789 = vpop.f32.mrb[0].mxu0
      %v9790 = vpop.f32.mrb[0].mxu0
      %v9791 = vadd.f32 %v9655, %v9790
      %v9792 = vpop.f32.mrb[0].mxu0
      %9793 = vmatprep.mubr.bf16.mxu0 0
      %9794 = vmatmul.mubr.bf16.gmra.mrb[0].mxu0 %v9724
      %v9795 = vpop.f32.mrb[0].mxu0
      %v9796 = vadd.f32 %v9660, %v9795
      %v9797 = vpop.f32.mrb[0].mxu0
      %v9798 = vpop.f32.mrb[0].mxu0
      %v9799 = vadd.f32 %v9663, %v9798
      %v9800 = vpop.f32.mrb[0].mxu0
      %9801 = vmatprep.mubr.bf16.mxu0 0
      %9802 = vmatmul.mubr.bf16.gmra.mrb[0].mxu0 %v9726
      %v9803 = vpop.f32.mrb[0].mxu0
      %v9804 = vadd.f32 %v9668, %v9803
      %v9805 = vpop.f32.mrb[0].mxu0
      %v9806 = vpop.f32.mrb[0].mxu0
      %v9807 = vadd.f32 %v9671, %v9806
      %v9808 = vpop.f32.mrb[0].mxu0
      %9809 = vmatprep.mubr.bf16.mxu0 0
      %9810 = vmatmul.mubr.bf16.gmra.mrb[0].mxu0 %v9728
      %v9811 = vpop.f32.mrb[0].mxu0
      %v9812 = vadd.f32 %v9676, %v9811
      %v9813 = vpop.f32.mrb[0].mxu0
      %v9814 = vpop.f32.mrb[0].mxu0
      %v9815 = vadd.f32 %v9679, %v9814
      %v9816 = vpop.f32.mrb[0].mxu0
      %9817 = vmatprep.mubr.bf16.mxu0 0
      %9818 = vmatmul.mubr.bf16.gmra.mrb[0].mxu0 %v9730
      %v9819 = vpop.f32.mrb[0].mxu0
      %v9820 = vadd.f32 %v9684, %v9819
      %v9821 = vpop.f32.mrb[0].mxu0
      %v9822 = vpop.f32.mrb[0].mxu0
      %v9823 = vadd.f32 %v9687, %v9822
      %v9824 = vpop.f32.mrb[0].mxu0
      %9825 = vmatprep.mubr.bf16.mxu0 0
      %9826 = vmatmul.mubr.bf16.gmra.mrb[0].mxu0 %v9732
      %v9827 = vpop.f32.mrb[0].mxu0
      %v9828 = vadd.f32 %v9692, %v9827
      %v9829 = vpop.f32.mrb[0].mxu0
      %v9830 = vpop.f32.mrb[0].mxu0
      %v9831 = vadd.f32 %v9695, %v9830
      %v9832 = vpop.f32.mrb[0].mxu0
      %9833 = vmatprep.mubr.bf16.mxu0 0
      %9834 = vmatmul.mubr.bf16.gmra.mrb[0].mxu0 %v9735
      %v9835 = vpop.f32.mrb[0].mxu0
      %v9836 = vadd.f32 %v9700, %v9835
      %v9837 = vpop.f32.mrb[0].mxu0
      %v9838 = vpop.f32.mrb[0].mxu0
      %v9839 = vpop.f32.mrb[0].mxu0
      %9840 = vdwg.mxu0
      %v9841 = vld [vmem:[#allocation2] sm:$0xe]
      %v9842 = vld [vmem:[%s5430] sm:$0xf]
      %v9843 = vld [vmem:[%s5430 + $0x4] sm:$0xf]
      %v9844 = vld [vmem:[%s5430 + $0x8] sm:$0xf]
      %v9845 = vld [vmem:[%s5430 + $0xc] sm:$0xf]
      %v9847 = vunpack.c.l.b16 %v9841
      %v9848 = vpack.c.b16 %v9465, %v9847
      %v9849 = vrot.slane %v9848, 1
      %v9850 = vrot.slane %v9483, 1
      %v9851 = vsel %vm1122, %v9849, %v9850
      %v9852 = vrot.slane %v9484, 1
      %v9853 = vsel %vm1122, %v9850, %v9852
      %v9854 = vrot.slane %v9485, 1
      %v9855 = vsel %vm1122, %v9852, %v9854
      %v9856 = vrot.slane %v9486, 1
      %v9857 = vsel %vm1122, %v9854, %v9856
      %v9858 = vrot.slane %v9487, 1
      %v9859 = vsel %vm1122, %v9856, %v9858
      %v9860 = vrot.slane %v9488, 1
      %v9861 = vsel %vm1122, %v9858, %v9860
      %v9862 = vrot.slane %v9489, 1
      %v9863 = vsel %vm1122, %v9860, %v9862
      %v9864 = vrot.slane %v9490, 1
      %v9865 = vsel %vm1122, %v9862, %v9864
      %v9870 = vunpack.c.l.b16 %v9842
      %v9871 = vunpack.c.l.b16 %v9843
      %v9872 = vunpack.c.l.b16 %v9844
      %v9873 = vunpack.c.l.b16 %v9845
      %v9874 = vpack.c.b16 %v9871, %v9870
      %v9875 = vpack.c.b16 %v9873, %v9872
      %v9879 = vsel %vm2959, %v9851, 0
      %v9882 = vsel %vm2959, %v9853, 0
      %v9885 = vsel %vm2959, %v9855, 0
      %v9888 = vsel %vm2959, %v9857, 0
      %v9891 = vsel %vm2959, %v9859, 0
      %v9894 = vsel %vm2959, %v9861, 0
      %v9897 = vsel %vm2959, %v9863, 0
      %v9900 = vsel %vm2959, %v9865, 0
      %v9903 = vsel %vm2959, %v9864, 0
      %9905 = vmatprep.subr.bf16.mxu0 0
      %9906 = vmatpush1.bf16.msra.mxu0 %v9874
      %9907 = vmatprep.subr.bf16.mxu0 0
      %9908 = vmatpush1.bf16.msra.mxu0 %v9875
      %9909 = vmatprep.subr.bf16.mxu0 0
      %9910 = vmatpush1.bf16.msra.mxu0 0
      %9911 = vmatprep.subr.bf16.mxu0 0
      %9912 = vmatpush1.bf16.msra.mxu0 0
      %9913 = vmatprep.subr.bf16.mxu0 0
      %9914 = vmatpush1.bf16.msra.mxu0 0
      %9915 = vmatprep.subr.bf16.mxu0 0
      %9916 = vmatpush1.bf16.msra.mxu0 0
      %9917 = vmatprep.subr.bf16.mxu0 0
      %9918 = vmatpush1.bf16.msra.mxu0 0
      %9919 = vmatprep.subr.bf16.mxu0 0
      %9920 = vmatpush1.bf16.msra.mxu0 0
      %9921 = vmatprep.subr.bf16.mxu0 0
      %9922 = vmatpush1.bf16.msra.mxu0 0
      %9923 = vmatprep.subr.bf16.mxu0 0
      %9924 = vmatpush1.bf16.msra.mxu0 0
      %9925 = vmatprep.subr.bf16.mxu0 0
      %9926 = vmatpush1.bf16.msra.mxu0 0
      %9927 = vmatprep.subr.bf16.mxu0 0
      %9928 = vmatpush1.bf16.msra.mxu0 0
      %9929 = vmatprep.subr.bf16.mxu0 0
      %9930 = vmatpush1.bf16.msra.mxu0 0
      %9931 = vmatprep.subr.bf16.mxu0 0
      %9932 = vmatpush1.bf16.msra.mxu0 0
      %9933 = vmatprep.subr.bf16.mxu0 0
      %9934 = vmatpush1.bf16.msra.mxu0 0
      %9935 = vmatprep.subr.bf16.mxu0 0
      %9936 = vmatpush1.bf16.msra.mxu0 0
      %9937 = vmatprep.mubr.bf16.mxu0 0
      %9938 = vmatmul.mubr.bf16.gmra.mrb[0].mxu0 %v9879
      %v9939 = vpop.f32.mrb[0].mxu0
      %v9940 = vadd.f32 0.0, %v9939
      %v9941 = vpop.f32.mrb[0].mxu0
      %v9942 = vpop.f32.mrb[0].mxu0
      %v9943 = vadd.f32 0.0, %v9942
      %v9944 = vpop.f32.mrb[0].mxu0
      %9945 = vmatprep.mubr.bf16.mxu0 0
      %9946 = vmatmul.mubr.bf16.gmra.mrb[0].mxu0 %v9882
      %v9947 = vpop.f32.mrb[0].mxu0
      %v9948 = vadd.f32 0.0, %v9947
      %v9949 = vpop.f32.mrb[0].mxu0
      %v9950 = vpop.f32.mrb[0].mxu0
      %v9951 = vadd.f32 0.0, %v9950
      %v9952 = vpop.f32.mrb[0].mxu0
      %9953 = vmatprep.mubr.bf16.mxu0 0
      %9954 = vmatmul.mubr.bf16.gmra.mrb[0].mxu0 %v9885
      %v9955 = vpop.f32.mrb[0].mxu0
      %v9956 = vadd.f32 0.0, %v9955
      %v9957 = vpop.f32.mrb[0].mxu0
      %v9958 = vpop.f32.mrb[0].mxu0
      %v9959 = vadd.f32 0.0, %v9958
      %v9960 = vpop.f32.mrb[0].mxu0
      %9961 = vmatprep.mubr.bf16.mxu0 0
      %9962 = vmatmul.mubr.bf16.gmra.mrb[0].mxu0 %v9888
      %v9963 = vpop.f32.mrb[0].mxu0
      %v9964 = vadd.f32 0.0, %v9963
      %v9965 = vpop.f32.mrb[0].mxu0
      %v9966 = vpop.f32.mrb[0].mxu0
      %v9967 = vadd.f32 0.0, %v9966
      %v9968 = vpop.f32.mrb[0].mxu0
      %9969 = vmatprep.mubr.bf16.mxu0 0
      %9970 = vmatmul.mubr.bf16.gmra.mrb[0].mxu0 %v9891
      %v9971 = vpop.f32.mrb[0].mxu0
      %v9972 = vadd.f32 0.0, %v9971
      %v9973 = vpop.f32.mrb[0].mxu0
      %v9974 = vpop.f32.mrb[0].mxu0
      %v9975 = vadd.f32 0.0, %v9974
      %v9976 = vpop.f32.mrb[0].mxu0
      %9977 = vmatprep.mubr.bf16.mxu0 0
      %9978 = vmatmul.mubr.bf16.gmra.mrb[0].mxu0 %v9894
      %v9979 = vpop.f32.mrb[0].mxu0
      %v9980 = vadd.f32 0.0, %v9979
      %v9981 = vpop.f32.mrb[0].mxu0
      %v9982 = vpop.f32.mrb[0].mxu0
      %v9983 = vadd.f32 0.0, %v9982
      %v9984 = vpop.f32.mrb[0].mxu0
      %9985 = vmatprep.mubr.bf16.mxu0 0
      %9986 = vmatmul.mubr.bf16.gmra.mrb[0].mxu0 %v9897
      %v9987 = vpop.f32.mrb[0].mxu0
      %v9988 = vadd.f32 0.0, %v9987
      %v9989 = vpop.f32.mrb[0].mxu0
      %v9990 = vpop.f32.mrb[0].mxu0
      %v9991 = vadd.f32 0.0, %v9990
      %v9992 = vpop.f32.mrb[0].mxu0
      %9993 = vmatprep.mubr.bf16.mxu0 0
      %9994 = vmatmul.mubr.bf16.gmra.mrb[0].mxu0 %v9900
      %v9995 = vpop.f32.mrb[0].mxu0
      %v9996 = vadd.f32 0.0, %v9995
      %v9997 = vpop.f32.mrb[0].mxu0
      %v9998 = vpop.f32.mrb[0].mxu0
      %v9999 = vadd.f32 0.0, %v9998
      %v10000 = vpop.f32.mrb[0].mxu0
      %10001 = vmatprep.mubr.bf16.mxu0 0
      %10002 = vmatmul.mubr.bf16.gmra.mrb[0].mxu0 %v9903
      %v10003 = vpop.f32.mrb[0].mxu0
      %v10004 = vadd.f32 0.0, %v10003
      %v10005 = vpop.f32.mrb[0].mxu0
      %v10006 = vpop.f32.mrb[0].mxu0
      %v10007 = vpop.f32.mrb[0].mxu0
      %10008 = vdwg.mxu0
      %v10009 = vadd.f32 %v9772, %v9940
      %v10010 = vadd.f32 %v9775, %v9943
      %v10011 = vadd.f32 %v9780, %v9948
      %v10012 = vadd.f32 %v9783, %v9951
      %v10013 = vadd.f32 %v9788, %v9956
      %v10014 = vadd.f32 %v9791, %v9959
      %v10015 = vadd.f32 %v9796, %v9964
      %v10016 = vadd.f32 %v9799, %v9967
      %v10017 = vadd.f32 %v9804, %v9972
      %v10018 = vadd.f32 %v9807, %v9975
      %v10019 = vadd.f32 %v9812, %v9980
      %v10020 = vadd.f32 %v9815, %v9983
      %v10021 = vadd.f32 %v9820, %v9988
      %v10022 = vadd.f32 %v9823, %v9991
      %v10023 = vadd.f32 %v9828, %v9996
      %v10024 = vadd.f32 %v9831, %v9999
      %v10025 = vadd.f32 %v9836, %v10004
      %v10026 = vld [vmem:[#allocation2] sm:$0xc]
      %v10027 = vld [vmem:[#allocation2 + $0x44] sm:$0x3]
      %v10028 = vld [vmem:[%s5617] sm:$0xf]
      %v10029 = vld [vmem:[%s5617 + $0x4] sm:$0xf]
      %v10030 = vld [vmem:[%s5617 + $0x8] sm:$0xf]
      %v10031 = vld [vmem:[%s5617 + $0xc] sm:$0xf]
      %v10034 = vunpack.c.l.b16 %v10026
      %v10035 = vunpack.c.l.b16 %v10027
      %v10036 = vpack.c.b16 %v9465, %v10034
      %v10037 = vpack.c.b16 %v10035, %v9480
      %v10038 = vrot.slane %v10036, 2
      %v10039 = vrot.slane %v9483, 2
      %v10040 = vsel %vm1293, %v10038, %v10039
      %v10041 = vrot.slane %v9484, 2
      %v10042 = vsel %vm1293, %v10039, %v10041
      %v10043 = vrot.slane %v9485, 2
      %v10044 = vsel %vm1293, %v10041, %v10043
      %v10045 = vrot.slane %v9486, 2
      %v10046 = vsel %vm1293, %v10043, %v10045
      %v10047 = vrot.slane %v9487, 2
      %v10048 = vsel %vm1293, %v10045, %v10047
      %v10049 = vrot.slane %v9488, 2
      %v10050 = vsel %vm1293, %v10047, %v10049
      %v10051 = vrot.slane %v9489, 2
      %v10052 = vsel %vm1293, %v10049, %v10051
      %v10053 = vrot.slane %v10037, 2
      %v10054 = vsel %vm1293, %v10051, %v10053
      %v10059 = vunpack.c.l.b16 %v10028
      %v10060 = vunpack.c.l.b16 %v10029
      %v10061 = vunpack.c.l.b16 %v10030
      %v10062 = vunpack.c.l.b16 %v10031
      %v10063 = vpack.c.b16 %v10060, %v10059
      %v10064 = vpack.c.b16 %v10062, %v10061
      %v10068 = vsel %vm2959, %v10040, 0
      %v10071 = vsel %vm2959, %v10042, 0
      %v10074 = vsel %vm2959, %v10044, 0
      %v10077 = vsel %vm2959, %v10046, 0
      %v10080 = vsel %vm2959, %v10048, 0
      %v10083 = vsel %vm2959, %v10050, 0
      %v10086 = vsel %vm2959, %v10052, 0
      %v10089 = vsel %vm2959, %v10054, 0
      %v10092 = vsel %vm2959, %v10053, 0
      %10094 = vmatprep.subr.bf16.mxu0 0
      %10095 = vmatpush1.bf16.msra.mxu0 %v10063
      %10096 = vmatprep.subr.bf16.mxu0 0
      %10097 = vmatpush1.bf16.msra.mxu0 %v10064
      %10098 = vmatprep.subr.bf16.mxu0 0
      %10099 = vmatpush1.bf16.msra.mxu0 0
      %10100 = vmatprep.subr.bf16.mxu0 0
      %10101 = vmatpush1.bf16.msra.mxu0 0
      %10102 = vmatprep.subr.bf16.mxu0 0
      %10103 = vmatpush1.bf16.msra.mxu0 0
      %10104 = vmatprep.subr.bf16.mxu0 0
      %10105 = vmatpush1.bf16.msra.mxu0 0
      %10106 = vmatprep.subr.bf16.mxu0 0
      %10107 = vmatpush1.bf16.msra.mxu0 0
      %10108 = vmatprep.subr.bf16.mxu0 0
      %10109 = vmatpush1.bf16.msra.mxu0 0
      %10110 = vmatprep.subr.bf16.mxu0 0
      %10111 = vmatpush1.bf16.msra.mxu0 0
      %10112 = vmatprep.subr.bf16.mxu0 0
      %10113 = vmatpush1.bf16.msra.mxu0 0
      %10114 = vmatprep.subr.bf16.mxu0 0
      %10115 = vmatpush1.bf16.msra.mxu0 0
      %10116 = vmatprep.subr.bf16.mxu0 0
      %10117 = vmatpush1.bf16.msra.mxu0 0
      %10118 = vmatprep.subr.bf16.mxu0 0
      %10119 = vmatpush1.bf16.msra.mxu0 0
      %10120 = vmatprep.subr.bf16.mxu0 0
      %10121 = vmatpush1.bf16.msra.mxu0 0
      %10122 = vmatprep.subr.bf16.mxu0 0
      %10123 = vmatpush1.bf16.msra.mxu0 0
      %10124 = vmatprep.subr.bf16.mxu0 0
      %10125 = vmatpush1.bf16.msra.mxu0 0
      %10126 = vmatprep.mubr.bf16.mxu0 0
      %10127 = vmatmul.mubr.bf16.gmra.mrb[0].mxu0 %v10068
      %v10128 = vpop.f32.mrb[0].mxu0
      %v10129 = vadd.f32 0.0, %v10128
      %v10130 = vpop.f32.mrb[0].mxu0
      %v10131 = vpop.f32.mrb[0].mxu0
      %v10132 = vadd.f32 0.0, %v10131
      %v10133 = vpop.f32.mrb[0].mxu0
      %10134 = vmatprep.mubr.bf16.mxu0 0
      %10135 = vmatmul.mubr.bf16.gmra.mrb[0].mxu0 %v10071
      %v10136 = vpop.f32.mrb[0].mxu0
      %v10137 = vadd.f32 0.0, %v10136
      %v10138 = vpop.f32.mrb[0].mxu0
      %v10139 = vpop.f32.mrb[0].mxu0
      %v10140 = vadd.f32 0.0, %v10139
      %v10141 = vpop.f32.mrb[0].mxu0
      %10142 = vmatprep.mubr.bf16.mxu0 0
      %10143 = vmatmul.mubr.bf16.gmra.mrb[0].mxu0 %v10074
      %v10144 = vpop.f32.mrb[0].mxu0
      %v10145 = vadd.f32 0.0, %v10144
      %v10146 = vpop.f32.mrb[0].mxu0
      %v10147 = vpop.f32.mrb[0].mxu0
      %v10148 = vadd.f32 0.0, %v10147
      %v10149 = vpop.f32.mrb[0].mxu0
      %10150 = vmatprep.mubr.bf16.mxu0 0
      %10151 = vmatmul.mubr.bf16.gmra.mrb[0].mxu0 %v10077
      %v10152 = vpop.f32.mrb[0].mxu0
      %v10153 = vadd.f32 0.0, %v10152
      %v10154 = vpop.f32.mrb[0].mxu0
      %v10155 = vpop.f32.mrb[0].mxu0
      %v10156 = vadd.f32 0.0, %v10155
      %v10157 = vpop.f32.mrb[0].mxu0
      %10158 = vmatprep.mubr.bf16.mxu0 0
      %10159 = vmatmul.mubr.bf16.gmra.mrb[0].mxu0 %v10080
      %v10160 = vpop.f32.mrb[0].mxu0
      %v10161 = vadd.f32 0.0, %v10160
      %v10162 = vpop.f32.mrb[0].mxu0
      %v10163 = vpop.f32.mrb[0].mxu0
      %v10164 = vadd.f32 0.0, %v10163
      %v10165 = vpop.f32.mrb[0].mxu0
      %10166 = vmatprep.mubr.bf16.mxu0 0
      %10167 = vmatmul.mubr.bf16.gmra.mrb[0].mxu0 %v10083
      %v10168 = vpop.f32.mrb[0].mxu0
      %v10169 = vadd.f32 0.0, %v10168
      %v10170 = vpop.f32.mrb[0].mxu0
      %v10171 = vpop.f32.mrb[0].mxu0
      %v10172 = vadd.f32 0.0, %v10171
      %v10173 = vpop.f32.mrb[0].mxu0
      %10174 = vmatprep.mubr.bf16.mxu0 0
      %10175 = vmatmul.mubr.bf16.gmra.mrb[0].mxu0 %v10086
      %v10176 = vpop.f32.mrb[0].mxu0
      %v10177 = vadd.f32 0.0, %v10176
      %v10178 = vpop.f32.mrb[0].mxu0
      %v10179 = vpop.f32.mrb[0].mxu0
      %v10180 = vadd.f32 0.0, %v10179
      %v10181 = vpop.f32.mrb[0].mxu0
      %10182 = vmatprep.mubr.bf16.mxu0 0
      %10183 = vmatmul.mubr.bf16.gmra.mrb[0].mxu0 %v10089
      %v10184 = vpop.f32.mrb[0].mxu0
      %v10185 = vadd.f32 0.0, %v10184
      %v10186 = vpop.f32.mrb[0].mxu0
      %v10187 = vpop.f32.mrb[0].mxu0
      %v10188 = vadd.f32 0.0, %v10187
      %v10189 = vpop.f32.mrb[0].mxu0
      %10190 = vmatprep.mubr.bf16.mxu0 0
      %10191 = vmatmul.mubr.bf16.gmra.mrb[0].mxu0 %v10092
      %v10192 = vpop.f32.mrb[0].mxu0
      %v10193 = vadd.f32 0.0, %v10192
      %v10194 = vpop.f32.mrb[0].mxu0
      %v10195 = vpop.f32.mrb[0].mxu0
      %v10196 = vpop.f32.mrb[0].mxu0
      %10197 = vdwg.mxu0
      %v10198 = vadd.f32 %v10009, %v10129
      %v10199 = vadd.f32 %v10010, %v10132
      %v10200 = vadd.f32 %v10011, %v10137
      %v10201 = vadd.f32 %v10012, %v10140
      %v10202 = vadd.f32 %v10013, %v10145
      %v10203 = vadd.f32 %v10014, %v10148
      %v10204 = vadd.f32 %v10015, %v10153
      %v10205 = vadd.f32 %v10016, %v10156
      %v10206 = vadd.f32 %v10017, %v10161
      %v10207 = vadd.f32 %v10018, %v10164
      %v10208 = vadd.f32 %v10019, %v10169
      %v10209 = vadd.f32 %v10020, %v10172
      %v10210 = vadd.f32 %v10021, %v10177
      %v10211 = vadd.f32 %v10022, %v10180
      %v10212 = vadd.f32 %v10023, %v10185
      %v10213 = vadd.f32 %v10024, %v10188
      %v10214 = vadd.f32 %v10025, %v10193
      %v10215 = vld [vmem:[#allocation2 + $0x44] sm:$0x7]
      %v10216 = vld [vmem:[%s5806] sm:$0xf]
      %v10217 = vld [vmem:[%s5806 + $0x4] sm:$0xf]
      %v10218 = vld [vmem:[%s5806 + $0x8] sm:$0xf]
      %v10219 = vld [vmem:[%s5806 + $0xc] sm:$0xf]
      %v10221 = vunpack.c.l.b16 %v10215
      %v10222 = vpack.c.b16 %v10221, %v9480
      %v10224 = vshrl.u32 %v10036, 16
      %v10226 = vrot.slane %v10224, 2
      %v10227 = vshll.u32 %v10036, 16
      %v10229 = vrot.slane %v10227, 3
      %v10230 = vor.u32 %v10226, %v10229
      %v10231 = vrot.slane %v9503, 2
      %v10232 = vrot.slane %v9499, 3
      %v10233 = vor.u32 %v10231, %v10232
      %v10234 = vsel %vm1464, %v10230, %v10233
      %v10235 = vrot.slane %v9511, 2
      %v10236 = vrot.slane %v9507, 3
      %v10237 = vor.u32 %v10235, %v10236
      %v10238 = vsel %vm1464, %v10233, %v10237
      %v10239 = vrot.slane %v9519, 2
      %v10240 = vrot.slane %v9515, 3
      %v10241 = vor.u32 %v10239, %v10240
      %v10242 = vsel %vm1464, %v10237, %v10241
      %v10243 = vrot.slane %v9527, 2
      %v10244 = vrot.slane %v9523, 3
      %v10245 = vor.u32 %v10243, %v10244
      %v10246 = vsel %vm1464, %v10241, %v10245
      %v10247 = vrot.slane %v9535, 2
      %v10248 = vrot.slane %v9531, 3
      %v10249 = vor.u32 %v10247, %v10248
      %v10250 = vsel %vm1464, %v10245, %v10249
      %v10251 = vrot.slane %v9543, 2
      %v10252 = vrot.slane %v9539, 3
      %v10253 = vor.u32 %v10251, %v10252
      %v10254 = vsel %vm1464, %v10249, %v10253
      %v10255 = vrot.slane %v9551, 2
      %v10256 = vrot.slane %v9547, 3
      %v10257 = vor.u32 %v10255, %v10256
      %v10258 = vsel %vm1464, %v10253, %v10257
      %v10260 = vshrl.u32 %v10222, 16
      %v10262 = vrot.slane %v10260, 2
      %v10263 = vshll.u32 %v10222, 16
      %v10265 = vrot.slane %v10263, 3
      %v10266 = vor.u32 %v10262, %v10265
      %v10267 = vsel %vm1464, %v10257, %v10266
      %v10272 = vunpack.c.l.b16 %v10216
      %v10273 = vunpack.c.l.b16 %v10217
      %v10274 = vunpack.c.l.b16 %v10218
      %v10275 = vunpack.c.l.b16 %v10219
      %v10276 = vpack.c.b16 %v10273, %v10272
      %v10277 = vpack.c.b16 %v10275, %v10274
      %v10281 = vsel %vm2959, %v10234, 0
      %v10284 = vsel %vm2959, %v10238, 0
      %v10287 = vsel %vm2959, %v10242, 0
      %v10290 = vsel %vm2959, %v10246, 0
      %v10293 = vsel %vm2959, %v10250, 0
      %v10296 = vsel %vm2959, %v10254, 0
      %v10299 = vsel %vm2959, %v10258, 0
      %v10302 = vsel %vm2959, %v10267, 0
      %v10305 = vsel %vm2959, %v10266, 0
      %10307 = vmatprep.subr.bf16.mxu0 0
      %10308 = vmatpush1.bf16.msra.mxu0 %v10276
      %10309 = vmatprep.subr.bf16.mxu0 0
      %10310 = vmatpush1.bf16.msra.mxu0 %v10277
      %10311 = vmatprep.subr.bf16.mxu0 0
      %10312 = vmatpush1.bf16.msra.mxu0 0
      %10313 = vmatprep.subr.bf16.mxu0 0
      %10314 = vmatpush1.bf16.msra.mxu0 0
      %10315 = vmatprep.subr.bf16.mxu0 0
      %10316 = vmatpush1.bf16.msra.mxu0 0
      %10317 = vmatprep.subr.bf16.mxu0 0
      %10318 = vmatpush1.bf16.msra.mxu0 0
      %10319 = vmatprep.subr.bf16.mxu0 0
      %10320 = vmatpush1.bf16.msra.mxu0 0
      %10321 = vmatprep.subr.bf16.mxu0 0
      %10322 = vmatpush1.bf16.msra.mxu0 0
      %10323 = vmatprep.subr.bf16.mxu0 0
      %10324 = vmatpush1.bf16.msra.mxu0 0
      %10325 = vmatprep.subr.bf16.mxu0 0
      %10326 = vmatpush1.bf16.msra.mxu0 0
      %10327 = vmatprep.subr.bf16.mxu0 0
      %10328 = vmatpush1.bf16.msra.mxu0 0
      %10329 = vmatprep.subr.bf16.mxu0 0
      %10330 = vmatpush1.bf16.msra.mxu0 0
      %10331 = vmatprep.subr.bf16.mxu0 0
      %10332 = vmatpush1.bf16.msra.mxu0 0
      %10333 = vmatprep.subr.bf16.mxu0 0
      %10334 = vmatpush1.bf16.msra.mxu0 0
      %10335 = vmatprep.subr.bf16.mxu0 0
      %10336 = vmatpush1.bf16.msra.mxu0 0
      %10337 = vmatprep.subr.bf16.mxu0 0
      %10338 = vmatpush1.bf16.msra.mxu0 0
      %10339 = vmatprep.mubr.bf16.mxu0 0
      %10340 = vmatmul.mubr.bf16.gmra.mrb[0].mxu0 %v10281
      %v10341 = vpop.f32.mrb[0].mxu0
      %v10342 = vadd.f32 0.0, %v10341
      %v10343 = vpop.f32.mrb[0].mxu0
      %v10344 = vpop.f32.mrb[0].mxu0
      %v10345 = vadd.f32 0.0, %v10344
      %v10346 = vpop.f32.mrb[0].mxu0
      %10347 = vmatprep.mubr.bf16.mxu0 0
      %10348 = vmatmul.mubr.bf16.gmra.mrb[0].mxu0 %v10284
      %v10349 = vpop.f32.mrb[0].mxu0
      %v10350 = vadd.f32 0.0, %v10349
      %v10351 = vpop.f32.mrb[0].mxu0
      %v10352 = vpop.f32.mrb[0].mxu0
      %v10353 = vadd.f32 0.0, %v10352
      %v10354 = vpop.f32.mrb[0].mxu0
      %10355 = vmatprep.mubr.bf16.mxu0 0
      %10356 = vmatmul.mubr.bf16.gmra.mrb[0].mxu0 %v10287
      %v10357 = vpop.f32.mrb[0].mxu0
      %v10358 = vadd.f32 0.0, %v10357
      %v10359 = vpop.f32.mrb[0].mxu0
      %v10360 = vpop.f32.mrb[0].mxu0
      %v10361 = vadd.f32 0.0, %v10360
      %v10362 = vpop.f32.mrb[0].mxu0
      %10363 = vmatprep.mubr.bf16.mxu0 0
      %10364 = vmatmul.mubr.bf16.gmra.mrb[0].mxu0 %v10290
      %v10365 = vpop.f32.mrb[0].mxu0
      %v10366 = vadd.f32 0.0, %v10365
      %v10367 = vpop.f32.mrb[0].mxu0
      %v10368 = vpop.f32.mrb[0].mxu0
      %v10369 = vadd.f32 0.0, %v10368
      %v10370 = vpop.f32.mrb[0].mxu0
      %10371 = vmatprep.mubr.bf16.mxu0 0
      %10372 = vmatmul.mubr.bf16.gmra.mrb[0].mxu0 %v10293
      %v10373 = vpop.f32.mrb[0].mxu0
      %v10374 = vadd.f32 0.0, %v10373
      %v10375 = vpop.f32.mrb[0].mxu0
      %v10376 = vpop.f32.mrb[0].mxu0
      %v10377 = vadd.f32 0.0, %v10376
      %v10378 = vpop.f32.mrb[0].mxu0
      %10379 = vmatprep.mubr.bf16.mxu0 0
      %10380 = vmatmul.mubr.bf16.gmra.mrb[0].mxu0 %v10296
      %v10381 = vpop.f32.mrb[0].mxu0
      %v10382 = vadd.f32 0.0, %v10381
      %v10383 = vpop.f32.mrb[0].mxu0
      %v10384 = vpop.f32.mrb[0].mxu0
      %v10385 = vadd.f32 0.0, %v10384
      %v10386 = vpop.f32.mrb[0].mxu0
      %10387 = vmatprep.mubr.bf16.mxu0 0
      %10388 = vmatmul.mubr.bf16.gmra.mrb[0].mxu0 %v10299
      %v10389 = vpop.f32.mrb[0].mxu0
      %v10390 = vadd.f32 0.0, %v10389
      %v10391 = vpop.f32.mrb[0].mxu0
      %v10392 = vpop.f32.mrb[0].mxu0
      %v10393 = vadd.f32 0.0, %v10392
      %v10394 = vpop.f32.mrb[0].mxu0
      %10395 = vmatprep.mubr.bf16.mxu0 0
      %10396 = vmatmul.mubr.bf16.gmra.mrb[0].mxu0 %v10302
      %v10397 = vpop.f32.mrb[0].mxu0
      %v10398 = vadd.f32 0.0, %v10397
      %v10399 = vpop.f32.mrb[0].mxu0
      %v10400 = vpop.f32.mrb[0].mxu0
      %v10401 = vadd.f32 0.0, %v10400
      %v10402 = vpop.f32.mrb[0].mxu0
      %10403 = vmatprep.mubr.bf16.mxu0 0
      %10404 = vmatmul.mubr.bf16.gmra.mrb[0].mxu0 %v10305
      %v10405 = vpop.f32.mrb[0].mxu0
      %v10406 = vadd.f32 0.0, %v10405
      %v10407 = vpop.f32.mrb[0].mxu0
      %v10408 = vpop.f32.mrb[0].mxu0
      %v10409 = vpop.f32.mrb[0].mxu0
      %10410 = vdwg.mxu0
      %v10411 = vadd.f32 %v10198, %v10342
      %v10412 = vadd.f32 %v10199, %v10345
      %v10413 = vadd.f32 %v10200, %v10350
      %v10414 = vadd.f32 %v10201, %v10353
      %v10415 = vadd.f32 %v10202, %v10358
      %v10416 = vadd.f32 %v10203, %v10361
      %v10417 = vadd.f32 %v10204, %v10366
      %v10418 = vadd.f32 %v10205, %v10369
      %v10419 = vadd.f32 %v10206, %v10374
      %v10420 = vadd.f32 %v10207, %v10377
      %v10421 = vadd.f32 %v10208, %v10382
      %v10422 = vadd.f32 %v10209, %v10385
      %v10423 = vadd.f32 %v10210, %v10390
      %v10424 = vadd.f32 %v10211, %v10393
      %v10425 = vadd.f32 %v10212, %v10398
      %v10426 = vadd.f32 %v10213, %v10401
      %v10427 = vadd.f32 %v10214, %v10406
      %v10428 = vld [vmem:[#allocation2] sm:$0x8]
      %v10429 = vld [vmem:[%s6020] sm:$0xf]
      %v10430 = vld [vmem:[%s6020 + $0x4] sm:$0xf]
      %v10431 = vld [vmem:[%s6020 + $0x8] sm:$0xf]
      %v10432 = vld [vmem:[%s6020 + $0xc] sm:$0xf]
      %v10434 = vunpack.c.l.b16 %v10428
      %v10435 = vpack.c.b16 %v9465, %v10434
      %v10436 = vrot.slane %v10435, 3
      %v10437 = vrot.slane %v9483, 3
      %v10438 = vsel %vm1653, %v10436, %v10437
      %v10439 = vrot.slane %v9484, 3
      %v10440 = vsel %vm1653, %v10437, %v10439
      %v10441 = vrot.slane %v9485, 3
      %v10442 = vsel %vm1653, %v10439, %v10441
      %v10443 = vrot.slane %v9486, 3
      %v10444 = vsel %vm1653, %v10441, %v10443
      %v10445 = vrot.slane %v9487, 3
      %v10446 = vsel %vm1653, %v10443, %v10445
      %v10447 = vrot.slane %v9488, 3
      %v10448 = vsel %vm1653, %v10445, %v10447
      %v10449 = vrot.slane %v9489, 3
      %v10450 = vsel %vm1653, %v10447, %v10449
      %v10451 = vrot.slane %v10222, 3
      %v10452 = vsel %vm1653, %v10449, %v10451
      %v10457 = vunpack.c.l.b16 %v10429
      %v10458 = vunpack.c.l.b16 %v10430
      %v10459 = vunpack.c.l.b16 %v10431
      %v10460 = vunpack.c.l.b16 %v10432
      %v10461 = vpack.c.b16 %v10458, %v10457
      %v10462 = vpack.c.b16 %v10460, %v10459
      %v10466 = vsel %vm2959, %v10438, 0
      %v10469 = vsel %vm2959, %v10440, 0
      %v10472 = vsel %vm2959, %v10442, 0
      %v10475 = vsel %vm2959, %v10444, 0
      %v10478 = vsel %vm2959, %v10446, 0
      %v10481 = vsel %vm2959, %v10448, 0
      %v10484 = vsel %vm2959, %v10450, 0
      %v10487 = vsel %vm2959, %v10452, 0
      %v10490 = vsel %vm2959, %v10451, 0
      %10492 = vmatprep.subr.bf16.mxu0 0
      %10493 = vmatpush1.bf16.msra.mxu0 %v10461
      %10494 = vmatprep.subr.bf16.mxu0 0
      %10495 = vmatpush1.bf16.msra.mxu0 %v10462
      %10496 = vmatprep.subr.bf16.mxu0 0
      %10497 = vmatpush1.bf16.msra.mxu0 0
      %10498 = vmatprep.subr.bf16.mxu0 0
      %10499 = vmatpush1.bf16.msra.mxu0 0
      %10500 = vmatprep.subr.bf16.mxu0 0
      %10501 = vmatpush1.bf16.msra.mxu0 0
      %10502 = vmatprep.subr.bf16.mxu0 0
      %10503 = vmatpush1.bf16.msra.mxu0 0
      %10504 = vmatprep.subr.bf16.mxu0 0
      %10505 = vmatpush1.bf16.msra.mxu0 0
      %10506 = vmatprep.subr.bf16.mxu0 0
      %10507 = vmatpush1.bf16.msra.mxu0 0
      %10508 = vmatprep.subr.bf16.mxu0 0
      %10509 = vmatpush1.bf16.msra.mxu0 0
      %10510 = vmatprep.subr.bf16.mxu0 0
      %10511 = vmatpush1.bf16.msra.mxu0 0
      %10512 = vmatprep.subr.bf16.mxu0 0
      %10513 = vmatpush1.bf16.msra.mxu0 0
      %10514 = vmatprep.subr.bf16.mxu0 0
      %10515 = vmatpush1.bf16.msra.mxu0 0
      %10516 = vmatprep.subr.bf16.mxu0 0
      %10517 = vmatpush1.bf16.msra.mxu0 0
      %10518 = vmatprep.subr.bf16.mxu0 0
      %10519 = vmatpush1.bf16.msra.mxu0 0
      %10520 = vmatprep.subr.bf16.mxu0 0
      %10521 = vmatpush1.bf16.msra.mxu0 0
      %10522 = vmatprep.subr.bf16.mxu0 0
      %10523 = vmatpush1.bf16.msra.mxu0 0
      %10524 = vmatprep.mubr.bf16.mxu0 0
      %10525 = vmatmul.mubr.bf16.gmra.mrb[0].mxu0 %v10466
      %v10526 = vpop.f32.mrb[0].mxu0
      %v10527 = vadd.f32 0.0, %v10526
      %v10528 = vpop.f32.mrb[0].mxu0
      %v10529 = vpop.f32.mrb[0].mxu0
      %v10530 = vadd.f32 0.0, %v10529
      %v10531 = vpop.f32.mrb[0].mxu0
      %10532 = vmatprep.mubr.bf16.mxu0 0
      %10533 = vmatmul.mubr.bf16.gmra.mrb[0].mxu0 %v10469
      %v10534 = vpop.f32.mrb[0].mxu0
      %v10535 = vadd.f32 0.0, %v10534
      %v10536 = vpop.f32.mrb[0].mxu0
      %v10537 = vpop.f32.mrb[0].mxu0
      %v10538 = vadd.f32 0.0, %v10537
      %v10539 = vpop.f32.mrb[0].mxu0
      %10540 = vmatprep.mubr.bf16.mxu0 0
      %10541 = vmatmul.mubr.bf16.gmra.mrb[0].mxu0 %v10472
      %v10542 = vpop.f32.mrb[0].mxu0
      %v10543 = vadd.f32 0.0, %v10542
      %v10544 = vpop.f32.mrb[0].mxu0
      %v10545 = vpop.f32.mrb[0].mxu0
      %v10546 = vadd.f32 0.0, %v10545
      %v10547 = vpop.f32.mrb[0].mxu0
      %10548 = vmatprep.mubr.bf16.mxu0 0
      %10549 = vmatmul.mubr.bf16.gmra.mrb[0].mxu0 %v10475
      %v10550 = vpop.f32.mrb[0].mxu0
      %v10551 = vadd.f32 0.0, %v10550
      %v10552 = vpop.f32.mrb[0].mxu0
      %v10553 = vpop.f32.mrb[0].mxu0
      %v10554 = vadd.f32 0.0, %v10553
      %v10555 = vpop.f32.mrb[0].mxu0
      %10556 = vmatprep.mubr.bf16.mxu0 0
      %10557 = vmatmul.mubr.bf16.gmra.mrb[0].mxu0 %v10478
      %v10558 = vpop.f32.mrb[0].mxu0
      %v10559 = vadd.f32 0.0, %v10558
      %v10560 = vpop.f32.mrb[0].mxu0
      %v10561 = vpop.f32.mrb[0].mxu0
      %v10562 = vadd.f32 0.0, %v10561
      %v10563 = vpop.f32.mrb[0].mxu0
      %10564 = vmatprep.mubr.bf16.mxu0 0
      %10565 = vmatmul.mubr.bf16.gmra.mrb[0].mxu0 %v10481
      %v10566 = vpop.f32.mrb[0].mxu0
      %v10567 = vadd.f32 0.0, %v10566
      %v10568 = vpop.f32.mrb[0].mxu0
      %v10569 = vpop.f32.mrb[0].mxu0
      %v10570 = vadd.f32 0.0, %v10569
      %v10571 = vpop.f32.mrb[0].mxu0
      %10572 = vmatprep.mubr.bf16.mxu0 0
      %10573 = vmatmul.mubr.bf16.gmra.mrb[0].mxu0 %v10484
      %v10574 = vpop.f32.mrb[0].mxu0
      %v10575 = vadd.f32 0.0, %v10574
      %v10576 = vpop.f32.mrb[0].mxu0
      %v10577 = vpop.f32.mrb[0].mxu0
      %v10578 = vadd.f32 0.0, %v10577
      %v10579 = vpop.f32.mrb[0].mxu0
      %10580 = vmatprep.mubr.bf16.mxu0 0
      %10581 = vmatmul.mubr.bf16.gmra.mrb[0].mxu0 %v10487
      %v10582 = vpop.f32.mrb[0].mxu0
      %v10583 = vadd.f32 0.0, %v10582
      %v10584 = vpop.f32.mrb[0].mxu0
      %v10585 = vpop.f32.mrb[0].mxu0
      %v10586 = vadd.f32 0.0, %v10585
      %v10587 = vpop.f32.mrb[0].mxu0
      %10588 = vmatprep.mubr.bf16.mxu0 0
      %10589 = vmatmul.mubr.bf16.gmra.mrb[0].mxu0 %v10490
      %v10590 = vpop.f32.mrb[0].mxu0
      %v10591 = vadd.f32 0.0, %v10590
      %v10592 = vpop.f32.mrb[0].mxu0
      %v10593 = vpop.f32.mrb[0].mxu0
      %v10594 = vpop.f32.mrb[0].mxu0
      %10595 = vdwg.mxu0
      %v10596 = vadd.f32 %v10411, %v10527
      %v10597 = vadd.f32 %v10412, %v10530
      %v10598 = vadd.f32 %v10413, %v10535
      %v10599 = vadd.f32 %v10414, %v10538
      %v10600 = vadd.f32 %v10415, %v10543
      %v10601 = vadd.f32 %v10416, %v10546
      %v10602 = vadd.f32 %v10417, %v10551
      %v10603 = vadd.f32 %v10418, %v10554
      %v10604 = vadd.f32 %v10419, %v10559
      %v10605 = vadd.f32 %v10420, %v10562
      %v10606 = vadd.f32 %v10421, %v10567
      %v10607 = vadd.f32 %v10422, %v10570
      %v10608 = vadd.f32 %v10423, %v10575
      %v10609 = vadd.f32 %v10424, %v10578
      %v10610 = vadd.f32 %v10425, %v10583
      %v10611 = vadd.f32 %v10426, %v10586
      %v10612 = vadd.f32 %v10427, %v10591
      %v10613 = vld [vmem:[#allocation2 + $0x44] sm:$0xf]
      %v10614 = vld [vmem:[%s6206] sm:$0xf]
      %v10615 = vld [vmem:[%s6206 + $0x4] sm:$0xf]
      %v10616 = vld [vmem:[%s6206 + $0x8] sm:$0xf]
      %v10617 = vld [vmem:[%s6206 + $0xc] sm:$0xf]
      %v10619 = vunpack.c.l.b16 %v10613
      %v10620 = vpack.c.b16 %v9466, %v9465
      %v10621 = vpack.c.b16 %v9468, %v9467
      %v10622 = vpack.c.b16 %v9470, %v9469
      %v10623 = vpack.c.b16 %v9472, %v9471
      %v10624 = vpack.c.b16 %v9474, %v9473
      %v10625 = vpack.c.b16 %v9476, %v9475
      %v10626 = vpack.c.b16 %v9478, %v9477
      %v10627 = vpack.c.b16 %v9480, %v9479
      %v10628 = vpack.c.b16 %v10619, %v10619
      %v10633 = vunpack.c.l.b16 %v10614
      %v10634 = vunpack.c.l.b16 %v10615
      %v10635 = vunpack.c.l.b16 %v10616
      %v10636 = vunpack.c.l.b16 %v10617
      %v10637 = vpack.c.b16 %v10634, %v10633
      %v10638 = vpack.c.b16 %v10636, %v10635
      %v10642 = vsel %vm2959, %v10620, 0
      %v10645 = vsel %vm2959, %v10621, 0
      %v10648 = vsel %vm2959, %v10622, 0
      %v10651 = vsel %vm2959, %v10623, 0
      %v10654 = vsel %vm2959, %v10624, 0
      %v10657 = vsel %vm2959, %v10625, 0
      %v10660 = vsel %vm2959, %v10626, 0
      %v10663 = vsel %vm2959, %v10627, 0
      %v10666 = vsel %vm2959, %v10628, 0
      %10668 = vmatprep.subr.bf16.mxu0 0
      %10669 = vmatpush1.bf16.msra.mxu0 %v10637
      %10670 = vmatprep.subr.bf16.mxu0 0
      %10671 = vmatpush1.bf16.msra.mxu0 %v10638
      %10672 = vmatprep.subr.bf16.mxu0 0
      %10673 = vmatpush1.bf16.msra.mxu0 0
      %10674 = vmatprep.subr.bf16.mxu0 0
      %10675 = vmatpush1.bf16.msra.mxu0 0
      %10676 = vmatprep.subr.bf16.mxu0 0
      %10677 = vmatpush1.bf16.msra.mxu0 0
      %10678 = vmatprep.subr.bf16.mxu0 0
      %10679 = vmatpush1.bf16.msra.mxu0 0
      %10680 = vmatprep.subr.bf16.mxu0 0
      %10681 = vmatpush1.bf16.msra.mxu0 0
      %10682 = vmatprep.subr.bf16.mxu0 0
      %10683 = vmatpush1.bf16.msra.mxu0 0
      %10684 = vmatprep.subr.bf16.mxu0 0
      %10685 = vmatpush1.bf16.msra.mxu0 0
      %10686 = vmatprep.subr.bf16.mxu0 0
      %10687 = vmatpush1.bf16.msra.mxu0 0
      %10688 = vmatprep.subr.bf16.mxu0 0
      %10689 = vmatpush1.bf16.msra.mxu0 0
      %10690 = vmatprep.subr.bf16.mxu0 0
      %10691 = vmatpush1.bf16.msra.mxu0 0
      %10692 = vmatprep.subr.bf16.mxu0 0
      %10693 = vmatpush1.bf16.msra.mxu0 0
      %10694 = vmatprep.subr.bf16.mxu0 0
      %10695 = vmatpush1.bf16.msra.mxu0 0
      %10696 = vmatprep.subr.bf16.mxu0 0
      %10697 = vmatpush1.bf16.msra.mxu0 0
      %10698 = vmatprep.subr.bf16.mxu0 0
      %10699 = vmatpush1.bf16.msra.mxu0 0
      %10700 = vmatprep.mubr.bf16.mxu0 0
      %10701 = vmatmul.mubr.bf16.gmra.mrb[0].mxu0 %v10642
      %v10702 = vpop.f32.mrb[0].mxu0
      %v10703 = vadd.f32 0.0, %v10702
      %v10704 = vpop.f32.mrb[0].mxu0
      %v10705 = vpop.f32.mrb[0].mxu0
      %v10706 = vadd.f32 0.0, %v10705
      %v10707 = vpop.f32.mrb[0].mxu0
      %10708 = vmatprep.mubr.bf16.mxu0 0
      %10709 = vmatmul.mubr.bf16.gmra.mrb[0].mxu0 %v10645
      %v10710 = vpop.f32.mrb[0].mxu0
      %v10711 = vadd.f32 0.0, %v10710
      %v10712 = vpop.f32.mrb[0].mxu0
      %v10713 = vpop.f32.mrb[0].mxu0
      %v10714 = vadd.f32 0.0, %v10713
      %v10715 = vpop.f32.mrb[0].mxu0
      %10716 = vmatprep.mubr.bf16.mxu0 0
      %10717 = vmatmul.mubr.bf16.gmra.mrb[0].mxu0 %v10648
      %v10718 = vpop.f32.mrb[0].mxu0
      %v10719 = vadd.f32 0.0, %v10718
      %v10720 = vpop.f32.mrb[0].mxu0
      %v10721 = vpop.f32.mrb[0].mxu0
      %v10722 = vadd.f32 0.0, %v10721
      %v10723 = vpop.f32.mrb[0].mxu0
      %10724 = vmatprep.mubr.bf16.mxu0 0
      %10725 = vmatmul.mubr.bf16.gmra.mrb[0].mxu0 %v10651
      %v10726 = vpop.f32.mrb[0].mxu0
      %v10727 = vadd.f32 0.0, %v10726
      %v10728 = vpop.f32.mrb[0].mxu0
      %v10729 = vpop.f32.mrb[0].mxu0
      %v10730 = vadd.f32 0.0, %v10729
      %v10731 = vpop.f32.mrb[0].mxu0
      %10732 = vmatprep.mubr.bf16.mxu0 0
      %10733 = vmatmul.mubr.bf16.gmra.mrb[0].mxu0 %v10654
      %v10734 = vpop.f32.mrb[0].mxu0
      %v10735 = vadd.f32 0.0, %v10734
      %v10736 = vpop.f32.mrb[0].mxu0
      %v10737 = vpop.f32.mrb[0].mxu0
      %v10738 = vadd.f32 0.0, %v10737
      %v10739 = vpop.f32.mrb[0].mxu0
      %10740 = vmatprep.mubr.bf16.mxu0 0
      %10741 = vmatmul.mubr.bf16.gmra.mrb[0].mxu0 %v10657
      %v10742 = vpop.f32.mrb[0].mxu0
      %v10743 = vadd.f32 0.0, %v10742
      %v10744 = vpop.f32.mrb[0].mxu0
      %v10745 = vpop.f32.mrb[0].mxu0
      %v10746 = vadd.f32 0.0, %v10745
      %v10747 = vpop.f32.mrb[0].mxu0
      %10748 = vmatprep.mubr.bf16.mxu0 0
      %10749 = vmatmul.mubr.bf16.gmra.mrb[0].mxu0 %v10660
      %v10750 = vpop.f32.mrb[0].mxu0
      %v10751 = vadd.f32 0.0, %v10750
      %v10752 = vpop.f32.mrb[0].mxu0
      %v10753 = vpop.f32.mrb[0].mxu0
      %v10754 = vadd.f32 0.0, %v10753
      %v10755 = vpop.f32.mrb[0].mxu0
      %10756 = vmatprep.mubr.bf16.mxu0 0
      %10757 = vmatmul.mubr.bf16.gmra.mrb[0].mxu0 %v10663
      %v10758 = vpop.f32.mrb[0].mxu0
      %v10759 = vadd.f32 0.0, %v10758
      %v10760 = vpop.f32.mrb[0].mxu0
      %v10761 = vpop.f32.mrb[0].mxu0
      %v10762 = vadd.f32 0.0, %v10761
      %v10763 = vpop.f32.mrb[0].mxu0
      %10764 = vmatprep.mubr.bf16.mxu0 0
      %10765 = vmatmul.mubr.bf16.gmra.mrb[0].mxu0 %v10666
      %v10766 = vpop.f32.mrb[0].mxu0
      %v10767 = vadd.f32 0.0, %v10766
      %v10768 = vpop.f32.mrb[0].mxu0
      %v10769 = vpop.f32.mrb[0].mxu0
      %v10770 = vpop.f32.mrb[0].mxu0
      %10771 = vdwg.mxu0
      %v10772 = vadd.f32 %v10596, %v10703
      %v10773 = vadd.f32 %v10597, %v10706
      %v10774 = vadd.f32 %v10598, %v10711
      %v10775 = vadd.f32 %v10599, %v10714
      %v10776 = vadd.f32 %v10600, %v10719
      %v10777 = vadd.f32 %v10601, %v10722
      %v10778 = vadd.f32 %v10602, %v10727
      %v10779 = vadd.f32 %v10603, %v10730
      %v10780 = vadd.f32 %v10604, %v10735
      %v10781 = vadd.f32 %v10605, %v10738
      %v10782 = vadd.f32 %v10606, %v10743
      %v10783 = vadd.f32 %v10607, %v10746
      %v10784 = vadd.f32 %v10608, %v10751
      %v10785 = vadd.f32 %v10609, %v10754
      %v10786 = vadd.f32 %v10610, %v10759
      %v10787 = vadd.f32 %v10611, %v10762
      %v10788 = vadd.f32 %v10612, %v10767
      %v10789 = vld [vmem:[#allocation2 + $0x4] sm:$0xf]
      %v10790 = vld [vmem:[#allocation2 + $0x8] sm:$0xf]
      %v10791 = vld [vmem:[#allocation2 + $0xc] sm:$0xf]
      %v10792 = vld [vmem:[#allocation2 + $0x10] sm:$0xf]
      %v10793 = vld [vmem:[#allocation2 + $0x14] sm:$0xf]
      %v10794 = vld [vmem:[#allocation2 + $0x18] sm:$0xf]
      %v10795 = vld [vmem:[#allocation2 + $0x1c] sm:$0xf]
      %v10796 = vld [vmem:[#allocation2 + $0x20] sm:$0xf]
      %v10797 = vld [vmem:[#allocation2 + $0x24] sm:$0xf]
      %v10798 = vld [vmem:[#allocation2 + $0x28] sm:$0xf]
      %v10799 = vld [vmem:[#allocation2 + $0x2c] sm:$0xf]
      %v10800 = vld [vmem:[#allocation2 + $0x30] sm:$0xf]
      %v10801 = vld [vmem:[#allocation2 + $0x34] sm:$0xf]
      %v10802 = vld [vmem:[#allocation2 + $0x38] sm:$0xf]
      %v10803 = vld [vmem:[#allocation2 + $0x3c] sm:$0xf]
      %v10804 = vld [vmem:[#allocation2 + $0x40] sm:$0xf]
      %v10805 = vld [vmem:[#allocation2 + $0x44] sm:$0xf]
      %v10806 = vld [vmem:[#allocation2 + $0x48] sm:$0x1]
      %v10807 = vld [vmem:[%s6400] sm:$0xf]
      %v10808 = vld [vmem:[%s6400 + $0x4] sm:$0xf]
      %v10809 = vld [vmem:[%s6400 + $0x8] sm:$0xf]
      %v10810 = vld [vmem:[%s6400 + $0xc] sm:$0xf]
      %v10829 = vunpack.c.l.b16 %v10789
      %v10830 = vunpack.c.l.b16 %v10790
      %v10831 = vunpack.c.l.b16 %v10791
      %v10832 = vunpack.c.l.b16 %v10792
      %v10833 = vunpack.c.l.b16 %v10793
      %v10834 = vunpack.c.l.b16 %v10794
      %v10835 = vunpack.c.l.b16 %v10795
      %v10836 = vunpack.c.l.b16 %v10796
      %v10837 = vunpack.c.l.b16 %v10797
      %v10838 = vunpack.c.l.b16 %v10798
      %v10839 = vunpack.c.l.b16 %v10799
      %v10840 = vunpack.c.l.b16 %v10800
      %v10841 = vunpack.c.l.b16 %v10801
      %v10842 = vunpack.c.l.b16 %v10802
      %v10843 = vunpack.c.l.b16 %v10803
      %v10844 = vunpack.c.l.b16 %v10804
      %v10845 = vunpack.c.l.b16 %v10805
      %v10846 = vunpack.c.l.b16 %v10806
      %v10847 = vpack.c.b16 %v10830, %v10829
      %v10848 = vpack.c.b16 %v10832, %v10831
      %v10849 = vpack.c.b16 %v10834, %v10833
      %v10850 = vpack.c.b16 %v10836, %v10835
      %v10851 = vpack.c.b16 %v10838, %v10837
      %v10852 = vpack.c.b16 %v10840, %v10839
      %v10853 = vpack.c.b16 %v10842, %v10841
      %v10854 = vpack.c.b16 %v10844, %v10843
      %v10855 = vpack.c.b16 %v10846, %v10845
      %v10857 = vshrl.u32 %v10847, 16
      %v10859 = vshll.u32 %v10847, 16
      %v10861 = vrot.slane %v10859, 1
      %v10862 = vor.u32 %v10857, %v10861
      %v10864 = vshll.u32 %v10848, 16
      %v10866 = vrot.slane %v10864, 1
      %v10867 = vsel %vm785, %v10862, %v10866
      %v10868 = vshrl.u32 %v10848, 16
      %v10870 = vor.u32 %v10868, %v10866
      %v10872 = vshll.u32 %v10849, 16
      %v10874 = vrot.slane %v10872, 1
      %v10875 = vsel %vm785, %v10870, %v10874
      %v10876 = vshrl.u32 %v10849, 16
      %v10878 = vor.u32 %v10876, %v10874
      %v10880 = vshll.u32 %v10850, 16
      %v10882 = vrot.slane %v10880, 1
      %v10883 = vsel %vm785, %v10878, %v10882
      %v10884 = vshrl.u32 %v10850, 16
      %v10886 = vor.u32 %v10884, %v10882
      %v10888 = vshll.u32 %v10851, 16
      %v10890 = vrot.slane %v10888, 1
      %v10891 = vsel %vm785, %v10886, %v10890
      %v10892 = vshrl.u32 %v10851, 16
      %v10894 = vor.u32 %v10892, %v10890
      %v10896 = vshll.u32 %v10852, 16
      %v10898 = vrot.slane %v10896, 1
      %v10899 = vsel %vm785, %v10894, %v10898
      %v10900 = vshrl.u32 %v10852, 16
      %v10902 = vor.u32 %v10900, %v10898
      %v10904 = vshll.u32 %v10853, 16
      %v10906 = vrot.slane %v10904, 1
      %v10907 = vsel %vm785, %v10902, %v10906
      %v10908 = vshrl.u32 %v10853, 16
      %v10910 = vor.u32 %v10908, %v10906
      %v10912 = vshll.u32 %v10854, 16
      %v10914 = vrot.slane %v10912, 1
      %v10915 = vsel %vm785, %v10910, %v10914
      %v10916 = vshrl.u32 %v10854, 16
      %v10918 = vor.u32 %v10916, %v10914
      %v10920 = vshll.u32 %v10855, 16
      %v10922 = vrot.slane %v10920, 1
      %v10923 = vsel %vm785, %v10918, %v10922
      %v10924 = vshrl.u32 %v10855, 16
      %v10926 = vor.u32 %v10924, %v10922
      %v10931 = vunpack.c.l.b16 %v10807
      %v10932 = vunpack.c.l.b16 %v10808
      %v10933 = vunpack.c.l.b16 %v10809
      %v10934 = vunpack.c.l.b16 %v10810
      %v10935 = vpack.c.b16 %v10932, %v10931
      %v10936 = vpack.c.b16 %v10934, %v10933
      %v10940 = vsel %vm2959, %v10867, 0
      %v10943 = vsel %vm2959, %v10875, 0
      %v10946 = vsel %vm2959, %v10883, 0
      %v10949 = vsel %vm2959, %v10891, 0
      %v10952 = vsel %vm2959, %v10899, 0
      %v10955 = vsel %vm2959, %v10907, 0
      %v10958 = vsel %vm2959, %v10915, 0
      %v10961 = vsel %vm2959, %v10923, 0
      %v10964 = vsel %vm2959, %v10926, 0
      %10966 = vmatprep.subr.bf16.mxu0 0
      %10967 = vmatpush1.bf16.msra.mxu0 %v10935
      %10968 = vmatprep.subr.bf16.mxu0 0
      %10969 = vmatpush1.bf16.msra.mxu0 %v10936
      %10970 = vmatprep.subr.bf16.mxu0 0
      %10971 = vmatpush1.bf16.msra.mxu0 0
      %10972 = vmatprep.subr.bf16.mxu0 0
      %10973 = vmatpush1.bf16.msra.mxu0 0
      %10974 = vmatprep.subr.bf16.mxu0 0
      %10975 = vmatpush1.bf16.msra.mxu0 0
      %10976 = vmatprep.subr.bf16.mxu0 0
      %10977 = vmatpush1.bf16.msra.mxu0 0
      %10978 = vmatprep.subr.bf16.mxu0 0
      %10979 = vmatpush1.bf16.msra.mxu0 0
      %10980 = vmatprep.subr.bf16.mxu0 0
      %10981 = vmatpush1.bf16.msra.mxu0 0
      %10982 = vmatprep.subr.bf16.mxu0 0
      %10983 = vmatpush1.bf16.msra.mxu0 0
      %10984 = vmatprep.subr.bf16.mxu0 0
      %10985 = vmatpush1.bf16.msra.mxu0 0
      %10986 = vmatprep.subr.bf16.mxu0 0
      %10987 = vmatpush1.bf16.msra.mxu0 0
      %10988 = vmatprep.subr.bf16.mxu0 0
      %10989 = vmatpush1.bf16.msra.mxu0 0
      %10990 = vmatprep.subr.bf16.mxu0 0
      %10991 = vmatpush1.bf16.msra.mxu0 0
      %10992 = vmatprep.subr.bf16.mxu0 0
      %10993 = vmatpush1.bf16.msra.mxu0 0
      %10994 = vmatprep.subr.bf16.mxu0 0
      %10995 = vmatpush1.bf16.msra.mxu0 0
      %10996 = vmatprep.subr.bf16.mxu0 0
      %10997 = vmatpush1.bf16.msra.mxu0 0
      %10998 = vmatprep.mubr.bf16.mxu0 0
      %10999 = vmatmul.mubr.bf16.gmra.mrb[0].mxu0 %v10940
      %v11000 = vpop.f32.mrb[0].mxu0
      %v11001 = vadd.f32 0.0, %v11000
      %v11002 = vpop.f32.mrb[0].mxu0
      %v11003 = vpop.f32.mrb[0].mxu0
      %v11004 = vadd.f32 0.0, %v11003
      %v11005 = vpop.f32.mrb[0].mxu0
      %11006 = vmatprep.mubr.bf16.mxu0 0
      %11007 = vmatmul.mubr.bf16.gmra.mrb[0].mxu0 %v10943
      %v11008 = vpop.f32.mrb[0].mxu0
      %v11009 = vadd.f32 0.0, %v11008
      %v11010 = vpop.f32.mrb[0].mxu0
      %v11011 = vpop.f32.mrb[0].mxu0
      %v11012 = vadd.f32 0.0, %v11011
      %v11013 = vpop.f32.mrb[0].mxu0
      %11014 = vmatprep.mubr.bf16.mxu0 0
      %11015 = vmatmul.mubr.bf16.gmra.mrb[0].mxu0 %v10946
      %v11016 = vpop.f32.mrb[0].mxu0
      %v11017 = vadd.f32 0.0, %v11016
      %v11018 = vpop.f32.mrb[0].mxu0
      %v11019 = vpop.f32.mrb[0].mxu0
      %v11020 = vadd.f32 0.0, %v11019
      %v11021 = vpop.f32.mrb[0].mxu0
      %11022 = vmatprep.mubr.bf16.mxu0 0
      %11023 = vmatmul.mubr.bf16.gmra.mrb[0].mxu0 %v10949
      %v11024 = vpop.f32.mrb[0].mxu0
      %v11025 = vadd.f32 0.0, %v11024
      %v11026 = vpop.f32.mrb[0].mxu0
      %v11027 = vpop.f32.mrb[0].mxu0
      %v11028 = vadd.f32 0.0, %v11027
      %v11029 = vpop.f32.mrb[0].mxu0
      %11030 = vmatprep.mubr.bf16.mxu0 0
      %11031 = vmatmul.mubr.bf16.gmra.mrb[0].mxu0 %v10952
      %v11032 = vpop.f32.mrb[0].mxu0
      %v11033 = vadd.f32 0.0, %v11032
      %v11034 = vpop.f32.mrb[0].mxu0
      %v11035 = vpop.f32.mrb[0].mxu0
      %v11036 = vadd.f32 0.0, %v11035
      %v11037 = vpop.f32.mrb[0].mxu0
      %11038 = vmatprep.mubr.bf16.mxu0 0
      %11039 = vmatmul.mubr.bf16.gmra.mrb[0].mxu0 %v10955
      %v11040 = vpop.f32.mrb[0].mxu0
      %v11041 = vadd.f32 0.0, %v11040
      %v11042 = vpop.f32.mrb[0].mxu0
      %v11043 = vpop.f32.mrb[0].mxu0
      %v11044 = vadd.f32 0.0, %v11043
      %v11045 = vpop.f32.mrb[0].mxu0
      %11046 = vmatprep.mubr.bf16.mxu0 0
      %11047 = vmatmul.mubr.bf16.gmra.mrb[0].mxu0 %v10958
      %v11048 = vpop.f32.mrb[0].mxu0
      %v11049 = vadd.f32 0.0, %v11048
      %v11050 = vpop.f32.mrb[0].mxu0
      %v11051 = vpop.f32.mrb[0].mxu0
      %v11052 = vadd.f32 0.0, %v11051
      %v11053 = vpop.f32.mrb[0].mxu0
      %11054 = vmatprep.mubr.bf16.mxu0 0
      %11055 = vmatmul.mubr.bf16.gmra.mrb[0].mxu0 %v10961
      %v11056 = vpop.f32.mrb[0].mxu0
      %v11057 = vadd.f32 0.0, %v11056
      %v11058 = vpop.f32.mrb[0].mxu0
      %v11059 = vpop.f32.mrb[0].mxu0
      %v11060 = vadd.f32 0.0, %v11059
      %v11061 = vpop.f32.mrb[0].mxu0
      %11062 = vmatprep.mubr.bf16.mxu0 0
      %11063 = vmatmul.mubr.bf16.gmra.mrb[0].mxu0 %v10964
      %v11064 = vpop.f32.mrb[0].mxu0
      %v11065 = vadd.f32 0.0, %v11064
      %v11066 = vpop.f32.mrb[0].mxu0
      %v11067 = vpop.f32.mrb[0].mxu0
      %v11068 = vpop.f32.mrb[0].mxu0
      %11069 = vdwg.mxu0
      %v11070 = vadd.f32 %v10772, %v11001
      %v11071 = vadd.f32 %v10773, %v11004
      %v11072 = vadd.f32 %v10774, %v11009
      %v11073 = vadd.f32 %v10775, %v11012
      %v11074 = vadd.f32 %v10776, %v11017
      %v11075 = vadd.f32 %v10777, %v11020
      %v11076 = vadd.f32 %v10778, %v11025
      %v11077 = vadd.f32 %v10779, %v11028
      %v11078 = vadd.f32 %v10780, %v11033
      %v11079 = vadd.f32 %v10781, %v11036
      %v11080 = vadd.f32 %v10782, %v11041
      %v11081 = vadd.f32 %v10783, %v11044
      %v11082 = vadd.f32 %v10784, %v11049
      %v11083 = vadd.f32 %v10785, %v11052
      %v11084 = vadd.f32 %v10786, %v11057
      %v11085 = vadd.f32 %v10787, %v11060
      %v11086 = vadd.f32 %v10788, %v11065
      %v11087 = vld [vmem:[#allocation2 + $0x4] sm:$0xe]
      %v11088 = vld [vmem:[%s6682] sm:$0xf]
      %v11089 = vld [vmem:[%s6682 + $0x4] sm:$0xf]
      %v11090 = vld [vmem:[%s6682 + $0x8] sm:$0xf]
      %v11091 = vld [vmem:[%s6682 + $0xc] sm:$0xf]
      %v11093 = vunpack.c.l.b16 %v11087
      %v11094 = vpack.c.b16 %v10830, %v11093
      %v11095 = vrot.slane %v11094, 1
      %v11096 = vrot.slane %v10848, 1
      %v11097 = vsel %vm1122, %v11095, %v11096
      %v11098 = vrot.slane %v10849, 1
      %v11099 = vsel %vm1122, %v11096, %v11098
      %v11100 = vrot.slane %v10850, 1
      %v11101 = vsel %vm1122, %v11098, %v11100
      %v11102 = vrot.slane %v10851, 1
      %v11103 = vsel %vm1122, %v11100, %v11102
      %v11104 = vrot.slane %v10852, 1
      %v11105 = vsel %vm1122, %v11102, %v11104
      %v11106 = vrot.slane %v10853, 1
      %v11107 = vsel %vm1122, %v11104, %v11106
      %v11108 = vrot.slane %v10854, 1
      %v11109 = vsel %vm1122, %v11106, %v11108
      %v11110 = vrot.slane %v10855, 1
      %v11111 = vsel %vm1122, %v11108, %v11110
      %v11116 = vunpack.c.l.b16 %v11088
      %v11117 = vunpack.c.l.b16 %v11089
      %v11118 = vunpack.c.l.b16 %v11090
      %v11119 = vunpack.c.l.b16 %v11091
      %v11120 = vpack.c.b16 %v11117, %v11116
      %v11121 = vpack.c.b16 %v11119, %v11118
      %v11125 = vsel %vm2959, %v11097, 0
      %v11128 = vsel %vm2959, %v11099, 0
      %v11131 = vsel %vm2959, %v11101, 0
      %v11134 = vsel %vm2959, %v11103, 0
      %v11137 = vsel %vm2959, %v11105, 0
      %v11140 = vsel %vm2959, %v11107, 0
      %v11143 = vsel %vm2959, %v11109, 0
      %v11146 = vsel %vm2959, %v11111, 0
      %v11149 = vsel %vm2959, %v11110, 0
      %11151 = vmatprep.subr.bf16.mxu0 0
      %11152 = vmatpush1.bf16.msra.mxu0 %v11120
      %11153 = vmatprep.subr.bf16.mxu0 0
      %11154 = vmatpush1.bf16.msra.mxu0 %v11121
      %11155 = vmatprep.subr.bf16.mxu0 0
      %11156 = vmatpush1.bf16.msra.mxu0 0
      %11157 = vmatprep.subr.bf16.mxu0 0
      %11158 = vmatpush1.bf16.msra.mxu0 0
      %11159 = vmatprep.subr.bf16.mxu0 0
      %11160 = vmatpush1.bf16.msra.mxu0 0
      %11161 = vmatprep.subr.bf16.mxu0 0
      %11162 = vmatpush1.bf16.msra.mxu0 0
      %11163 = vmatprep.subr.bf16.mxu0 0
      %11164 = vmatpush1.bf16.msra.mxu0 0
      %11165 = vmatprep.subr.bf16.mxu0 0
      %11166 = vmatpush1.bf16.msra.mxu0 0
      %11167 = vmatprep.subr.bf16.mxu0 0
      %11168 = vmatpush1.bf16.msra.mxu0 0
      %11169 = vmatprep.subr.bf16.mxu0 0
      %11170 = vmatpush1.bf16.msra.mxu0 0
      %11171 = vmatprep.subr.bf16.mxu0 0
      %11172 = vmatpush1.bf16.msra.mxu0 0
      %11173 = vmatprep.subr.bf16.mxu0 0
      %11174 = vmatpush1.bf16.msra.mxu0 0
      %11175 = vmatprep.subr.bf16.mxu0 0
      %11176 = vmatpush1.bf16.msra.mxu0 0
      %11177 = vmatprep.subr.bf16.mxu0 0
      %11178 = vmatpush1.bf16.msra.mxu0 0
      %11179 = vmatprep.subr.bf16.mxu0 0
      %11180 = vmatpush1.bf16.msra.mxu0 0
      %11181 = vmatprep.subr.bf16.mxu0 0
      %11182 = vmatpush1.bf16.msra.mxu0 0
      %11183 = vmatprep.mubr.bf16.mxu0 0
      %11184 = vmatmul.mubr.bf16.gmra.mrb[0].mxu0 %v11125
      %v11185 = vpop.f32.mrb[0].mxu0
      %v11186 = vadd.f32 0.0, %v11185
      %v11187 = vpop.f32.mrb[0].mxu0
      %v11188 = vpop.f32.mrb[0].mxu0
      %v11189 = vadd.f32 0.0, %v11188
      %v11190 = vpop.f32.mrb[0].mxu0
      %11191 = vmatprep.mubr.bf16.mxu0 0
      %11192 = vmatmul.mubr.bf16.gmra.mrb[0].mxu0 %v11128
      %v11193 = vpop.f32.mrb[0].mxu0
      %v11194 = vadd.f32 0.0, %v11193
      %v11195 = vpop.f32.mrb[0].mxu0
      %v11196 = vpop.f32.mrb[0].mxu0
      %v11197 = vadd.f32 0.0, %v11196
      %v11198 = vpop.f32.mrb[0].mxu0
      %11199 = vmatprep.mubr.bf16.mxu0 0
      %11200 = vmatmul.mubr.bf16.gmra.mrb[0].mxu0 %v11131
      %v11201 = vpop.f32.mrb[0].mxu0
      %v11202 = vadd.f32 0.0, %v11201
      %v11203 = vpop.f32.mrb[0].mxu0
      %v11204 = vpop.f32.mrb[0].mxu0
      %v11205 = vadd.f32 0.0, %v11204
      %v11206 = vpop.f32.mrb[0].mxu0
      %11207 = vmatprep.mubr.bf16.mxu0 0
      %11208 = vmatmul.mubr.bf16.gmra.mrb[0].mxu0 %v11134
      %v11209 = vpop.f32.mrb[0].mxu0
      %v11210 = vadd.f32 0.0, %v11209
      %v11211 = vpop.f32.mrb[0].mxu0
      %v11212 = vpop.f32.mrb[0].mxu0
      %v11213 = vadd.f32 0.0, %v11212
      %v11214 = vpop.f32.mrb[0].mxu0
      %11215 = vmatprep.mubr.bf16.mxu0 0
      %11216 = vmatmul.mubr.bf16.gmra.mrb[0].mxu0 %v11137
      %v11217 = vpop.f32.mrb[0].mxu0
      %v11218 = vadd.f32 0.0, %v11217
      %v11219 = vpop.f32.mrb[0].mxu0
      %v11220 = vpop.f32.mrb[0].mxu0
      %v11221 = vadd.f32 0.0, %v11220
      %v11222 = vpop.f32.mrb[0].mxu0
      %11223 = vmatprep.mubr.bf16.mxu0 0
      %11224 = vmatmul.mubr.bf16.gmra.mrb[0].mxu0 %v11140
      %v11225 = vpop.f32.mrb[0].mxu0
      %v11226 = vadd.f32 0.0, %v11225
      %v11227 = vpop.f32.mrb[0].mxu0
      %v11228 = vpop.f32.mrb[0].mxu0
      %v11229 = vadd.f32 0.0, %v11228
      %v11230 = vpop.f32.mrb[0].mxu0
      %11231 = vmatprep.mubr.bf16.mxu0 0
      %11232 = vmatmul.mubr.bf16.gmra.mrb[0].mxu0 %v11143
      %v11233 = vpop.f32.mrb[0].mxu0
      %v11234 = vadd.f32 0.0, %v11233
      %v11235 = vpop.f32.mrb[0].mxu0
      %v11236 = vpop.f32.mrb[0].mxu0
      %v11237 = vadd.f32 0.0, %v11236
      %v11238 = vpop.f32.mrb[0].mxu0
      %11239 = vmatprep.mubr.bf16.mxu0 0
      %11240 = vmatmul.mubr.bf16.gmra.mrb[0].mxu0 %v11146
      %v11241 = vpop.f32.mrb[0].mxu0
      %v11242 = vadd.f32 0.0, %v11241
      %v11243 = vpop.f32.mrb[0].mxu0
      %v11244 = vpop.f32.mrb[0].mxu0
      %v11245 = vadd.f32 0.0, %v11244
      %v11246 = vpop.f32.mrb[0].mxu0
      %11247 = vmatprep.mubr.bf16.mxu0 0
      %11248 = vmatmul.mubr.bf16.gmra.mrb[0].mxu0 %v11149
      %v11249 = vpop.f32.mrb[0].mxu0
      %v11250 = vadd.f32 0.0, %v11249
      %v11251 = vpop.f32.mrb[0].mxu0
      %v11252 = vpop.f32.mrb[0].mxu0
      %v11253 = vpop.f32.mrb[0].mxu0
      %11254 = vdwg.mxu0
      %v11255 = vadd.f32 %v11070, %v11186
      %v11256 = vadd.f32 %v11071, %v11189
      %v11257 = vadd.f32 %v11072, %v11194
      %v11258 = vadd.f32 %v11073, %v11197
      %v11259 = vadd.f32 %v11074, %v11202
      %v11260 = vadd.f32 %v11075, %v11205
      %v11261 = vadd.f32 %v11076, %v11210
      %v11262 = vadd.f32 %v11077, %v11213
      %v11263 = vadd.f32 %v11078, %v11218
      %v11264 = vadd.f32 %v11079, %v11221
      %v11265 = vadd.f32 %v11080, %v11226
      %v11266 = vadd.f32 %v11081, %v11229
      %v11267 = vadd.f32 %v11082, %v11234
      %v11268 = vadd.f32 %v11083, %v11237
      %v11269 = vadd.f32 %v11084, %v11242
      %v11270 = vadd.f32 %v11085, %v11245
      %v11271 = vadd.f32 %v11086, %v11250
      %v11273 = vlaneseq
      %v11274 = vshrl.u32 %v11273, 7
      %v11275 = vsub.s32 0, %v11274
      %v11276 = vrot.slane %v9418, %v11275
      %v11278 = vmul.f32 %v11255, %v11276
      %v11279 = vmul.f32 %v11256, %v11276
      %v11280 = vmul.f32 %v11257, %v11276
      %v11281 = vmul.f32 %v11258, %v11276
      %v11282 = vmul.f32 %v11259, %v11276
      %v11283 = vmul.f32 %v11260, %v11276
      %v11284 = vmul.f32 %v11261, %v11276
      %v11285 = vmul.f32 %v11262, %v11276
      %v11286 = vmul.f32 %v11263, %v11276
      %v11287 = vmul.f32 %v11264, %v11276
      %v11288 = vmul.f32 %v11265, %v11276
      %v11289 = vmul.f32 %v11266, %v11276
      %v11290 = vmul.f32 %v11267, %v11276
      %v11291 = vmul.f32 %v11268, %v11276
      %v11292 = vmul.f32 %v11269, %v11276
      %v11293 = vmul.f32 %v11270, %v11276
      %v11294 = vmul.f32 %v11271, %v11276
      %v11296 = vlaneseq
      %v11297 = vshrl.u32 %v11296, 7
      %v11298 = vsub.s32 0, %v11297
      %v11299 = vrot.slane %v9419, %v11298
      %v11301 = vadd.f32 %v11278, %v11299
      %v11302 = vadd.f32 %v11279, %v11299
      %v11303 = vadd.f32 %v11280, %v11299
      %v11304 = vadd.f32 %v11281, %v11299
      %v11305 = vadd.f32 %v11282, %v11299
      %v11306 = vadd.f32 %v11283, %v11299
      %v11307 = vadd.f32 %v11284, %v11299
      %v11308 = vadd.f32 %v11285, %v11299
      %v11309 = vadd.f32 %v11286, %v11299
      %v11310 = vadd.f32 %v11287, %v11299
      %v11311 = vadd.f32 %v11288, %v11299
      %v11312 = vadd.f32 %v11289, %v11299
      %v11313 = vadd.f32 %v11290, %v11299
      %v11314 = vadd.f32 %v11291, %v11299
      %v11315 = vadd.f32 %v11292, %v11299
      %v11316 = vadd.f32 %v11293, %v11299
      %v11317 = vadd.f32 %v11294, %v11299
      %v11318 = vadd.f32 %v11301, %v6947
      %v11319 = vadd.f32 %v11302, %v6948
      %v11320 = vadd.f32 %v11303, %v6949
      %v11321 = vadd.f32 %v11304, %v6950
      %v11322 = vadd.f32 %v11305, %v6951
      %v11323 = vadd.f32 %v11306, %v6952
      %v11324 = vadd.f32 %v11307, %v6953
      %v11325 = vadd.f32 %v11308, %v6954
      %v11326 = vadd.f32 %v11309, %v6955
      %v11327 = vadd.f32 %v11310, %v6956
      %v11328 = vadd.f32 %v11311, %v6957
      %v11329 = vadd.f32 %v11312, %v6958
      %v11330 = vadd.f32 %v11313, %v6959
      %v11331 = vadd.f32 %v11314, %v6960
      %v11332 = vadd.f32 %v11315, %v6961
      %v11333 = vadd.f32 %v11316, %v6962
      %v11334 = vadd.f32 %v11317, %v6963
      %v11335 = vmax.f32 %v11318, 0.0
      %v11336 = vmax.f32 %v11319, 0.0
      %v11337 = vmax.f32 %v11320, 0.0
      %v11338 = vmax.f32 %v11321, 0.0
      %v11339 = vmax.f32 %v11322, 0.0
      %v11340 = vmax.f32 %v11323, 0.0
      %v11341 = vmax.f32 %v11324, 0.0
      %v11342 = vmax.f32 %v11325, 0.0
      %v11343 = vmax.f32 %v11326, 0.0
      %v11344 = vmax.f32 %v11327, 0.0
      %v11345 = vmax.f32 %v11328, 0.0
      %v11346 = vmax.f32 %v11329, 0.0
      %v11347 = vmax.f32 %v11330, 0.0
      %v11348 = vmax.f32 %v11331, 0.0
      %v11349 = vmax.f32 %v11332, 0.0
      %v11350 = vmax.f32 %v11333, 0.0
      %v11351 = vmax.f32 %v11334, 0.0
      %v11352 = vmul.f32 %v11335, %v2439
      %v11353 = vmul.f32 %v11336, %v2444
      %v11354 = vmul.f32 %v11337, %v2449
      %v11355 = vmul.f32 %v11338, %v2454
      %v11356 = vmul.f32 %v11339, %v2459
      %v11357 = vmul.f32 %v11340, %v2464
      %v11358 = vmul.f32 %v11341, %v2469
      %v11359 = vmul.f32 %v11342, %v2474
      %v11360 = vmul.f32 %v11343, %v2479
      %v11361 = vmul.f32 %v11344, %v2484
      %v11362 = vmul.f32 %v11345, %v2489
      %v11363 = vmul.f32 %v11346, %v2494
      %v11364 = vmul.f32 %v11347, %v2499
      %v11365 = vmul.f32 %v11348, %v2504
      %v11366 = vmul.f32 %v11349, %v2509
      %v11367 = vmul.f32 %v11350, %v2514
      %v11368 = vmul.f32 %v11351, %v2519
      %v11369 = vld [vmem:[%s12] sm:$0xf]
      %v11370 = vpack.c.bf16 %v11353, %v11352
      %v11371 = vpack.c.bf16 %v11355, %v11354
      %v11372 = vpack.c.bf16 %v11357, %v11356
      %v11373 = vpack.c.bf16 %v11359, %v11358
      %v11374 = vpack.c.bf16 %v11361, %v11360
      %v11375 = vpack.c.bf16 %v11363, %v11362
      %v11376 = vpack.c.bf16 %v11365, %v11364
      %v11377 = vpack.c.bf16 %v11367, %v11366
      %v11378 = vpack.c.bf16 %v11368, %v11368
      %v11380 = vsel %vm2959, %v11369, 0
      %v11383 = vsel %vm2959, %v11370, 0
      %v11386 = vsel %vm2959, %v11371, 0
      %v11389 = vsel %vm2959, %v11372, 0
      %v11392 = vsel %vm2959, %v11373, 0
      %v11395 = vsel %vm2959, %v11374, 0
      %v11398 = vsel %vm2959, %v11375, 0
      %v11401 = vsel %vm2959, %v11376, 0
      %v11404 = vsel %vm2959, %v11377, 0
      %v11407 = vsel %vm2959, %v11378, 0
      %11409 = vmatprep.subr.bf16.mxu0 0
      %11410 = vmatpush1.bf16.xpose.msra.mxu0 %v11383
      %11411 = vmatprep.subr.bf16.mxu0 0
      %11412 = vmatpush1.bf16.xpose.msra.mxu0 %v11386
      %11413 = vmatprep.subr.bf16.mxu0 0
      %11414 = vmatpush1.bf16.xpose.msra.mxu0 %v11389
      %11415 = vmatprep.subr.bf16.mxu0 0
      %11416 = vmatpush1.bf16.xpose.msra.mxu0 %v11392
      %11417 = vmatprep.subr.bf16.mxu0 0
      %11418 = vmatpush1.bf16.xpose.msra.mxu0 %v11395
      %11419 = vmatprep.subr.bf16.mxu0 0
      %11420 = vmatpush1.bf16.xpose.msra.mxu0 %v11398
      %11421 = vmatprep.subr.bf16.mxu0 0
      %11422 = vmatpush1.bf16.xpose.msra.mxu0 %v11401
      %11423 = vmatprep.subr.bf16.mxu0 0
      %11424 = vmatpush1.bf16.xpose.msra.mxu0 %v11404
      %11425 = vmatprep.subr.bf16.mxu0 0
      %11426 = vmatpush1.bf16.xpose.msra.mxu0 %v11407
      %11427 = vmatprep.subr.bf16.mxu0 0
      %11428 = vmatpush1.bf16.xpose.msra.mxu0 0
      %11429 = vmatprep.subr.bf16.mxu0 0
      %11430 = vmatpush1.bf16.xpose.msra.mxu0 0
      %11431 = vmatprep.subr.bf16.mxu0 0
      %11432 = vmatpush1.bf16.xpose.msra.mxu0 0
      %11433 = vmatprep.subr.bf16.mxu0 0
      %11434 = vmatpush1.bf16.xpose.msra.mxu0 0
      %11435 = vmatprep.subr.bf16.mxu0 0
      %11436 = vmatpush1.bf16.xpose.msra.mxu0 0
      %11437 = vmatprep.subr.bf16.mxu0 0
      %11438 = vmatpush1.bf16.xpose.msra.mxu0 0
      %11439 = vmatprep.subr.bf16.mxu0 0
      %11440 = vmatpush1.bf16.xpose.msra.mxu0 0
      %11441 = vmatprep.mubr.bf16.mxu0 0
      %11442 = vmatmul.mubr.bf16.gmra.mrb[0].mxu0 %v11380
      %v11443 = vpop.f32.mrb[0].mxu0
      %v11444 = vadd.f32 0.0, %v11443
      %v11445 = vpop.f32.mrb[0].mxu0
      %v11446 = vadd.f32 0.0, %v11445
      %v11447 = vpop.f32.mrb[0].mxu0
      %v11448 = vpop.f32.mrb[0].mxu0
      %11449 = vdwg.mxu0
      %v11450 = vld [vmem:[%s13] sm:$0xff]
      %11452 = vset.pattern.permute.xlu0 0
      %11453 = vperm.xlu0 %11452, %v11450
      %v11454 = vpop.permute.xlu0 %11453
      %v11456 = vmul.f32 %v11444, %v11454
      %v11457 = vmul.f32 %v11446, %v11454
      %v11458 = vld [vmem:[%s14] sm:$0xff]
      %11460 = vset.pattern.permute.xlu0 0
      %11461 = vperm.xlu0 %11460, %v11458
      %v11462 = vpop.permute.xlu0 %11461
      %v11464 = vadd.f32 %v11456, %v11462
      %v11465 = vadd.f32 %v11457, %v11462
      %v11466 = vmax.f32 %v11464, 0.0
      %v11467 = vmax.f32 %v11465, 0.0
      %v11468 = vld [vmem:[%s2] sm:$0xff]
      %v11469 = vld [vmem:[%s2 + $0x8] sm:$0xff]
      %v11470 = vlaneseq
      %v11471 = vshrl.u32 %v11470, 7
      %v11472 = vsub.s32 0, %v11471
      %v11473 = vrot.slane %v11466, %v11472
      %v11474 = vlaneseq
      %v11475 = vshrl.u32 %v11474, 7
      %v11476 = vsub.s32 0, %v11475
      %v11477 = vrot.slane %v11467, %v11476
      %v11478 = vmul.f32 %v11473, %v11468
      %v11479 = vmul.f32 %v11477, %v11469
      %v11480 = vpack.c.bf16 %v11478, %v11478
      %v11481 = vpack.c.bf16 %v11479, %v11479
      %v11482 = vlaneseq
      %v11483 = vshrl.u32 %v11482, 7
      %v11484 = vsub.s32 1, %v11483
      %v11485 = vrot.slane %v11466, %v11484
      %v11486 = vlaneseq
      %v11487 = vshrl.u32 %v11486, 7
      %v11488 = vsub.s32 1, %v11487
      %v11489 = vrot.slane %v11467, %v11488
      %v11490 = vmul.f32 %v11485, %v11468
      %v11491 = vmul.f32 %v11489, %v11469
      %v11492 = vpack.c.bf16 %v11490, %v11490
      %v11493 = vpack.c.bf16 %v11491, %v11491
      %v11494 = vlaneseq
      %v11495 = vshrl.u32 %v11494, 7
      %v11496 = vsub.s32 2, %v11495
      %v11497 = vrot.slane %v11466, %v11496
      %v11498 = vlaneseq
      %v11499 = vshrl.u32 %v11498, 7
      %v11500 = vsub.s32 2, %v11499
      %v11501 = vrot.slane %v11467, %v11500
      %v11502 = vmul.f32 %v11497, %v11468
      %v11503 = vmul.f32 %v11501, %v11469
      %v11504 = vpack.c.bf16 %v11502, %v11502
      %v11505 = vpack.c.bf16 %v11503, %v11503
      %v11506 = vld [vmem:[%s15] sm:$0xf]
      %v11507 = vld [vmem:[%s15 + $0x4] sm:$0xf]
      %v11508 = vld [vmem:[%s15 + $0x8] sm:$0xf]
      %v11509 = vld [vmem:[%s15 + $0xc] sm:$0xf]
      %v11510 = vld [vmem:[%s15 + $0x10] sm:$0xf]
      %v11511 = vld [vmem:[%s15 + $0x14] sm:$0xf]
      %v11512 = vld [vmem:[%s15 + $0x18] sm:$0xf]
      %v11513 = vld [vmem:[%s15 + $0x1c] sm:$0xf]
      %v11514 = vld [vmem:[%s15 + $0x20] sm:$0xf]
      %v11515 = vld [vmem:[%s15 + $0x24] sm:$0xf]
      %v11516 = vld [vmem:[%s15 + $0x28] sm:$0xf]
      %v11517 = vld [vmem:[%s15 + $0x2c] sm:$0xf]
      %v11518 = vld [vmem:[%s15 + $0x30] sm:$0xf]
      %v11519 = vld [vmem:[%s15 + $0x34] sm:$0xf]
      %v11520 = vld [vmem:[%s15 + $0x38] sm:$0xf]
      %v11521 = vld [vmem:[%s15 + $0x3c] sm:$0xf]
      %v11522 = vld [vmem:[%s15 + $0x40] sm:$0xf]
      %v11523 = vld [vmem:[%s16] sm:$0xf]
      %v11524 = vld [vmem:[%s16 + $0x4] sm:$0xf]
      %v11525 = vld [vmem:[%s16 + $0x8] sm:$0xf]
      %v11526 = vld [vmem:[%s16 + $0xc] sm:$0xf]
      %v11527 = vld [vmem:[%s16 + $0x10] sm:$0xf]
      %v11528 = vld [vmem:[%s16 + $0x14] sm:$0xf]
      %v11529 = vld [vmem:[%s16 + $0x18] sm:$0xf]
      %v11530 = vld [vmem:[%s16 + $0x1c] sm:$0xf]
      %v11531 = vld [vmem:[%s16 + $0x20] sm:$0xf]
      %v11532 = vld [vmem:[%s16 + $0x24] sm:$0xf]
      %v11533 = vld [vmem:[%s16 + $0x28] sm:$0xf]
      %v11534 = vld [vmem:[%s16 + $0x2c] sm:$0xf]
      %v11535 = vld [vmem:[%s16 + $0x30] sm:$0xf]
      %v11536 = vld [vmem:[%s16 + $0x34] sm:$0xf]
      %v11537 = vld [vmem:[%s16 + $0x38] sm:$0xf]
      %v11538 = vld [vmem:[%s16 + $0x3c] sm:$0xf]
      %v11539 = vld [vmem:[%s16 + $0x40] sm:$0xf]
      %v11557 = vunpack.c.l.b16 %v11523
      %v11558 = vunpack.c.l.b16 %v11524
      %v11559 = vunpack.c.l.b16 %v11525
      %v11560 = vunpack.c.l.b16 %v11526
      %v11561 = vunpack.c.l.b16 %v11527
      %v11562 = vunpack.c.l.b16 %v11528
      %v11563 = vunpack.c.l.b16 %v11529
      %v11564 = vunpack.c.l.b16 %v11530
      %v11565 = vunpack.c.l.b16 %v11531
      %v11566 = vunpack.c.l.b16 %v11532
      %v11567 = vunpack.c.l.b16 %v11533
      %v11568 = vunpack.c.l.b16 %v11534
      %v11569 = vunpack.c.l.b16 %v11535
      %v11570 = vunpack.c.l.b16 %v11536
      %v11571 = vunpack.c.l.b16 %v11537
      %v11572 = vunpack.c.l.b16 %v11538
      %v11573 = vunpack.c.l.b16 %v11539
      %v11574 = vpack.c.b16 %v11558, %v11557
      %v11575 = vpack.c.b16 %v11560, %v11559
      %v11576 = vpack.c.b16 %v11562, %v11561
      %v11577 = vpack.c.b16 %v11564, %v11563
      %v11578 = vpack.c.b16 %v11566, %v11565
      %v11579 = vpack.c.b16 %v11568, %v11567
      %v11580 = vpack.c.b16 %v11570, %v11569
      %v11581 = vpack.c.b16 %v11572, %v11571
      %v11582 = vpack.c.b16 %v11573, %v11573
      %v11592 = vsel %vm857, %v11493, 0
      %v11595 = vsel %vm885, %v11582, 0
      %11597 = vmatprep.subr.bf16.mxu0 0
      %11598 = vmatpush1.bf16.msra.mxu0 %v11574
      %11599 = vmatprep.subr.bf16.mxu0 0
      %11600 = vmatpush1.bf16.msra.mxu0 %v11575
      %11601 = vmatprep.subr.bf16.mxu0 0
      %11602 = vmatpush1.bf16.msra.mxu0 %v11576
      %11603 = vmatprep.subr.bf16.mxu0 0
      %11604 = vmatpush1.bf16.msra.mxu0 %v11577
      %11605 = vmatprep.subr.bf16.mxu0 0
      %11606 = vmatpush1.bf16.msra.mxu0 %v11578
      %11607 = vmatprep.subr.bf16.mxu0 0
      %11608 = vmatpush1.bf16.msra.mxu0 %v11579
      %11609 = vmatprep.subr.bf16.mxu0 0
      %11610 = vmatpush1.bf16.msra.mxu0 %v11580
      %11611 = vmatprep.subr.bf16.mxu0 0
      %11612 = vmatpush1.bf16.msra.mxu0 %v11581
      %11613 = vmatprep.subr.bf16.mxu0 0
      %11614 = vmatpush1.bf16.msra.mxu0 %v11595
      %11615 = vmatprep.subr.bf16.mxu0 0
      %11616 = vmatpush1.bf16.msra.mxu0 0
      %11617 = vmatprep.subr.bf16.mxu0 0
      %11618 = vmatpush1.bf16.msra.mxu0 0
      %11619 = vmatprep.subr.bf16.mxu0 0
      %11620 = vmatpush1.bf16.msra.mxu0 0
      %11621 = vmatprep.subr.bf16.mxu0 0
      %11622 = vmatpush1.bf16.msra.mxu0 0
      %11623 = vmatprep.subr.bf16.mxu0 0
      %11624 = vmatpush1.bf16.msra.mxu0 0
      %11625 = vmatprep.subr.bf16.mxu0 0
      %11626 = vmatpush1.bf16.msra.mxu0 0
      %11627 = vmatprep.subr.bf16.mxu0 0
      %11628 = vmatpush1.bf16.msra.mxu0 0
      %11629 = vmatprep.mubr.bf16.mxu0 %v11592
      %11630 = vmatmul.mubr.bf16.gmra.mrb[0].mxu0 %v11492
      %v11631 = vpop.f32.mrb[0].mxu0
      %v11632 = vadd.f32 0.0, %v11631
      %v11633 = vpop.f32.mrb[0].mxu0
      %v11634 = vpop.f32.mrb[0].mxu0
      %v11635 = vpop.f32.mrb[0].mxu0
      %11636 = vdwg.mxu0
      %v11654 = vunpack.c.l.b16 %v11506
      %v11655 = vunpack.c.l.b16 %v11507
      %v11656 = vunpack.c.l.b16 %v11508
      %v11657 = vunpack.c.l.b16 %v11509
      %v11658 = vunpack.c.l.b16 %v11510
      %v11659 = vunpack.c.l.b16 %v11511
      %v11660 = vunpack.c.l.b16 %v11512
      %v11661 = vunpack.c.l.b16 %v11513
      %v11662 = vunpack.c.l.b16 %v11514
      %v11663 = vunpack.c.l.b16 %v11515
      %v11664 = vunpack.c.l.b16 %v11516
      %v11665 = vunpack.c.l.b16 %v11517
      %v11666 = vunpack.c.l.b16 %v11518
      %v11667 = vunpack.c.l.b16 %v11519
      %v11668 = vunpack.c.l.b16 %v11520
      %v11669 = vunpack.c.l.b16 %v11521
      %v11670 = vunpack.c.l.b16 %v11522
      %v11671 = vpack.c.b16 %v11655, %v11654
      %v11672 = vpack.c.b16 %v11657, %v11656
      %v11673 = vpack.c.b16 %v11659, %v11658
      %v11674 = vpack.c.b16 %v11661, %v11660
      %v11675 = vpack.c.b16 %v11663, %v11662
      %v11676 = vpack.c.b16 %v11665, %v11664
      %v11677 = vpack.c.b16 %v11667, %v11666
      %v11678 = vpack.c.b16 %v11669, %v11668
      %v11679 = vpack.c.b16 %v11670, %v11670
      %v11689 = vsel %vm857, %v11481, 0
      %v11692 = vsel %vm885, %v11679, 0
      %11694 = vmatprep.subr.bf16.mxu0 0
      %11695 = vmatpush1.bf16.msra.mxu0 %v11671
      %11696 = vmatprep.subr.bf16.mxu0 0
      %11697 = vmatpush1.bf16.msra.mxu0 %v11672
      %11698 = vmatprep.subr.bf16.mxu0 0
      %11699 = vmatpush1.bf16.msra.mxu0 %v11673
      %11700 = vmatprep.subr.bf16.mxu0 0
      %11701 = vmatpush1.bf16.msra.mxu0 %v11674
      %11702 = vmatprep.subr.bf16.mxu0 0
      %11703 = vmatpush1.bf16.msra.mxu0 %v11675
      %11704 = vmatprep.subr.bf16.mxu0 0
      %11705 = vmatpush1.bf16.msra.mxu0 %v11676
      %11706 = vmatprep.subr.bf16.mxu0 0
      %11707 = vmatpush1.bf16.msra.mxu0 %v11677
      %11708 = vmatprep.subr.bf16.mxu0 0
      %11709 = vmatpush1.bf16.msra.mxu0 %v11678
      %11710 = vmatprep.subr.bf16.mxu0 0
      %11711 = vmatpush1.bf16.msra.mxu0 %v11692
      %11712 = vmatprep.subr.bf16.mxu0 0
      %11713 = vmatpush1.bf16.msra.mxu0 0
      %11714 = vmatprep.subr.bf16.mxu0 0
      %11715 = vmatpush1.bf16.msra.mxu0 0
      %11716 = vmatprep.subr.bf16.mxu0 0
      %11717 = vmatpush1.bf16.msra.mxu0 0
      %11718 = vmatprep.subr.bf16.mxu0 0
      %11719 = vmatpush1.bf16.msra.mxu0 0
      %11720 = vmatprep.subr.bf16.mxu0 0
      %11721 = vmatpush1.bf16.msra.mxu0 0
      %11722 = vmatprep.subr.bf16.mxu0 0
      %11723 = vmatpush1.bf16.msra.mxu0 0
      %11724 = vmatprep.subr.bf16.mxu0 0
      %11725 = vmatpush1.bf16.msra.mxu0 0
      %11726 = vmatprep.mubr.bf16.mxu0 %v11689
      %11727 = vmatmul.mubr.bf16.gmra.mrb[0].mxu0 %v11480
      %v11728 = vpop.f32.mrb[0].mxu0
      %v11729 = vadd.f32 %v11632, %v11728
      %v11730 = vpop.f32.mrb[0].mxu0
      %v11731 = vpop.f32.mrb[0].mxu0
      %v11732 = vpop.f32.mrb[0].mxu0
      %11733 = vdwg.mxu0
      %v11734 = vld [vmem:[%s17] sm:$0x1]
      %v11736 = vlaneseq
      %v11737 = vshrl.u32 %v11736, 7
      %v11738 = vsub.s32 0, %v11737
      %v11739 = vrot.slane %v11734, %v11738
      %v11741 = vadd.f32 %v11729, %v11739
      %v11742 = vld [vmem:[%s18] sm:$0xff]
      %v11743 = vld [vmem:[%s18 + $0x8] sm:$0xff]
      %v11744 = vld [vmem:[%s18 + $0x10] sm:$0xff]
      %v11745 = vld [vmem:[%s18 + $0x18] sm:$0xff]
      %v11746 = vld [vmem:[%s18 + $0x20] sm:$0xff]
      %v11747 = vld [vmem:[%s18 + $0x28] sm:$0xff]
      %v11748 = vld [vmem:[%s18 + $0x30] sm:$0xff]
      %v11749 = vld [vmem:[%s18 + $0x38] sm:$0xff]
      %v11750 = vld [vmem:[%s18 + $0x40] sm:$0xff]
      %v11751 = vld [vmem:[%s18 + $0x48] sm:$0xff]
      %v11752 = vld [vmem:[%s18 + $0x50] sm:$0xff]
      %v11753 = vld [vmem:[%s18 + $0x58] sm:$0xff]
      %v11754 = vld [vmem:[%s18 + $0x60] sm:$0xff]
      %v11755 = vld [vmem:[%s18 + $0x68] sm:$0xff]
      %v11756 = vld [vmem:[%s18 + $0x70] sm:$0xff]
      %v11757 = vld [vmem:[%s18 + $0x78] sm:$0xff]
      %v11758 = vld [vmem:[%s18 + $0x80] sm:$0xff]
      %v11759 = vld [vmem:[%s19] sm:$0x3]
      %v11761 = vlaneseq
      %v11762 = vshrl.u32 %v11761, 7
      %v11763 = vsub.s32 0, %v11762
      %v11764 = vrot.slane %v11759, %v11763
      %v11765 = vlaneseq
      %v11766 = vshrl.u32 %v11765, 7
      %v11767 = vsub.s32 1, %v11766
      %v11768 = vrot.slane %v11759, %v11767
      %v11788 = vunpack.c.l.b16 %v11742
      %v11789 = vunpack.c.h.b16 %v11742
      %v11790 = vunpack.c.l.b16 %v11743
      %v11791 = vunpack.c.h.b16 %v11743
      %v11792 = vunpack.c.l.b16 %v11744
      %v11793 = vunpack.c.h.b16 %v11744
      %v11794 = vunpack.c.l.b16 %v11745
      %v11795 = vunpack.c.h.b16 %v11745
      %v11796 = vunpack.c.l.b16 %v11746
      %v11797 = vunpack.c.h.b16 %v11746
      %v11798 = vunpack.c.l.b16 %v11747
      %v11799 = vunpack.c.h.b16 %v11747
      %v11800 = vunpack.c.l.b16 %v11748
      %v11801 = vunpack.c.h.b16 %v11748
      %v11802 = vunpack.c.l.b16 %v11749
      %v11803 = vunpack.c.h.b16 %v11749
      %v11804 = vunpack.c.l.b16 %v11750
      %v11805 = vunpack.c.h.b16 %v11750
      %v11806 = vunpack.c.l.b16 %v11751
      %v11807 = vunpack.c.h.b16 %v11751
      %v11808 = vunpack.c.l.b16 %v11752
      %v11809 = vunpack.c.h.b16 %v11752
      %v11810 = vunpack.c.l.b16 %v11753
      %v11811 = vunpack.c.h.b16 %v11753
      %v11812 = vunpack.c.l.b16 %v11754
      %v11813 = vunpack.c.h.b16 %v11754
      %v11814 = vunpack.c.l.b16 %v11755
      %v11815 = vunpack.c.h.b16 %v11755
      %v11816 = vunpack.c.l.b16 %v11756
      %v11817 = vunpack.c.h.b16 %v11756
      %v11818 = vunpack.c.l.b16 %v11757
      %v11819 = vunpack.c.h.b16 %v11757
      %v11820 = vunpack.c.l.b16 %v11758
      %v11821 = vunpack.c.h.b16 %v11758
      %v11822 = vpack.c.b16 %v11790, %v11788
      %v11823 = vpack.c.b16 %v11791, %v11789
      %v11824 = vpack.c.b16 %v11794, %v11792
      %v11825 = vpack.c.b16 %v11795, %v11793
      %v11826 = vpack.c.b16 %v11798, %v11796
      %v11827 = vpack.c.b16 %v11799, %v11797
      %v11828 = vpack.c.b16 %v11802, %v11800
      %v11829 = vpack.c.b16 %v11803, %v11801
      %v11830 = vpack.c.b16 %v11806, %v11804
      %v11831 = vpack.c.b16 %v11807, %v11805
      %v11832 = vpack.c.b16 %v11810, %v11808
      %v11833 = vpack.c.b16 %v11811, %v11809
      %v11834 = vpack.c.b16 %v11814, %v11812
      %v11835 = vpack.c.b16 %v11815, %v11813
      %v11836 = vpack.c.b16 %v11818, %v11816
      %v11837 = vpack.c.b16 %v11819, %v11817
      %v11838 = vpack.c.b16 %v11820, %v11820
      %v11839 = vpack.c.b16 %v11821, %v11821
      %v11857 = vsel %vm857, %v11505, 0
      %v11860 = vsel %vm885, %v11838, 0
      %v11863 = vsel %vm885, %v11839, 0
      %11865 = vmatprep.subr.bf16.mxu0 %v11823
      %11866 = vmatpush1.bf16.msra.mxu0 %v11822
      %11867 = vmatprep.subr.bf16.mxu0 %v11825
      %11868 = vmatpush1.bf16.msra.mxu0 %v11824
      %11869 = vmatprep.subr.bf16.mxu0 %v11827
      %11870 = vmatpush1.bf16.msra.mxu0 %v11826
      %11871 = vmatprep.subr.bf16.mxu0 %v11829
      %11872 = vmatpush1.bf16.msra.mxu0 %v11828
      %11873 = vmatprep.subr.bf16.mxu0 %v11831
      %11874 = vmatpush1.bf16.msra.mxu0 %v11830
      %11875 = vmatprep.subr.bf16.mxu0 %v11833
      %11876 = vmatpush1.bf16.msra.mxu0 %v11832
      %11877 = vmatprep.subr.bf16.mxu0 %v11835
      %11878 = vmatpush1.bf16.msra.mxu0 %v11834
      %11879 = vmatprep.subr.bf16.mxu0 %v11837
      %11880 = vmatpush1.bf16.msra.mxu0 %v11836
      %11881 = vmatprep.subr.bf16.mxu0 %v11863
      %11882 = vmatpush1.bf16.msra.mxu0 %v11860
      %11883 = vmatprep.subr.bf16.mxu0 0
      %11884 = vmatpush1.bf16.msra.mxu0 0
      %11885 = vmatprep.subr.bf16.mxu0 0
      %11886 = vmatpush1.bf16.msra.mxu0 0
      %11887 = vmatprep.subr.bf16.mxu0 0
      %11888 = vmatpush1.bf16.msra.mxu0 0
      %11889 = vmatprep.subr.bf16.mxu0 0
      %11890 = vmatpush1.bf16.msra.mxu0 0
      %11891 = vmatprep.subr.bf16.mxu0 0
      %11892 = vmatpush1.bf16.msra.mxu0 0
      %11893 = vmatprep.subr.bf16.mxu0 0
      %11894 = vmatpush1.bf16.msra.mxu0 0
      %11895 = vmatprep.subr.bf16.mxu0 0
      %11896 = vmatpush1.bf16.msra.mxu0 0
      %11897 = vmatprep.mubr.bf16.mxu0 %v11857
      %11898 = vmatmul.mubr.bf16.gmra.mrb[0].mxu0 %v11504
      %v11899 = vpop.f32.mrb[0].mxu0
      %v11900 = vadd.f32 %v11764, %v11899
      %v11901 = vpop.f32.mrb[0].mxu0
      %v11902 = vadd.f32 %v11768, %v11901
      %v11903 = vpop.f32.mrb[0].mxu0
      %v11904 = vpop.f32.mrb[0].mxu0
      %11905 = vdwg.mxu0
      %v11906 = vmax.f32 %v11900, 0.0
      %v11907 = vmax.f32 %v11902, 0.0
      %v11908 = vld [vmem:[%s20] sm:$0x3]
      %v11910 = vlaneseq
      %v11911 = vshrl.u32 %v11910, 7
      %v11912 = vsub.s32 0, %v11911
      %v11913 = vrot.slane %v11908, %v11912
      %v11914 = vlaneseq
      %v11915 = vshrl.u32 %v11914, 7
      %v11916 = vsub.s32 1, %v11915
      %v11917 = vrot.slane %v11908, %v11916
      %v11920 = vmul.f32 %v11906, %v11913
      %v11921 = vmul.f32 %v11907, %v11917
      %v11922 = vadd.f32 %v11920, %v11921
      %11923 = vadd.xlane.f32.xlu0 %v11922
      %v11924 = vpop.xlane.xlu0 %11923
      %v11925 = vld [vmem:[#allocation3] sm:$0x1]
      %v11927 = vlaneseq
      %v11928 = vshrl.u32 %v11927, 7
      %v11929 = vsub.s32 0, %v11928
      %v11930 = vrot.slane %v11925, %v11929
      %v11932 = vadd.f32 %v11924, %v11930
      %v11933 = vtanh.pop %v11932
      %11934 = vst [vmem:[%s683] sm:$0xff] 0.0
      %vm11935 = vcmask 72704
      %11936 = vst.msk [vmem:[%s683] sm:$0xff] %vm11935, %v11741
      %11938 = vrot.lane.b32.xlu0 %v11933, 9
      %v11939 = vpop.permute.xlu0 %11938
      %vm11941 = vcmask 80968
      %11942 = vst.msk [vmem:[%s683] sm:$0xff] %vm11941, %v11939
      %p11943 = scmp.lt.s32.totalorder %s35, 1
      %s11944 = scalar_select %p11943, %s35, 1
      %s11945 = smul.addr %s11944, 8
      %s11946 = scalar_lea.vmem %s22, %s11945
      // Predicated region
      $region109: #{forward.1} parent=107 // pred_check
        %p11947 = pneg %p520
      $region110: #{forward.1} parent=107 // pred_check_branch
        %11949 = sbr.rel (%p11947) target = $region112
      $region111: #{forward.1} parent=107 // pred_region
        _
      $region112: #{forward.1} parent=107 // pred_fallthru
        _
    $region108: #{forward.1} parent=5 // pred_fallthru
      _
    %p11950 = scmp.le.s32.totalorder 2, %s30
    // Predicated region
    $region113: #{forward.1} parent=5 // pred_check
      %p11951 = pneg %p11950
    $region114: #{forward.1} parent=5 // pred_check_branch
      %11953 = sbr.rel (%p11951) target = $region116
    $region115: #{forward.1} parent=5 // pred_region
      %s11954 = ssub.s32 %s30, 2
      // Predicated region
      $region117: #{forward.1} parent=115 // pred_check
        %p11955 = pneg %p526
      $region118: #{forward.1} parent=115 // pred_check_branch
        %11957 = sbr.rel (%p11955) target = $region120
      $region119: #{forward.1} parent=115 // pred_region
        %p11958 = scmp.lt.s32.totalorder %s36, 1
        %s11959 = scalar_select %p11958, %s36, 1
        %s11960 = smul.addr %s11959, 8
        %s11961 = scalar_lea.vmem %s22, %s11960
      $region120: #{forward.1} parent=115 // pred_fallthru
        _
    $region116: #{forward.1} parent=5 // pred_fallthru
      _
  $region6: #{forward.1} parent=0 // loop_footer
    %s34 = sadd.s32 1, %s30
  $region7: #{forward.1} parent=0 // loop_footer_branch
    %29 = sbr.rel target = $region3
  $region8: #{forward.1} parent=0 // loop_exit
    _

</llo_original>
